<compile_context>
chip_gen: v5e
topology: v5e:2x2
jax: 0.10.0
libtpu: 0.0.40
codegen_flags: <defaults>
</compile_context>

<pallas_src>
import functools

import jax
import jax.numpy as jnp
from jax import lax
from jax.experimental import pallas as pl
from jax.experimental.pallas import tpu as pltpu


_VMEM_LIMIT = 16 * 1024 * 1024  # right-sized budget; peak working set ~8.5 MiB


def _fused_conv_kernel(*refs, has_bias, use_bn, use_act, eps, slope):
    """Single-shot GEMM (tk == K) for one (tm, Cout) output tile + fused epilogue."""
    if has_bias:
        p_ref, w_ref, b_ref, o_ref = refs
    else:
        p_ref, w_ref, o_ref = refs

    # bf16 x bf16 -> f32 accumulation on the MXU; no K sweep, no scratch.
    acc = jnp.dot(p_ref[...], w_ref[...], preferred_element_type=jnp.float32)

    if has_bias:
        acc = acc + b_ref[...]                               # (1, Cout) f32 bias
    if use_bn:
        # BatchNorm2d, training-mode batch statistics over the full M = N*Ho*Wo
        # axis (wrapper enforces tm == M for BN layers), biased variance,
        # gamma=1 / beta=0 (PyTorch affine defaults). Epilogue math in f32.
        mean = jnp.mean(acc, axis=0, keepdims=True)
        var = jnp.mean((acc - mean) ** 2, axis=0, keepdims=True)
        acc = (acc - mean) * lax.rsqrt(var + eps)
    if use_act:
        acc = jnp.where(acc >= 0, acc, slope * acc)          # LeakyReLU(0.2)
    o_ref[...] = acc.astype(o_ref.dtype)


def _pick_tile(dim, target, align):
    """Largest tile <= target that divides `dim` and is `align`-aligned, else full dim."""
    if dim <= target:
        return dim
    t = (target // align) * align
    while t >= align:
        if dim % t == 0:
            return t
        t -= align
    return dim


def fused_conv_gemm(patches, w, b, *, use_bn, use_act, eps=1e-5, slope=0.2,
                    tm_target=256, out_dtype=jnp.bfloat16):
    """patches: (M, K) bf16, w: (K, Cout) bf16, b: (1, Cout) f32 or None (BN layers)."""
    M, K = patches.shape
    Kw, N = w.shape
    assert K == Kw and N % 128 == 0
    has_bias = b is not None

    # BN reduces over all M rows -> whole output tile stays VMEM-resident.
    # TODO(synk): two-pass BN (partial sums then normalize) once M outgrows VMEM.
    tm = M if use_bn else _pick_tile(M, tm_target, 8)
    grid = (M // tm,)

    out_bytes = jnp.dtype(out_dtype).itemsize
    work = tm * K * 2 + K * N * 2 + (N * 4 if has_bias else 0) + tm * N * out_bytes
    assert 2 * work <= _VMEM_LIMIT, (
        f"working set {2 * work} B exceeds VMEM budget {_VMEM_LIMIT} B; "
        "switch BN layers to a two-pass scheme before scaling the input.")

    kernel = functools.partial(_fused_conv_kernel, has_bias=has_bias,
                               use_bn=use_bn, use_act=use_act, eps=eps, slope=slope)

    in_specs = [
        pl.BlockSpec((tm, K), lambda m: (m, 0)),   # patches (whole K, single shot)
        pl.BlockSpec((K, N), lambda m: (0, 0)),    # weights
    ]
    args = [patches, w]
    if has_bias:
        in_specs.append(pl.BlockSpec((1, N), lambda m: (0, 0)))
        args.append(b)

    cost = pl.CostEstimate(
        flops=2 * M * K * N,
        transcendentals=N if use_bn else 0,
        bytes_accessed=patches.size * 2 + w.size * 2
        + (b.size * 4 if has_bias else 0) + M * N * out_bytes,
    )

    return pl.pallas_call(
        kernel,
        out_shape=jax.ShapeDtypeStruct((M, N), out_dtype),
        grid_spec=pltpu.PrefetchScalarGridSpec(
            num_scalar_prefetch=0,
            grid=grid,                                        # 1-D grid over M tiles
            in_specs=in_specs,
            out_specs=pl.BlockSpec((tm, N), lambda m: (m, 0)),
        ),
        compiler_params=pltpu.CompilerParams(
            dimension_semantics=("parallel",),
            vmem_limit_bytes=_VMEM_LIMIT,
        ),
        cost_estimate=cost,
    )(*args)


def im2col_nhwc(x, kh, kw, stride, pad):
    # x: (N, H, W, C) channels-last (bf16). Returns (N*Ho*Wo, kh*kw*C) patches
    # with a reshape only (no transposes), plus (Ho, Wo). Column order (kh, kw, cin).
    xp = jnp.pad(x, ((0, 0), (pad, pad), (pad, pad), (0, 0)))
    n, hp, wp, c = xp.shape
    ho = (hp - kh) // stride + 1
    wo = (wp - kw) // stride + 1
    cols = []
    for i in range(kh):
        for j in range(kw):
            cols.append(xp[:, i:i + stride * ho:stride, j:j + stride * wo:stride, :])
    p = jnp.stack(cols, axis=3)               # (N, Ho, Wo, kh*kw, C)
    p = p.reshape(n * ho * wo, kh * kw * c)   # reshape only
    return p, ho, wo


def downsample_conv(x, wmat, b, cout, *, use_bn, use_act, kh=4, kw=4, stride=2, pad=1):
    # x: NHWC bf16, wmat: (kh*kw*Cin, Cout_pad) bf16, b: (1, Cout_pad) f32 or None.
    patches, ho, wo = im2col_nhwc(x, kh, kw, stride, pad)
    out = fused_conv_gemm(patches, wmat, b, use_bn=use_bn, use_act=use_act)
    if out.shape[1] != cout:                  # drop the lane-padding columns
        out = out[:, :cout]
    n = x.shape[0]
    return out.reshape(n, ho, wo, cout)       # NHWC, no transpose


def init_params(key, input_channels):
    # Deterministic synthetic parameter init (shapes match nn.Conv2d defaults).
    chans = [(input_channels, 64), (64, 128), (128, 256), (256, 512)]
    params = []
    for cin, cout in chans:
        key, kw_, kb_ = jax.random.split(key, 3)
        w = jax.random.normal(kw_, (cout, cin, 4, 4), jnp.float32) * 0.05
        b = jax.random.normal(kb_, (cout,), jnp.float32) * 0.05
        params.append((w, b))
    key, kw_, kb_ = jax.random.split(key, 3)
    wf = jax.random.normal(kw_, (1, 512, 1, 1), jnp.float32) * 0.05
    bf = jax.random.normal(kb_, (1,), jnp.float32) * 0.05
    params.append((wf, bf))
    return params


def prepare_params(params):
    """One-time weight prep (outside the jitted forward):
    PyTorch (Cout,Cin,kh,kw) -> (kh*kw*Cin, Cout_pad) bf16 GEMM weights,
    Cout zero-padded to a multiple of 128 (lane-dense stores), bias -> (1,Cout_pad)
    f32. Bias is dropped for BN layers (cancelled exactly by the mean subtraction)."""
    use_bn_flags = (False, True, True, True)
    prepped = []
    for (w, b), use_bn in zip(params[:4], use_bn_flags):
        cout, cin, kh, kw = w.shape
        wmat = w.transpose(2, 3, 1, 0).reshape(kh * kw * cin, cout)
        cpad = (-cout) % 128
        if cpad:
            wmat = jnp.pad(wmat, ((0, 0), (0, cpad)))
        wmat = wmat.astype(jnp.bfloat16)
        if use_bn:
            bias = None
        else:
            bvec = jnp.pad(b, (0, cpad)) if cpad else b
            bias = bvec.reshape(1, -1).astype(jnp.float32)
        prepped.append((wmat, bias))
    wf, bf = params[4]
    wf_mat = wf.reshape(wf.shape[0], wf.shape[1]).T.astype(jnp.bfloat16)  # (512, 1)
    prepped.append((wf_mat, bf.astype(jnp.float32)))
    return prepped


def patchgan_forward(prepped, x, y):
    # x, y: NCHW (PyTorch convention). Convert to NHWC + bf16 once and stay
    # there so every layer's GEMM layout is reshape-only and HBM traffic is halved.
    h = jnp.concatenate([x, y], axis=1)               # torch.cat([x, y], axis=1)
    h = h.transpose(0, 2, 3, 1).astype(jnp.bfloat16)  # NCHW -> NHWC, bf16 (once)
    (w1, b1), (w2, b2), (w3, b3), (w4, b4), (wf, bf) = prepped
    h = downsample_conv(h, w1, b1, 64, use_bn=False, use_act=True)   # d1 (no BN)
    h = downsample_conv(h, w2, b2, 128, use_bn=True, use_act=True)   # d2
    h = downsample_conv(h, w3, b3, 256, use_bn=True, use_act=True)   # d3
    h = downsample_conv(h, w4, b4, 512, use_bn=True, use_act=True)   # d4
    # Final 1x1 conv, Cout=1: (M,512)x(512,1) would use 1/256 of the MXU lanes
    # and force masked lane-1 stores, so it runs as plain XLA.
    n, ho, wo, c = h.shape
    out = jnp.dot(h.reshape(n * ho * wo, c), wf,
                  preferred_element_type=jnp.float32) + bf.reshape(1, 1)
    out = out.reshape(n, ho, wo, 1).transpose(0, 3, 1, 2)            # back to NCHW
    return out


if __name__ == "__main__":
    key = jax.random.PRNGKey(0)
    kx, ky, kp = jax.random.split(key, 3)
    # x, y each (N=2, C=4, H=16, W=16) -> concat gives input_channels = 8
    x = jax.random.normal(kx, (2, 4, 16, 16), jnp.float32)
    y = jax.random.normal(ky, (2, 4, 16, 16), jnp.float32)
    params = init_params(kp, 8)
    prepped = prepare_params(params)          # one-time weight prep, outside jit

    fwd = jax.jit(patchgan_forward)
    out = fwd(prepped, x, y)
    out = jax.block_until_ready(out)
    assert out.shape == (2, 1, 1, 1), out.shape       # 16 -> 8 -> 4 -> 2 -> 1, 1x1 head
    assert jnp.all(jnp.isfinite(out))
    print("KERNEL_OK")
</pallas_src>

<mosaic_0001>
module attributes {stable_mosaic.version = 11 : i64} {
  func.func @_fused_conv_kernel(%arg0: i32, %arg1: memref<128x128xbf16, #tpu.memory_space<vmem>>, %arg2: memref<128x128xbf16, #tpu.memory_space<vmem>>, %arg3: memref<1x128xf32, #tpu.memory_space<vmem>>, %arg4: memref<128x128xbf16, #tpu.memory_space<vmem>>) attributes {dimension_semantics = [#tpu.dimension_semantics<parallel>], iteration_bounds = array<i64: 1>, scalar_prefetch = 0 : i64, scratch_operands = 0 : i64, tpu.core_type = #tpu.core_type<tc>, window_params = [{transform_indices = @transform_0, window_bounds = array<i64: 128, 128>}, {pipeline_mode = #tpu.pipeline_mode<synchronous>, transform_indices = @transform_1, window_bounds = array<i64: 128, 128>}, {pipeline_mode = #tpu.pipeline_mode<synchronous>, transform_indices = @transform_2, window_bounds = array<i64: 1, 128>}, {transform_indices = @transform_3, window_bounds = array<i64: 128, 128>}]} {
    %c0 = arith.constant 0 : index
    %c0_0 = arith.constant 0 : index
    %0 = vector.load %arg1[%c0, %c0_0] : memref<128x128xbf16, #tpu.memory_space<vmem>>, vector<128x128xbf16>
    %c0_1 = arith.constant 0 : index
    %c0_2 = arith.constant 0 : index
    %1 = vector.load %arg2[%c0_1, %c0_2] : memref<128x128xbf16, #tpu.memory_space<vmem>>, vector<128x128xbf16>
    %cst = arith.constant dense<0.000000e+00> : vector<128x128xf32>
    %2 = tpu.matmul %0, %1, %cst {dimension_numbers = #tpu.dot_dimension_numbers<[1], [0], [0], [1], [0, 0, 1, 1], [], []>} : vector<128x128xbf16>, vector<128x128xbf16>, vector<128x128xf32> -> vector<128x128xf32>
    %c0_3 = arith.constant 0 : index
    %c0_4 = arith.constant 0 : index
    %3 = vector.load %arg3[%c0_3, %c0_4] : memref<1x128xf32, #tpu.memory_space<vmem>>, vector<1x128xf32>
    %4 = vector.broadcast %3 : vector<1x128xf32> to vector<128x128xf32>
    %5 = arith.addf %2, %4 : vector<128x128xf32>
    %cst_5 = arith.constant 0.000000e+00 : f32
    %6 = vector.broadcast %cst_5 : f32 to vector<128x128xf32>
    %7 = arith.cmpf oge, %5, %6 : vector<128x128xf32>
    %cst_6 = arith.constant 2.000000e-01 : f32
    %8 = vector.broadcast %cst_6 : f32 to vector<128x128xf32>
    %9 = arith.mulf %8, %5 : vector<128x128xf32>
    %10 = arith.select %7, %5, %9 : vector<128x128xi1>, vector<128x128xf32>
    %11 = arith.truncf %10 : vector<128x128xf32> to vector<128x128xbf16>
    %c0_7 = arith.constant 0 : index
    %c0_8 = arith.constant 0 : index
    %12 = vector.load %arg4[%c0_7, %c0_8] : memref<128x128xbf16, #tpu.memory_space<vmem>>, vector<128x128xbf16>
    tpu.vector_store %arg4[%c0_7, %c0_8], %11 {strides = array<i32>} : memref<128x128xbf16, #tpu.memory_space<vmem>>, vector<128x128xbf16>,
    return
  }
  func.func @transform_0(%arg0: i32) -> (i32, i32) {
    %c0_i32 = arith.constant 0 : i32
    %c0_i32_0 = arith.constant 0 : i32
    return %arg0, %c0_i32 : i32, i32
  }
  func.func @transform_1(%arg0: i32) -> (i32, i32) {
    %c0_i32 = arith.constant 0 : i32
    %c0_i32_0 = arith.constant 0 : i32
    %c0_i32_1 = arith.constant 0 : i32
    return %c0_i32, %c0_i32_0 : i32, i32
  }
  func.func @transform_2(%arg0: i32) -> (i32, i32) {
    %c0_i32 = arith.constant 0 : i32
    %c0_i32_0 = arith.constant 0 : i32
    %c0_i32_1 = arith.constant 0 : i32
    return %c0_i32, %c0_i32_0 : i32, i32
  }
  func.func @transform_3(%arg0: i32) -> (i32, i32) {
    %c0_i32 = arith.constant 0 : i32
    %c0_i32_0 = arith.constant 0 : i32
    return %arg0, %c0_i32 : i32, i32
  }
}

module attributes {stable_mosaic.version = 11 : i64} {
  func.func @_fused_conv_kernel(%arg0: i32, %arg1: memref<32x1024xbf16, #tpu.memory_space<vmem>>, %arg2: memref<1024x128xbf16, #tpu.memory_space<vmem>>, %arg3: memref<32x128xbf16, #tpu.memory_space<vmem>>) attributes {dimension_semantics = [#tpu.dimension_semantics<parallel>], iteration_bounds = array<i64: 1>, scalar_prefetch = 0 : i64, scratch_operands = 0 : i64, tpu.core_type = #tpu.core_type<tc>, window_params = [{transform_indices = @transform_0, window_bounds = array<i64: 32, 1024>}, {pipeline_mode = #tpu.pipeline_mode<synchronous>, transform_indices = @transform_1, window_bounds = array<i64: 1024, 128>}, {transform_indices = @transform_2, window_bounds = array<i64: 32, 128>}]} {
    %c0 = arith.constant 0 : index
    %c0_0 = arith.constant 0 : index
    %0 = vector.load %arg1[%c0, %c0_0] : memref<32x1024xbf16, #tpu.memory_space<vmem>>, vector<32x1024xbf16>
    %c0_1 = arith.constant 0 : index
    %c0_2 = arith.constant 0 : index
    %1 = vector.load %arg2[%c0_1, %c0_2] : memref<1024x128xbf16, #tpu.memory_space<vmem>>, vector<1024x128xbf16>
    %cst = arith.constant dense<0.000000e+00> : vector<32x128xf32>
    %2 = tpu.matmul %0, %1, %cst {dimension_numbers = #tpu.dot_dimension_numbers<[1], [0], [0], [1], [0, 0, 1, 1], [], []>} : vector<32x1024xbf16>, vector<1024x128xbf16>, vector<32x128xf32> -> vector<32x128xf32>
    %cst_3 = arith.constant dense<0.000000e+00> : vector<128xf32>
    %3 = vector.multi_reduction <add>, %2, %cst_3 [0] : vector<32x128xf32> to vector<128xf32>
    %4 = vector.shape_cast %3 : vector<128xf32> to vector<1x128xf32>
    %cst_4 = arith.constant 3.200000e+01 : f32
    %5 = vector.broadcast %cst_4 : f32 to vector<1x128xf32>
    %6 = arith.divf %4, %5 : vector<1x128xf32>
    %7 = vector.broadcast %6 : vector<1x128xf32> to vector<32x128xf32>
    %8 = arith.subf %2, %7 : vector<32x128xf32>
    %9 = arith.mulf %8, %8 : vector<32x128xf32>
    %cst_5 = arith.constant dense<0.000000e+00> : vector<128xf32>
    %10 = vector.multi_reduction <add>, %9, %cst_5 [0] : vector<32x128xf32> to vector<128xf32>
    %11 = vector.shape_cast %10 : vector<128xf32> to vector<1x128xf32>
    %cst_6 = arith.constant 3.200000e+01 : f32
    %12 = vector.broadcast %cst_6 : f32 to vector<1x128xf32>
    %13 = arith.divf %11, %12 : vector<1x128xf32>
    %14 = vector.broadcast %6 : vector<1x128xf32> to vector<32x128xf32>
    %15 = arith.subf %2, %14 : vector<32x128xf32>
    %cst_7 = arith.constant 9.99999974E-6 : f32
    %16 = vector.broadcast %cst_7 : f32 to vector<1x128xf32>
    %17 = arith.addf %13, %16 : vector<1x128xf32>
    %18 = math.rsqrt %17 : vector<1x128xf32>
    %19 = vector.broadcast %18 : vector<1x128xf32> to vector<32x128xf32>
    %20 = arith.mulf %15, %19 : vector<32x128xf32>
    %cst_8 = arith.constant 0.000000e+00 : f32
    %21 = vector.broadcast %cst_8 : f32 to vector<32x128xf32>
    %22 = arith.cmpf oge, %20, %21 : vector<32x128xf32>
    %cst_9 = arith.constant 2.000000e-01 : f32
    %23 = vector.broadcast %cst_9 : f32 to vector<32x128xf32>
    %24 = arith.mulf %23, %20 : vector<32x128xf32>
    %25 = arith.select %22, %20, %24 : vector<32x128xi1>, vector<32x128xf32>
    %26 = arith.truncf %25 : vector<32x128xf32> to vector<32x128xbf16>
    %c0_10 = arith.constant 0 : index
    %c0_11 = arith.constant 0 : index
    %27 = vector.load %arg3[%c0_10, %c0_11] : memref<32x128xbf16, #tpu.memory_space<vmem>>, vector<32x128xbf16>
    tpu.vector_store %arg3[%c0_10, %c0_11], %26 {strides = array<i32>} : memref<32x128xbf16, #tpu.memory_space<vmem>>, vector<32x128xbf16>,
    return
  }
  func.func @transform_0(%arg0: i32) -> (i32, i32) {
    %c0_i32 = arith.constant 0 : i32
    %c0_i32_0 = arith.constant 0 : i32
    return %arg0, %c0_i32 : i32, i32
  }
  func.func @transform_1(%arg0: i32) -> (i32, i32) {
    %c0_i32 = arith.constant 0 : i32
    %c0_i32_0 = arith.constant 0 : i32
    %c0_i32_1 = arith.constant 0 : i32
    return %c0_i32, %c0_i32_0 : i32, i32
  }
  func.func @transform_2(%arg0: i32) -> (i32, i32) {
    %c0_i32 = arith.constant 0 : i32
    %c0_i32_0 = arith.constant 0 : i32
    return %arg0, %c0_i32 : i32, i32
  }
}

module attributes {stable_mosaic.version = 11 : i64} {
  func.func @_fused_conv_kernel(%arg0: i32, %arg1: memref<8x2048xbf16, #tpu.memory_space<vmem>>, %arg2: memref<2048x256xbf16, #tpu.memory_space<vmem>>, %arg3: memref<8x256xbf16, #tpu.memory_space<vmem>>) attributes {dimension_semantics = [#tpu.dimension_semantics<parallel>], iteration_bounds = array<i64: 1>, scalar_prefetch = 0 : i64, scratch_operands = 0 : i64, tpu.core_type = #tpu.core_type<tc>, window_params = [{transform_indices = @transform_0, window_bounds = array<i64: 8, 2048>}, {pipeline_mode = #tpu.pipeline_mode<synchronous>, transform_indices = @transform_1, window_bounds = array<i64: 2048, 256>}, {transform_indices = @transform_2, window_bounds = array<i64: 8, 256>}]} {
    %c0 = arith.constant 0 : index
    %c0_0 = arith.constant 0 : index
    %0 = vector.load %arg1[%c0, %c0_0] : memref<8x2048xbf16, #tpu.memory_space<vmem>>, vector<8x2048xbf16>
    %c0_1 = arith.constant 0 : index
    %c0_2 = arith.constant 0 : index
    %1 = vector.load %arg2[%c0_1, %c0_2] : memref<2048x256xbf16, #tpu.memory_space<vmem>>, vector<2048x256xbf16>
    %cst = arith.constant dense<0.000000e+00> : vector<8x256xf32>
    %2 = tpu.matmul %0, %1, %cst {dimension_numbers = #tpu.dot_dimension_numbers<[1], [0], [0], [1], [0, 0, 1, 1], [], []>} : vector<8x2048xbf16>, vector<2048x256xbf16>, vector<8x256xf32> -> vector<8x256xf32>
    %cst_3 = arith.constant dense<0.000000e+00> : vector<256xf32>
    %3 = vector.multi_reduction <add>, %2, %cst_3 [0] : vector<8x256xf32> to vector<256xf32>
    %4 = vector.shape_cast %3 : vector<256xf32> to vector<1x256xf32>
    %cst_4 = arith.constant 8.000000e+00 : f32
    %5 = vector.broadcast %cst_4 : f32 to vector<1x256xf32>
    %6 = arith.divf %4, %5 : vector<1x256xf32>
    %7 = vector.broadcast %6 : vector<1x256xf32> to vector<8x256xf32>
    %8 = arith.subf %2, %7 : vector<8x256xf32>
    %9 = arith.mulf %8, %8 : vector<8x256xf32>
    %cst_5 = arith.constant dense<0.000000e+00> : vector<256xf32>
    %10 = vector.multi_reduction <add>, %9, %cst_5 [0] : vector<8x256xf32> to vector<256xf32>
    %11 = vector.shape_cast %10 : vector<256xf32> to vector<1x256xf32>
    %cst_6 = arith.constant 8.000000e+00 : f32
    %12 = vector.broadcast %cst_6 : f32 to vector<1x256xf32>
    %13 = arith.divf %11, %12 : vector<1x256xf32>
    %14 = vector.broadcast %6 : vector<1x256xf32> to vector<8x256xf32>
    %15 = arith.subf %2, %14 : vector<8x256xf32>
    %cst_7 = arith.constant 9.99999974E-6 : f32
    %16 = vector.broadcast %cst_7 : f32 to vector<1x256xf32>
    %17 = arith.addf %13, %16 : vector<1x256xf32>
    %18 = math.rsqrt %17 : vector<1x256xf32>
    %19 = vector.broadcast %18 : vector<1x256xf32> to vector<8x256xf32>
    %20 = arith.mulf %15, %19 : vector<8x256xf32>
    %cst_8 = arith.constant 0.000000e+00 : f32
    %21 = vector.broadcast %cst_8 : f32 to vector<8x256xf32>
    %22 = arith.cmpf oge, %20, %21 : vector<8x256xf32>
    %cst_9 = arith.constant 2.000000e-01 : f32
    %23 = vector.broadcast %cst_9 : f32 to vector<8x256xf32>
    %24 = arith.mulf %23, %20 : vector<8x256xf32>
    %25 = arith.select %22, %20, %24 : vector<8x256xi1>, vector<8x256xf32>
    %26 = arith.truncf %25 : vector<8x256xf32> to vector<8x256xbf16>
    %c0_10 = arith.constant 0 : index
    %c0_11 = arith.constant 0 : index
    %27 = vector.load %arg3[%c0_10, %c0_11] : memref<8x256xbf16, #tpu.memory_space<vmem>>, vector<8x256xbf16>
    tpu.vector_store %arg3[%c0_10, %c0_11], %26 {strides = array<i32>} : memref<8x256xbf16, #tpu.memory_space<vmem>>, vector<8x256xbf16>,
    return
  }
  func.func @transform_0(%arg0: i32) -> (i32, i32) {
    %c0_i32 = arith.constant 0 : i32
    %c0_i32_0 = arith.constant 0 : i32
    return %arg0, %c0_i32 : i32, i32
  }
  func.func @transform_1(%arg0: i32) -> (i32, i32) {
    %c0_i32 = arith.constant 0 : i32
    %c0_i32_0 = arith.constant 0 : i32
    %c0_i32_1 = arith.constant 0 : i32
    return %c0_i32, %c0_i32_0 : i32, i32
  }
  func.func @transform_2(%arg0: i32) -> (i32, i32) {
    %c0_i32 = arith.constant 0 : i32
    %c0_i32_0 = arith.constant 0 : i32
    return %arg0, %c0_i32 : i32, i32
  }
}

module attributes {stable_mosaic.version = 11 : i64} {
  func.func @_fused_conv_kernel(%arg0: i32, %arg1: memref<2x4096xbf16, #tpu.memory_space<vmem>>, %arg2: memref<4096x512xbf16, #tpu.memory_space<vmem>>, %arg3: memref<2x512xbf16, #tpu.memory_space<vmem>>) attributes {dimension_semantics = [#tpu.dimension_semantics<parallel>], iteration_bounds = array<i64: 1>, scalar_prefetch = 0 : i64, scratch_operands = 0 : i64, tpu.core_type = #tpu.core_type<tc>, window_params = [{transform_indices = @transform_0, window_bounds = array<i64: 2, 4096>}, {pipeline_mode = #tpu.pipeline_mode<synchronous>, transform_indices = @transform_1, window_bounds = array<i64: 4096, 512>}, {transform_indices = @transform_2, window_bounds = array<i64: 2, 512>}]} {
    %c0 = arith.constant 0 : index
    %c0_0 = arith.constant 0 : index
    %0 = vector.load %arg1[%c0, %c0_0] : memref<2x4096xbf16, #tpu.memory_space<vmem>>, vector<2x4096xbf16>
    %c0_1 = arith.constant 0 : index
    %c0_2 = arith.constant 0 : index
    %1 = vector.load %arg2[%c0_1, %c0_2] : memref<4096x512xbf16, #tpu.memory_space<vmem>>, vector<4096x512xbf16>
    %cst = arith.constant dense<0.000000e+00> : vector<2x512xf32>
    %2 = tpu.matmul %0, %1, %cst {dimension_numbers = #tpu.dot_dimension_numbers<[1], [0], [0], [1], [0, 0, 1, 1], [], []>} : vector<2x4096xbf16>, vector<4096x512xbf16>, vector<2x512xf32> -> vector<2x512xf32>
    %cst_3 = arith.constant dense<0.000000e+00> : vector<512xf32>
    %3 = vector.multi_reduction <add>, %2, %cst_3 [0] : vector<2x512xf32> to vector<512xf32>
    %4 = vector.shape_cast %3 : vector<512xf32> to vector<1x512xf32>
    %cst_4 = arith.constant 2.000000e+00 : f32
    %5 = vector.broadcast %cst_4 : f32 to vector<1x512xf32>
    %6 = arith.divf %4, %5 : vector<1x512xf32>
    %7 = vector.broadcast %6 : vector<1x512xf32> to vector<2x512xf32>
    %8 = arith.subf %2, %7 : vector<2x512xf32>
    %9 = arith.mulf %8, %8 : vector<2x512xf32>
    %cst_5 = arith.constant dense<0.000000e+00> : vector<512xf32>
    %10 = vector.multi_reduction <add>, %9, %cst_5 [0] : vector<2x512xf32> to vector<512xf32>
    %11 = vector.shape_cast %10 : vector<512xf32> to vector<1x512xf32>
    %cst_6 = arith.constant 2.000000e+00 : f32
    %12 = vector.broadcast %cst_6 : f32 to vector<1x512xf32>
    %13 = arith.divf %11, %12 : vector<1x512xf32>
    %14 = vector.broadcast %6 : vector<1x512xf32> to vector<2x512xf32>
    %15 = arith.subf %2, %14 : vector<2x512xf32>
    %cst_7 = arith.constant 9.99999974E-6 : f32
    %16 = vector.broadcast %cst_7 : f32 to vector<1x512xf32>
    %17 = arith.addf %13, %16 : vector<1x512xf32>
    %18 = math.rsqrt %17 : vector<1x512xf32>
    %19 = vector.broadcast %18 : vector<1x512xf32> to vector<2x512xf32>
    %20 = arith.mulf %15, %19 : vector<2x512xf32>
    %cst_8 = arith.constant 0.000000e+00 : f32
    %21 = vector.broadcast %cst_8 : f32 to vector<2x512xf32>
    %22 = arith.cmpf oge, %20, %21 : vector<2x512xf32>
    %cst_9 = arith.constant 2.000000e-01 : f32
    %23 = vector.broadcast %cst_9 : f32 to vector<2x512xf32>
    %24 = arith.mulf %23, %20 : vector<2x512xf32>
    %25 = arith.select %22, %20, %24 : vector<2x512xi1>, vector<2x512xf32>
    %26 = arith.truncf %25 : vector<2x512xf32> to vector<2x512xbf16>
    %c0_10 = arith.constant 0 : index
    %c0_11 = arith.constant 0 : index
    %27 = vector.load %arg3[%c0_10, %c0_11] : memref<2x512xbf16, #tpu.memory_space<vmem>>, vector<2x512xbf16>
    tpu.vector_store %arg3[%c0_10, %c0_11], %26 {strides = array<i32>} : memref<2x512xbf16, #tpu.memory_space<vmem>>, vector<2x512xbf16>,
    return
  }
  func.func @transform_0(%arg0: i32) -> (i32, i32) {
    %c0_i32 = arith.constant 0 : i32
    %c0_i32_0 = arith.constant 0 : i32
    return %arg0, %c0_i32 : i32, i32
  }
  func.func @transform_1(%arg0: i32) -> (i32, i32) {
    %c0_i32 = arith.constant 0 : i32
    %c0_i32_0 = arith.constant 0 : i32
    %c0_i32_1 = arith.constant 0 : i32
    return %c0_i32, %c0_i32_0 : i32, i32
  }
  func.func @transform_2(%arg0: i32) -> (i32, i32) {
    %c0_i32 = arith.constant 0 : i32
    %c0_i32_0 = arith.constant 0 : i32
    return %arg0, %c0_i32 : i32, i32
  }
}

</mosaic_0001>

<llo_original>
// kernel: patchgan_forward.4
$region0: #{patchgan_forward.4}
  #allocation0 [shape = 'u32[]', space=smem, size = 0x4, offset = 0x4, fixed_abs, tag = 'smem constant byte address 0x4 - core index']
  #allocation1 [shape = 'u32[72,128]{1,0:T(1,128)}', space=vmem, size = 0x9000, scoped, tag = 'internal scratch']
  %s0 = inlined_call_operand.vmem [shape: bf16[128,128], index: 0, kind: input, shape index: {}]
  %s1 = inlined_call_operand.vmem [shape: bf16[128,128], index: 1, kind: input, shape index: {}]
  %s2 = inlined_call_operand.vmem [shape: f32[1,128], index: 2, kind: input, shape index: {}]
  %s3 = inlined_call_operand.vmem [shape: bf16[128,128], index: 3, kind: output, shape index: {}]
  %s4 = sld [smem:[#allocation0]]
  $region22: #{patchgan_forward.4} parent=0
    _
  %s6 = ssub.s32 1, %s4
  %s7 = scalar_select 0, %s6, %s4
  // Predicated region
  $region2: #{patchgan_forward.4} parent=0 // pred_check
    _
  $region3: #{patchgan_forward.4} parent=0 // pred_check_branch
    %9 = sbr.rel (0) target = $region5
  $region4: #{patchgan_forward.4} parent=0 // pred_region
    _
  $region5: #{patchgan_forward.4} parent=0 // pred_fallthru
    _
  // Predicated region
  $region6: #{patchgan_forward.4} parent=0 // pred_check
    _
  $region7: #{patchgan_forward.4} parent=0 // pred_check_branch
    %11 = sbr.rel (0) target = $region9
  $region8: #{patchgan_forward.4} parent=0 // pred_region
    _
  $region9: #{patchgan_forward.4} parent=0 // pred_fallthru
    _
  // Predicated region
  $region10: #{patchgan_forward.4} parent=0 // pred_check
    _
  $region11: #{patchgan_forward.4} parent=0 // pred_check_branch
    %13 = sbr.rel (0) target = $region13
  $region12: #{patchgan_forward.4} parent=0 // pred_region
    _
  $region13: #{patchgan_forward.4} parent=0 // pred_fallthru
    _
  %v14 = vld [vmem:[%s0] sm:$0xf]
  %v15 = vld [vmem:[%s0 + $0x4] sm:$0xf]
  %v16 = vld [vmem:[%s0 + $0x8] sm:$0xf]
  %v17 = vld [vmem:[%s0 + $0xc] sm:$0xf]
  %v18 = vld [vmem:[%s0 + $0x10] sm:$0xf]
  %v19 = vld [vmem:[%s0 + $0x14] sm:$0xf]
  %v20 = vld [vmem:[%s0 + $0x18] sm:$0xf]
  %v21 = vld [vmem:[%s0 + $0x1c] sm:$0xf]
  %v22 = vld [vmem:[%s0 + $0x20] sm:$0xf]
  %v23 = vld [vmem:[%s0 + $0x24] sm:$0xf]
  %v24 = vld [vmem:[%s0 + $0x28] sm:$0xf]
  %v25 = vld [vmem:[%s0 + $0x2c] sm:$0xf]
  %v26 = vld [vmem:[%s0 + $0x30] sm:$0xf]
  %v27 = vld [vmem:[%s0 + $0x34] sm:$0xf]
  %v28 = vld [vmem:[%s0 + $0x38] sm:$0xf]
  %v29 = vld [vmem:[%s0 + $0x3c] sm:$0xf]
  %v30 = vld [vmem:[%s1] sm:$0xf]
  %v31 = vld [vmem:[%s1 + $0x4] sm:$0xf]
  %v32 = vld [vmem:[%s1 + $0x8] sm:$0xf]
  %v33 = vld [vmem:[%s1 + $0xc] sm:$0xf]
  %v34 = vld [vmem:[%s1 + $0x10] sm:$0xf]
  %v35 = vld [vmem:[%s1 + $0x14] sm:$0xf]
  %v36 = vld [vmem:[%s1 + $0x18] sm:$0xf]
  %v37 = vld [vmem:[%s1 + $0x1c] sm:$0xf]
  %v38 = vld [vmem:[%s1 + $0x20] sm:$0xf]
  %v39 = vld [vmem:[%s1 + $0x24] sm:$0xf]
  %v40 = vld [vmem:[%s1 + $0x28] sm:$0xf]
  %v41 = vld [vmem:[%s1 + $0x2c] sm:$0xf]
  %v42 = vld [vmem:[%s1 + $0x30] sm:$0xf]
  %v43 = vld [vmem:[%s1 + $0x34] sm:$0xf]
  %v44 = vld [vmem:[%s1 + $0x38] sm:$0xf]
  %v45 = vld [vmem:[%s1 + $0x3c] sm:$0xf]
  %v46 = vld [vmem:[%s2] sm:$0x1]
  %v48 = vperm.slane %v46, 0
  %v66 = vunpack.c.l.b16 %v14
  %v67 = vunpack.c.l.b16 %v15
  %v68 = vunpack.c.l.b16 %v16
  %v69 = vunpack.c.l.b16 %v17
  %v70 = vunpack.c.l.b16 %v18
  %v71 = vunpack.c.l.b16 %v19
  %v72 = vunpack.c.l.b16 %v20
  %v73 = vunpack.c.l.b16 %v21
  %v74 = vunpack.c.l.b16 %v22
  %v75 = vunpack.c.l.b16 %v23
  %v76 = vunpack.c.l.b16 %v24
  %v77 = vunpack.c.l.b16 %v25
  %v78 = vunpack.c.l.b16 %v26
  %v79 = vunpack.c.l.b16 %v27
  %v80 = vunpack.c.l.b16 %v28
  %v81 = vunpack.c.l.b16 %v29
  %v82 = vpack.c.b16 %v67, %v66
  %v83 = vpack.c.b16 %v69, %v68
  %v84 = vpack.c.b16 %v71, %v70
  %v85 = vpack.c.b16 %v73, %v72
  %v86 = vpack.c.b16 %v75, %v74
  %v87 = vpack.c.b16 %v77, %v76
  %v88 = vpack.c.b16 %v79, %v78
  %v89 = vpack.c.b16 %v81, %v80
  %v114 = vunpack.c.l.b16 %v30
  %v115 = vunpack.c.l.b16 %v31
  %v116 = vunpack.c.l.b16 %v32
  %v117 = vunpack.c.l.b16 %v33
  %v118 = vunpack.c.l.b16 %v34
  %v119 = vunpack.c.l.b16 %v35
  %v120 = vunpack.c.l.b16 %v36
  %v121 = vunpack.c.l.b16 %v37
  %v122 = vunpack.c.l.b16 %v38
  %v123 = vunpack.c.l.b16 %v39
  %v124 = vunpack.c.l.b16 %v40
  %v125 = vunpack.c.l.b16 %v41
  %v126 = vunpack.c.l.b16 %v42
  %v127 = vunpack.c.l.b16 %v43
  %v128 = vunpack.c.l.b16 %v44
  %v129 = vunpack.c.l.b16 %v45
  %v130 = vpack.c.b16 %v115, %v114
  %v131 = vpack.c.b16 %v117, %v116
  %v132 = vpack.c.b16 %v119, %v118
  %v133 = vpack.c.b16 %v121, %v120
  %v134 = vpack.c.b16 %v123, %v122
  %v135 = vpack.c.b16 %v125, %v124
  %v136 = vpack.c.b16 %v127, %v126
  %v137 = vpack.c.b16 %v129, %v128
  %146 = vmatpush.bf16.msra.mxu0 %v137
  %147 = vmatpush.bf16.msra.mxu0 %v136
  %148 = vmatpush.bf16.msra.mxu0 %v135
  %149 = vmatpush.bf16.msra.mxu0 %v134
  %150 = vmatpush.bf16.msra.mxu0 %v133
  %151 = vmatpush.bf16.msra.mxu0 %v132
  %152 = vmatpush.bf16.msra.mxu0 %v131
  %153 = vmatpush.bf16.msra.mxu0 %v130
  %154 = vmatmul.bf16.gmra.mxu0 %v82
  %v155 = vpop.f32.mrf.mxu0
  %v156 = vadd.f32 %v48, %v155
  %v157 = vpop.f32.mrf.mxu0
  %v158 = vadd.f32 %v48, %v157
  %159 = vmatmul.bf16.gmra.mxu0 %v83
  %v160 = vpop.f32.mrf.mxu0
  %v161 = vadd.f32 %v48, %v160
  %v162 = vpop.f32.mrf.mxu0
  %v163 = vadd.f32 %v48, %v162
  %164 = vmatmul.bf16.gmra.mxu0 %v84
  %v165 = vpop.f32.mrf.mxu0
  %v166 = vadd.f32 %v48, %v165
  %v167 = vpop.f32.mrf.mxu0
  %v168 = vadd.f32 %v48, %v167
  %169 = vmatmul.bf16.gmra.mxu0 %v85
  %v170 = vpop.f32.mrf.mxu0
  %v171 = vadd.f32 %v48, %v170
  %v172 = vpop.f32.mrf.mxu0
  %v173 = vadd.f32 %v48, %v172
  %174 = vmatmul.bf16.gmra.mxu0 %v86
  %v175 = vpop.f32.mrf.mxu0
  %v176 = vadd.f32 %v48, %v175
  %v177 = vpop.f32.mrf.mxu0
  %v178 = vadd.f32 %v48, %v177
  %179 = vmatmul.bf16.gmra.mxu0 %v87
  %v180 = vpop.f32.mrf.mxu0
  %v181 = vadd.f32 %v48, %v180
  %v182 = vpop.f32.mrf.mxu0
  %v183 = vadd.f32 %v48, %v182
  %184 = vmatmul.bf16.gmra.mxu0 %v88
  %v185 = vpop.f32.mrf.mxu0
  %v186 = vadd.f32 %v48, %v185
  %v187 = vpop.f32.mrf.mxu0
  %v188 = vadd.f32 %v48, %v187
  %189 = vmatmul.bf16.gmra.mxu0 %v89
  %v190 = vpop.f32.mrf.mxu0
  %v191 = vadd.f32 %v48, %v190
  %v192 = vpop.f32.mrf.mxu0
  %v193 = vadd.f32 %v48, %v192
  %194 = vdwg.mxu0
  %vm195 = vcmp.ge.f32.partialorder %v156, 0.0
  %vm196 = vcmp.ge.f32.partialorder %v158, 0.0
  %vm197 = vcmp.ge.f32.partialorder %v161, 0.0
  %vm198 = vcmp.ge.f32.partialorder %v163, 0.0
  %vm199 = vcmp.ge.f32.partialorder %v166, 0.0
  %vm200 = vcmp.ge.f32.partialorder %v168, 0.0
  %vm201 = vcmp.ge.f32.partialorder %v171, 0.0
  %vm202 = vcmp.ge.f32.partialorder %v173, 0.0
  %vm203 = vcmp.ge.f32.partialorder %v176, 0.0
  %vm204 = vcmp.ge.f32.partialorder %v178, 0.0
  %vm205 = vcmp.ge.f32.partialorder %v181, 0.0
  %vm206 = vcmp.ge.f32.partialorder %v183, 0.0
  %vm207 = vcmp.ge.f32.partialorder %v186, 0.0
  %vm208 = vcmp.ge.f32.partialorder %v188, 0.0
  %vm209 = vcmp.ge.f32.partialorder %v191, 0.0
  %vm210 = vcmp.ge.f32.partialorder %v193, 0.0
  %v211 = vmul.f32 %v156, 0.2
  %v212 = vmul.f32 %v158, 0.2
  %v213 = vmul.f32 %v161, 0.2
  %v214 = vmul.f32 %v163, 0.2
  %v215 = vmul.f32 %v166, 0.2
  %v216 = vmul.f32 %v168, 0.2
  %v217 = vmul.f32 %v171, 0.2
  %v218 = vmul.f32 %v173, 0.2
  %v219 = vmul.f32 %v176, 0.2
  %v220 = vmul.f32 %v178, 0.2
  %v221 = vmul.f32 %v181, 0.2
  %v222 = vmul.f32 %v183, 0.2
  %v223 = vmul.f32 %v186, 0.2
  %v224 = vmul.f32 %v188, 0.2
  %v225 = vmul.f32 %v191, 0.2
  %v226 = vmul.f32 %v193, 0.2
  %v227 = vsel %vm195, %v156, %v211
  %v228 = vsel %vm196, %v158, %v212
  %v229 = vsel %vm197, %v161, %v213
  %v230 = vsel %vm198, %v163, %v214
  %v231 = vsel %vm199, %v166, %v215
  %v232 = vsel %vm200, %v168, %v216
  %v233 = vsel %vm201, %v171, %v217
  %v234 = vsel %vm202, %v173, %v218
  %v235 = vsel %vm203, %v176, %v219
  %v236 = vsel %vm204, %v178, %v220
  %v237 = vsel %vm205, %v181, %v221
  %v238 = vsel %vm206, %v183, %v222
  %v239 = vsel %vm207, %v186, %v223
  %v240 = vsel %vm208, %v188, %v224
  %v241 = vsel %vm209, %v191, %v225
  %v242 = vsel %vm210, %v193, %v226
  %v243 = vpack.c.bf16 %v227, %v227
  %v244 = vpack.c.bf16 %v228, %v228
  %v245 = vpack.c.bf16 %v229, %v229
  %v246 = vpack.c.bf16 %v230, %v230
  %v247 = vpack.c.bf16 %v231, %v231
  %v248 = vpack.c.bf16 %v232, %v232
  %v249 = vpack.c.bf16 %v233, %v233
  %v250 = vpack.c.bf16 %v234, %v234
  %v251 = vpack.c.bf16 %v235, %v235
  %v252 = vpack.c.bf16 %v236, %v236
  %v253 = vpack.c.bf16 %v237, %v237
  %v254 = vpack.c.bf16 %v238, %v238
  %v255 = vpack.c.bf16 %v239, %v239
  %v256 = vpack.c.bf16 %v240, %v240
  %v257 = vpack.c.bf16 %v241, %v241
  %v258 = vpack.c.bf16 %v242, %v242
  %259 = vst [vmem:[%s3] sm:$0xf] %v243
  %260 = vst [vmem:[%s3 + $0x4] sm:$0xf] %v244
  %261 = vst [vmem:[%s3 + $0x8] sm:$0xf] %v245
  %262 = vst [vmem:[%s3 + $0xc] sm:$0xf] %v246
  %263 = vst [vmem:[%s3 + $0x10] sm:$0xf] %v247
  %264 = vst [vmem:[%s3 + $0x14] sm:$0xf] %v248
  %265 = vst [vmem:[%s3 + $0x18] sm:$0xf] %v249
  %266 = vst [vmem:[%s3 + $0x1c] sm:$0xf] %v250
  %267 = vst [vmem:[%s3 + $0x20] sm:$0xf] %v251
  %268 = vst [vmem:[%s3 + $0x24] sm:$0xf] %v252
  %269 = vst [vmem:[%s3 + $0x28] sm:$0xf] %v253
  %270 = vst [vmem:[%s3 + $0x2c] sm:$0xf] %v254
  %271 = vst [vmem:[%s3 + $0x30] sm:$0xf] %v255
  %272 = vst [vmem:[%s3 + $0x34] sm:$0xf] %v256
  %273 = vst [vmem:[%s3 + $0x38] sm:$0xf] %v257
  %274 = vst [vmem:[%s3 + $0x3c] sm:$0xf] %v258
  // Predicated region
  $region14: #{patchgan_forward.4} parent=0 // pred_check
    _
  $region15: #{patchgan_forward.4} parent=0 // pred_check_branch
    %276 = sbr.rel (0) target = $region17
  $region16: #{patchgan_forward.4} parent=0 // pred_region
    _
  $region17: #{patchgan_forward.4} parent=0 // pred_fallthru
    _
  // Predicated region
  $region18: #{patchgan_forward.4} parent=0 // pred_check
    _
  $region19: #{patchgan_forward.4} parent=0 // pred_check_branch
    %278 = sbr.rel (0) target = $region21
  $region20: #{patchgan_forward.4} parent=0 // pred_region
    _
  $region21: #{patchgan_forward.4} parent=0 // pred_fallthru
    _

// kernel: patchgan_forward.5
$region0: #{patchgan_forward.5}
  #allocation0 [shape = 'u32[]', space=smem, size = 0x4, offset = 0x4, fixed_abs, tag = 'smem constant byte address 0x4 - core index']
  #allocation1 [shape = 'u32[72,128]{1,0:T(1,128)}', space=vmem, size = 0x9000, scoped, tag = 'internal scratch']
  %s0 = inlined_call_operand.vmem [shape: bf16[32,1024], index: 0, kind: input, shape index: {}]
  %s1 = inlined_call_operand.vmem [shape: bf16[1024,128], index: 1, kind: input, shape index: {}]
  %s2 = inlined_call_operand.vmem [shape: bf16[32,128], index: 2, kind: output, shape index: {}]
  %s3 = sld [smem:[#allocation0]]
  $region18: #{patchgan_forward.5} parent=0
    _
  %s5 = ssub.s32 1, %s3
  %s6 = scalar_select 0, %s5, %s3
  // Predicated region
  $region2: #{patchgan_forward.5} parent=0 // pred_check
    _
  $region3: #{patchgan_forward.5} parent=0 // pred_check_branch
    %8 = sbr.rel (0) target = $region5
  $region4: #{patchgan_forward.5} parent=0 // pred_region
    _
  $region5: #{patchgan_forward.5} parent=0 // pred_fallthru
    _
  // Predicated region
  $region6: #{patchgan_forward.5} parent=0 // pred_check
    _
  $region7: #{patchgan_forward.5} parent=0 // pred_check_branch
    %10 = sbr.rel (0) target = $region9
  $region8: #{patchgan_forward.5} parent=0 // pred_region
    _
  $region9: #{patchgan_forward.5} parent=0 // pred_fallthru
    _
  %v11 = vld [vmem:[%s0] sm:$0xff]
  %v12 = vld [vmem:[%s0 + $0x8] sm:$0xff]
  %v13 = vld [vmem:[%s0 + $0x10] sm:$0xff]
  %v14 = vld [vmem:[%s0 + $0x18] sm:$0xff]
  %v15 = vld [vmem:[%s0 + $0x20] sm:$0xff]
  %v16 = vld [vmem:[%s0 + $0x28] sm:$0xff]
  %v17 = vld [vmem:[%s0 + $0x30] sm:$0xff]
  %v18 = vld [vmem:[%s0 + $0x38] sm:$0xff]
  %v19 = vld [vmem:[%s0 + $0x40] sm:$0xff]
  %v20 = vld [vmem:[%s0 + $0x48] sm:$0xff]
  %v21 = vld [vmem:[%s0 + $0x50] sm:$0xff]
  %v22 = vld [vmem:[%s0 + $0x58] sm:$0xff]
  %v23 = vld [vmem:[%s0 + $0x60] sm:$0xff]
  %v24 = vld [vmem:[%s0 + $0x68] sm:$0xff]
  %v25 = vld [vmem:[%s0 + $0x70] sm:$0xff]
  %v26 = vld [vmem:[%s0 + $0x78] sm:$0xff]
  %v27 = vld [vmem:[%s1] sm:$0xf]
  %v28 = vld [vmem:[%s1 + $0x4] sm:$0xf]
  %v29 = vld [vmem:[%s1 + $0x8] sm:$0xf]
  %v30 = vld [vmem:[%s1 + $0xc] sm:$0xf]
  %v31 = vld [vmem:[%s1 + $0x10] sm:$0xf]
  %v32 = vld [vmem:[%s1 + $0x14] sm:$0xf]
  %v33 = vld [vmem:[%s1 + $0x18] sm:$0xf]
  %v34 = vld [vmem:[%s1 + $0x1c] sm:$0xf]
  %v35 = vld [vmem:[%s1 + $0x20] sm:$0xf]
  %v36 = vld [vmem:[%s1 + $0x24] sm:$0xf]
  %v37 = vld [vmem:[%s1 + $0x28] sm:$0xf]
  %v38 = vld [vmem:[%s1 + $0x2c] sm:$0xf]
  %v39 = vld [vmem:[%s1 + $0x30] sm:$0xf]
  %v40 = vld [vmem:[%s1 + $0x34] sm:$0xf]
  %v41 = vld [vmem:[%s1 + $0x38] sm:$0xf]
  %v42 = vld [vmem:[%s1 + $0x3c] sm:$0xf]
  %v43 = vld [vmem:[%s1 + $0x40] sm:$0xf]
  %v44 = vld [vmem:[%s1 + $0x44] sm:$0xf]
  %v45 = vld [vmem:[%s1 + $0x48] sm:$0xf]
  %v46 = vld [vmem:[%s1 + $0x4c] sm:$0xf]
  %v47 = vld [vmem:[%s1 + $0x50] sm:$0xf]
  %v48 = vld [vmem:[%s1 + $0x54] sm:$0xf]
  %v49 = vld [vmem:[%s1 + $0x58] sm:$0xf]
  %v50 = vld [vmem:[%s1 + $0x5c] sm:$0xf]
  %v51 = vld [vmem:[%s1 + $0x60] sm:$0xf]
  %v52 = vld [vmem:[%s1 + $0x64] sm:$0xf]
  %v53 = vld [vmem:[%s1 + $0x68] sm:$0xf]
  %v54 = vld [vmem:[%s1 + $0x6c] sm:$0xf]
  %v55 = vld [vmem:[%s1 + $0x70] sm:$0xf]
  %v56 = vld [vmem:[%s1 + $0x74] sm:$0xf]
  %v57 = vld [vmem:[%s1 + $0x78] sm:$0xf]
  %v58 = vld [vmem:[%s1 + $0x7c] sm:$0xf]
  %v59 = vld [vmem:[%s1 + $0x80] sm:$0xf]
  %v60 = vld [vmem:[%s1 + $0x84] sm:$0xf]
  %v61 = vld [vmem:[%s1 + $0x88] sm:$0xf]
  %v62 = vld [vmem:[%s1 + $0x8c] sm:$0xf]
  %v63 = vld [vmem:[%s1 + $0x90] sm:$0xf]
  %v64 = vld [vmem:[%s1 + $0x94] sm:$0xf]
  %v65 = vld [vmem:[%s1 + $0x98] sm:$0xf]
  %v66 = vld [vmem:[%s1 + $0x9c] sm:$0xf]
  %v67 = vld [vmem:[%s1 + $0xa0] sm:$0xf]
  %v68 = vld [vmem:[%s1 + $0xa4] sm:$0xf]
  %v69 = vld [vmem:[%s1 + $0xa8] sm:$0xf]
  %v70 = vld [vmem:[%s1 + $0xac] sm:$0xf]
  %v71 = vld [vmem:[%s1 + $0xb0] sm:$0xf]
  %v72 = vld [vmem:[%s1 + $0xb4] sm:$0xf]
  %v73 = vld [vmem:[%s1 + $0xb8] sm:$0xf]
  %v74 = vld [vmem:[%s1 + $0xbc] sm:$0xf]
  %v75 = vld [vmem:[%s1 + $0xc0] sm:$0xf]
  %v76 = vld [vmem:[%s1 + $0xc4] sm:$0xf]
  %v77 = vld [vmem:[%s1 + $0xc8] sm:$0xf]
  %v78 = vld [vmem:[%s1 + $0xcc] sm:$0xf]
  %v79 = vld [vmem:[%s1 + $0xd0] sm:$0xf]
  %v80 = vld [vmem:[%s1 + $0xd4] sm:$0xf]
  %v81 = vld [vmem:[%s1 + $0xd8] sm:$0xf]
  %v82 = vld [vmem:[%s1 + $0xdc] sm:$0xf]
  %v83 = vld [vmem:[%s1 + $0xe0] sm:$0xf]
  %v84 = vld [vmem:[%s1 + $0xe4] sm:$0xf]
  %v85 = vld [vmem:[%s1 + $0xe8] sm:$0xf]
  %v86 = vld [vmem:[%s1 + $0xec] sm:$0xf]
  %v87 = vld [vmem:[%s1 + $0xf0] sm:$0xf]
  %v88 = vld [vmem:[%s1 + $0xf4] sm:$0xf]
  %v89 = vld [vmem:[%s1 + $0xf8] sm:$0xf]
  %v90 = vld [vmem:[%s1 + $0xfc] sm:$0xf]
  %v91 = vld [vmem:[%s1 + $0x100] sm:$0xf]
  %v92 = vld [vmem:[%s1 + $0x104] sm:$0xf]
  %v93 = vld [vmem:[%s1 + $0x108] sm:$0xf]
  %v94 = vld [vmem:[%s1 + $0x10c] sm:$0xf]
  %v95 = vld [vmem:[%s1 + $0x110] sm:$0xf]
  %v96 = vld [vmem:[%s1 + $0x114] sm:$0xf]
  %v97 = vld [vmem:[%s1 + $0x118] sm:$0xf]
  %v98 = vld [vmem:[%s1 + $0x11c] sm:$0xf]
  %v99 = vld [vmem:[%s1 + $0x120] sm:$0xf]
  %v100 = vld [vmem:[%s1 + $0x124] sm:$0xf]
  %v101 = vld [vmem:[%s1 + $0x128] sm:$0xf]
  %v102 = vld [vmem:[%s1 + $0x12c] sm:$0xf]
  %v103 = vld [vmem:[%s1 + $0x130] sm:$0xf]
  %v104 = vld [vmem:[%s1 + $0x134] sm:$0xf]
  %v105 = vld [vmem:[%s1 + $0x138] sm:$0xf]
  %v106 = vld [vmem:[%s1 + $0x13c] sm:$0xf]
  %v107 = vld [vmem:[%s1 + $0x140] sm:$0xf]
  %v108 = vld [vmem:[%s1 + $0x144] sm:$0xf]
  %v109 = vld [vmem:[%s1 + $0x148] sm:$0xf]
  %v110 = vld [vmem:[%s1 + $0x14c] sm:$0xf]
  %v111 = vld [vmem:[%s1 + $0x150] sm:$0xf]
  %v112 = vld [vmem:[%s1 + $0x154] sm:$0xf]
  %v113 = vld [vmem:[%s1 + $0x158] sm:$0xf]
  %v114 = vld [vmem:[%s1 + $0x15c] sm:$0xf]
  %v115 = vld [vmem:[%s1 + $0x160] sm:$0xf]
  %v116 = vld [vmem:[%s1 + $0x164] sm:$0xf]
  %v117 = vld [vmem:[%s1 + $0x168] sm:$0xf]
  %v118 = vld [vmem:[%s1 + $0x16c] sm:$0xf]
  %v119 = vld [vmem:[%s1 + $0x170] sm:$0xf]
  %v120 = vld [vmem:[%s1 + $0x174] sm:$0xf]
  %v121 = vld [vmem:[%s1 + $0x178] sm:$0xf]
  %v122 = vld [vmem:[%s1 + $0x17c] sm:$0xf]
  %v123 = vld [vmem:[%s1 + $0x180] sm:$0xf]
  %v124 = vld [vmem:[%s1 + $0x184] sm:$0xf]
  %v125 = vld [vmem:[%s1 + $0x188] sm:$0xf]
  %v126 = vld [vmem:[%s1 + $0x18c] sm:$0xf]
  %v127 = vld [vmem:[%s1 + $0x190] sm:$0xf]
  %v128 = vld [vmem:[%s1 + $0x194] sm:$0xf]
  %v129 = vld [vmem:[%s1 + $0x198] sm:$0xf]
  %v130 = vld [vmem:[%s1 + $0x19c] sm:$0xf]
  %v131 = vld [vmem:[%s1 + $0x1a0] sm:$0xf]
  %v132 = vld [vmem:[%s1 + $0x1a4] sm:$0xf]
  %v133 = vld [vmem:[%s1 + $0x1a8] sm:$0xf]
  %v134 = vld [vmem:[%s1 + $0x1ac] sm:$0xf]
  %v135 = vld [vmem:[%s1 + $0x1b0] sm:$0xf]
  %v136 = vld [vmem:[%s1 + $0x1b4] sm:$0xf]
  %v137 = vld [vmem:[%s1 + $0x1b8] sm:$0xf]
  %v138 = vld [vmem:[%s1 + $0x1bc] sm:$0xf]
  %v139 = vld [vmem:[%s1 + $0x1c0] sm:$0xf]
  %v140 = vld [vmem:[%s1 + $0x1c4] sm:$0xf]
  %v141 = vld [vmem:[%s1 + $0x1c8] sm:$0xf]
  %v142 = vld [vmem:[%s1 + $0x1cc] sm:$0xf]
  %v143 = vld [vmem:[%s1 + $0x1d0] sm:$0xf]
  %v144 = vld [vmem:[%s1 + $0x1d4] sm:$0xf]
  %v145 = vld [vmem:[%s1 + $0x1d8] sm:$0xf]
  %v146 = vld [vmem:[%s1 + $0x1dc] sm:$0xf]
  %v147 = vld [vmem:[%s1 + $0x1e0] sm:$0xf]
  %v148 = vld [vmem:[%s1 + $0x1e4] sm:$0xf]
  %v149 = vld [vmem:[%s1 + $0x1e8] sm:$0xf]
  %v150 = vld [vmem:[%s1 + $0x1ec] sm:$0xf]
  %v151 = vld [vmem:[%s1 + $0x1f0] sm:$0xf]
  %v152 = vld [vmem:[%s1 + $0x1f4] sm:$0xf]
  %v153 = vld [vmem:[%s1 + $0x1f8] sm:$0xf]
  %v154 = vld [vmem:[%s1 + $0x1fc] sm:$0xf]
  %v171 = vunpack.c.l.b16 %v11
  %v172 = vunpack.c.h.b16 %v11
  %v173 = vunpack.c.l.b16 %v12
  %v174 = vunpack.c.h.b16 %v12
  %v175 = vunpack.c.l.b16 %v13
  %v176 = vunpack.c.h.b16 %v13
  %v177 = vunpack.c.l.b16 %v14
  %v178 = vunpack.c.h.b16 %v14
  %v179 = vunpack.c.l.b16 %v15
  %v180 = vunpack.c.h.b16 %v15
  %v181 = vunpack.c.l.b16 %v16
  %v182 = vunpack.c.h.b16 %v16
  %v183 = vunpack.c.l.b16 %v17
  %v184 = vunpack.c.h.b16 %v17
  %v185 = vunpack.c.l.b16 %v18
  %v186 = vunpack.c.h.b16 %v18
  %v187 = vunpack.c.l.b16 %v19
  %v188 = vunpack.c.h.b16 %v19
  %v189 = vunpack.c.l.b16 %v20
  %v190 = vunpack.c.h.b16 %v20
  %v191 = vunpack.c.l.b16 %v21
  %v192 = vunpack.c.h.b16 %v21
  %v193 = vunpack.c.l.b16 %v22
  %v194 = vunpack.c.h.b16 %v22
  %v195 = vunpack.c.l.b16 %v23
  %v196 = vunpack.c.h.b16 %v23
  %v197 = vunpack.c.l.b16 %v24
  %v198 = vunpack.c.h.b16 %v24
  %v199 = vunpack.c.l.b16 %v25
  %v200 = vunpack.c.h.b16 %v25
  %v201 = vunpack.c.l.b16 %v26
  %v202 = vunpack.c.h.b16 %v26
  %v203 = vpack.c.b16 %v179, %v171
  %v204 = vpack.c.b16 %v180, %v172
  %v205 = vpack.c.b16 %v181, %v173
  %v206 = vpack.c.b16 %v182, %v174
  %v207 = vpack.c.b16 %v183, %v175
  %v208 = vpack.c.b16 %v184, %v176
  %v209 = vpack.c.b16 %v185, %v177
  %v210 = vpack.c.b16 %v186, %v178
  %v211 = vpack.c.b16 %v195, %v187
  %v212 = vpack.c.b16 %v196, %v188
  %v213 = vpack.c.b16 %v197, %v189
  %v214 = vpack.c.b16 %v198, %v190
  %v215 = vpack.c.b16 %v199, %v191
  %v216 = vpack.c.b16 %v200, %v192
  %v217 = vpack.c.b16 %v201, %v193
  %v218 = vpack.c.b16 %v202, %v194
  %v363 = vunpack.c.l.b16 %v27
  %v364 = vunpack.c.l.b16 %v28
  %v365 = vunpack.c.l.b16 %v29
  %v366 = vunpack.c.l.b16 %v30
  %v367 = vunpack.c.l.b16 %v31
  %v368 = vunpack.c.l.b16 %v32
  %v369 = vunpack.c.l.b16 %v33
  %v370 = vunpack.c.l.b16 %v34
  %v371 = vunpack.c.l.b16 %v35
  %v372 = vunpack.c.l.b16 %v36
  %v373 = vunpack.c.l.b16 %v37
  %v374 = vunpack.c.l.b16 %v38
  %v375 = vunpack.c.l.b16 %v39
  %v376 = vunpack.c.l.b16 %v40
  %v377 = vunpack.c.l.b16 %v41
  %v378 = vunpack.c.l.b16 %v42
  %v379 = vunpack.c.l.b16 %v43
  %v380 = vunpack.c.l.b16 %v44
  %v381 = vunpack.c.l.b16 %v45
  %v382 = vunpack.c.l.b16 %v46
  %v383 = vunpack.c.l.b16 %v47
  %v384 = vunpack.c.l.b16 %v48
  %v385 = vunpack.c.l.b16 %v49
  %v386 = vunpack.c.l.b16 %v50
  %v387 = vunpack.c.l.b16 %v51
  %v388 = vunpack.c.l.b16 %v52
  %v389 = vunpack.c.l.b16 %v53
  %v390 = vunpack.c.l.b16 %v54
  %v391 = vunpack.c.l.b16 %v55
  %v392 = vunpack.c.l.b16 %v56
  %v393 = vunpack.c.l.b16 %v57
  %v394 = vunpack.c.l.b16 %v58
  %v395 = vunpack.c.l.b16 %v59
  %v396 = vunpack.c.l.b16 %v60
  %v397 = vunpack.c.l.b16 %v61
  %v398 = vunpack.c.l.b16 %v62
  %v399 = vunpack.c.l.b16 %v63
  %v400 = vunpack.c.l.b16 %v64
  %v401 = vunpack.c.l.b16 %v65
  %v402 = vunpack.c.l.b16 %v66
  %v403 = vunpack.c.l.b16 %v67
  %v404 = vunpack.c.l.b16 %v68
  %v405 = vunpack.c.l.b16 %v69
  %v406 = vunpack.c.l.b16 %v70
  %v407 = vunpack.c.l.b16 %v71
  %v408 = vunpack.c.l.b16 %v72
  %v409 = vunpack.c.l.b16 %v73
  %v410 = vunpack.c.l.b16 %v74
  %v411 = vunpack.c.l.b16 %v75
  %v412 = vunpack.c.l.b16 %v76
  %v413 = vunpack.c.l.b16 %v77
  %v414 = vunpack.c.l.b16 %v78
  %v415 = vunpack.c.l.b16 %v79
  %v416 = vunpack.c.l.b16 %v80
  %v417 = vunpack.c.l.b16 %v81
  %v418 = vunpack.c.l.b16 %v82
  %v419 = vunpack.c.l.b16 %v83
  %v420 = vunpack.c.l.b16 %v84
  %v421 = vunpack.c.l.b16 %v85
  %v422 = vunpack.c.l.b16 %v86
  %v423 = vunpack.c.l.b16 %v87
  %v424 = vunpack.c.l.b16 %v88
  %v425 = vunpack.c.l.b16 %v89
  %v426 = vunpack.c.l.b16 %v90
  %v427 = vunpack.c.l.b16 %v91
  %v428 = vunpack.c.l.b16 %v92
  %v429 = vunpack.c.l.b16 %v93
  %v430 = vunpack.c.l.b16 %v94
  %v431 = vunpack.c.l.b16 %v95
  %v432 = vunpack.c.l.b16 %v96
  %v433 = vunpack.c.l.b16 %v97
  %v434 = vunpack.c.l.b16 %v98
  %v435 = vunpack.c.l.b16 %v99
  %v436 = vunpack.c.l.b16 %v100
  %v437 = vunpack.c.l.b16 %v101
  %v438 = vunpack.c.l.b16 %v102
  %v439 = vunpack.c.l.b16 %v103
  %v440 = vunpack.c.l.b16 %v104
  %v441 = vunpack.c.l.b16 %v105
  %v442 = vunpack.c.l.b16 %v106
  %v443 = vunpack.c.l.b16 %v107
  %v444 = vunpack.c.l.b16 %v108
  %v445 = vunpack.c.l.b16 %v109
  %v446 = vunpack.c.l.b16 %v110
  %v447 = vunpack.c.l.b16 %v111
  %v448 = vunpack.c.l.b16 %v112
  %v449 = vunpack.c.l.b16 %v113
  %v450 = vunpack.c.l.b16 %v114
  %v451 = vunpack.c.l.b16 %v115
  %v452 = vunpack.c.l.b16 %v116
  %v453 = vunpack.c.l.b16 %v117
  %v454 = vunpack.c.l.b16 %v118
  %v455 = vunpack.c.l.b16 %v119
  %v456 = vunpack.c.l.b16 %v120
  %v457 = vunpack.c.l.b16 %v121
  %v458 = vunpack.c.l.b16 %v122
  %v459 = vunpack.c.l.b16 %v123
  %v460 = vunpack.c.l.b16 %v124
  %v461 = vunpack.c.l.b16 %v125
  %v462 = vunpack.c.l.b16 %v126
  %v463 = vunpack.c.l.b16 %v127
  %v464 = vunpack.c.l.b16 %v128
  %v465 = vunpack.c.l.b16 %v129
  %v466 = vunpack.c.l.b16 %v130
  %v467 = vunpack.c.l.b16 %v131
  %v468 = vunpack.c.l.b16 %v132
  %v469 = vunpack.c.l.b16 %v133
  %v470 = vunpack.c.l.b16 %v134
  %v471 = vunpack.c.l.b16 %v135
  %v472 = vunpack.c.l.b16 %v136
  %v473 = vunpack.c.l.b16 %v137
  %v474 = vunpack.c.l.b16 %v138
  %v475 = vunpack.c.l.b16 %v139
  %v476 = vunpack.c.l.b16 %v140
  %v477 = vunpack.c.l.b16 %v141
  %v478 = vunpack.c.l.b16 %v142
  %v479 = vunpack.c.l.b16 %v143
  %v480 = vunpack.c.l.b16 %v144
  %v481 = vunpack.c.l.b16 %v145
  %v482 = vunpack.c.l.b16 %v146
  %v483 = vunpack.c.l.b16 %v147
  %v484 = vunpack.c.l.b16 %v148
  %v485 = vunpack.c.l.b16 %v149
  %v486 = vunpack.c.l.b16 %v150
  %v487 = vunpack.c.l.b16 %v151
  %v488 = vunpack.c.l.b16 %v152
  %v489 = vunpack.c.l.b16 %v153
  %v490 = vunpack.c.l.b16 %v154
  %v491 = vpack.c.b16 %v364, %v363
  %v492 = vpack.c.b16 %v366, %v365
  %v493 = vpack.c.b16 %v368, %v367
  %v494 = vpack.c.b16 %v370, %v369
  %v495 = vpack.c.b16 %v372, %v371
  %v496 = vpack.c.b16 %v374, %v373
  %v497 = vpack.c.b16 %v376, %v375
  %v498 = vpack.c.b16 %v378, %v377
  %v499 = vpack.c.b16 %v380, %v379
  %v500 = vpack.c.b16 %v382, %v381
  %v501 = vpack.c.b16 %v384, %v383
  %v502 = vpack.c.b16 %v386, %v385
  %v503 = vpack.c.b16 %v388, %v387
  %v504 = vpack.c.b16 %v390, %v389
  %v505 = vpack.c.b16 %v392, %v391
  %v506 = vpack.c.b16 %v394, %v393
  %v507 = vpack.c.b16 %v396, %v395
  %v508 = vpack.c.b16 %v398, %v397
  %v509 = vpack.c.b16 %v400, %v399
  %v510 = vpack.c.b16 %v402, %v401
  %v511 = vpack.c.b16 %v404, %v403
  %v512 = vpack.c.b16 %v406, %v405
  %v513 = vpack.c.b16 %v408, %v407
  %v514 = vpack.c.b16 %v410, %v409
  %v515 = vpack.c.b16 %v412, %v411
  %v516 = vpack.c.b16 %v414, %v413
  %v517 = vpack.c.b16 %v416, %v415
  %v518 = vpack.c.b16 %v418, %v417
  %v519 = vpack.c.b16 %v420, %v419
  %v520 = vpack.c.b16 %v422, %v421
  %v521 = vpack.c.b16 %v424, %v423
  %v522 = vpack.c.b16 %v426, %v425
  %v523 = vpack.c.b16 %v428, %v427
  %v524 = vpack.c.b16 %v430, %v429
  %v525 = vpack.c.b16 %v432, %v431
  %v526 = vpack.c.b16 %v434, %v433
  %v527 = vpack.c.b16 %v436, %v435
  %v528 = vpack.c.b16 %v438, %v437
  %v529 = vpack.c.b16 %v440, %v439
  %v530 = vpack.c.b16 %v442, %v441
  %v531 = vpack.c.b16 %v444, %v443
  %v532 = vpack.c.b16 %v446, %v445
  %v533 = vpack.c.b16 %v448, %v447
  %v534 = vpack.c.b16 %v450, %v449
  %v535 = vpack.c.b16 %v452, %v451
  %v536 = vpack.c.b16 %v454, %v453
  %v537 = vpack.c.b16 %v456, %v455
  %v538 = vpack.c.b16 %v458, %v457
  %v539 = vpack.c.b16 %v460, %v459
  %v540 = vpack.c.b16 %v462, %v461
  %v541 = vpack.c.b16 %v464, %v463
  %v542 = vpack.c.b16 %v466, %v465
  %v543 = vpack.c.b16 %v468, %v467
  %v544 = vpack.c.b16 %v470, %v469
  %v545 = vpack.c.b16 %v472, %v471
  %v546 = vpack.c.b16 %v474, %v473
  %v547 = vpack.c.b16 %v476, %v475
  %v548 = vpack.c.b16 %v478, %v477
  %v549 = vpack.c.b16 %v480, %v479
  %v550 = vpack.c.b16 %v482, %v481
  %v551 = vpack.c.b16 %v484, %v483
  %v552 = vpack.c.b16 %v486, %v485
  %v553 = vpack.c.b16 %v488, %v487
  %v554 = vpack.c.b16 %v490, %v489
  %619 = vmatpush.bf16.msra.mxu0 %v498
  %620 = vmatpush.bf16.msra.mxu0 %v497
  %621 = vmatpush.bf16.msra.mxu0 %v496
  %622 = vmatpush.bf16.msra.mxu0 %v495
  %623 = vmatpush.bf16.msra.mxu0 %v494
  %624 = vmatpush.bf16.msra.mxu0 %v493
  %625 = vmatpush.bf16.msra.mxu0 %v492
  %626 = vmatpush.bf16.msra.mxu0 %v491
  %627 = vmatmul.bf16.gmra.mxu0 %v203
  %v628 = vpop.f32.mrf.mxu0
  %v629 = vadd.f32 0.0, %v628
  %v630 = vpop.f32.mrf.mxu0
  %v631 = vadd.f32 0.0, %v630
  %632 = vmatmul.bf16.gmra.mxu0 %v211
  %v633 = vpop.f32.mrf.mxu0
  %v634 = vadd.f32 0.0, %v633
  %v635 = vpop.f32.mrf.mxu0
  %v636 = vadd.f32 0.0, %v635
  %637 = vdwg.mxu0
  %638 = vmatpush.bf16.msra.mxu0 %v506
  %639 = vmatpush.bf16.msra.mxu0 %v505
  %640 = vmatpush.bf16.msra.mxu0 %v504
  %641 = vmatpush.bf16.msra.mxu0 %v503
  %642 = vmatpush.bf16.msra.mxu0 %v502
  %643 = vmatpush.bf16.msra.mxu0 %v501
  %644 = vmatpush.bf16.msra.mxu0 %v500
  %645 = vmatpush.bf16.msra.mxu0 %v499
  %646 = vmatmul.bf16.gmra.mxu0 %v204
  %v647 = vpop.f32.mrf.mxu0
  %v648 = vadd.f32 %v629, %v647
  %v649 = vpop.f32.mrf.mxu0
  %v650 = vadd.f32 %v631, %v649
  %651 = vmatmul.bf16.gmra.mxu0 %v212
  %v652 = vpop.f32.mrf.mxu0
  %v653 = vadd.f32 %v634, %v652
  %v654 = vpop.f32.mrf.mxu0
  %v655 = vadd.f32 %v636, %v654
  %656 = vdwg.mxu0
  %657 = vmatpush.bf16.msra.mxu0 %v514
  %658 = vmatpush.bf16.msra.mxu0 %v513
  %659 = vmatpush.bf16.msra.mxu0 %v512
  %660 = vmatpush.bf16.msra.mxu0 %v511
  %661 = vmatpush.bf16.msra.mxu0 %v510
  %662 = vmatpush.bf16.msra.mxu0 %v509
  %663 = vmatpush.bf16.msra.mxu0 %v508
  %664 = vmatpush.bf16.msra.mxu0 %v507
  %665 = vmatmul.bf16.gmra.mxu0 %v205
  %v666 = vpop.f32.mrf.mxu0
  %v667 = vadd.f32 %v648, %v666
  %v668 = vpop.f32.mrf.mxu0
  %v669 = vadd.f32 %v650, %v668
  %670 = vmatmul.bf16.gmra.mxu0 %v213
  %v671 = vpop.f32.mrf.mxu0
  %v672 = vadd.f32 %v653, %v671
  %v673 = vpop.f32.mrf.mxu0
  %v674 = vadd.f32 %v655, %v673
  %675 = vdwg.mxu0
  %676 = vmatpush.bf16.msra.mxu0 %v522
  %677 = vmatpush.bf16.msra.mxu0 %v521
  %678 = vmatpush.bf16.msra.mxu0 %v520
  %679 = vmatpush.bf16.msra.mxu0 %v519
  %680 = vmatpush.bf16.msra.mxu0 %v518
  %681 = vmatpush.bf16.msra.mxu0 %v517
  %682 = vmatpush.bf16.msra.mxu0 %v516
  %683 = vmatpush.bf16.msra.mxu0 %v515
  %684 = vmatmul.bf16.gmra.mxu0 %v206
  %v685 = vpop.f32.mrf.mxu0
  %v686 = vadd.f32 %v667, %v685
  %v687 = vpop.f32.mrf.mxu0
  %v688 = vadd.f32 %v669, %v687
  %689 = vmatmul.bf16.gmra.mxu0 %v214
  %v690 = vpop.f32.mrf.mxu0
  %v691 = vadd.f32 %v672, %v690
  %v692 = vpop.f32.mrf.mxu0
  %v693 = vadd.f32 %v674, %v692
  %694 = vdwg.mxu0
  %695 = vmatpush.bf16.msra.mxu0 %v530
  %696 = vmatpush.bf16.msra.mxu0 %v529
  %697 = vmatpush.bf16.msra.mxu0 %v528
  %698 = vmatpush.bf16.msra.mxu0 %v527
  %699 = vmatpush.bf16.msra.mxu0 %v526
  %700 = vmatpush.bf16.msra.mxu0 %v525
  %701 = vmatpush.bf16.msra.mxu0 %v524
  %702 = vmatpush.bf16.msra.mxu0 %v523
  %703 = vmatmul.bf16.gmra.mxu0 %v207
  %v704 = vpop.f32.mrf.mxu0
  %v705 = vadd.f32 %v686, %v704
  %v706 = vpop.f32.mrf.mxu0
  %v707 = vadd.f32 %v688, %v706
  %708 = vmatmul.bf16.gmra.mxu0 %v215
  %v709 = vpop.f32.mrf.mxu0
  %v710 = vadd.f32 %v691, %v709
  %v711 = vpop.f32.mrf.mxu0
  %v712 = vadd.f32 %v693, %v711
  %713 = vdwg.mxu0
  %714 = vmatpush.bf16.msra.mxu0 %v538
  %715 = vmatpush.bf16.msra.mxu0 %v537
  %716 = vmatpush.bf16.msra.mxu0 %v536
  %717 = vmatpush.bf16.msra.mxu0 %v535
  %718 = vmatpush.bf16.msra.mxu0 %v534
  %719 = vmatpush.bf16.msra.mxu0 %v533
  %720 = vmatpush.bf16.msra.mxu0 %v532
  %721 = vmatpush.bf16.msra.mxu0 %v531
  %722 = vmatmul.bf16.gmra.mxu0 %v208
  %v723 = vpop.f32.mrf.mxu0
  %v724 = vadd.f32 %v705, %v723
  %v725 = vpop.f32.mrf.mxu0
  %v726 = vadd.f32 %v707, %v725
  %727 = vmatmul.bf16.gmra.mxu0 %v216
  %v728 = vpop.f32.mrf.mxu0
  %v729 = vadd.f32 %v710, %v728
  %v730 = vpop.f32.mrf.mxu0
  %v731 = vadd.f32 %v712, %v730
  %732 = vdwg.mxu0
  %733 = vmatpush.bf16.msra.mxu0 %v546
  %734 = vmatpush.bf16.msra.mxu0 %v545
  %735 = vmatpush.bf16.msra.mxu0 %v544
  %736 = vmatpush.bf16.msra.mxu0 %v543
  %737 = vmatpush.bf16.msra.mxu0 %v542
  %738 = vmatpush.bf16.msra.mxu0 %v541
  %739 = vmatpush.bf16.msra.mxu0 %v540
  %740 = vmatpush.bf16.msra.mxu0 %v539
  %741 = vmatmul.bf16.gmra.mxu0 %v209
  %v742 = vpop.f32.mrf.mxu0
  %v743 = vadd.f32 %v724, %v742
  %v744 = vpop.f32.mrf.mxu0
  %v745 = vadd.f32 %v726, %v744
  %746 = vmatmul.bf16.gmra.mxu0 %v217
  %v747 = vpop.f32.mrf.mxu0
  %v748 = vadd.f32 %v729, %v747
  %v749 = vpop.f32.mrf.mxu0
  %v750 = vadd.f32 %v731, %v749
  %751 = vdwg.mxu0
  %752 = vmatpush.bf16.msra.mxu0 %v554
  %753 = vmatpush.bf16.msra.mxu0 %v553
  %754 = vmatpush.bf16.msra.mxu0 %v552
  %755 = vmatpush.bf16.msra.mxu0 %v551
  %756 = vmatpush.bf16.msra.mxu0 %v550
  %757 = vmatpush.bf16.msra.mxu0 %v549
  %758 = vmatpush.bf16.msra.mxu0 %v548
  %759 = vmatpush.bf16.msra.mxu0 %v547
  %760 = vmatmul.bf16.gmra.mxu0 %v210
  %v761 = vpop.f32.mrf.mxu0
  %v762 = vadd.f32 %v743, %v761
  %v763 = vpop.f32.mrf.mxu0
  %v764 = vadd.f32 %v745, %v763
  %765 = vmatmul.bf16.gmra.mxu0 %v218
  %v766 = vpop.f32.mrf.mxu0
  %v767 = vadd.f32 %v748, %v766
  %v768 = vpop.f32.mrf.mxu0
  %v769 = vadd.f32 %v750, %v768
  %770 = vdwg.mxu0
  %v771 = vadd.f32 %v762, %v764
  %v772 = vadd.f32 %v771, %v767
  %v773 = vadd.f32 %v772, %v769
  %v774 = vrot.slane %v773, 4
  %v775 = vadd.f32 %v773, %v774
  %v776 = vrot.slane %v775, 2
  %v777 = vadd.f32 %v775, %v776
  %v778 = vrot.slane %v777, 1
  %v779 = vadd.f32 %v777, %v778
  %v780 = vrcp.pop 32.0
  %v781 = vmul.f32 32.0, %v780
  %v782 = vsub.f32 1.0, %v781
  %v783 = vmul.f32 %v780, %v782
  %v784 = vadd.f32 %v780, %v783
  %vm785 = vweird.f32 %v780
  %v786 = vsel %vm785, %v780, %v784
  %v787 = vmul.f32 %v779, %v786
  %v788 = vsub.f32 %v762, %v787
  %v789 = vsub.f32 %v764, %v787
  %v790 = vsub.f32 %v767, %v787
  %v791 = vsub.f32 %v769, %v787
  %v792 = vmul.f32 %v788, %v788
  %v793 = vmul.f32 %v789, %v789
  %v794 = vmul.f32 %v790, %v790
  %v795 = vmul.f32 %v791, %v791
  %v796 = vadd.f32 %v792, %v793
  %v797 = vadd.f32 %v796, %v794
  %v798 = vadd.f32 %v797, %v795
  %v799 = vrot.slane %v798, 4
  %v800 = vadd.f32 %v798, %v799
  %v801 = vrot.slane %v800, 2
  %v802 = vadd.f32 %v800, %v801
  %v803 = vrot.slane %v802, 1
  %v804 = vadd.f32 %v802, %v803
  %v805 = vmul.f32 %v804, %v786
  %v806 = vadd.f32 %v805, 1e-05
  %v807 = vrsqrt.pop %v806
  %v808 = vmul.f32 %v807, %v806
  %v809 = vmul.f32 %v808, %v807
  %v810 = vmul.f32 0.5, %v809
  %v811 = vsub.f32 1.5, %v810
  %v812 = vmul.f32 %v807, %v811
  %vm813 = vweird.f32 %v806
  %vm814 = vweird.f32 %v807
  %vm815 = vmor %vm813, %vm814
  %v816 = vsel %vm815, %v807, %v812
  %v817 = vmul.f32 %v788, %v816
  %v818 = vmul.f32 %v789, %v816
  %v819 = vmul.f32 %v790, %v816
  %v820 = vmul.f32 %v791, %v816
  %vm821 = vcmp.ge.f32.partialorder %v817, 0.0
  %vm822 = vcmp.ge.f32.partialorder %v818, 0.0
  %vm823 = vcmp.ge.f32.partialorder %v819, 0.0
  %vm824 = vcmp.ge.f32.partialorder %v820, 0.0
  %v825 = vmul.f32 %v817, 0.2
  %v826 = vmul.f32 %v818, 0.2
  %v827 = vmul.f32 %v819, 0.2
  %v828 = vmul.f32 %v820, 0.2
  %v829 = vsel %vm821, %v817, %v825
  %v830 = vsel %vm822, %v818, %v826
  %v831 = vsel %vm823, %v819, %v827
  %v832 = vsel %vm824, %v820, %v828
  %v833 = vpack.c.bf16 %v829, %v829
  %v834 = vpack.c.bf16 %v830, %v830
  %v835 = vpack.c.bf16 %v831, %v831
  %v836 = vpack.c.bf16 %v832, %v832
  %837 = vst [vmem:[%s2] sm:$0xf] %v833
  %838 = vst [vmem:[%s2 + $0x4] sm:$0xf] %v834
  %839 = vst [vmem:[%s2 + $0x8] sm:$0xf] %v835
  %840 = vst [vmem:[%s2 + $0xc] sm:$0xf] %v836
  // Predicated region
  $region10: #{patchgan_forward.5} parent=0 // pred_check
    _
  $region11: #{patchgan_forward.5} parent=0 // pred_check_branch
    %842 = sbr.rel (0) target = $region13
  $region12: #{patchgan_forward.5} parent=0 // pred_region
    _
  $region13: #{patchgan_forward.5} parent=0 // pred_fallthru
    _
  // Predicated region
  $region14: #{patchgan_forward.5} parent=0 // pred_check
    _
  $region15: #{patchgan_forward.5} parent=0 // pred_check_branch
    %844 = sbr.rel (0) target = $region17
  $region16: #{patchgan_forward.5} parent=0 // pred_region
    _
  $region17: #{patchgan_forward.5} parent=0 // pred_fallthru
    _

// kernel: patchgan_forward.6
$region0: #{patchgan_forward.6}
  #allocation0 [shape = 'u32[]', space=smem, size = 0x4, offset = 0x4, fixed_abs, tag = 'smem constant byte address 0x4 - core index']
  #allocation1 [shape = 'u32[72,128]{1,0:T(1,128)}', space=vmem, size = 0x9000, scoped, tag = 'internal scratch']
  %s0 = inlined_call_operand.vmem [shape: bf16[8,2048], index: 0, kind: input, shape index: {}]
  %s1 = inlined_call_operand.vmem [shape: bf16[2048,256], index: 1, kind: input, shape index: {}]
  %s2 = inlined_call_operand.vmem [shape: bf16[8,256], index: 2, kind: output, shape index: {}]
  %s3 = sld [smem:[#allocation0]]
  $region18: #{patchgan_forward.6} parent=0
    _
  %s5 = ssub.s32 1, %s3
  %s6 = scalar_select 0, %s5, %s3
  // Predicated region
  $region2: #{patchgan_forward.6} parent=0 // pred_check
    _
  $region3: #{patchgan_forward.6} parent=0 // pred_check_branch
    %8 = sbr.rel (0) target = $region5
  $region4: #{patchgan_forward.6} parent=0 // pred_region
    _
  $region5: #{patchgan_forward.6} parent=0 // pred_fallthru
    _
  // Predicated region
  $region6: #{patchgan_forward.6} parent=0 // pred_check
    _
  $region7: #{patchgan_forward.6} parent=0 // pred_check_branch
    %10 = sbr.rel (0) target = $region9
  $region8: #{patchgan_forward.6} parent=0 // pred_region
    _
  $region9: #{patchgan_forward.6} parent=0 // pred_fallthru
    _
  %v11 = vld [vmem:[%s0] sm:$0xff]
  %v12 = vld [vmem:[%s0 + $0x8] sm:$0xff]
  %v13 = vld [vmem:[%s0 + $0x10] sm:$0xff]
  %v14 = vld [vmem:[%s0 + $0x18] sm:$0xff]
  %v15 = vld [vmem:[%s0 + $0x20] sm:$0xff]
  %v16 = vld [vmem:[%s0 + $0x28] sm:$0xff]
  %v17 = vld [vmem:[%s0 + $0x30] sm:$0xff]
  %v18 = vld [vmem:[%s0 + $0x38] sm:$0xff]
  %v19 = vld [vmem:[%s1] sm:$0xff]
  %v20 = vld [vmem:[%s1 + $0x8] sm:$0xff]
  %v21 = vld [vmem:[%s1 + $0x10] sm:$0xff]
  %v22 = vld [vmem:[%s1 + $0x18] sm:$0xff]
  %v23 = vld [vmem:[%s1 + $0x20] sm:$0xff]
  %v24 = vld [vmem:[%s1 + $0x28] sm:$0xff]
  %v25 = vld [vmem:[%s1 + $0x30] sm:$0xff]
  %v26 = vld [vmem:[%s1 + $0x38] sm:$0xff]
  %v27 = vld [vmem:[%s1 + $0x40] sm:$0xff]
  %v28 = vld [vmem:[%s1 + $0x48] sm:$0xff]
  %v29 = vld [vmem:[%s1 + $0x50] sm:$0xff]
  %v30 = vld [vmem:[%s1 + $0x58] sm:$0xff]
  %v31 = vld [vmem:[%s1 + $0x60] sm:$0xff]
  %v32 = vld [vmem:[%s1 + $0x68] sm:$0xff]
  %v33 = vld [vmem:[%s1 + $0x70] sm:$0xff]
  %v34 = vld [vmem:[%s1 + $0x78] sm:$0xff]
  %v35 = vld [vmem:[%s1 + $0x80] sm:$0xff]
  %v36 = vld [vmem:[%s1 + $0x88] sm:$0xff]
  %v37 = vld [vmem:[%s1 + $0x90] sm:$0xff]
  %v38 = vld [vmem:[%s1 + $0x98] sm:$0xff]
  %v39 = vld [vmem:[%s1 + $0xa0] sm:$0xff]
  %v40 = vld [vmem:[%s1 + $0xa8] sm:$0xff]
  %v41 = vld [vmem:[%s1 + $0xb0] sm:$0xff]
  %v42 = vld [vmem:[%s1 + $0xb8] sm:$0xff]
  %v43 = vld [vmem:[%s1 + $0xc0] sm:$0xff]
  %v44 = vld [vmem:[%s1 + $0xc8] sm:$0xff]
  %v45 = vld [vmem:[%s1 + $0xd0] sm:$0xff]
  %v46 = vld [vmem:[%s1 + $0xd8] sm:$0xff]
  %v47 = vld [vmem:[%s1 + $0xe0] sm:$0xff]
  %v48 = vld [vmem:[%s1 + $0xe8] sm:$0xff]
  %v49 = vld [vmem:[%s1 + $0xf0] sm:$0xff]
  %v50 = vld [vmem:[%s1 + $0xf8] sm:$0xff]
  %v51 = vld [vmem:[%s1 + $0x100] sm:$0xff]
  %v52 = vld [vmem:[%s1 + $0x108] sm:$0xff]
  %v53 = vld [vmem:[%s1 + $0x110] sm:$0xff]
  %v54 = vld [vmem:[%s1 + $0x118] sm:$0xff]
  %v55 = vld [vmem:[%s1 + $0x120] sm:$0xff]
  %v56 = vld [vmem:[%s1 + $0x128] sm:$0xff]
  %v57 = vld [vmem:[%s1 + $0x130] sm:$0xff]
  %v58 = vld [vmem:[%s1 + $0x138] sm:$0xff]
  %v59 = vld [vmem:[%s1 + $0x140] sm:$0xff]
  %v60 = vld [vmem:[%s1 + $0x148] sm:$0xff]
  %v61 = vld [vmem:[%s1 + $0x150] sm:$0xff]
  %v62 = vld [vmem:[%s1 + $0x158] sm:$0xff]
  %v63 = vld [vmem:[%s1 + $0x160] sm:$0xff]
  %v64 = vld [vmem:[%s1 + $0x168] sm:$0xff]
  %v65 = vld [vmem:[%s1 + $0x170] sm:$0xff]
  %v66 = vld [vmem:[%s1 + $0x178] sm:$0xff]
  %v67 = vld [vmem:[%s1 + $0x180] sm:$0xff]
  %v68 = vld [vmem:[%s1 + $0x188] sm:$0xff]
  %v69 = vld [vmem:[%s1 + $0x190] sm:$0xff]
  %v70 = vld [vmem:[%s1 + $0x198] sm:$0xff]
  %v71 = vld [vmem:[%s1 + $0x1a0] sm:$0xff]
  %v72 = vld [vmem:[%s1 + $0x1a8] sm:$0xff]
  %v73 = vld [vmem:[%s1 + $0x1b0] sm:$0xff]
  %v74 = vld [vmem:[%s1 + $0x1b8] sm:$0xff]
  %v75 = vld [vmem:[%s1 + $0x1c0] sm:$0xff]
  %v76 = vld [vmem:[%s1 + $0x1c8] sm:$0xff]
  %v77 = vld [vmem:[%s1 + $0x1d0] sm:$0xff]
  %v78 = vld [vmem:[%s1 + $0x1d8] sm:$0xff]
  %v79 = vld [vmem:[%s1 + $0x1e0] sm:$0xff]
  %v80 = vld [vmem:[%s1 + $0x1e8] sm:$0xff]
  %v81 = vld [vmem:[%s1 + $0x1f0] sm:$0xff]
  %v82 = vld [vmem:[%s1 + $0x1f8] sm:$0xff]
  %v83 = vld [vmem:[%s1 + $0x200] sm:$0xff]
  %v84 = vld [vmem:[%s1 + $0x208] sm:$0xff]
  %v85 = vld [vmem:[%s1 + $0x210] sm:$0xff]
  %v86 = vld [vmem:[%s1 + $0x218] sm:$0xff]
  %v87 = vld [vmem:[%s1 + $0x220] sm:$0xff]
  %v88 = vld [vmem:[%s1 + $0x228] sm:$0xff]
  %v89 = vld [vmem:[%s1 + $0x230] sm:$0xff]
  %v90 = vld [vmem:[%s1 + $0x238] sm:$0xff]
  %v91 = vld [vmem:[%s1 + $0x240] sm:$0xff]
  %v92 = vld [vmem:[%s1 + $0x248] sm:$0xff]
  %v93 = vld [vmem:[%s1 + $0x250] sm:$0xff]
  %v94 = vld [vmem:[%s1 + $0x258] sm:$0xff]
  %v95 = vld [vmem:[%s1 + $0x260] sm:$0xff]
  %v96 = vld [vmem:[%s1 + $0x268] sm:$0xff]
  %v97 = vld [vmem:[%s1 + $0x270] sm:$0xff]
  %v98 = vld [vmem:[%s1 + $0x278] sm:$0xff]
  %v99 = vld [vmem:[%s1 + $0x280] sm:$0xff]
  %v100 = vld [vmem:[%s1 + $0x288] sm:$0xff]
  %v101 = vld [vmem:[%s1 + $0x290] sm:$0xff]
  %v102 = vld [vmem:[%s1 + $0x298] sm:$0xff]
  %v103 = vld [vmem:[%s1 + $0x2a0] sm:$0xff]
  %v104 = vld [vmem:[%s1 + $0x2a8] sm:$0xff]
  %v105 = vld [vmem:[%s1 + $0x2b0] sm:$0xff]
  %v106 = vld [vmem:[%s1 + $0x2b8] sm:$0xff]
  %v107 = vld [vmem:[%s1 + $0x2c0] sm:$0xff]
  %v108 = vld [vmem:[%s1 + $0x2c8] sm:$0xff]
  %v109 = vld [vmem:[%s1 + $0x2d0] sm:$0xff]
  %v110 = vld [vmem:[%s1 + $0x2d8] sm:$0xff]
  %v111 = vld [vmem:[%s1 + $0x2e0] sm:$0xff]
  %v112 = vld [vmem:[%s1 + $0x2e8] sm:$0xff]
  %v113 = vld [vmem:[%s1 + $0x2f0] sm:$0xff]
  %v114 = vld [vmem:[%s1 + $0x2f8] sm:$0xff]
  %v115 = vld [vmem:[%s1 + $0x300] sm:$0xff]
  %v116 = vld [vmem:[%s1 + $0x308] sm:$0xff]
  %v117 = vld [vmem:[%s1 + $0x310] sm:$0xff]
  %v118 = vld [vmem:[%s1 + $0x318] sm:$0xff]
  %v119 = vld [vmem:[%s1 + $0x320] sm:$0xff]
  %v120 = vld [vmem:[%s1 + $0x328] sm:$0xff]
  %v121 = vld [vmem:[%s1 + $0x330] sm:$0xff]
  %v122 = vld [vmem:[%s1 + $0x338] sm:$0xff]
  %v123 = vld [vmem:[%s1 + $0x340] sm:$0xff]
  %v124 = vld [vmem:[%s1 + $0x348] sm:$0xff]
  %v125 = vld [vmem:[%s1 + $0x350] sm:$0xff]
  %v126 = vld [vmem:[%s1 + $0x358] sm:$0xff]
  %v127 = vld [vmem:[%s1 + $0x360] sm:$0xff]
  %v128 = vld [vmem:[%s1 + $0x368] sm:$0xff]
  %v129 = vld [vmem:[%s1 + $0x370] sm:$0xff]
  %v130 = vld [vmem:[%s1 + $0x378] sm:$0xff]
  %v131 = vld [vmem:[%s1 + $0x380] sm:$0xff]
  %v132 = vld [vmem:[%s1 + $0x388] sm:$0xff]
  %v133 = vld [vmem:[%s1 + $0x390] sm:$0xff]
  %v134 = vld [vmem:[%s1 + $0x398] sm:$0xff]
  %v135 = vld [vmem:[%s1 + $0x3a0] sm:$0xff]
  %v136 = vld [vmem:[%s1 + $0x3a8] sm:$0xff]
  %v137 = vld [vmem:[%s1 + $0x3b0] sm:$0xff]
  %v138 = vld [vmem:[%s1 + $0x3b8] sm:$0xff]
  %v139 = vld [vmem:[%s1 + $0x3c0] sm:$0xff]
  %v140 = vld [vmem:[%s1 + $0x3c8] sm:$0xff]
  %v141 = vld [vmem:[%s1 + $0x3d0] sm:$0xff]
  %v142 = vld [vmem:[%s1 + $0x3d8] sm:$0xff]
  %v143 = vld [vmem:[%s1 + $0x3e0] sm:$0xff]
  %v144 = vld [vmem:[%s1 + $0x3e8] sm:$0xff]
  %v145 = vld [vmem:[%s1 + $0x3f0] sm:$0xff]
  %v146 = vld [vmem:[%s1 + $0x3f8] sm:$0xff]
  %v147 = vld [vmem:[%s1 + $0x400] sm:$0xff]
  %v148 = vld [vmem:[%s1 + $0x408] sm:$0xff]
  %v149 = vld [vmem:[%s1 + $0x410] sm:$0xff]
  %v150 = vld [vmem:[%s1 + $0x418] sm:$0xff]
  %v151 = vld [vmem:[%s1 + $0x420] sm:$0xff]
  %v152 = vld [vmem:[%s1 + $0x428] sm:$0xff]
  %v153 = vld [vmem:[%s1 + $0x430] sm:$0xff]
  %v154 = vld [vmem:[%s1 + $0x438] sm:$0xff]
  %v155 = vld [vmem:[%s1 + $0x440] sm:$0xff]
  %v156 = vld [vmem:[%s1 + $0x448] sm:$0xff]
  %v157 = vld [vmem:[%s1 + $0x450] sm:$0xff]
  %v158 = vld [vmem:[%s1 + $0x458] sm:$0xff]
  %v159 = vld [vmem:[%s1 + $0x460] sm:$0xff]
  %v160 = vld [vmem:[%s1 + $0x468] sm:$0xff]
  %v161 = vld [vmem:[%s1 + $0x470] sm:$0xff]
  %v162 = vld [vmem:[%s1 + $0x478] sm:$0xff]
  %v163 = vld [vmem:[%s1 + $0x480] sm:$0xff]
  %v164 = vld [vmem:[%s1 + $0x488] sm:$0xff]
  %v165 = vld [vmem:[%s1 + $0x490] sm:$0xff]
  %v166 = vld [vmem:[%s1 + $0x498] sm:$0xff]
  %v167 = vld [vmem:[%s1 + $0x4a0] sm:$0xff]
  %v168 = vld [vmem:[%s1 + $0x4a8] sm:$0xff]
  %v169 = vld [vmem:[%s1 + $0x4b0] sm:$0xff]
  %v170 = vld [vmem:[%s1 + $0x4b8] sm:$0xff]
  %v171 = vld [vmem:[%s1 + $0x4c0] sm:$0xff]
  %v172 = vld [vmem:[%s1 + $0x4c8] sm:$0xff]
  %v173 = vld [vmem:[%s1 + $0x4d0] sm:$0xff]
  %v174 = vld [vmem:[%s1 + $0x4d8] sm:$0xff]
  %v175 = vld [vmem:[%s1 + $0x4e0] sm:$0xff]
  %v176 = vld [vmem:[%s1 + $0x4e8] sm:$0xff]
  %v177 = vld [vmem:[%s1 + $0x4f0] sm:$0xff]
  %v178 = vld [vmem:[%s1 + $0x4f8] sm:$0xff]
  %v179 = vld [vmem:[%s1 + $0x500] sm:$0xff]
  %v180 = vld [vmem:[%s1 + $0x508] sm:$0xff]
  %v181 = vld [vmem:[%s1 + $0x510] sm:$0xff]
  %v182 = vld [vmem:[%s1 + $0x518] sm:$0xff]
  %v183 = vld [vmem:[%s1 + $0x520] sm:$0xff]
  %v184 = vld [vmem:[%s1 + $0x528] sm:$0xff]
  %v185 = vld [vmem:[%s1 + $0x530] sm:$0xff]
  %v186 = vld [vmem:[%s1 + $0x538] sm:$0xff]
  %v187 = vld [vmem:[%s1 + $0x540] sm:$0xff]
  %v188 = vld [vmem:[%s1 + $0x548] sm:$0xff]
  %v189 = vld [vmem:[%s1 + $0x550] sm:$0xff]
  %v190 = vld [vmem:[%s1 + $0x558] sm:$0xff]
  %v191 = vld [vmem:[%s1 + $0x560] sm:$0xff]
  %v192 = vld [vmem:[%s1 + $0x568] sm:$0xff]
  %v193 = vld [vmem:[%s1 + $0x570] sm:$0xff]
  %v194 = vld [vmem:[%s1 + $0x578] sm:$0xff]
  %v195 = vld [vmem:[%s1 + $0x580] sm:$0xff]
  %v196 = vld [vmem:[%s1 + $0x588] sm:$0xff]
  %v197 = vld [vmem:[%s1 + $0x590] sm:$0xff]
  %v198 = vld [vmem:[%s1 + $0x598] sm:$0xff]
  %v199 = vld [vmem:[%s1 + $0x5a0] sm:$0xff]
  %v200 = vld [vmem:[%s1 + $0x5a8] sm:$0xff]
  %v201 = vld [vmem:[%s1 + $0x5b0] sm:$0xff]
  %v202 = vld [vmem:[%s1 + $0x5b8] sm:$0xff]
  %v203 = vld [vmem:[%s1 + $0x5c0] sm:$0xff]
  %v204 = vld [vmem:[%s1 + $0x5c8] sm:$0xff]
  %v205 = vld [vmem:[%s1 + $0x5d0] sm:$0xff]
  %v206 = vld [vmem:[%s1 + $0x5d8] sm:$0xff]
  %v207 = vld [vmem:[%s1 + $0x5e0] sm:$0xff]
  %v208 = vld [vmem:[%s1 + $0x5e8] sm:$0xff]
  %v209 = vld [vmem:[%s1 + $0x5f0] sm:$0xff]
  %v210 = vld [vmem:[%s1 + $0x5f8] sm:$0xff]
  %v211 = vld [vmem:[%s1 + $0x600] sm:$0xff]
  %v212 = vld [vmem:[%s1 + $0x608] sm:$0xff]
  %v213 = vld [vmem:[%s1 + $0x610] sm:$0xff]
  %v214 = vld [vmem:[%s1 + $0x618] sm:$0xff]
  %v215 = vld [vmem:[%s1 + $0x620] sm:$0xff]
  %v216 = vld [vmem:[%s1 + $0x628] sm:$0xff]
  %v217 = vld [vmem:[%s1 + $0x630] sm:$0xff]
  %v218 = vld [vmem:[%s1 + $0x638] sm:$0xff]
  %v219 = vld [vmem:[%s1 + $0x640] sm:$0xff]
  %v220 = vld [vmem:[%s1 + $0x648] sm:$0xff]
  %v221 = vld [vmem:[%s1 + $0x650] sm:$0xff]
  %v222 = vld [vmem:[%s1 + $0x658] sm:$0xff]
  %v223 = vld [vmem:[%s1 + $0x660] sm:$0xff]
  %v224 = vld [vmem:[%s1 + $0x668] sm:$0xff]
  %v225 = vld [vmem:[%s1 + $0x670] sm:$0xff]
  %v226 = vld [vmem:[%s1 + $0x678] sm:$0xff]
  %v227 = vld [vmem:[%s1 + $0x680] sm:$0xff]
  %v228 = vld [vmem:[%s1 + $0x688] sm:$0xff]
  %v229 = vld [vmem:[%s1 + $0x690] sm:$0xff]
  %v230 = vld [vmem:[%s1 + $0x698] sm:$0xff]
  %v231 = vld [vmem:[%s1 + $0x6a0] sm:$0xff]
  %v232 = vld [vmem:[%s1 + $0x6a8] sm:$0xff]
  %v233 = vld [vmem:[%s1 + $0x6b0] sm:$0xff]
  %v234 = vld [vmem:[%s1 + $0x6b8] sm:$0xff]
  %v235 = vld [vmem:[%s1 + $0x6c0] sm:$0xff]
  %v236 = vld [vmem:[%s1 + $0x6c8] sm:$0xff]
  %v237 = vld [vmem:[%s1 + $0x6d0] sm:$0xff]
  %v238 = vld [vmem:[%s1 + $0x6d8] sm:$0xff]
  %v239 = vld [vmem:[%s1 + $0x6e0] sm:$0xff]
  %v240 = vld [vmem:[%s1 + $0x6e8] sm:$0xff]
  %v241 = vld [vmem:[%s1 + $0x6f0] sm:$0xff]
  %v242 = vld [vmem:[%s1 + $0x6f8] sm:$0xff]
  %v243 = vld [vmem:[%s1 + $0x700] sm:$0xff]
  %v244 = vld [vmem:[%s1 + $0x708] sm:$0xff]
  %v245 = vld [vmem:[%s1 + $0x710] sm:$0xff]
  %v246 = vld [vmem:[%s1 + $0x718] sm:$0xff]
  %v247 = vld [vmem:[%s1 + $0x720] sm:$0xff]
  %v248 = vld [vmem:[%s1 + $0x728] sm:$0xff]
  %v249 = vld [vmem:[%s1 + $0x730] sm:$0xff]
  %v250 = vld [vmem:[%s1 + $0x738] sm:$0xff]
  %v251 = vld [vmem:[%s1 + $0x740] sm:$0xff]
  %v252 = vld [vmem:[%s1 + $0x748] sm:$0xff]
  %v253 = vld [vmem:[%s1 + $0x750] sm:$0xff]
  %v254 = vld [vmem:[%s1 + $0x758] sm:$0xff]
  %v255 = vld [vmem:[%s1 + $0x760] sm:$0xff]
  %v256 = vld [vmem:[%s1 + $0x768] sm:$0xff]
  %v257 = vld [vmem:[%s1 + $0x770] sm:$0xff]
  %v258 = vld [vmem:[%s1 + $0x778] sm:$0xff]
  %v259 = vld [vmem:[%s1 + $0x780] sm:$0xff]
  %v260 = vld [vmem:[%s1 + $0x788] sm:$0xff]
  %v261 = vld [vmem:[%s1 + $0x790] sm:$0xff]
  %v262 = vld [vmem:[%s1 + $0x798] sm:$0xff]
  %v263 = vld [vmem:[%s1 + $0x7a0] sm:$0xff]
  %v264 = vld [vmem:[%s1 + $0x7a8] sm:$0xff]
  %v265 = vld [vmem:[%s1 + $0x7b0] sm:$0xff]
  %v266 = vld [vmem:[%s1 + $0x7b8] sm:$0xff]
  %v267 = vld [vmem:[%s1 + $0x7c0] sm:$0xff]
  %v268 = vld [vmem:[%s1 + $0x7c8] sm:$0xff]
  %v269 = vld [vmem:[%s1 + $0x7d0] sm:$0xff]
  %v270 = vld [vmem:[%s1 + $0x7d8] sm:$0xff]
  %v271 = vld [vmem:[%s1 + $0x7e0] sm:$0xff]
  %v272 = vld [vmem:[%s1 + $0x7e8] sm:$0xff]
  %v273 = vld [vmem:[%s1 + $0x7f0] sm:$0xff]
  %v274 = vld [vmem:[%s1 + $0x7f8] sm:$0xff]
  %v283 = vunpack.c.l.b16 %v11
  %v284 = vunpack.c.h.b16 %v11
  %v285 = vunpack.c.l.b16 %v12
  %v286 = vunpack.c.h.b16 %v12
  %v287 = vunpack.c.l.b16 %v13
  %v288 = vunpack.c.h.b16 %v13
  %v289 = vunpack.c.l.b16 %v14
  %v290 = vunpack.c.h.b16 %v14
  %v291 = vunpack.c.l.b16 %v15
  %v292 = vunpack.c.h.b16 %v15
  %v293 = vunpack.c.l.b16 %v16
  %v294 = vunpack.c.h.b16 %v16
  %v295 = vunpack.c.l.b16 %v17
  %v296 = vunpack.c.h.b16 %v17
  %v297 = vunpack.c.l.b16 %v18
  %v298 = vunpack.c.h.b16 %v18
  %v299 = vpack.c.b16 %v283, %v283
  %v300 = vpack.c.b16 %v284, %v284
  %v301 = vpack.c.b16 %v285, %v285
  %v302 = vpack.c.b16 %v286, %v286
  %v303 = vpack.c.b16 %v287, %v287
  %v304 = vpack.c.b16 %v288, %v288
  %v305 = vpack.c.b16 %v289, %v289
  %v306 = vpack.c.b16 %v290, %v290
  %v307 = vpack.c.b16 %v291, %v291
  %v308 = vpack.c.b16 %v292, %v292
  %v309 = vpack.c.b16 %v293, %v293
  %v310 = vpack.c.b16 %v294, %v294
  %v311 = vpack.c.b16 %v295, %v295
  %v312 = vpack.c.b16 %v296, %v296
  %v313 = vpack.c.b16 %v297, %v297
  %v314 = vpack.c.b16 %v298, %v298
  %v587 = vunpack.c.l.b16 %v19
  %v588 = vunpack.c.h.b16 %v19
  %v589 = vunpack.c.l.b16 %v20
  %v590 = vunpack.c.h.b16 %v20
  %v591 = vunpack.c.l.b16 %v21
  %v592 = vunpack.c.h.b16 %v21
  %v593 = vunpack.c.l.b16 %v22
  %v594 = vunpack.c.h.b16 %v22
  %v595 = vunpack.c.l.b16 %v23
  %v596 = vunpack.c.h.b16 %v23
  %v597 = vunpack.c.l.b16 %v24
  %v598 = vunpack.c.h.b16 %v24
  %v599 = vunpack.c.l.b16 %v25
  %v600 = vunpack.c.h.b16 %v25
  %v601 = vunpack.c.l.b16 %v26
  %v602 = vunpack.c.h.b16 %v26
  %v603 = vunpack.c.l.b16 %v27
  %v604 = vunpack.c.h.b16 %v27
  %v605 = vunpack.c.l.b16 %v28
  %v606 = vunpack.c.h.b16 %v28
  %v607 = vunpack.c.l.b16 %v29
  %v608 = vunpack.c.h.b16 %v29
  %v609 = vunpack.c.l.b16 %v30
  %v610 = vunpack.c.h.b16 %v30
  %v611 = vunpack.c.l.b16 %v31
  %v612 = vunpack.c.h.b16 %v31
  %v613 = vunpack.c.l.b16 %v32
  %v614 = vunpack.c.h.b16 %v32
  %v615 = vunpack.c.l.b16 %v33
  %v616 = vunpack.c.h.b16 %v33
  %v617 = vunpack.c.l.b16 %v34
  %v618 = vunpack.c.h.b16 %v34
  %v619 = vunpack.c.l.b16 %v35
  %v620 = vunpack.c.h.b16 %v35
  %v621 = vunpack.c.l.b16 %v36
  %v622 = vunpack.c.h.b16 %v36
  %v623 = vunpack.c.l.b16 %v37
  %v624 = vunpack.c.h.b16 %v37
  %v625 = vunpack.c.l.b16 %v38
  %v626 = vunpack.c.h.b16 %v38
  %v627 = vunpack.c.l.b16 %v39
  %v628 = vunpack.c.h.b16 %v39
  %v629 = vunpack.c.l.b16 %v40
  %v630 = vunpack.c.h.b16 %v40
  %v631 = vunpack.c.l.b16 %v41
  %v632 = vunpack.c.h.b16 %v41
  %v633 = vunpack.c.l.b16 %v42
  %v634 = vunpack.c.h.b16 %v42
  %v635 = vunpack.c.l.b16 %v43
  %v636 = vunpack.c.h.b16 %v43
  %v637 = vunpack.c.l.b16 %v44
  %v638 = vunpack.c.h.b16 %v44
  %v639 = vunpack.c.l.b16 %v45
  %v640 = vunpack.c.h.b16 %v45
  %v641 = vunpack.c.l.b16 %v46
  %v642 = vunpack.c.h.b16 %v46
  %v643 = vunpack.c.l.b16 %v47
  %v644 = vunpack.c.h.b16 %v47
  %v645 = vunpack.c.l.b16 %v48
  %v646 = vunpack.c.h.b16 %v48
  %v647 = vunpack.c.l.b16 %v49
  %v648 = vunpack.c.h.b16 %v49
  %v649 = vunpack.c.l.b16 %v50
  %v650 = vunpack.c.h.b16 %v50
  %v651 = vunpack.c.l.b16 %v51
  %v652 = vunpack.c.h.b16 %v51
  %v653 = vunpack.c.l.b16 %v52
  %v654 = vunpack.c.h.b16 %v52
  %v655 = vunpack.c.l.b16 %v53
  %v656 = vunpack.c.h.b16 %v53
  %v657 = vunpack.c.l.b16 %v54
  %v658 = vunpack.c.h.b16 %v54
  %v659 = vunpack.c.l.b16 %v55
  %v660 = vunpack.c.h.b16 %v55
  %v661 = vunpack.c.l.b16 %v56
  %v662 = vunpack.c.h.b16 %v56
  %v663 = vunpack.c.l.b16 %v57
  %v664 = vunpack.c.h.b16 %v57
  %v665 = vunpack.c.l.b16 %v58
  %v666 = vunpack.c.h.b16 %v58
  %v667 = vunpack.c.l.b16 %v59
  %v668 = vunpack.c.h.b16 %v59
  %v669 = vunpack.c.l.b16 %v60
  %v670 = vunpack.c.h.b16 %v60
  %v671 = vunpack.c.l.b16 %v61
  %v672 = vunpack.c.h.b16 %v61
  %v673 = vunpack.c.l.b16 %v62
  %v674 = vunpack.c.h.b16 %v62
  %v675 = vunpack.c.l.b16 %v63
  %v676 = vunpack.c.h.b16 %v63
  %v677 = vunpack.c.l.b16 %v64
  %v678 = vunpack.c.h.b16 %v64
  %v679 = vunpack.c.l.b16 %v65
  %v680 = vunpack.c.h.b16 %v65
  %v681 = vunpack.c.l.b16 %v66
  %v682 = vunpack.c.h.b16 %v66
  %v683 = vunpack.c.l.b16 %v67
  %v684 = vunpack.c.h.b16 %v67
  %v685 = vunpack.c.l.b16 %v68
  %v686 = vunpack.c.h.b16 %v68
  %v687 = vunpack.c.l.b16 %v69
  %v688 = vunpack.c.h.b16 %v69
  %v689 = vunpack.c.l.b16 %v70
  %v690 = vunpack.c.h.b16 %v70
  %v691 = vunpack.c.l.b16 %v71
  %v692 = vunpack.c.h.b16 %v71
  %v693 = vunpack.c.l.b16 %v72
  %v694 = vunpack.c.h.b16 %v72
  %v695 = vunpack.c.l.b16 %v73
  %v696 = vunpack.c.h.b16 %v73
  %v697 = vunpack.c.l.b16 %v74
  %v698 = vunpack.c.h.b16 %v74
  %v699 = vunpack.c.l.b16 %v75
  %v700 = vunpack.c.h.b16 %v75
  %v701 = vunpack.c.l.b16 %v76
  %v702 = vunpack.c.h.b16 %v76
  %v703 = vunpack.c.l.b16 %v77
  %v704 = vunpack.c.h.b16 %v77
  %v705 = vunpack.c.l.b16 %v78
  %v706 = vunpack.c.h.b16 %v78
  %v707 = vunpack.c.l.b16 %v79
  %v708 = vunpack.c.h.b16 %v79
  %v709 = vunpack.c.l.b16 %v80
  %v710 = vunpack.c.h.b16 %v80
  %v711 = vunpack.c.l.b16 %v81
  %v712 = vunpack.c.h.b16 %v81
  %v713 = vunpack.c.l.b16 %v82
  %v714 = vunpack.c.h.b16 %v82
  %v715 = vunpack.c.l.b16 %v83
  %v716 = vunpack.c.h.b16 %v83
  %v717 = vunpack.c.l.b16 %v84
  %v718 = vunpack.c.h.b16 %v84
  %v719 = vunpack.c.l.b16 %v85
  %v720 = vunpack.c.h.b16 %v85
  %v721 = vunpack.c.l.b16 %v86
  %v722 = vunpack.c.h.b16 %v86
  %v723 = vunpack.c.l.b16 %v87
  %v724 = vunpack.c.h.b16 %v87
  %v725 = vunpack.c.l.b16 %v88
  %v726 = vunpack.c.h.b16 %v88
  %v727 = vunpack.c.l.b16 %v89
  %v728 = vunpack.c.h.b16 %v89
  %v729 = vunpack.c.l.b16 %v90
  %v730 = vunpack.c.h.b16 %v90
  %v731 = vunpack.c.l.b16 %v91
  %v732 = vunpack.c.h.b16 %v91
  %v733 = vunpack.c.l.b16 %v92
  %v734 = vunpack.c.h.b16 %v92
  %v735 = vunpack.c.l.b16 %v93
  %v736 = vunpack.c.h.b16 %v93
  %v737 = vunpack.c.l.b16 %v94
  %v738 = vunpack.c.h.b16 %v94
  %v739 = vunpack.c.l.b16 %v95
  %v740 = vunpack.c.h.b16 %v95
  %v741 = vunpack.c.l.b16 %v96
  %v742 = vunpack.c.h.b16 %v96
  %v743 = vunpack.c.l.b16 %v97
  %v744 = vunpack.c.h.b16 %v97
  %v745 = vunpack.c.l.b16 %v98
  %v746 = vunpack.c.h.b16 %v98
  %v747 = vunpack.c.l.b16 %v99
  %v748 = vunpack.c.h.b16 %v99
  %v749 = vunpack.c.l.b16 %v100
  %v750 = vunpack.c.h.b16 %v100
  %v751 = vunpack.c.l.b16 %v101
  %v752 = vunpack.c.h.b16 %v101
  %v753 = vunpack.c.l.b16 %v102
  %v754 = vunpack.c.h.b16 %v102
  %v755 = vunpack.c.l.b16 %v103
  %v756 = vunpack.c.h.b16 %v103
  %v757 = vunpack.c.l.b16 %v104
  %v758 = vunpack.c.h.b16 %v104
  %v759 = vunpack.c.l.b16 %v105
  %v760 = vunpack.c.h.b16 %v105
  %v761 = vunpack.c.l.b16 %v106
  %v762 = vunpack.c.h.b16 %v106
  %v763 = vunpack.c.l.b16 %v107
  %v764 = vunpack.c.h.b16 %v107
  %v765 = vunpack.c.l.b16 %v108
  %v766 = vunpack.c.h.b16 %v108
  %v767 = vunpack.c.l.b16 %v109
  %v768 = vunpack.c.h.b16 %v109
  %v769 = vunpack.c.l.b16 %v110
  %v770 = vunpack.c.h.b16 %v110
  %v771 = vunpack.c.l.b16 %v111
  %v772 = vunpack.c.h.b16 %v111
  %v773 = vunpack.c.l.b16 %v112
  %v774 = vunpack.c.h.b16 %v112
  %v775 = vunpack.c.l.b16 %v113
  %v776 = vunpack.c.h.b16 %v113
  %v777 = vunpack.c.l.b16 %v114
  %v778 = vunpack.c.h.b16 %v114
  %v779 = vunpack.c.l.b16 %v115
  %v780 = vunpack.c.h.b16 %v115
  %v781 = vunpack.c.l.b16 %v116
  %v782 = vunpack.c.h.b16 %v116
  %v783 = vunpack.c.l.b16 %v117
  %v784 = vunpack.c.h.b16 %v117
  %v785 = vunpack.c.l.b16 %v118
  %v786 = vunpack.c.h.b16 %v118
  %v787 = vunpack.c.l.b16 %v119
  %v788 = vunpack.c.h.b16 %v119
  %v789 = vunpack.c.l.b16 %v120
  %v790 = vunpack.c.h.b16 %v120
  %v791 = vunpack.c.l.b16 %v121
  %v792 = vunpack.c.h.b16 %v121
  %v793 = vunpack.c.l.b16 %v122
  %v794 = vunpack.c.h.b16 %v122
  %v795 = vunpack.c.l.b16 %v123
  %v796 = vunpack.c.h.b16 %v123
  %v797 = vunpack.c.l.b16 %v124
  %v798 = vunpack.c.h.b16 %v124
  %v799 = vunpack.c.l.b16 %v125
  %v800 = vunpack.c.h.b16 %v125
  %v801 = vunpack.c.l.b16 %v126
  %v802 = vunpack.c.h.b16 %v126
  %v803 = vunpack.c.l.b16 %v127
  %v804 = vunpack.c.h.b16 %v127
  %v805 = vunpack.c.l.b16 %v128
  %v806 = vunpack.c.h.b16 %v128
  %v807 = vunpack.c.l.b16 %v129
  %v808 = vunpack.c.h.b16 %v129
  %v809 = vunpack.c.l.b16 %v130
  %v810 = vunpack.c.h.b16 %v130
  %v811 = vunpack.c.l.b16 %v131
  %v812 = vunpack.c.h.b16 %v131
  %v813 = vunpack.c.l.b16 %v132
  %v814 = vunpack.c.h.b16 %v132
  %v815 = vunpack.c.l.b16 %v133
  %v816 = vunpack.c.h.b16 %v133
  %v817 = vunpack.c.l.b16 %v134
  %v818 = vunpack.c.h.b16 %v134
  %v819 = vunpack.c.l.b16 %v135
  %v820 = vunpack.c.h.b16 %v135
  %v821 = vunpack.c.l.b16 %v136
  %v822 = vunpack.c.h.b16 %v136
  %v823 = vunpack.c.l.b16 %v137
  %v824 = vunpack.c.h.b16 %v137
  %v825 = vunpack.c.l.b16 %v138
  %v826 = vunpack.c.h.b16 %v138
  %v827 = vunpack.c.l.b16 %v139
  %v828 = vunpack.c.h.b16 %v139
  %v829 = vunpack.c.l.b16 %v140
  %v830 = vunpack.c.h.b16 %v140
  %v831 = vunpack.c.l.b16 %v141
  %v832 = vunpack.c.h.b16 %v141
  %v833 = vunpack.c.l.b16 %v142
  %v834 = vunpack.c.h.b16 %v142
  %v835 = vunpack.c.l.b16 %v143
  %v836 = vunpack.c.h.b16 %v143
  %v837 = vunpack.c.l.b16 %v144
  %v838 = vunpack.c.h.b16 %v144
  %v839 = vunpack.c.l.b16 %v145
  %v840 = vunpack.c.h.b16 %v145
  %v841 = vunpack.c.l.b16 %v146
  %v842 = vunpack.c.h.b16 %v146
  %v843 = vunpack.c.l.b16 %v147
  %v844 = vunpack.c.h.b16 %v147
  %v845 = vunpack.c.l.b16 %v148
  %v846 = vunpack.c.h.b16 %v148
  %v847 = vunpack.c.l.b16 %v149
  %v848 = vunpack.c.h.b16 %v149
  %v849 = vunpack.c.l.b16 %v150
  %v850 = vunpack.c.h.b16 %v150
  %v851 = vunpack.c.l.b16 %v151
  %v852 = vunpack.c.h.b16 %v151
  %v853 = vunpack.c.l.b16 %v152
  %v854 = vunpack.c.h.b16 %v152
  %v855 = vunpack.c.l.b16 %v153
  %v856 = vunpack.c.h.b16 %v153
  %v857 = vunpack.c.l.b16 %v154
  %v858 = vunpack.c.h.b16 %v154
  %v859 = vunpack.c.l.b16 %v155
  %v860 = vunpack.c.h.b16 %v155
  %v861 = vunpack.c.l.b16 %v156
  %v862 = vunpack.c.h.b16 %v156
  %v863 = vunpack.c.l.b16 %v157
  %v864 = vunpack.c.h.b16 %v157
  %v865 = vunpack.c.l.b16 %v158
  %v866 = vunpack.c.h.b16 %v158
  %v867 = vunpack.c.l.b16 %v159
  %v868 = vunpack.c.h.b16 %v159
  %v869 = vunpack.c.l.b16 %v160
  %v870 = vunpack.c.h.b16 %v160
  %v871 = vunpack.c.l.b16 %v161
  %v872 = vunpack.c.h.b16 %v161
  %v873 = vunpack.c.l.b16 %v162
  %v874 = vunpack.c.h.b16 %v162
  %v875 = vunpack.c.l.b16 %v163
  %v876 = vunpack.c.h.b16 %v163
  %v877 = vunpack.c.l.b16 %v164
  %v878 = vunpack.c.h.b16 %v164
  %v879 = vunpack.c.l.b16 %v165
  %v880 = vunpack.c.h.b16 %v165
  %v881 = vunpack.c.l.b16 %v166
  %v882 = vunpack.c.h.b16 %v166
  %v883 = vunpack.c.l.b16 %v167
  %v884 = vunpack.c.h.b16 %v167
  %v885 = vunpack.c.l.b16 %v168
  %v886 = vunpack.c.h.b16 %v168
  %v887 = vunpack.c.l.b16 %v169
  %v888 = vunpack.c.h.b16 %v169
  %v889 = vunpack.c.l.b16 %v170
  %v890 = vunpack.c.h.b16 %v170
  %v891 = vunpack.c.l.b16 %v171
  %v892 = vunpack.c.h.b16 %v171
  %v893 = vunpack.c.l.b16 %v172
  %v894 = vunpack.c.h.b16 %v172
  %v895 = vunpack.c.l.b16 %v173
  %v896 = vunpack.c.h.b16 %v173
  %v897 = vunpack.c.l.b16 %v174
  %v898 = vunpack.c.h.b16 %v174
  %v899 = vunpack.c.l.b16 %v175
  %v900 = vunpack.c.h.b16 %v175
  %v901 = vunpack.c.l.b16 %v176
  %v902 = vunpack.c.h.b16 %v176
  %v903 = vunpack.c.l.b16 %v177
  %v904 = vunpack.c.h.b16 %v177
  %v905 = vunpack.c.l.b16 %v178
  %v906 = vunpack.c.h.b16 %v178
  %v907 = vunpack.c.l.b16 %v179
  %v908 = vunpack.c.h.b16 %v179
  %v909 = vunpack.c.l.b16 %v180
  %v910 = vunpack.c.h.b16 %v180
  %v911 = vunpack.c.l.b16 %v181
  %v912 = vunpack.c.h.b16 %v181
  %v913 = vunpack.c.l.b16 %v182
  %v914 = vunpack.c.h.b16 %v182
  %v915 = vunpack.c.l.b16 %v183
  %v916 = vunpack.c.h.b16 %v183
  %v917 = vunpack.c.l.b16 %v184
  %v918 = vunpack.c.h.b16 %v184
  %v919 = vunpack.c.l.b16 %v185
  %v920 = vunpack.c.h.b16 %v185
  %v921 = vunpack.c.l.b16 %v186
  %v922 = vunpack.c.h.b16 %v186
  %v923 = vunpack.c.l.b16 %v187
  %v924 = vunpack.c.h.b16 %v187
  %v925 = vunpack.c.l.b16 %v188
  %v926 = vunpack.c.h.b16 %v188
  %v927 = vunpack.c.l.b16 %v189
  %v928 = vunpack.c.h.b16 %v189
  %v929 = vunpack.c.l.b16 %v190
  %v930 = vunpack.c.h.b16 %v190
  %v931 = vunpack.c.l.b16 %v191
  %v932 = vunpack.c.h.b16 %v191
  %v933 = vunpack.c.l.b16 %v192
  %v934 = vunpack.c.h.b16 %v192
  %v935 = vunpack.c.l.b16 %v193
  %v936 = vunpack.c.h.b16 %v193
  %v937 = vunpack.c.l.b16 %v194
  %v938 = vunpack.c.h.b16 %v194
  %v939 = vunpack.c.l.b16 %v195
  %v940 = vunpack.c.h.b16 %v195
  %v941 = vunpack.c.l.b16 %v196
  %v942 = vunpack.c.h.b16 %v196
  %v943 = vunpack.c.l.b16 %v197
  %v944 = vunpack.c.h.b16 %v197
  %v945 = vunpack.c.l.b16 %v198
  %v946 = vunpack.c.h.b16 %v198
  %v947 = vunpack.c.l.b16 %v199
  %v948 = vunpack.c.h.b16 %v199
  %v949 = vunpack.c.l.b16 %v200
  %v950 = vunpack.c.h.b16 %v200
  %v951 = vunpack.c.l.b16 %v201
  %v952 = vunpack.c.h.b16 %v201
  %v953 = vunpack.c.l.b16 %v202
  %v954 = vunpack.c.h.b16 %v202
  %v955 = vunpack.c.l.b16 %v203
  %v956 = vunpack.c.h.b16 %v203
  %v957 = vunpack.c.l.b16 %v204
  %v958 = vunpack.c.h.b16 %v204
  %v959 = vunpack.c.l.b16 %v205
  %v960 = vunpack.c.h.b16 %v205
  %v961 = vunpack.c.l.b16 %v206
  %v962 = vunpack.c.h.b16 %v206
  %v963 = vunpack.c.l.b16 %v207
  %v964 = vunpack.c.h.b16 %v207
  %v965 = vunpack.c.l.b16 %v208
  %v966 = vunpack.c.h.b16 %v208
  %v967 = vunpack.c.l.b16 %v209
  %v968 = vunpack.c.h.b16 %v209
  %v969 = vunpack.c.l.b16 %v210
  %v970 = vunpack.c.h.b16 %v210
  %v971 = vunpack.c.l.b16 %v211
  %v972 = vunpack.c.h.b16 %v211
  %v973 = vunpack.c.l.b16 %v212
  %v974 = vunpack.c.h.b16 %v212
  %v975 = vunpack.c.l.b16 %v213
  %v976 = vunpack.c.h.b16 %v213
  %v977 = vunpack.c.l.b16 %v214
  %v978 = vunpack.c.h.b16 %v214
  %v979 = vunpack.c.l.b16 %v215
  %v980 = vunpack.c.h.b16 %v215
  %v981 = vunpack.c.l.b16 %v216
  %v982 = vunpack.c.h.b16 %v216
  %v983 = vunpack.c.l.b16 %v217
  %v984 = vunpack.c.h.b16 %v217
  %v985 = vunpack.c.l.b16 %v218
  %v986 = vunpack.c.h.b16 %v218
  %v987 = vunpack.c.l.b16 %v219
  %v988 = vunpack.c.h.b16 %v219
  %v989 = vunpack.c.l.b16 %v220
  %v990 = vunpack.c.h.b16 %v220
  %v991 = vunpack.c.l.b16 %v221
  %v992 = vunpack.c.h.b16 %v221
  %v993 = vunpack.c.l.b16 %v222
  %v994 = vunpack.c.h.b16 %v222
  %v995 = vunpack.c.l.b16 %v223
  %v996 = vunpack.c.h.b16 %v223
  %v997 = vunpack.c.l.b16 %v224
  %v998 = vunpack.c.h.b16 %v224
  %v999 = vunpack.c.l.b16 %v225
  %v1000 = vunpack.c.h.b16 %v225
  %v1001 = vunpack.c.l.b16 %v226
  %v1002 = vunpack.c.h.b16 %v226
  %v1003 = vunpack.c.l.b16 %v227
  %v1004 = vunpack.c.h.b16 %v227
  %v1005 = vunpack.c.l.b16 %v228
  %v1006 = vunpack.c.h.b16 %v228
  %v1007 = vunpack.c.l.b16 %v229
  %v1008 = vunpack.c.h.b16 %v229
  %v1009 = vunpack.c.l.b16 %v230
  %v1010 = vunpack.c.h.b16 %v230
  %v1011 = vunpack.c.l.b16 %v231
  %v1012 = vunpack.c.h.b16 %v231
  %v1013 = vunpack.c.l.b16 %v232
  %v1014 = vunpack.c.h.b16 %v232
  %v1015 = vunpack.c.l.b16 %v233
  %v1016 = vunpack.c.h.b16 %v233
  %v1017 = vunpack.c.l.b16 %v234
  %v1018 = vunpack.c.h.b16 %v234
  %v1019 = vunpack.c.l.b16 %v235
  %v1020 = vunpack.c.h.b16 %v235
  %v1021 = vunpack.c.l.b16 %v236
  %v1022 = vunpack.c.h.b16 %v236
  %v1023 = vunpack.c.l.b16 %v237
  %v1024 = vunpack.c.h.b16 %v237
  %v1025 = vunpack.c.l.b16 %v238
  %v1026 = vunpack.c.h.b16 %v238
  %v1027 = vunpack.c.l.b16 %v239
  %v1028 = vunpack.c.h.b16 %v239
  %v1029 = vunpack.c.l.b16 %v240
  %v1030 = vunpack.c.h.b16 %v240
  %v1031 = vunpack.c.l.b16 %v241
  %v1032 = vunpack.c.h.b16 %v241
  %v1033 = vunpack.c.l.b16 %v242
  %v1034 = vunpack.c.h.b16 %v242
  %v1035 = vunpack.c.l.b16 %v243
  %v1036 = vunpack.c.h.b16 %v243
  %v1037 = vunpack.c.l.b16 %v244
  %v1038 = vunpack.c.h.b16 %v244
  %v1039 = vunpack.c.l.b16 %v245
  %v1040 = vunpack.c.h.b16 %v245
  %v1041 = vunpack.c.l.b16 %v246
  %v1042 = vunpack.c.h.b16 %v246
  %v1043 = vunpack.c.l.b16 %v247
  %v1044 = vunpack.c.h.b16 %v247
  %v1045 = vunpack.c.l.b16 %v248
  %v1046 = vunpack.c.h.b16 %v248
  %v1047 = vunpack.c.l.b16 %v249
  %v1048 = vunpack.c.h.b16 %v249
  %v1049 = vunpack.c.l.b16 %v250
  %v1050 = vunpack.c.h.b16 %v250
  %v1051 = vunpack.c.l.b16 %v251
  %v1052 = vunpack.c.h.b16 %v251
  %v1053 = vunpack.c.l.b16 %v252
  %v1054 = vunpack.c.h.b16 %v252
  %v1055 = vunpack.c.l.b16 %v253
  %v1056 = vunpack.c.h.b16 %v253
  %v1057 = vunpack.c.l.b16 %v254
  %v1058 = vunpack.c.h.b16 %v254
  %v1059 = vunpack.c.l.b16 %v255
  %v1060 = vunpack.c.h.b16 %v255
  %v1061 = vunpack.c.l.b16 %v256
  %v1062 = vunpack.c.h.b16 %v256
  %v1063 = vunpack.c.l.b16 %v257
  %v1064 = vunpack.c.h.b16 %v257
  %v1065 = vunpack.c.l.b16 %v258
  %v1066 = vunpack.c.h.b16 %v258
  %v1067 = vunpack.c.l.b16 %v259
  %v1068 = vunpack.c.h.b16 %v259
  %v1069 = vunpack.c.l.b16 %v260
  %v1070 = vunpack.c.h.b16 %v260
  %v1071 = vunpack.c.l.b16 %v261
  %v1072 = vunpack.c.h.b16 %v261
  %v1073 = vunpack.c.l.b16 %v262
  %v1074 = vunpack.c.h.b16 %v262
  %v1075 = vunpack.c.l.b16 %v263
  %v1076 = vunpack.c.h.b16 %v263
  %v1077 = vunpack.c.l.b16 %v264
  %v1078 = vunpack.c.h.b16 %v264
  %v1079 = vunpack.c.l.b16 %v265
  %v1080 = vunpack.c.h.b16 %v265
  %v1081 = vunpack.c.l.b16 %v266
  %v1082 = vunpack.c.h.b16 %v266
  %v1083 = vunpack.c.l.b16 %v267
  %v1084 = vunpack.c.h.b16 %v267
  %v1085 = vunpack.c.l.b16 %v268
  %v1086 = vunpack.c.h.b16 %v268
  %v1087 = vunpack.c.l.b16 %v269
  %v1088 = vunpack.c.h.b16 %v269
  %v1089 = vunpack.c.l.b16 %v270
  %v1090 = vunpack.c.h.b16 %v270
  %v1091 = vunpack.c.l.b16 %v271
  %v1092 = vunpack.c.h.b16 %v271
  %v1093 = vunpack.c.l.b16 %v272
  %v1094 = vunpack.c.h.b16 %v272
  %v1095 = vunpack.c.l.b16 %v273
  %v1096 = vunpack.c.h.b16 %v273
  %v1097 = vunpack.c.l.b16 %v274
  %v1098 = vunpack.c.h.b16 %v274
  %v1099 = vpack.c.b16 %v589, %v587
  %v1100 = vpack.c.b16 %v590, %v588
  %v1101 = vpack.c.b16 %v593, %v591
  %v1102 = vpack.c.b16 %v594, %v592
  %v1103 = vpack.c.b16 %v597, %v595
  %v1104 = vpack.c.b16 %v598, %v596
  %v1105 = vpack.c.b16 %v601, %v599
  %v1106 = vpack.c.b16 %v602, %v600
  %v1107 = vpack.c.b16 %v605, %v603
  %v1108 = vpack.c.b16 %v606, %v604
  %v1109 = vpack.c.b16 %v609, %v607
  %v1110 = vpack.c.b16 %v610, %v608
  %v1111 = vpack.c.b16 %v613, %v611
  %v1112 = vpack.c.b16 %v614, %v612
  %v1113 = vpack.c.b16 %v617, %v615
  %v1114 = vpack.c.b16 %v618, %v616
  %v1115 = vpack.c.b16 %v621, %v619
  %v1116 = vpack.c.b16 %v622, %v620
  %v1117 = vpack.c.b16 %v625, %v623
  %v1118 = vpack.c.b16 %v626, %v624
  %v1119 = vpack.c.b16 %v629, %v627
  %v1120 = vpack.c.b16 %v630, %v628
  %v1121 = vpack.c.b16 %v633, %v631
  %v1122 = vpack.c.b16 %v634, %v632
  %v1123 = vpack.c.b16 %v637, %v635
  %v1124 = vpack.c.b16 %v638, %v636
  %v1125 = vpack.c.b16 %v641, %v639
  %v1126 = vpack.c.b16 %v642, %v640
  %v1127 = vpack.c.b16 %v645, %v643
  %v1128 = vpack.c.b16 %v646, %v644
  %v1129 = vpack.c.b16 %v649, %v647
  %v1130 = vpack.c.b16 %v650, %v648
  %v1131 = vpack.c.b16 %v653, %v651
  %v1132 = vpack.c.b16 %v654, %v652
  %v1133 = vpack.c.b16 %v657, %v655
  %v1134 = vpack.c.b16 %v658, %v656
  %v1135 = vpack.c.b16 %v661, %v659
  %v1136 = vpack.c.b16 %v662, %v660
  %v1137 = vpack.c.b16 %v665, %v663
  %v1138 = vpack.c.b16 %v666, %v664
  %v1139 = vpack.c.b16 %v669, %v667
  %v1140 = vpack.c.b16 %v670, %v668
  %v1141 = vpack.c.b16 %v673, %v671
  %v1142 = vpack.c.b16 %v674, %v672
  %v1143 = vpack.c.b16 %v677, %v675
  %v1144 = vpack.c.b16 %v678, %v676
  %v1145 = vpack.c.b16 %v681, %v679
  %v1146 = vpack.c.b16 %v682, %v680
  %v1147 = vpack.c.b16 %v685, %v683
  %v1148 = vpack.c.b16 %v686, %v684
  %v1149 = vpack.c.b16 %v689, %v687
  %v1150 = vpack.c.b16 %v690, %v688
  %v1151 = vpack.c.b16 %v693, %v691
  %v1152 = vpack.c.b16 %v694, %v692
  %v1153 = vpack.c.b16 %v697, %v695
  %v1154 = vpack.c.b16 %v698, %v696
  %v1155 = vpack.c.b16 %v701, %v699
  %v1156 = vpack.c.b16 %v702, %v700
  %v1157 = vpack.c.b16 %v705, %v703
  %v1158 = vpack.c.b16 %v706, %v704
  %v1159 = vpack.c.b16 %v709, %v707
  %v1160 = vpack.c.b16 %v710, %v708
  %v1161 = vpack.c.b16 %v713, %v711
  %v1162 = vpack.c.b16 %v714, %v712
  %v1163 = vpack.c.b16 %v717, %v715
  %v1164 = vpack.c.b16 %v718, %v716
  %v1165 = vpack.c.b16 %v721, %v719
  %v1166 = vpack.c.b16 %v722, %v720
  %v1167 = vpack.c.b16 %v725, %v723
  %v1168 = vpack.c.b16 %v726, %v724
  %v1169 = vpack.c.b16 %v729, %v727
  %v1170 = vpack.c.b16 %v730, %v728
  %v1171 = vpack.c.b16 %v733, %v731
  %v1172 = vpack.c.b16 %v734, %v732
  %v1173 = vpack.c.b16 %v737, %v735
  %v1174 = vpack.c.b16 %v738, %v736
  %v1175 = vpack.c.b16 %v741, %v739
  %v1176 = vpack.c.b16 %v742, %v740
  %v1177 = vpack.c.b16 %v745, %v743
  %v1178 = vpack.c.b16 %v746, %v744
  %v1179 = vpack.c.b16 %v749, %v747
  %v1180 = vpack.c.b16 %v750, %v748
  %v1181 = vpack.c.b16 %v753, %v751
  %v1182 = vpack.c.b16 %v754, %v752
  %v1183 = vpack.c.b16 %v757, %v755
  %v1184 = vpack.c.b16 %v758, %v756
  %v1185 = vpack.c.b16 %v761, %v759
  %v1186 = vpack.c.b16 %v762, %v760
  %v1187 = vpack.c.b16 %v765, %v763
  %v1188 = vpack.c.b16 %v766, %v764
  %v1189 = vpack.c.b16 %v769, %v767
  %v1190 = vpack.c.b16 %v770, %v768
  %v1191 = vpack.c.b16 %v773, %v771
  %v1192 = vpack.c.b16 %v774, %v772
  %v1193 = vpack.c.b16 %v777, %v775
  %v1194 = vpack.c.b16 %v778, %v776
  %v1195 = vpack.c.b16 %v781, %v779
  %v1196 = vpack.c.b16 %v782, %v780
  %v1197 = vpack.c.b16 %v785, %v783
  %v1198 = vpack.c.b16 %v786, %v784
  %v1199 = vpack.c.b16 %v789, %v787
  %v1200 = vpack.c.b16 %v790, %v788
  %v1201 = vpack.c.b16 %v793, %v791
  %v1202 = vpack.c.b16 %v794, %v792
  %v1203 = vpack.c.b16 %v797, %v795
  %v1204 = vpack.c.b16 %v798, %v796
  %v1205 = vpack.c.b16 %v801, %v799
  %v1206 = vpack.c.b16 %v802, %v800
  %v1207 = vpack.c.b16 %v805, %v803
  %v1208 = vpack.c.b16 %v806, %v804
  %v1209 = vpack.c.b16 %v809, %v807
  %v1210 = vpack.c.b16 %v810, %v808
  %v1211 = vpack.c.b16 %v813, %v811
  %v1212 = vpack.c.b16 %v814, %v812
  %v1213 = vpack.c.b16 %v817, %v815
  %v1214 = vpack.c.b16 %v818, %v816
  %v1215 = vpack.c.b16 %v821, %v819
  %v1216 = vpack.c.b16 %v822, %v820
  %v1217 = vpack.c.b16 %v825, %v823
  %v1218 = vpack.c.b16 %v826, %v824
  %v1219 = vpack.c.b16 %v829, %v827
  %v1220 = vpack.c.b16 %v830, %v828
  %v1221 = vpack.c.b16 %v833, %v831
  %v1222 = vpack.c.b16 %v834, %v832
  %v1223 = vpack.c.b16 %v837, %v835
  %v1224 = vpack.c.b16 %v838, %v836
  %v1225 = vpack.c.b16 %v841, %v839
  %v1226 = vpack.c.b16 %v842, %v840
  %v1227 = vpack.c.b16 %v845, %v843
  %v1228 = vpack.c.b16 %v846, %v844
  %v1229 = vpack.c.b16 %v849, %v847
  %v1230 = vpack.c.b16 %v850, %v848
  %v1231 = vpack.c.b16 %v853, %v851
  %v1232 = vpack.c.b16 %v854, %v852
  %v1233 = vpack.c.b16 %v857, %v855
  %v1234 = vpack.c.b16 %v858, %v856
  %v1235 = vpack.c.b16 %v861, %v859
  %v1236 = vpack.c.b16 %v862, %v860
  %v1237 = vpack.c.b16 %v865, %v863
  %v1238 = vpack.c.b16 %v866, %v864
  %v1239 = vpack.c.b16 %v869, %v867
  %v1240 = vpack.c.b16 %v870, %v868
  %v1241 = vpack.c.b16 %v873, %v871
  %v1242 = vpack.c.b16 %v874, %v872
  %v1243 = vpack.c.b16 %v877, %v875
  %v1244 = vpack.c.b16 %v878, %v876
  %v1245 = vpack.c.b16 %v881, %v879
  %v1246 = vpack.c.b16 %v882, %v880
  %v1247 = vpack.c.b16 %v885, %v883
  %v1248 = vpack.c.b16 %v886, %v884
  %v1249 = vpack.c.b16 %v889, %v887
  %v1250 = vpack.c.b16 %v890, %v888
  %v1251 = vpack.c.b16 %v893, %v891
  %v1252 = vpack.c.b16 %v894, %v892
  %v1253 = vpack.c.b16 %v897, %v895
  %v1254 = vpack.c.b16 %v898, %v896
  %v1255 = vpack.c.b16 %v901, %v899
  %v1256 = vpack.c.b16 %v902, %v900
  %v1257 = vpack.c.b16 %v905, %v903
  %v1258 = vpack.c.b16 %v906, %v904
  %v1259 = vpack.c.b16 %v909, %v907
  %v1260 = vpack.c.b16 %v910, %v908
  %v1261 = vpack.c.b16 %v913, %v911
  %v1262 = vpack.c.b16 %v914, %v912
  %v1263 = vpack.c.b16 %v917, %v915
  %v1264 = vpack.c.b16 %v918, %v916
  %v1265 = vpack.c.b16 %v921, %v919
  %v1266 = vpack.c.b16 %v922, %v920
  %v1267 = vpack.c.b16 %v925, %v923
  %v1268 = vpack.c.b16 %v926, %v924
  %v1269 = vpack.c.b16 %v929, %v927
  %v1270 = vpack.c.b16 %v930, %v928
  %v1271 = vpack.c.b16 %v933, %v931
  %v1272 = vpack.c.b16 %v934, %v932
  %v1273 = vpack.c.b16 %v937, %v935
  %v1274 = vpack.c.b16 %v938, %v936
  %v1275 = vpack.c.b16 %v941, %v939
  %v1276 = vpack.c.b16 %v942, %v940
  %v1277 = vpack.c.b16 %v945, %v943
  %v1278 = vpack.c.b16 %v946, %v944
  %v1279 = vpack.c.b16 %v949, %v947
  %v1280 = vpack.c.b16 %v950, %v948
  %v1281 = vpack.c.b16 %v953, %v951
  %v1282 = vpack.c.b16 %v954, %v952
  %v1283 = vpack.c.b16 %v957, %v955
  %v1284 = vpack.c.b16 %v958, %v956
  %v1285 = vpack.c.b16 %v961, %v959
  %v1286 = vpack.c.b16 %v962, %v960
  %v1287 = vpack.c.b16 %v965, %v963
  %v1288 = vpack.c.b16 %v966, %v964
  %v1289 = vpack.c.b16 %v969, %v967
  %v1290 = vpack.c.b16 %v970, %v968
  %v1291 = vpack.c.b16 %v973, %v971
  %v1292 = vpack.c.b16 %v974, %v972
  %v1293 = vpack.c.b16 %v977, %v975
  %v1294 = vpack.c.b16 %v978, %v976
  %v1295 = vpack.c.b16 %v981, %v979
  %v1296 = vpack.c.b16 %v982, %v980
  %v1297 = vpack.c.b16 %v985, %v983
  %v1298 = vpack.c.b16 %v986, %v984
  %v1299 = vpack.c.b16 %v989, %v987
  %v1300 = vpack.c.b16 %v990, %v988
  %v1301 = vpack.c.b16 %v993, %v991
  %v1302 = vpack.c.b16 %v994, %v992
  %v1303 = vpack.c.b16 %v997, %v995
  %v1304 = vpack.c.b16 %v998, %v996
  %v1305 = vpack.c.b16 %v1001, %v999
  %v1306 = vpack.c.b16 %v1002, %v1000
  %v1307 = vpack.c.b16 %v1005, %v1003
  %v1308 = vpack.c.b16 %v1006, %v1004
  %v1309 = vpack.c.b16 %v1009, %v1007
  %v1310 = vpack.c.b16 %v1010, %v1008
  %v1311 = vpack.c.b16 %v1013, %v1011
  %v1312 = vpack.c.b16 %v1014, %v1012
  %v1313 = vpack.c.b16 %v1017, %v1015
  %v1314 = vpack.c.b16 %v1018, %v1016
  %v1315 = vpack.c.b16 %v1021, %v1019
  %v1316 = vpack.c.b16 %v1022, %v1020
  %v1317 = vpack.c.b16 %v1025, %v1023
  %v1318 = vpack.c.b16 %v1026, %v1024
  %v1319 = vpack.c.b16 %v1029, %v1027
  %v1320 = vpack.c.b16 %v1030, %v1028
  %v1321 = vpack.c.b16 %v1033, %v1031
  %v1322 = vpack.c.b16 %v1034, %v1032
  %v1323 = vpack.c.b16 %v1037, %v1035
  %v1324 = vpack.c.b16 %v1038, %v1036
  %v1325 = vpack.c.b16 %v1041, %v1039
  %v1326 = vpack.c.b16 %v1042, %v1040
  %v1327 = vpack.c.b16 %v1045, %v1043
  %v1328 = vpack.c.b16 %v1046, %v1044
  %v1329 = vpack.c.b16 %v1049, %v1047
  %v1330 = vpack.c.b16 %v1050, %v1048
  %v1331 = vpack.c.b16 %v1053, %v1051
  %v1332 = vpack.c.b16 %v1054, %v1052
  %v1333 = vpack.c.b16 %v1057, %v1055
  %v1334 = vpack.c.b16 %v1058, %v1056
  %v1335 = vpack.c.b16 %v1061, %v1059
  %v1336 = vpack.c.b16 %v1062, %v1060
  %v1337 = vpack.c.b16 %v1065, %v1063
  %v1338 = vpack.c.b16 %v1066, %v1064
  %v1339 = vpack.c.b16 %v1069, %v1067
  %v1340 = vpack.c.b16 %v1070, %v1068
  %v1341 = vpack.c.b16 %v1073, %v1071
  %v1342 = vpack.c.b16 %v1074, %v1072
  %v1343 = vpack.c.b16 %v1077, %v1075
  %v1344 = vpack.c.b16 %v1078, %v1076
  %v1345 = vpack.c.b16 %v1081, %v1079
  %v1346 = vpack.c.b16 %v1082, %v1080
  %v1347 = vpack.c.b16 %v1085, %v1083
  %v1348 = vpack.c.b16 %v1086, %v1084
  %v1349 = vpack.c.b16 %v1089, %v1087
  %v1350 = vpack.c.b16 %v1090, %v1088
  %v1351 = vpack.c.b16 %v1093, %v1091
  %v1352 = vpack.c.b16 %v1094, %v1092
  %v1353 = vpack.c.b16 %v1097, %v1095
  %v1354 = vpack.c.b16 %v1098, %v1096
  %1611 = vmatpush.bf16.msra.mxu0 %v1113
  %1612 = vmatpush.bf16.msra.mxu0 %v1111
  %1613 = vmatpush.bf16.msra.mxu0 %v1109
  %1614 = vmatpush.bf16.msra.mxu0 %v1107
  %1615 = vmatpush.bf16.msra.mxu0 %v1105
  %1616 = vmatpush.bf16.msra.mxu0 %v1103
  %1617 = vmatpush.bf16.msra.mxu0 %v1101
  %1618 = vmatpush.bf16.msra.mxu0 %v1099
  %1619 = vmatmul.bf16.gmra.mxu0 %v299
  %v1620 = vpop.f32.mrf.mxu0
  %v1621 = vadd.f32 0.0, %v1620
  %v1622 = vpop.f32.mrf.mxu0
  %1623 = vdwg.mxu0
  %1624 = vmatpush.bf16.msra.mxu0 %v1129
  %1625 = vmatpush.bf16.msra.mxu0 %v1127
  %1626 = vmatpush.bf16.msra.mxu0 %v1125
  %1627 = vmatpush.bf16.msra.mxu0 %v1123
  %1628 = vmatpush.bf16.msra.mxu0 %v1121
  %1629 = vmatpush.bf16.msra.mxu0 %v1119
  %1630 = vmatpush.bf16.msra.mxu0 %v1117
  %1631 = vmatpush.bf16.msra.mxu0 %v1115
  %1632 = vmatmul.bf16.gmra.mxu0 %v300
  %v1633 = vpop.f32.mrf.mxu0
  %v1634 = vadd.f32 %v1621, %v1633
  %v1635 = vpop.f32.mrf.mxu0
  %1636 = vdwg.mxu0
  %1637 = vmatpush.bf16.msra.mxu0 %v1145
  %1638 = vmatpush.bf16.msra.mxu0 %v1143
  %1639 = vmatpush.bf16.msra.mxu0 %v1141
  %1640 = vmatpush.bf16.msra.mxu0 %v1139
  %1641 = vmatpush.bf16.msra.mxu0 %v1137
  %1642 = vmatpush.bf16.msra.mxu0 %v1135
  %1643 = vmatpush.bf16.msra.mxu0 %v1133
  %1644 = vmatpush.bf16.msra.mxu0 %v1131
  %1645 = vmatmul.bf16.gmra.mxu0 %v301
  %v1646 = vpop.f32.mrf.mxu0
  %v1647 = vadd.f32 %v1634, %v1646
  %v1648 = vpop.f32.mrf.mxu0
  %1649 = vdwg.mxu0
  %1650 = vmatpush.bf16.msra.mxu0 %v1161
  %1651 = vmatpush.bf16.msra.mxu0 %v1159
  %1652 = vmatpush.bf16.msra.mxu0 %v1157
  %1653 = vmatpush.bf16.msra.mxu0 %v1155
  %1654 = vmatpush.bf16.msra.mxu0 %v1153
  %1655 = vmatpush.bf16.msra.mxu0 %v1151
  %1656 = vmatpush.bf16.msra.mxu0 %v1149
  %1657 = vmatpush.bf16.msra.mxu0 %v1147
  %1658 = vmatmul.bf16.gmra.mxu0 %v302
  %v1659 = vpop.f32.mrf.mxu0
  %v1660 = vadd.f32 %v1647, %v1659
  %v1661 = vpop.f32.mrf.mxu0
  %1662 = vdwg.mxu0
  %1663 = vmatpush.bf16.msra.mxu0 %v1177
  %1664 = vmatpush.bf16.msra.mxu0 %v1175
  %1665 = vmatpush.bf16.msra.mxu0 %v1173
  %1666 = vmatpush.bf16.msra.mxu0 %v1171
  %1667 = vmatpush.bf16.msra.mxu0 %v1169
  %1668 = vmatpush.bf16.msra.mxu0 %v1167
  %1669 = vmatpush.bf16.msra.mxu0 %v1165
  %1670 = vmatpush.bf16.msra.mxu0 %v1163
  %1671 = vmatmul.bf16.gmra.mxu0 %v303
  %v1672 = vpop.f32.mrf.mxu0
  %v1673 = vadd.f32 %v1660, %v1672
  %v1674 = vpop.f32.mrf.mxu0
  %1675 = vdwg.mxu0
  %1676 = vmatpush.bf16.msra.mxu0 %v1193
  %1677 = vmatpush.bf16.msra.mxu0 %v1191
  %1678 = vmatpush.bf16.msra.mxu0 %v1189
  %1679 = vmatpush.bf16.msra.mxu0 %v1187
  %1680 = vmatpush.bf16.msra.mxu0 %v1185
  %1681 = vmatpush.bf16.msra.mxu0 %v1183
  %1682 = vmatpush.bf16.msra.mxu0 %v1181
  %1683 = vmatpush.bf16.msra.mxu0 %v1179
  %1684 = vmatmul.bf16.gmra.mxu0 %v304
  %v1685 = vpop.f32.mrf.mxu0
  %v1686 = vadd.f32 %v1673, %v1685
  %v1687 = vpop.f32.mrf.mxu0
  %1688 = vdwg.mxu0
  %1689 = vmatpush.bf16.msra.mxu0 %v1209
  %1690 = vmatpush.bf16.msra.mxu0 %v1207
  %1691 = vmatpush.bf16.msra.mxu0 %v1205
  %1692 = vmatpush.bf16.msra.mxu0 %v1203
  %1693 = vmatpush.bf16.msra.mxu0 %v1201
  %1694 = vmatpush.bf16.msra.mxu0 %v1199
  %1695 = vmatpush.bf16.msra.mxu0 %v1197
  %1696 = vmatpush.bf16.msra.mxu0 %v1195
  %1697 = vmatmul.bf16.gmra.mxu0 %v305
  %v1698 = vpop.f32.mrf.mxu0
  %v1699 = vadd.f32 %v1686, %v1698
  %v1700 = vpop.f32.mrf.mxu0
  %1701 = vdwg.mxu0
  %1702 = vmatpush.bf16.msra.mxu0 %v1225
  %1703 = vmatpush.bf16.msra.mxu0 %v1223
  %1704 = vmatpush.bf16.msra.mxu0 %v1221
  %1705 = vmatpush.bf16.msra.mxu0 %v1219
  %1706 = vmatpush.bf16.msra.mxu0 %v1217
  %1707 = vmatpush.bf16.msra.mxu0 %v1215
  %1708 = vmatpush.bf16.msra.mxu0 %v1213
  %1709 = vmatpush.bf16.msra.mxu0 %v1211
  %1710 = vmatmul.bf16.gmra.mxu0 %v306
  %v1711 = vpop.f32.mrf.mxu0
  %v1712 = vadd.f32 %v1699, %v1711
  %v1713 = vpop.f32.mrf.mxu0
  %1714 = vdwg.mxu0
  %1715 = vmatpush.bf16.msra.mxu0 %v1241
  %1716 = vmatpush.bf16.msra.mxu0 %v1239
  %1717 = vmatpush.bf16.msra.mxu0 %v1237
  %1718 = vmatpush.bf16.msra.mxu0 %v1235
  %1719 = vmatpush.bf16.msra.mxu0 %v1233
  %1720 = vmatpush.bf16.msra.mxu0 %v1231
  %1721 = vmatpush.bf16.msra.mxu0 %v1229
  %1722 = vmatpush.bf16.msra.mxu0 %v1227
  %1723 = vmatmul.bf16.gmra.mxu0 %v307
  %v1724 = vpop.f32.mrf.mxu0
  %v1725 = vadd.f32 %v1712, %v1724
  %v1726 = vpop.f32.mrf.mxu0
  %1727 = vdwg.mxu0
  %1728 = vmatpush.bf16.msra.mxu0 %v1257
  %1729 = vmatpush.bf16.msra.mxu0 %v1255
  %1730 = vmatpush.bf16.msra.mxu0 %v1253
  %1731 = vmatpush.bf16.msra.mxu0 %v1251
  %1732 = vmatpush.bf16.msra.mxu0 %v1249
  %1733 = vmatpush.bf16.msra.mxu0 %v1247
  %1734 = vmatpush.bf16.msra.mxu0 %v1245
  %1735 = vmatpush.bf16.msra.mxu0 %v1243
  %1736 = vmatmul.bf16.gmra.mxu0 %v308
  %v1737 = vpop.f32.mrf.mxu0
  %v1738 = vadd.f32 %v1725, %v1737
  %v1739 = vpop.f32.mrf.mxu0
  %1740 = vdwg.mxu0
  %1741 = vmatpush.bf16.msra.mxu0 %v1273
  %1742 = vmatpush.bf16.msra.mxu0 %v1271
  %1743 = vmatpush.bf16.msra.mxu0 %v1269
  %1744 = vmatpush.bf16.msra.mxu0 %v1267
  %1745 = vmatpush.bf16.msra.mxu0 %v1265
  %1746 = vmatpush.bf16.msra.mxu0 %v1263
  %1747 = vmatpush.bf16.msra.mxu0 %v1261
  %1748 = vmatpush.bf16.msra.mxu0 %v1259
  %1749 = vmatmul.bf16.gmra.mxu0 %v309
  %v1750 = vpop.f32.mrf.mxu0
  %v1751 = vadd.f32 %v1738, %v1750
  %v1752 = vpop.f32.mrf.mxu0
  %1753 = vdwg.mxu0
  %1754 = vmatpush.bf16.msra.mxu0 %v1289
  %1755 = vmatpush.bf16.msra.mxu0 %v1287
  %1756 = vmatpush.bf16.msra.mxu0 %v1285
  %1757 = vmatpush.bf16.msra.mxu0 %v1283
  %1758 = vmatpush.bf16.msra.mxu0 %v1281
  %1759 = vmatpush.bf16.msra.mxu0 %v1279
  %1760 = vmatpush.bf16.msra.mxu0 %v1277
  %1761 = vmatpush.bf16.msra.mxu0 %v1275
  %1762 = vmatmul.bf16.gmra.mxu0 %v310
  %v1763 = vpop.f32.mrf.mxu0
  %v1764 = vadd.f32 %v1751, %v1763
  %v1765 = vpop.f32.mrf.mxu0
  %1766 = vdwg.mxu0
  %1767 = vmatpush.bf16.msra.mxu0 %v1305
  %1768 = vmatpush.bf16.msra.mxu0 %v1303
  %1769 = vmatpush.bf16.msra.mxu0 %v1301
  %1770 = vmatpush.bf16.msra.mxu0 %v1299
  %1771 = vmatpush.bf16.msra.mxu0 %v1297
  %1772 = vmatpush.bf16.msra.mxu0 %v1295
  %1773 = vmatpush.bf16.msra.mxu0 %v1293
  %1774 = vmatpush.bf16.msra.mxu0 %v1291
  %1775 = vmatmul.bf16.gmra.mxu0 %v311
  %v1776 = vpop.f32.mrf.mxu0
  %v1777 = vadd.f32 %v1764, %v1776
  %v1778 = vpop.f32.mrf.mxu0
  %1779 = vdwg.mxu0
  %1780 = vmatpush.bf16.msra.mxu0 %v1321
  %1781 = vmatpush.bf16.msra.mxu0 %v1319
  %1782 = vmatpush.bf16.msra.mxu0 %v1317
  %1783 = vmatpush.bf16.msra.mxu0 %v1315
  %1784 = vmatpush.bf16.msra.mxu0 %v1313
  %1785 = vmatpush.bf16.msra.mxu0 %v1311
  %1786 = vmatpush.bf16.msra.mxu0 %v1309
  %1787 = vmatpush.bf16.msra.mxu0 %v1307
  %1788 = vmatmul.bf16.gmra.mxu0 %v312
  %v1789 = vpop.f32.mrf.mxu0
  %v1790 = vadd.f32 %v1777, %v1789
  %v1791 = vpop.f32.mrf.mxu0
  %1792 = vdwg.mxu0
  %1793 = vmatpush.bf16.msra.mxu0 %v1337
  %1794 = vmatpush.bf16.msra.mxu0 %v1335
  %1795 = vmatpush.bf16.msra.mxu0 %v1333
  %1796 = vmatpush.bf16.msra.mxu0 %v1331
  %1797 = vmatpush.bf16.msra.mxu0 %v1329
  %1798 = vmatpush.bf16.msra.mxu0 %v1327
  %1799 = vmatpush.bf16.msra.mxu0 %v1325
  %1800 = vmatpush.bf16.msra.mxu0 %v1323
  %1801 = vmatmul.bf16.gmra.mxu0 %v313
  %v1802 = vpop.f32.mrf.mxu0
  %v1803 = vadd.f32 %v1790, %v1802
  %v1804 = vpop.f32.mrf.mxu0
  %1805 = vdwg.mxu0
  %1806 = vmatpush.bf16.msra.mxu0 %v1353
  %1807 = vmatpush.bf16.msra.mxu0 %v1351
  %1808 = vmatpush.bf16.msra.mxu0 %v1349
  %1809 = vmatpush.bf16.msra.mxu0 %v1347
  %1810 = vmatpush.bf16.msra.mxu0 %v1345
  %1811 = vmatpush.bf16.msra.mxu0 %v1343
  %1812 = vmatpush.bf16.msra.mxu0 %v1341
  %1813 = vmatpush.bf16.msra.mxu0 %v1339
  %1814 = vmatmul.bf16.gmra.mxu0 %v314
  %v1815 = vpop.f32.mrf.mxu0
  %v1816 = vadd.f32 %v1803, %v1815
  %v1817 = vpop.f32.mrf.mxu0
  %1818 = vdwg.mxu0
  %1819 = vmatpush.bf16.msra.mxu0 %v1114
  %1820 = vmatpush.bf16.msra.mxu0 %v1112
  %1821 = vmatpush.bf16.msra.mxu0 %v1110
  %1822 = vmatpush.bf16.msra.mxu0 %v1108
  %1823 = vmatpush.bf16.msra.mxu0 %v1106
  %1824 = vmatpush.bf16.msra.mxu0 %v1104
  %1825 = vmatpush.bf16.msra.mxu0 %v1102
  %1826 = vmatpush.bf16.msra.mxu0 %v1100
  %1827 = vmatmul.bf16.gmra.mxu0 %v299
  %v1828 = vpop.f32.mrf.mxu0
  %v1829 = vadd.f32 0.0, %v1828
  %v1830 = vpop.f32.mrf.mxu0
  %1831 = vdwg.mxu0
  %1832 = vmatpush.bf16.msra.mxu0 %v1130
  %1833 = vmatpush.bf16.msra.mxu0 %v1128
  %1834 = vmatpush.bf16.msra.mxu0 %v1126
  %1835 = vmatpush.bf16.msra.mxu0 %v1124
  %1836 = vmatpush.bf16.msra.mxu0 %v1122
  %1837 = vmatpush.bf16.msra.mxu0 %v1120
  %1838 = vmatpush.bf16.msra.mxu0 %v1118
  %1839 = vmatpush.bf16.msra.mxu0 %v1116
  %1840 = vmatmul.bf16.gmra.mxu0 %v300
  %v1841 = vpop.f32.mrf.mxu0
  %v1842 = vadd.f32 %v1829, %v1841
  %v1843 = vpop.f32.mrf.mxu0
  %1844 = vdwg.mxu0
  %1845 = vmatpush.bf16.msra.mxu0 %v1146
  %1846 = vmatpush.bf16.msra.mxu0 %v1144
  %1847 = vmatpush.bf16.msra.mxu0 %v1142
  %1848 = vmatpush.bf16.msra.mxu0 %v1140
  %1849 = vmatpush.bf16.msra.mxu0 %v1138
  %1850 = vmatpush.bf16.msra.mxu0 %v1136
  %1851 = vmatpush.bf16.msra.mxu0 %v1134
  %1852 = vmatpush.bf16.msra.mxu0 %v1132
  %1853 = vmatmul.bf16.gmra.mxu0 %v301
  %v1854 = vpop.f32.mrf.mxu0
  %v1855 = vadd.f32 %v1842, %v1854
  %v1856 = vpop.f32.mrf.mxu0
  %1857 = vdwg.mxu0
  %1858 = vmatpush.bf16.msra.mxu0 %v1162
  %1859 = vmatpush.bf16.msra.mxu0 %v1160
  %1860 = vmatpush.bf16.msra.mxu0 %v1158
  %1861 = vmatpush.bf16.msra.mxu0 %v1156
  %1862 = vmatpush.bf16.msra.mxu0 %v1154
  %1863 = vmatpush.bf16.msra.mxu0 %v1152
  %1864 = vmatpush.bf16.msra.mxu0 %v1150
  %1865 = vmatpush.bf16.msra.mxu0 %v1148
  %1866 = vmatmul.bf16.gmra.mxu0 %v302
  %v1867 = vpop.f32.mrf.mxu0
  %v1868 = vadd.f32 %v1855, %v1867
  %v1869 = vpop.f32.mrf.mxu0
  %1870 = vdwg.mxu0
  %1871 = vmatpush.bf16.msra.mxu0 %v1178
  %1872 = vmatpush.bf16.msra.mxu0 %v1176
  %1873 = vmatpush.bf16.msra.mxu0 %v1174
  %1874 = vmatpush.bf16.msra.mxu0 %v1172
  %1875 = vmatpush.bf16.msra.mxu0 %v1170
  %1876 = vmatpush.bf16.msra.mxu0 %v1168
  %1877 = vmatpush.bf16.msra.mxu0 %v1166
  %1878 = vmatpush.bf16.msra.mxu0 %v1164
  %1879 = vmatmul.bf16.gmra.mxu0 %v303
  %v1880 = vpop.f32.mrf.mxu0
  %v1881 = vadd.f32 %v1868, %v1880
  %v1882 = vpop.f32.mrf.mxu0
  %1883 = vdwg.mxu0
  %1884 = vmatpush.bf16.msra.mxu0 %v1194
  %1885 = vmatpush.bf16.msra.mxu0 %v1192
  %1886 = vmatpush.bf16.msra.mxu0 %v1190
  %1887 = vmatpush.bf16.msra.mxu0 %v1188
  %1888 = vmatpush.bf16.msra.mxu0 %v1186
  %1889 = vmatpush.bf16.msra.mxu0 %v1184
  %1890 = vmatpush.bf16.msra.mxu0 %v1182
  %1891 = vmatpush.bf16.msra.mxu0 %v1180
  %1892 = vmatmul.bf16.gmra.mxu0 %v304
  %v1893 = vpop.f32.mrf.mxu0
  %v1894 = vadd.f32 %v1881, %v1893
  %v1895 = vpop.f32.mrf.mxu0
  %1896 = vdwg.mxu0
  %1897 = vmatpush.bf16.msra.mxu0 %v1210
  %1898 = vmatpush.bf16.msra.mxu0 %v1208
  %1899 = vmatpush.bf16.msra.mxu0 %v1206
  %1900 = vmatpush.bf16.msra.mxu0 %v1204
  %1901 = vmatpush.bf16.msra.mxu0 %v1202
  %1902 = vmatpush.bf16.msra.mxu0 %v1200
  %1903 = vmatpush.bf16.msra.mxu0 %v1198
  %1904 = vmatpush.bf16.msra.mxu0 %v1196
  %1905 = vmatmul.bf16.gmra.mxu0 %v305
  %v1906 = vpop.f32.mrf.mxu0
  %v1907 = vadd.f32 %v1894, %v1906
  %v1908 = vpop.f32.mrf.mxu0
  %1909 = vdwg.mxu0
  %1910 = vmatpush.bf16.msra.mxu0 %v1226
  %1911 = vmatpush.bf16.msra.mxu0 %v1224
  %1912 = vmatpush.bf16.msra.mxu0 %v1222
  %1913 = vmatpush.bf16.msra.mxu0 %v1220
  %1914 = vmatpush.bf16.msra.mxu0 %v1218
  %1915 = vmatpush.bf16.msra.mxu0 %v1216
  %1916 = vmatpush.bf16.msra.mxu0 %v1214
  %1917 = vmatpush.bf16.msra.mxu0 %v1212
  %1918 = vmatmul.bf16.gmra.mxu0 %v306
  %v1919 = vpop.f32.mrf.mxu0
  %v1920 = vadd.f32 %v1907, %v1919
  %v1921 = vpop.f32.mrf.mxu0
  %1922 = vdwg.mxu0
  %1923 = vmatpush.bf16.msra.mxu0 %v1242
  %1924 = vmatpush.bf16.msra.mxu0 %v1240
  %1925 = vmatpush.bf16.msra.mxu0 %v1238
  %1926 = vmatpush.bf16.msra.mxu0 %v1236
  %1927 = vmatpush.bf16.msra.mxu0 %v1234
  %1928 = vmatpush.bf16.msra.mxu0 %v1232
  %1929 = vmatpush.bf16.msra.mxu0 %v1230
  %1930 = vmatpush.bf16.msra.mxu0 %v1228
  %1931 = vmatmul.bf16.gmra.mxu0 %v307
  %v1932 = vpop.f32.mrf.mxu0
  %v1933 = vadd.f32 %v1920, %v1932
  %v1934 = vpop.f32.mrf.mxu0
  %1935 = vdwg.mxu0
  %1936 = vmatpush.bf16.msra.mxu0 %v1258
  %1937 = vmatpush.bf16.msra.mxu0 %v1256
  %1938 = vmatpush.bf16.msra.mxu0 %v1254
  %1939 = vmatpush.bf16.msra.mxu0 %v1252
  %1940 = vmatpush.bf16.msra.mxu0 %v1250
  %1941 = vmatpush.bf16.msra.mxu0 %v1248
  %1942 = vmatpush.bf16.msra.mxu0 %v1246
  %1943 = vmatpush.bf16.msra.mxu0 %v1244
  %1944 = vmatmul.bf16.gmra.mxu0 %v308
  %v1945 = vpop.f32.mrf.mxu0
  %v1946 = vadd.f32 %v1933, %v1945
  %v1947 = vpop.f32.mrf.mxu0
  %1948 = vdwg.mxu0
  %1949 = vmatpush.bf16.msra.mxu0 %v1274
  %1950 = vmatpush.bf16.msra.mxu0 %v1272
  %1951 = vmatpush.bf16.msra.mxu0 %v1270
  %1952 = vmatpush.bf16.msra.mxu0 %v1268
  %1953 = vmatpush.bf16.msra.mxu0 %v1266
  %1954 = vmatpush.bf16.msra.mxu0 %v1264
  %1955 = vmatpush.bf16.msra.mxu0 %v1262
  %1956 = vmatpush.bf16.msra.mxu0 %v1260
  %1957 = vmatmul.bf16.gmra.mxu0 %v309
  %v1958 = vpop.f32.mrf.mxu0
  %v1959 = vadd.f32 %v1946, %v1958
  %v1960 = vpop.f32.mrf.mxu0
  %1961 = vdwg.mxu0
  %1962 = vmatpush.bf16.msra.mxu0 %v1290
  %1963 = vmatpush.bf16.msra.mxu0 %v1288
  %1964 = vmatpush.bf16.msra.mxu0 %v1286
  %1965 = vmatpush.bf16.msra.mxu0 %v1284
  %1966 = vmatpush.bf16.msra.mxu0 %v1282
  %1967 = vmatpush.bf16.msra.mxu0 %v1280
  %1968 = vmatpush.bf16.msra.mxu0 %v1278
  %1969 = vmatpush.bf16.msra.mxu0 %v1276
  %1970 = vmatmul.bf16.gmra.mxu0 %v310
  %v1971 = vpop.f32.mrf.mxu0
  %v1972 = vadd.f32 %v1959, %v1971
  %v1973 = vpop.f32.mrf.mxu0
  %1974 = vdwg.mxu0
  %1975 = vmatpush.bf16.msra.mxu0 %v1306
  %1976 = vmatpush.bf16.msra.mxu0 %v1304
  %1977 = vmatpush.bf16.msra.mxu0 %v1302
  %1978 = vmatpush.bf16.msra.mxu0 %v1300
  %1979 = vmatpush.bf16.msra.mxu0 %v1298
  %1980 = vmatpush.bf16.msra.mxu0 %v1296
  %1981 = vmatpush.bf16.msra.mxu0 %v1294
  %1982 = vmatpush.bf16.msra.mxu0 %v1292
  %1983 = vmatmul.bf16.gmra.mxu0 %v311
  %v1984 = vpop.f32.mrf.mxu0
  %v1985 = vadd.f32 %v1972, %v1984
  %v1986 = vpop.f32.mrf.mxu0
  %1987 = vdwg.mxu0
  %1988 = vmatpush.bf16.msra.mxu0 %v1322
  %1989 = vmatpush.bf16.msra.mxu0 %v1320
  %1990 = vmatpush.bf16.msra.mxu0 %v1318
  %1991 = vmatpush.bf16.msra.mxu0 %v1316
  %1992 = vmatpush.bf16.msra.mxu0 %v1314
  %1993 = vmatpush.bf16.msra.mxu0 %v1312
  %1994 = vmatpush.bf16.msra.mxu0 %v1310
  %1995 = vmatpush.bf16.msra.mxu0 %v1308
  %1996 = vmatmul.bf16.gmra.mxu0 %v312
  %v1997 = vpop.f32.mrf.mxu0
  %v1998 = vadd.f32 %v1985, %v1997
  %v1999 = vpop.f32.mrf.mxu0
  %2000 = vdwg.mxu0
  %2001 = vmatpush.bf16.msra.mxu0 %v1338
  %2002 = vmatpush.bf16.msra.mxu0 %v1336
  %2003 = vmatpush.bf16.msra.mxu0 %v1334
  %2004 = vmatpush.bf16.msra.mxu0 %v1332
  %2005 = vmatpush.bf16.msra.mxu0 %v1330
  %2006 = vmatpush.bf16.msra.mxu0 %v1328
  %2007 = vmatpush.bf16.msra.mxu0 %v1326
  %2008 = vmatpush.bf16.msra.mxu0 %v1324
  %2009 = vmatmul.bf16.gmra.mxu0 %v313
  %v2010 = vpop.f32.mrf.mxu0
  %v2011 = vadd.f32 %v1998, %v2010
  %v2012 = vpop.f32.mrf.mxu0
  %2013 = vdwg.mxu0
  %2014 = vmatpush.bf16.msra.mxu0 %v1354
  %2015 = vmatpush.bf16.msra.mxu0 %v1352
  %2016 = vmatpush.bf16.msra.mxu0 %v1350
  %2017 = vmatpush.bf16.msra.mxu0 %v1348
  %2018 = vmatpush.bf16.msra.mxu0 %v1346
  %2019 = vmatpush.bf16.msra.mxu0 %v1344
  %2020 = vmatpush.bf16.msra.mxu0 %v1342
  %2021 = vmatpush.bf16.msra.mxu0 %v1340
  %2022 = vmatmul.bf16.gmra.mxu0 %v314
  %v2023 = vpop.f32.mrf.mxu0
  %v2024 = vadd.f32 %v2011, %v2023
  %v2025 = vpop.f32.mrf.mxu0
  %2026 = vdwg.mxu0
  %v2027 = vrot.slane %v1816, 4
  %v2028 = vadd.f32 %v1816, %v2027
  %v2029 = vrot.slane %v2028, 2
  %v2030 = vadd.f32 %v2028, %v2029
  %v2031 = vrot.slane %v2030, 1
  %v2032 = vadd.f32 %v2030, %v2031
  %v2033 = vrot.slane %v2024, 4
  %v2034 = vadd.f32 %v2024, %v2033
  %v2035 = vrot.slane %v2034, 2
  %v2036 = vadd.f32 %v2034, %v2035
  %v2037 = vrot.slane %v2036, 1
  %v2038 = vadd.f32 %v2036, %v2037
  %v2039 = vrcp.pop 8.0
  %v2040 = vmul.f32 8.0, %v2039
  %v2041 = vsub.f32 1.0, %v2040
  %v2042 = vmul.f32 %v2039, %v2041
  %v2043 = vadd.f32 %v2039, %v2042
  %vm2044 = vweird.f32 %v2039
  %v2045 = vsel %vm2044, %v2039, %v2043
  %v2046 = vmul.f32 %v2032, %v2045
  %v2047 = vmul.f32 %v2038, %v2045
  %v2048 = vsub.f32 %v1816, %v2046
  %v2049 = vsub.f32 %v2024, %v2047
  %v2050 = vmul.f32 %v2048, %v2048
  %v2051 = vmul.f32 %v2049, %v2049
  %v2052 = vrot.slane %v2050, 4
  %v2053 = vadd.f32 %v2050, %v2052
  %v2054 = vrot.slane %v2053, 2
  %v2055 = vadd.f32 %v2053, %v2054
  %v2056 = vrot.slane %v2055, 1
  %v2057 = vadd.f32 %v2055, %v2056
  %v2058 = vrot.slane %v2051, 4
  %v2059 = vadd.f32 %v2051, %v2058
  %v2060 = vrot.slane %v2059, 2
  %v2061 = vadd.f32 %v2059, %v2060
  %v2062 = vrot.slane %v2061, 1
  %v2063 = vadd.f32 %v2061, %v2062
  %v2064 = vmul.f32 %v2057, %v2045
  %v2065 = vmul.f32 %v2063, %v2045
  %v2066 = vadd.f32 %v2064, 1e-05
  %v2067 = vadd.f32 %v2065, 1e-05
  %v2068 = vrsqrt.pop %v2066
  %v2069 = vmul.f32 %v2068, %v2066
  %v2070 = vmul.f32 %v2069, %v2068
  %v2071 = vmul.f32 0.5, %v2070
  %v2072 = vsub.f32 1.5, %v2071
  %v2073 = vmul.f32 %v2068, %v2072
  %vm2074 = vweird.f32 %v2066
  %vm2075 = vweird.f32 %v2068
  %vm2076 = vmor %vm2074, %vm2075
  %v2077 = vsel %vm2076, %v2068, %v2073
  %v2078 = vrsqrt.pop %v2067
  %v2079 = vmul.f32 %v2078, %v2067
  %v2080 = vmul.f32 %v2079, %v2078
  %v2081 = vmul.f32 0.5, %v2080
  %v2082 = vsub.f32 1.5, %v2081
  %v2083 = vmul.f32 %v2078, %v2082
  %vm2084 = vweird.f32 %v2067
  %vm2085 = vweird.f32 %v2078
  %vm2086 = vmor %vm2084, %vm2085
  %v2087 = vsel %vm2086, %v2078, %v2083
  %v2088 = vmul.f32 %v2048, %v2077
  %v2089 = vmul.f32 %v2049, %v2087
  %vm2090 = vcmp.ge.f32.partialorder %v2088, 0.0
  %vm2091 = vcmp.ge.f32.partialorder %v2089, 0.0
  %v2092 = vmul.f32 %v2088, 0.2
  %v2093 = vmul.f32 %v2089, 0.2
  %v2094 = vsel %vm2090, %v2088, %v2092
  %v2095 = vsel %vm2091, %v2089, %v2093
  %v2096 = vpack.c.bf16 %v2095, %v2094
  %2097 = vst [vmem:[%s2] sm:$0xff] %v2096
  // Predicated region
  $region10: #{patchgan_forward.6} parent=0 // pred_check
    _
  $region11: #{patchgan_forward.6} parent=0 // pred_check_branch
    %2099 = sbr.rel (0) target = $region13
  $region12: #{patchgan_forward.6} parent=0 // pred_region
    _
  $region13: #{patchgan_forward.6} parent=0 // pred_fallthru
    _
  // Predicated region
  $region14: #{patchgan_forward.6} parent=0 // pred_check
    _
  $region15: #{patchgan_forward.6} parent=0 // pred_check_branch
    %2101 = sbr.rel (0) target = $region17
  $region16: #{patchgan_forward.6} parent=0 // pred_region
    _
  $region17: #{patchgan_forward.6} parent=0 // pred_fallthru
    _

// kernel: patchgan_forward.7
$region0: #{patchgan_forward.7}
  #allocation0 [shape = 'u32[]', space=smem, size = 0x4, offset = 0x4, fixed_abs, tag = 'smem constant byte address 0x4 - core index']
  #allocation1 [shape = 'u32[72,128]{1,0:T(1,128)}', space=vmem, size = 0x9000, scoped, tag = 'internal scratch']
  %s0 = inlined_call_operand.vmem [shape: bf16[2,4096], index: 0, kind: input, shape index: {}]
  %s1 = inlined_call_operand.vmem [shape: bf16[4096,512], index: 1, kind: input, shape index: {}]
  %s2 = inlined_call_operand.vmem [shape: bf16[2,512], index: 2, kind: output, shape index: {}]
  %s3 = sld [smem:[#allocation0]]
  $region18: #{patchgan_forward.7} parent=0
    _
  %s5 = ssub.s32 1, %s3
  %s6 = scalar_select 0, %s5, %s3
  // Predicated region
  $region2: #{patchgan_forward.7} parent=0 // pred_check
    _
  $region3: #{patchgan_forward.7} parent=0 // pred_check_branch
    %8 = sbr.rel (0) target = $region5
  $region4: #{patchgan_forward.7} parent=0 // pred_region
    _
  $region5: #{patchgan_forward.7} parent=0 // pred_fallthru
    _
  // Predicated region
  $region6: #{patchgan_forward.7} parent=0 // pred_check
    _
  $region7: #{patchgan_forward.7} parent=0 // pred_check_branch
    %10 = sbr.rel (0) target = $region9
  $region8: #{patchgan_forward.7} parent=0 // pred_region
    _
  $region9: #{patchgan_forward.7} parent=0 // pred_fallthru
    _
  %v11 = vld [vmem:[%s0] sm:$0xff]
  %v12 = vld [vmem:[%s0 + $0x8] sm:$0xff]
  %v13 = vld [vmem:[%s0 + $0x10] sm:$0xff]
  %v14 = vld [vmem:[%s0 + $0x18] sm:$0xff]
  %v15 = vld [vmem:[%s1] sm:$0xff]
  %v16 = vld [vmem:[%s1 + $0x8] sm:$0xff]
  %v17 = vld [vmem:[%s1 + $0x10] sm:$0xff]
  %v18 = vld [vmem:[%s1 + $0x18] sm:$0xff]
  %v19 = vld [vmem:[%s1 + $0x20] sm:$0xff]
  %v20 = vld [vmem:[%s1 + $0x28] sm:$0xff]
  %v21 = vld [vmem:[%s1 + $0x30] sm:$0xff]
  %v22 = vld [vmem:[%s1 + $0x38] sm:$0xff]
  %v23 = vld [vmem:[%s1 + $0x40] sm:$0xff]
  %v24 = vld [vmem:[%s1 + $0x48] sm:$0xff]
  %v25 = vld [vmem:[%s1 + $0x50] sm:$0xff]
  %v26 = vld [vmem:[%s1 + $0x58] sm:$0xff]
  %v27 = vld [vmem:[%s1 + $0x60] sm:$0xff]
  %v28 = vld [vmem:[%s1 + $0x68] sm:$0xff]
  %v29 = vld [vmem:[%s1 + $0x70] sm:$0xff]
  %v30 = vld [vmem:[%s1 + $0x78] sm:$0xff]
  %v31 = vld [vmem:[%s1 + $0x80] sm:$0xff]
  %v32 = vld [vmem:[%s1 + $0x88] sm:$0xff]
  %v33 = vld [vmem:[%s1 + $0x90] sm:$0xff]
  %v34 = vld [vmem:[%s1 + $0x98] sm:$0xff]
  %v35 = vld [vmem:[%s1 + $0xa0] sm:$0xff]
  %v36 = vld [vmem:[%s1 + $0xa8] sm:$0xff]
  %v37 = vld [vmem:[%s1 + $0xb0] sm:$0xff]
  %v38 = vld [vmem:[%s1 + $0xb8] sm:$0xff]
  %v39 = vld [vmem:[%s1 + $0xc0] sm:$0xff]
  %v40 = vld [vmem:[%s1 + $0xc8] sm:$0xff]
  %v41 = vld [vmem:[%s1 + $0xd0] sm:$0xff]
  %v42 = vld [vmem:[%s1 + $0xd8] sm:$0xff]
  %v43 = vld [vmem:[%s1 + $0xe0] sm:$0xff]
  %v44 = vld [vmem:[%s1 + $0xe8] sm:$0xff]
  %v45 = vld [vmem:[%s1 + $0xf0] sm:$0xff]
  %v46 = vld [vmem:[%s1 + $0xf8] sm:$0xff]
  %v47 = vld [vmem:[%s1 + $0x100] sm:$0xff]
  %v48 = vld [vmem:[%s1 + $0x108] sm:$0xff]
  %v49 = vld [vmem:[%s1 + $0x110] sm:$0xff]
  %v50 = vld [vmem:[%s1 + $0x118] sm:$0xff]
  %v51 = vld [vmem:[%s1 + $0x120] sm:$0xff]
  %v52 = vld [vmem:[%s1 + $0x128] sm:$0xff]
  %v53 = vld [vmem:[%s1 + $0x130] sm:$0xff]
  %v54 = vld [vmem:[%s1 + $0x138] sm:$0xff]
  %v55 = vld [vmem:[%s1 + $0x140] sm:$0xff]
  %v56 = vld [vmem:[%s1 + $0x148] sm:$0xff]
  %v57 = vld [vmem:[%s1 + $0x150] sm:$0xff]
  %v58 = vld [vmem:[%s1 + $0x158] sm:$0xff]
  %v59 = vld [vmem:[%s1 + $0x160] sm:$0xff]
  %v60 = vld [vmem:[%s1 + $0x168] sm:$0xff]
  %v61 = vld [vmem:[%s1 + $0x170] sm:$0xff]
  %v62 = vld [vmem:[%s1 + $0x178] sm:$0xff]
  %v63 = vld [vmem:[%s1 + $0x180] sm:$0xff]
  %v64 = vld [vmem:[%s1 + $0x188] sm:$0xff]
  %v65 = vld [vmem:[%s1 + $0x190] sm:$0xff]
  %v66 = vld [vmem:[%s1 + $0x198] sm:$0xff]
  %v67 = vld [vmem:[%s1 + $0x1a0] sm:$0xff]
  %v68 = vld [vmem:[%s1 + $0x1a8] sm:$0xff]
  %v69 = vld [vmem:[%s1 + $0x1b0] sm:$0xff]
  %v70 = vld [vmem:[%s1 + $0x1b8] sm:$0xff]
  %v71 = vld [vmem:[%s1 + $0x1c0] sm:$0xff]
  %v72 = vld [vmem:[%s1 + $0x1c8] sm:$0xff]
  %v73 = vld [vmem:[%s1 + $0x1d0] sm:$0xff]
  %v74 = vld [vmem:[%s1 + $0x1d8] sm:$0xff]
  %v75 = vld [vmem:[%s1 + $0x1e0] sm:$0xff]
  %v76 = vld [vmem:[%s1 + $0x1e8] sm:$0xff]
  %v77 = vld [vmem:[%s1 + $0x1f0] sm:$0xff]
  %v78 = vld [vmem:[%s1 + $0x1f8] sm:$0xff]
  %v79 = vld [vmem:[%s1 + $0x200] sm:$0xff]
  %v80 = vld [vmem:[%s1 + $0x208] sm:$0xff]
  %v81 = vld [vmem:[%s1 + $0x210] sm:$0xff]
  %v82 = vld [vmem:[%s1 + $0x218] sm:$0xff]
  %v83 = vld [vmem:[%s1 + $0x220] sm:$0xff]
  %v84 = vld [vmem:[%s1 + $0x228] sm:$0xff]
  %v85 = vld [vmem:[%s1 + $0x230] sm:$0xff]
  %v86 = vld [vmem:[%s1 + $0x238] sm:$0xff]
  %v87 = vld [vmem:[%s1 + $0x240] sm:$0xff]
  %v88 = vld [vmem:[%s1 + $0x248] sm:$0xff]
  %v89 = vld [vmem:[%s1 + $0x250] sm:$0xff]
  %v90 = vld [vmem:[%s1 + $0x258] sm:$0xff]
  %v91 = vld [vmem:[%s1 + $0x260] sm:$0xff]
  %v92 = vld [vmem:[%s1 + $0x268] sm:$0xff]
  %v93 = vld [vmem:[%s1 + $0x270] sm:$0xff]
  %v94 = vld [vmem:[%s1 + $0x278] sm:$0xff]
  %v95 = vld [vmem:[%s1 + $0x280] sm:$0xff]
  %v96 = vld [vmem:[%s1 + $0x288] sm:$0xff]
  %v97 = vld [vmem:[%s1 + $0x290] sm:$0xff]
  %v98 = vld [vmem:[%s1 + $0x298] sm:$0xff]
  %v99 = vld [vmem:[%s1 + $0x2a0] sm:$0xff]
  %v100 = vld [vmem:[%s1 + $0x2a8] sm:$0xff]
  %v101 = vld [vmem:[%s1 + $0x2b0] sm:$0xff]
  %v102 = vld [vmem:[%s1 + $0x2b8] sm:$0xff]
  %v103 = vld [vmem:[%s1 + $0x2c0] sm:$0xff]
  %v104 = vld [vmem:[%s1 + $0x2c8] sm:$0xff]
  %v105 = vld [vmem:[%s1 + $0x2d0] sm:$0xff]
  %v106 = vld [vmem:[%s1 + $0x2d8] sm:$0xff]
  %v107 = vld [vmem:[%s1 + $0x2e0] sm:$0xff]
  %v108 = vld [vmem:[%s1 + $0x2e8] sm:$0xff]
  %v109 = vld [vmem:[%s1 + $0x2f0] sm:$0xff]
  %v110 = vld [vmem:[%s1 + $0x2f8] sm:$0xff]
  %v111 = vld [vmem:[%s1 + $0x300] sm:$0xff]
  %v112 = vld [vmem:[%s1 + $0x308] sm:$0xff]
  %v113 = vld [vmem:[%s1 + $0x310] sm:$0xff]
  %v114 = vld [vmem:[%s1 + $0x318] sm:$0xff]
  %v115 = vld [vmem:[%s1 + $0x320] sm:$0xff]
  %v116 = vld [vmem:[%s1 + $0x328] sm:$0xff]
  %v117 = vld [vmem:[%s1 + $0x330] sm:$0xff]
  %v118 = vld [vmem:[%s1 + $0x338] sm:$0xff]
  %v119 = vld [vmem:[%s1 + $0x340] sm:$0xff]
  %v120 = vld [vmem:[%s1 + $0x348] sm:$0xff]
  %v121 = vld [vmem:[%s1 + $0x350] sm:$0xff]
  %v122 = vld [vmem:[%s1 + $0x358] sm:$0xff]
  %v123 = vld [vmem:[%s1 + $0x360] sm:$0xff]
  %v124 = vld [vmem:[%s1 + $0x368] sm:$0xff]
  %v125 = vld [vmem:[%s1 + $0x370] sm:$0xff]
  %v126 = vld [vmem:[%s1 + $0x378] sm:$0xff]
  %v127 = vld [vmem:[%s1 + $0x380] sm:$0xff]
  %v128 = vld [vmem:[%s1 + $0x388] sm:$0xff]
  %v129 = vld [vmem:[%s1 + $0x390] sm:$0xff]
  %v130 = vld [vmem:[%s1 + $0x398] sm:$0xff]
  %v131 = vld [vmem:[%s1 + $0x3a0] sm:$0xff]
  %v132 = vld [vmem:[%s1 + $0x3a8] sm:$0xff]
  %v133 = vld [vmem:[%s1 + $0x3b0] sm:$0xff]
  %v134 = vld [vmem:[%s1 + $0x3b8] sm:$0xff]
  %v135 = vld [vmem:[%s1 + $0x3c0] sm:$0xff]
  %v136 = vld [vmem:[%s1 + $0x3c8] sm:$0xff]
  %v137 = vld [vmem:[%s1 + $0x3d0] sm:$0xff]
  %v138 = vld [vmem:[%s1 + $0x3d8] sm:$0xff]
  %v139 = vld [vmem:[%s1 + $0x3e0] sm:$0xff]
  %v140 = vld [vmem:[%s1 + $0x3e8] sm:$0xff]
  %v141 = vld [vmem:[%s1 + $0x3f0] sm:$0xff]
  %v142 = vld [vmem:[%s1 + $0x3f8] sm:$0xff]
  %v143 = vld [vmem:[%s1 + $0x400] sm:$0xff]
  %v144 = vld [vmem:[%s1 + $0x408] sm:$0xff]
  %v145 = vld [vmem:[%s1 + $0x410] sm:$0xff]
  %v146 = vld [vmem:[%s1 + $0x418] sm:$0xff]
  %v147 = vld [vmem:[%s1 + $0x420] sm:$0xff]
  %v148 = vld [vmem:[%s1 + $0x428] sm:$0xff]
  %v149 = vld [vmem:[%s1 + $0x430] sm:$0xff]
  %v150 = vld [vmem:[%s1 + $0x438] sm:$0xff]
  %v151 = vld [vmem:[%s1 + $0x440] sm:$0xff]
  %v152 = vld [vmem:[%s1 + $0x448] sm:$0xff]
  %v153 = vld [vmem:[%s1 + $0x450] sm:$0xff]
  %v154 = vld [vmem:[%s1 + $0x458] sm:$0xff]
  %v155 = vld [vmem:[%s1 + $0x460] sm:$0xff]
  %v156 = vld [vmem:[%s1 + $0x468] sm:$0xff]
  %v157 = vld [vmem:[%s1 + $0x470] sm:$0xff]
  %v158 = vld [vmem:[%s1 + $0x478] sm:$0xff]
  %v159 = vld [vmem:[%s1 + $0x480] sm:$0xff]
  %v160 = vld [vmem:[%s1 + $0x488] sm:$0xff]
  %v161 = vld [vmem:[%s1 + $0x490] sm:$0xff]
  %v162 = vld [vmem:[%s1 + $0x498] sm:$0xff]
  %v163 = vld [vmem:[%s1 + $0x4a0] sm:$0xff]
  %v164 = vld [vmem:[%s1 + $0x4a8] sm:$0xff]
  %v165 = vld [vmem:[%s1 + $0x4b0] sm:$0xff]
  %v166 = vld [vmem:[%s1 + $0x4b8] sm:$0xff]
  %v167 = vld [vmem:[%s1 + $0x4c0] sm:$0xff]
  %v168 = vld [vmem:[%s1 + $0x4c8] sm:$0xff]
  %v169 = vld [vmem:[%s1 + $0x4d0] sm:$0xff]
  %v170 = vld [vmem:[%s1 + $0x4d8] sm:$0xff]
  %v171 = vld [vmem:[%s1 + $0x4e0] sm:$0xff]
  %v172 = vld [vmem:[%s1 + $0x4e8] sm:$0xff]
  %v173 = vld [vmem:[%s1 + $0x4f0] sm:$0xff]
  %v174 = vld [vmem:[%s1 + $0x4f8] sm:$0xff]
  %v175 = vld [vmem:[%s1 + $0x500] sm:$0xff]
  %v176 = vld [vmem:[%s1 + $0x508] sm:$0xff]
  %v177 = vld [vmem:[%s1 + $0x510] sm:$0xff]
  %v178 = vld [vmem:[%s1 + $0x518] sm:$0xff]
  %v179 = vld [vmem:[%s1 + $0x520] sm:$0xff]
  %v180 = vld [vmem:[%s1 + $0x528] sm:$0xff]
  %v181 = vld [vmem:[%s1 + $0x530] sm:$0xff]
  %v182 = vld [vmem:[%s1 + $0x538] sm:$0xff]
  %v183 = vld [vmem:[%s1 + $0x540] sm:$0xff]
  %v184 = vld [vmem:[%s1 + $0x548] sm:$0xff]
  %v185 = vld [vmem:[%s1 + $0x550] sm:$0xff]
  %v186 = vld [vmem:[%s1 + $0x558] sm:$0xff]
  %v187 = vld [vmem:[%s1 + $0x560] sm:$0xff]
  %v188 = vld [vmem:[%s1 + $0x568] sm:$0xff]
  %v189 = vld [vmem:[%s1 + $0x570] sm:$0xff]
  %v190 = vld [vmem:[%s1 + $0x578] sm:$0xff]
  %v191 = vld [vmem:[%s1 + $0x580] sm:$0xff]
  %v192 = vld [vmem:[%s1 + $0x588] sm:$0xff]
  %v193 = vld [vmem:[%s1 + $0x590] sm:$0xff]
  %v194 = vld [vmem:[%s1 + $0x598] sm:$0xff]
  %v195 = vld [vmem:[%s1 + $0x5a0] sm:$0xff]
  %v196 = vld [vmem:[%s1 + $0x5a8] sm:$0xff]
  %v197 = vld [vmem:[%s1 + $0x5b0] sm:$0xff]
  %v198 = vld [vmem:[%s1 + $0x5b8] sm:$0xff]
  %v199 = vld [vmem:[%s1 + $0x5c0] sm:$0xff]
  %v200 = vld [vmem:[%s1 + $0x5c8] sm:$0xff]
  %v201 = vld [vmem:[%s1 + $0x5d0] sm:$0xff]
  %v202 = vld [vmem:[%s1 + $0x5d8] sm:$0xff]
  %v203 = vld [vmem:[%s1 + $0x5e0] sm:$0xff]
  %v204 = vld [vmem:[%s1 + $0x5e8] sm:$0xff]
  %v205 = vld [vmem:[%s1 + $0x5f0] sm:$0xff]
  %v206 = vld [vmem:[%s1 + $0x5f8] sm:$0xff]
  %v207 = vld [vmem:[%s1 + $0x600] sm:$0xff]
  %v208 = vld [vmem:[%s1 + $0x608] sm:$0xff]
  %v209 = vld [vmem:[%s1 + $0x610] sm:$0xff]
  %v210 = vld [vmem:[%s1 + $0x618] sm:$0xff]
  %v211 = vld [vmem:[%s1 + $0x620] sm:$0xff]
  %v212 = vld [vmem:[%s1 + $0x628] sm:$0xff]
  %v213 = vld [vmem:[%s1 + $0x630] sm:$0xff]
  %v214 = vld [vmem:[%s1 + $0x638] sm:$0xff]
  %v215 = vld [vmem:[%s1 + $0x640] sm:$0xff]
  %v216 = vld [vmem:[%s1 + $0x648] sm:$0xff]
  %v217 = vld [vmem:[%s1 + $0x650] sm:$0xff]
  %v218 = vld [vmem:[%s1 + $0x658] sm:$0xff]
  %v219 = vld [vmem:[%s1 + $0x660] sm:$0xff]
  %v220 = vld [vmem:[%s1 + $0x668] sm:$0xff]
  %v221 = vld [vmem:[%s1 + $0x670] sm:$0xff]
  %v222 = vld [vmem:[%s1 + $0x678] sm:$0xff]
  %v223 = vld [vmem:[%s1 + $0x680] sm:$0xff]
  %v224 = vld [vmem:[%s1 + $0x688] sm:$0xff]
  %v225 = vld [vmem:[%s1 + $0x690] sm:$0xff]
  %v226 = vld [vmem:[%s1 + $0x698] sm:$0xff]
  %v227 = vld [vmem:[%s1 + $0x6a0] sm:$0xff]
  %v228 = vld [vmem:[%s1 + $0x6a8] sm:$0xff]
  %v229 = vld [vmem:[%s1 + $0x6b0] sm:$0xff]
  %v230 = vld [vmem:[%s1 + $0x6b8] sm:$0xff]
  %v231 = vld [vmem:[%s1 + $0x6c0] sm:$0xff]
  %v232 = vld [vmem:[%s1 + $0x6c8] sm:$0xff]
  %v233 = vld [vmem:[%s1 + $0x6d0] sm:$0xff]
  %v234 = vld [vmem:[%s1 + $0x6d8] sm:$0xff]
  %v235 = vld [vmem:[%s1 + $0x6e0] sm:$0xff]
  %v236 = vld [vmem:[%s1 + $0x6e8] sm:$0xff]
  %v237 = vld [vmem:[%s1 + $0x6f0] sm:$0xff]
  %v238 = vld [vmem:[%s1 + $0x6f8] sm:$0xff]
  %v239 = vld [vmem:[%s1 + $0x700] sm:$0xff]
  %v240 = vld [vmem:[%s1 + $0x708] sm:$0xff]
  %v241 = vld [vmem:[%s1 + $0x710] sm:$0xff]
  %v242 = vld [vmem:[%s1 + $0x718] sm:$0xff]
  %v243 = vld [vmem:[%s1 + $0x720] sm:$0xff]
  %v244 = vld [vmem:[%s1 + $0x728] sm:$0xff]
  %v245 = vld [vmem:[%s1 + $0x730] sm:$0xff]
  %v246 = vld [vmem:[%s1 + $0x738] sm:$0xff]
  %v247 = vld [vmem:[%s1 + $0x740] sm:$0xff]
  %v248 = vld [vmem:[%s1 + $0x748] sm:$0xff]
  %v249 = vld [vmem:[%s1 + $0x750] sm:$0xff]
  %v250 = vld [vmem:[%s1 + $0x758] sm:$0xff]
  %v251 = vld [vmem:[%s1 + $0x760] sm:$0xff]
  %v252 = vld [vmem:[%s1 + $0x768] sm:$0xff]
  %v253 = vld [vmem:[%s1 + $0x770] sm:$0xff]
  %v254 = vld [vmem:[%s1 + $0x778] sm:$0xff]
  %v255 = vld [vmem:[%s1 + $0x780] sm:$0xff]
  %v256 = vld [vmem:[%s1 + $0x788] sm:$0xff]
  %v257 = vld [vmem:[%s1 + $0x790] sm:$0xff]
  %v258 = vld [vmem:[%s1 + $0x798] sm:$0xff]
  %v259 = vld [vmem:[%s1 + $0x7a0] sm:$0xff]
  %v260 = vld [vmem:[%s1 + $0x7a8] sm:$0xff]
  %v261 = vld [vmem:[%s1 + $0x7b0] sm:$0xff]
  %v262 = vld [vmem:[%s1 + $0x7b8] sm:$0xff]
  %v263 = vld [vmem:[%s1 + $0x7c0] sm:$0xff]
  %v264 = vld [vmem:[%s1 + $0x7c8] sm:$0xff]
  %v265 = vld [vmem:[%s1 + $0x7d0] sm:$0xff]
  %v266 = vld [vmem:[%s1 + $0x7d8] sm:$0xff]
  %v267 = vld [vmem:[%s1 + $0x7e0] sm:$0xff]
  %v268 = vld [vmem:[%s1 + $0x7e8] sm:$0xff]
  %v269 = vld [vmem:[%s1 + $0x7f0] sm:$0xff]
  %v270 = vld [vmem:[%s1 + $0x7f8] sm:$0xff]
  %v271 = vld [vmem:[%s1 + $0x800] sm:$0xff]
  %v272 = vld [vmem:[%s1 + $0x808] sm:$0xff]
  %v273 = vld [vmem:[%s1 + $0x810] sm:$0xff]
  %v274 = vld [vmem:[%s1 + $0x818] sm:$0xff]
  %v275 = vld [vmem:[%s1 + $0x820] sm:$0xff]
  %v276 = vld [vmem:[%s1 + $0x828] sm:$0xff]
  %v277 = vld [vmem:[%s1 + $0x830] sm:$0xff]
  %v278 = vld [vmem:[%s1 + $0x838] sm:$0xff]
  %v279 = vld [vmem:[%s1 + $0x840] sm:$0xff]
  %v280 = vld [vmem:[%s1 + $0x848] sm:$0xff]
  %v281 = vld [vmem:[%s1 + $0x850] sm:$0xff]
  %v282 = vld [vmem:[%s1 + $0x858] sm:$0xff]
  %v283 = vld [vmem:[%s1 + $0x860] sm:$0xff]
  %v284 = vld [vmem:[%s1 + $0x868] sm:$0xff]
  %v285 = vld [vmem:[%s1 + $0x870] sm:$0xff]
  %v286 = vld [vmem:[%s1 + $0x878] sm:$0xff]
  %v287 = vld [vmem:[%s1 + $0x880] sm:$0xff]
  %v288 = vld [vmem:[%s1 + $0x888] sm:$0xff]
  %v289 = vld [vmem:[%s1 + $0x890] sm:$0xff]
  %v290 = vld [vmem:[%s1 + $0x898] sm:$0xff]
  %v291 = vld [vmem:[%s1 + $0x8a0] sm:$0xff]
  %v292 = vld [vmem:[%s1 + $0x8a8] sm:$0xff]
  %v293 = vld [vmem:[%s1 + $0x8b0] sm:$0xff]
  %v294 = vld [vmem:[%s1 + $0x8b8] sm:$0xff]
  %v295 = vld [vmem:[%s1 + $0x8c0] sm:$0xff]
  %v296 = vld [vmem:[%s1 + $0x8c8] sm:$0xff]
  %v297 = vld [vmem:[%s1 + $0x8d0] sm:$0xff]
  %v298 = vld [vmem:[%s1 + $0x8d8] sm:$0xff]
  %v299 = vld [vmem:[%s1 + $0x8e0] sm:$0xff]
  %v300 = vld [vmem:[%s1 + $0x8e8] sm:$0xff]
  %v301 = vld [vmem:[%s1 + $0x8f0] sm:$0xff]
  %v302 = vld [vmem:[%s1 + $0x8f8] sm:$0xff]
  %v303 = vld [vmem:[%s1 + $0x900] sm:$0xff]
  %v304 = vld [vmem:[%s1 + $0x908] sm:$0xff]
  %v305 = vld [vmem:[%s1 + $0x910] sm:$0xff]
  %v306 = vld [vmem:[%s1 + $0x918] sm:$0xff]
  %v307 = vld [vmem:[%s1 + $0x920] sm:$0xff]
  %v308 = vld [vmem:[%s1 + $0x928] sm:$0xff]
  %v309 = vld [vmem:[%s1 + $0x930] sm:$0xff]
  %v310 = vld [vmem:[%s1 + $0x938] sm:$0xff]
  %v311 = vld [vmem:[%s1 + $0x940] sm:$0xff]
  %v312 = vld [vmem:[%s1 + $0x948] sm:$0xff]
  %v313 = vld [vmem:[%s1 + $0x950] sm:$0xff]
  %v314 = vld [vmem:[%s1 + $0x958] sm:$0xff]
  %v315 = vld [vmem:[%s1 + $0x960] sm:$0xff]
  %v316 = vld [vmem:[%s1 + $0x968] sm:$0xff]
  %v317 = vld [vmem:[%s1 + $0x970] sm:$0xff]
  %v318 = vld [vmem:[%s1 + $0x978] sm:$0xff]
  %v319 = vld [vmem:[%s1 + $0x980] sm:$0xff]
  %v320 = vld [vmem:[%s1 + $0x988] sm:$0xff]
  %v321 = vld [vmem:[%s1 + $0x990] sm:$0xff]
  %v322 = vld [vmem:[%s1 + $0x998] sm:$0xff]
  %v323 = vld [vmem:[%s1 + $0x9a0] sm:$0xff]
  %v324 = vld [vmem:[%s1 + $0x9a8] sm:$0xff]
  %v325 = vld [vmem:[%s1 + $0x9b0] sm:$0xff]
  %v326 = vld [vmem:[%s1 + $0x9b8] sm:$0xff]
  %v327 = vld [vmem:[%s1 + $0x9c0] sm:$0xff]
  %v328 = vld [vmem:[%s1 + $0x9c8] sm:$0xff]
  %v329 = vld [vmem:[%s1 + $0x9d0] sm:$0xff]
  %v330 = vld [vmem:[%s1 + $0x9d8] sm:$0xff]
  %v331 = vld [vmem:[%s1 + $0x9e0] sm:$0xff]
  %v332 = vld [vmem:[%s1 + $0x9e8] sm:$0xff]
  %v333 = vld [vmem:[%s1 + $0x9f0] sm:$0xff]
  %v334 = vld [vmem:[%s1 + $0x9f8] sm:$0xff]
  %v335 = vld [vmem:[%s1 + $0xa00] sm:$0xff]
  %v336 = vld [vmem:[%s1 + $0xa08] sm:$0xff]
  %v337 = vld [vmem:[%s1 + $0xa10] sm:$0xff]
  %v338 = vld [vmem:[%s1 + $0xa18] sm:$0xff]
  %v339 = vld [vmem:[%s1 + $0xa20] sm:$0xff]
  %v340 = vld [vmem:[%s1 + $0xa28] sm:$0xff]
  %v341 = vld [vmem:[%s1 + $0xa30] sm:$0xff]
  %v342 = vld [vmem:[%s1 + $0xa38] sm:$0xff]
  %v343 = vld [vmem:[%s1 + $0xa40] sm:$0xff]
  %v344 = vld [vmem:[%s1 + $0xa48] sm:$0xff]
  %v345 = vld [vmem:[%s1 + $0xa50] sm:$0xff]
  %v346 = vld [vmem:[%s1 + $0xa58] sm:$0xff]
  %v347 = vld [vmem:[%s1 + $0xa60] sm:$0xff]
  %v348 = vld [vmem:[%s1 + $0xa68] sm:$0xff]
  %v349 = vld [vmem:[%s1 + $0xa70] sm:$0xff]
  %v350 = vld [vmem:[%s1 + $0xa78] sm:$0xff]
  %v351 = vld [vmem:[%s1 + $0xa80] sm:$0xff]
  %v352 = vld [vmem:[%s1 + $0xa88] sm:$0xff]
  %v353 = vld [vmem:[%s1 + $0xa90] sm:$0xff]
  %v354 = vld [vmem:[%s1 + $0xa98] sm:$0xff]
  %v355 = vld [vmem:[%s1 + $0xaa0] sm:$0xff]
  %v356 = vld [vmem:[%s1 + $0xaa8] sm:$0xff]
  %v357 = vld [vmem:[%s1 + $0xab0] sm:$0xff]
  %v358 = vld [vmem:[%s1 + $0xab8] sm:$0xff]
  %v359 = vld [vmem:[%s1 + $0xac0] sm:$0xff]
  %v360 = vld [vmem:[%s1 + $0xac8] sm:$0xff]
  %v361 = vld [vmem:[%s1 + $0xad0] sm:$0xff]
  %v362 = vld [vmem:[%s1 + $0xad8] sm:$0xff]
  %v363 = vld [vmem:[%s1 + $0xae0] sm:$0xff]
  %v364 = vld [vmem:[%s1 + $0xae8] sm:$0xff]
  %v365 = vld [vmem:[%s1 + $0xaf0] sm:$0xff]
  %v366 = vld [vmem:[%s1 + $0xaf8] sm:$0xff]
  %v367 = vld [vmem:[%s1 + $0xb00] sm:$0xff]
  %v368 = vld [vmem:[%s1 + $0xb08] sm:$0xff]
  %v369 = vld [vmem:[%s1 + $0xb10] sm:$0xff]
  %v370 = vld [vmem:[%s1 + $0xb18] sm:$0xff]
  %v371 = vld [vmem:[%s1 + $0xb20] sm:$0xff]
  %v372 = vld [vmem:[%s1 + $0xb28] sm:$0xff]
  %v373 = vld [vmem:[%s1 + $0xb30] sm:$0xff]
  %v374 = vld [vmem:[%s1 + $0xb38] sm:$0xff]
  %v375 = vld [vmem:[%s1 + $0xb40] sm:$0xff]
  %v376 = vld [vmem:[%s1 + $0xb48] sm:$0xff]
  %v377 = vld [vmem:[%s1 + $0xb50] sm:$0xff]
  %v378 = vld [vmem:[%s1 + $0xb58] sm:$0xff]
  %v379 = vld [vmem:[%s1 + $0xb60] sm:$0xff]
  %v380 = vld [vmem:[%s1 + $0xb68] sm:$0xff]
  %v381 = vld [vmem:[%s1 + $0xb70] sm:$0xff]
  %v382 = vld [vmem:[%s1 + $0xb78] sm:$0xff]
  %v383 = vld [vmem:[%s1 + $0xb80] sm:$0xff]
  %v384 = vld [vmem:[%s1 + $0xb88] sm:$0xff]
  %v385 = vld [vmem:[%s1 + $0xb90] sm:$0xff]
  %v386 = vld [vmem:[%s1 + $0xb98] sm:$0xff]
  %v387 = vld [vmem:[%s1 + $0xba0] sm:$0xff]
  %v388 = vld [vmem:[%s1 + $0xba8] sm:$0xff]
  %v389 = vld [vmem:[%s1 + $0xbb0] sm:$0xff]
  %v390 = vld [vmem:[%s1 + $0xbb8] sm:$0xff]
  %v391 = vld [vmem:[%s1 + $0xbc0] sm:$0xff]
  %v392 = vld [vmem:[%s1 + $0xbc8] sm:$0xff]
  %v393 = vld [vmem:[%s1 + $0xbd0] sm:$0xff]
  %v394 = vld [vmem:[%s1 + $0xbd8] sm:$0xff]
  %v395 = vld [vmem:[%s1 + $0xbe0] sm:$0xff]
  %v396 = vld [vmem:[%s1 + $0xbe8] sm:$0xff]
  %v397 = vld [vmem:[%s1 + $0xbf0] sm:$0xff]
  %v398 = vld [vmem:[%s1 + $0xbf8] sm:$0xff]
  %v399 = vld [vmem:[%s1 + $0xc00] sm:$0xff]
  %v400 = vld [vmem:[%s1 + $0xc08] sm:$0xff]
  %v401 = vld [vmem:[%s1 + $0xc10] sm:$0xff]
  %v402 = vld [vmem:[%s1 + $0xc18] sm:$0xff]
  %v403 = vld [vmem:[%s1 + $0xc20] sm:$0xff]
  %v404 = vld [vmem:[%s1 + $0xc28] sm:$0xff]
  %v405 = vld [vmem:[%s1 + $0xc30] sm:$0xff]
  %v406 = vld [vmem:[%s1 + $0xc38] sm:$0xff]
  %v407 = vld [vmem:[%s1 + $0xc40] sm:$0xff]
  %v408 = vld [vmem:[%s1 + $0xc48] sm:$0xff]
  %v409 = vld [vmem:[%s1 + $0xc50] sm:$0xff]
  %v410 = vld [vmem:[%s1 + $0xc58] sm:$0xff]
  %v411 = vld [vmem:[%s1 + $0xc60] sm:$0xff]
  %v412 = vld [vmem:[%s1 + $0xc68] sm:$0xff]
  %v413 = vld [vmem:[%s1 + $0xc70] sm:$0xff]
  %v414 = vld [vmem:[%s1 + $0xc78] sm:$0xff]
  %v415 = vld [vmem:[%s1 + $0xc80] sm:$0xff]
  %v416 = vld [vmem:[%s1 + $0xc88] sm:$0xff]
  %v417 = vld [vmem:[%s1 + $0xc90] sm:$0xff]
  %v418 = vld [vmem:[%s1 + $0xc98] sm:$0xff]
  %v419 = vld [vmem:[%s1 + $0xca0] sm:$0xff]
  %v420 = vld [vmem:[%s1 + $0xca8] sm:$0xff]
  %v421 = vld [vmem:[%s1 + $0xcb0] sm:$0xff]
  %v422 = vld [vmem:[%s1 + $0xcb8] sm:$0xff]
  %v423 = vld [vmem:[%s1 + $0xcc0] sm:$0xff]
  %v424 = vld [vmem:[%s1 + $0xcc8] sm:$0xff]
  %v425 = vld [vmem:[%s1 + $0xcd0] sm:$0xff]
  %v426 = vld [vmem:[%s1 + $0xcd8] sm:$0xff]
  %v427 = vld [vmem:[%s1 + $0xce0] sm:$0xff]
  %v428 = vld [vmem:[%s1 + $0xce8] sm:$0xff]
  %v429 = vld [vmem:[%s1 + $0xcf0] sm:$0xff]
  %v430 = vld [vmem:[%s1 + $0xcf8] sm:$0xff]
  %v431 = vld [vmem:[%s1 + $0xd00] sm:$0xff]
  %v432 = vld [vmem:[%s1 + $0xd08] sm:$0xff]
  %v433 = vld [vmem:[%s1 + $0xd10] sm:$0xff]
  %v434 = vld [vmem:[%s1 + $0xd18] sm:$0xff]
  %v435 = vld [vmem:[%s1 + $0xd20] sm:$0xff]
  %v436 = vld [vmem:[%s1 + $0xd28] sm:$0xff]
  %v437 = vld [vmem:[%s1 + $0xd30] sm:$0xff]
  %v438 = vld [vmem:[%s1 + $0xd38] sm:$0xff]
  %v439 = vld [vmem:[%s1 + $0xd40] sm:$0xff]
  %v440 = vld [vmem:[%s1 + $0xd48] sm:$0xff]
  %v441 = vld [vmem:[%s1 + $0xd50] sm:$0xff]
  %v442 = vld [vmem:[%s1 + $0xd58] sm:$0xff]
  %v443 = vld [vmem:[%s1 + $0xd60] sm:$0xff]
  %v444 = vld [vmem:[%s1 + $0xd68] sm:$0xff]
  %v445 = vld [vmem:[%s1 + $0xd70] sm:$0xff]
  %v446 = vld [vmem:[%s1 + $0xd78] sm:$0xff]
  %v447 = vld [vmem:[%s1 + $0xd80] sm:$0xff]
  %v448 = vld [vmem:[%s1 + $0xd88] sm:$0xff]
  %v449 = vld [vmem:[%s1 + $0xd90] sm:$0xff]
  %v450 = vld [vmem:[%s1 + $0xd98] sm:$0xff]
  %v451 = vld [vmem:[%s1 + $0xda0] sm:$0xff]
  %v452 = vld [vmem:[%s1 + $0xda8] sm:$0xff]
  %v453 = vld [vmem:[%s1 + $0xdb0] sm:$0xff]
  %v454 = vld [vmem:[%s1 + $0xdb8] sm:$0xff]
  %v455 = vld [vmem:[%s1 + $0xdc0] sm:$0xff]
  %v456 = vld [vmem:[%s1 + $0xdc8] sm:$0xff]
  %v457 = vld [vmem:[%s1 + $0xdd0] sm:$0xff]
  %v458 = vld [vmem:[%s1 + $0xdd8] sm:$0xff]
  %v459 = vld [vmem:[%s1 + $0xde0] sm:$0xff]
  %v460 = vld [vmem:[%s1 + $0xde8] sm:$0xff]
  %v461 = vld [vmem:[%s1 + $0xdf0] sm:$0xff]
  %v462 = vld [vmem:[%s1 + $0xdf8] sm:$0xff]
  %v463 = vld [vmem:[%s1 + $0xe00] sm:$0xff]
  %v464 = vld [vmem:[%s1 + $0xe08] sm:$0xff]
  %v465 = vld [vmem:[%s1 + $0xe10] sm:$0xff]
  %v466 = vld [vmem:[%s1 + $0xe18] sm:$0xff]
  %v467 = vld [vmem:[%s1 + $0xe20] sm:$0xff]
  %v468 = vld [vmem:[%s1 + $0xe28] sm:$0xff]
  %v469 = vld [vmem:[%s1 + $0xe30] sm:$0xff]
  %v470 = vld [vmem:[%s1 + $0xe38] sm:$0xff]
  %v471 = vld [vmem:[%s1 + $0xe40] sm:$0xff]
  %v472 = vld [vmem:[%s1 + $0xe48] sm:$0xff]
  %v473 = vld [vmem:[%s1 + $0xe50] sm:$0xff]
  %v474 = vld [vmem:[%s1 + $0xe58] sm:$0xff]
  %v475 = vld [vmem:[%s1 + $0xe60] sm:$0xff]
  %v476 = vld [vmem:[%s1 + $0xe68] sm:$0xff]
  %v477 = vld [vmem:[%s1 + $0xe70] sm:$0xff]
  %v478 = vld [vmem:[%s1 + $0xe78] sm:$0xff]
  %v479 = vld [vmem:[%s1 + $0xe80] sm:$0xff]
  %v480 = vld [vmem:[%s1 + $0xe88] sm:$0xff]
  %v481 = vld [vmem:[%s1 + $0xe90] sm:$0xff]
  %v482 = vld [vmem:[%s1 + $0xe98] sm:$0xff]
  %v483 = vld [vmem:[%s1 + $0xea0] sm:$0xff]
  %v484 = vld [vmem:[%s1 + $0xea8] sm:$0xff]
  %v485 = vld [vmem:[%s1 + $0xeb0] sm:$0xff]
  %v486 = vld [vmem:[%s1 + $0xeb8] sm:$0xff]
  %v487 = vld [vmem:[%s1 + $0xec0] sm:$0xff]
  %v488 = vld [vmem:[%s1 + $0xec8] sm:$0xff]
  %v489 = vld [vmem:[%s1 + $0xed0] sm:$0xff]
  %v490 = vld [vmem:[%s1 + $0xed8] sm:$0xff]
  %v491 = vld [vmem:[%s1 + $0xee0] sm:$0xff]
  %v492 = vld [vmem:[%s1 + $0xee8] sm:$0xff]
  %v493 = vld [vmem:[%s1 + $0xef0] sm:$0xff]
  %v494 = vld [vmem:[%s1 + $0xef8] sm:$0xff]
  %v495 = vld [vmem:[%s1 + $0xf00] sm:$0xff]
  %v496 = vld [vmem:[%s1 + $0xf08] sm:$0xff]
  %v497 = vld [vmem:[%s1 + $0xf10] sm:$0xff]
  %v498 = vld [vmem:[%s1 + $0xf18] sm:$0xff]
  %v499 = vld [vmem:[%s1 + $0xf20] sm:$0xff]
  %v500 = vld [vmem:[%s1 + $0xf28] sm:$0xff]
  %v501 = vld [vmem:[%s1 + $0xf30] sm:$0xff]
  %v502 = vld [vmem:[%s1 + $0xf38] sm:$0xff]
  %v503 = vld [vmem:[%s1 + $0xf40] sm:$0xff]
  %v504 = vld [vmem:[%s1 + $0xf48] sm:$0xff]
  %v505 = vld [vmem:[%s1 + $0xf50] sm:$0xff]
  %v506 = vld [vmem:[%s1 + $0xf58] sm:$0xff]
  %v507 = vld [vmem:[%s1 + $0xf60] sm:$0xff]
  %v508 = vld [vmem:[%s1 + $0xf68] sm:$0xff]
  %v509 = vld [vmem:[%s1 + $0xf70] sm:$0xff]
  %v510 = vld [vmem:[%s1 + $0xf78] sm:$0xff]
  %v511 = vld [vmem:[%s1 + $0xf80] sm:$0xff]
  %v512 = vld [vmem:[%s1 + $0xf88] sm:$0xff]
  %v513 = vld [vmem:[%s1 + $0xf90] sm:$0xff]
  %v514 = vld [vmem:[%s1 + $0xf98] sm:$0xff]
  %v515 = vld [vmem:[%s1 + $0xfa0] sm:$0xff]
  %v516 = vld [vmem:[%s1 + $0xfa8] sm:$0xff]
  %v517 = vld [vmem:[%s1 + $0xfb0] sm:$0xff]
  %v518 = vld [vmem:[%s1 + $0xfb8] sm:$0xff]
  %v519 = vld [vmem:[%s1 + $0xfc0] sm:$0xff]
  %v520 = vld [vmem:[%s1 + $0xfc8] sm:$0xff]
  %v521 = vld [vmem:[%s1 + $0xfd0] sm:$0xff]
  %v522 = vld [vmem:[%s1 + $0xfd8] sm:$0xff]
  %v523 = vld [vmem:[%s1 + $0xfe0] sm:$0xff]
  %v524 = vld [vmem:[%s1 + $0xfe8] sm:$0xff]
  %v525 = vld [vmem:[%s1 + $0xff0] sm:$0xff]
  %v526 = vld [vmem:[%s1 + $0xff8] sm:$0xff]
  %v527 = vld [vmem:[%s1 + $0x1000] sm:$0xff]
  %v528 = vld [vmem:[%s1 + $0x1008] sm:$0xff]
  %v529 = vld [vmem:[%s1 + $0x1010] sm:$0xff]
  %v530 = vld [vmem:[%s1 + $0x1018] sm:$0xff]
  %v531 = vld [vmem:[%s1 + $0x1020] sm:$0xff]
  %v532 = vld [vmem:[%s1 + $0x1028] sm:$0xff]
  %v533 = vld [vmem:[%s1 + $0x1030] sm:$0xff]
  %v534 = vld [vmem:[%s1 + $0x1038] sm:$0xff]
  %v535 = vld [vmem:[%s1 + $0x1040] sm:$0xff]
  %v536 = vld [vmem:[%s1 + $0x1048] sm:$0xff]
  %v537 = vld [vmem:[%s1 + $0x1050] sm:$0xff]
  %v538 = vld [vmem:[%s1 + $0x1058] sm:$0xff]
  %v539 = vld [vmem:[%s1 + $0x1060] sm:$0xff]
  %v540 = vld [vmem:[%s1 + $0x1068] sm:$0xff]
  %v541 = vld [vmem:[%s1 + $0x1070] sm:$0xff]
  %v542 = vld [vmem:[%s1 + $0x1078] sm:$0xff]
  %v543 = vld [vmem:[%s1 + $0x1080] sm:$0xff]
  %v544 = vld [vmem:[%s1 + $0x1088] sm:$0xff]
  %v545 = vld [vmem:[%s1 + $0x1090] sm:$0xff]
  %v546 = vld [vmem:[%s1 + $0x1098] sm:$0xff]
  %v547 = vld [vmem:[%s1 + $0x10a0] sm:$0xff]
  %v548 = vld [vmem:[%s1 + $0x10a8] sm:$0xff]
  %v549 = vld [vmem:[%s1 + $0x10b0] sm:$0xff]
  %v550 = vld [vmem:[%s1 + $0x10b8] sm:$0xff]
  %v551 = vld [vmem:[%s1 + $0x10c0] sm:$0xff]
  %v552 = vld [vmem:[%s1 + $0x10c8] sm:$0xff]
  %v553 = vld [vmem:[%s1 + $0x10d0] sm:$0xff]
  %v554 = vld [vmem:[%s1 + $0x10d8] sm:$0xff]
  %v555 = vld [vmem:[%s1 + $0x10e0] sm:$0xff]
  %v556 = vld [vmem:[%s1 + $0x10e8] sm:$0xff]
  %v557 = vld [vmem:[%s1 + $0x10f0] sm:$0xff]
  %v558 = vld [vmem:[%s1 + $0x10f8] sm:$0xff]
  %v559 = vld [vmem:[%s1 + $0x1100] sm:$0xff]
  %v560 = vld [vmem:[%s1 + $0x1108] sm:$0xff]
  %v561 = vld [vmem:[%s1 + $0x1110] sm:$0xff]
  %v562 = vld [vmem:[%s1 + $0x1118] sm:$0xff]
  %v563 = vld [vmem:[%s1 + $0x1120] sm:$0xff]
  %v564 = vld [vmem:[%s1 + $0x1128] sm:$0xff]
  %v565 = vld [vmem:[%s1 + $0x1130] sm:$0xff]
  %v566 = vld [vmem:[%s1 + $0x1138] sm:$0xff]
  %v567 = vld [vmem:[%s1 + $0x1140] sm:$0xff]
  %v568 = vld [vmem:[%s1 + $0x1148] sm:$0xff]
  %v569 = vld [vmem:[%s1 + $0x1150] sm:$0xff]
  %v570 = vld [vmem:[%s1 + $0x1158] sm:$0xff]
  %v571 = vld [vmem:[%s1 + $0x1160] sm:$0xff]
  %v572 = vld [vmem:[%s1 + $0x1168] sm:$0xff]
  %v573 = vld [vmem:[%s1 + $0x1170] sm:$0xff]
  %v574 = vld [vmem:[%s1 + $0x1178] sm:$0xff]
  %v575 = vld [vmem:[%s1 + $0x1180] sm:$0xff]
  %v576 = vld [vmem:[%s1 + $0x1188] sm:$0xff]
  %v577 = vld [vmem:[%s1 + $0x1190] sm:$0xff]
  %v578 = vld [vmem:[%s1 + $0x1198] sm:$0xff]
  %v579 = vld [vmem:[%s1 + $0x11a0] sm:$0xff]
  %v580 = vld [vmem:[%s1 + $0x11a8] sm:$0xff]
  %v581 = vld [vmem:[%s1 + $0x11b0] sm:$0xff]
  %v582 = vld [vmem:[%s1 + $0x11b8] sm:$0xff]
  %v583 = vld [vmem:[%s1 + $0x11c0] sm:$0xff]
  %v584 = vld [vmem:[%s1 + $0x11c8] sm:$0xff]
  %v585 = vld [vmem:[%s1 + $0x11d0] sm:$0xff]
  %v586 = vld [vmem:[%s1 + $0x11d8] sm:$0xff]
  %v587 = vld [vmem:[%s1 + $0x11e0] sm:$0xff]
  %v588 = vld [vmem:[%s1 + $0x11e8] sm:$0xff]
  %v589 = vld [vmem:[%s1 + $0x11f0] sm:$0xff]
  %v590 = vld [vmem:[%s1 + $0x11f8] sm:$0xff]
  %v591 = vld [vmem:[%s1 + $0x1200] sm:$0xff]
  %v592 = vld [vmem:[%s1 + $0x1208] sm:$0xff]
  %v593 = vld [vmem:[%s1 + $0x1210] sm:$0xff]
  %v594 = vld [vmem:[%s1 + $0x1218] sm:$0xff]
  %v595 = vld [vmem:[%s1 + $0x1220] sm:$0xff]
  %v596 = vld [vmem:[%s1 + $0x1228] sm:$0xff]
  %v597 = vld [vmem:[%s1 + $0x1230] sm:$0xff]
  %v598 = vld [vmem:[%s1 + $0x1238] sm:$0xff]
  %v599 = vld [vmem:[%s1 + $0x1240] sm:$0xff]
  %v600 = vld [vmem:[%s1 + $0x1248] sm:$0xff]
  %v601 = vld [vmem:[%s1 + $0x1250] sm:$0xff]
  %v602 = vld [vmem:[%s1 + $0x1258] sm:$0xff]
  %v603 = vld [vmem:[%s1 + $0x1260] sm:$0xff]
  %v604 = vld [vmem:[%s1 + $0x1268] sm:$0xff]
  %v605 = vld [vmem:[%s1 + $0x1270] sm:$0xff]
  %v606 = vld [vmem:[%s1 + $0x1278] sm:$0xff]
  %v607 = vld [vmem:[%s1 + $0x1280] sm:$0xff]
  %v608 = vld [vmem:[%s1 + $0x1288] sm:$0xff]
  %v609 = vld [vmem:[%s1 + $0x1290] sm:$0xff]
  %v610 = vld [vmem:[%s1 + $0x1298] sm:$0xff]
  %v611 = vld [vmem:[%s1 + $0x12a0] sm:$0xff]
  %v612 = vld [vmem:[%s1 + $0x12a8] sm:$0xff]
  %v613 = vld [vmem:[%s1 + $0x12b0] sm:$0xff]
  %v614 = vld [vmem:[%s1 + $0x12b8] sm:$0xff]
  %v615 = vld [vmem:[%s1 + $0x12c0] sm:$0xff]
  %v616 = vld [vmem:[%s1 + $0x12c8] sm:$0xff]
  %v617 = vld [vmem:[%s1 + $0x12d0] sm:$0xff]
  %v618 = vld [vmem:[%s1 + $0x12d8] sm:$0xff]
  %v619 = vld [vmem:[%s1 + $0x12e0] sm:$0xff]
  %v620 = vld [vmem:[%s1 + $0x12e8] sm:$0xff]
  %v621 = vld [vmem:[%s1 + $0x12f0] sm:$0xff]
  %v622 = vld [vmem:[%s1 + $0x12f8] sm:$0xff]
  %v623 = vld [vmem:[%s1 + $0x1300] sm:$0xff]
  %v624 = vld [vmem:[%s1 + $0x1308] sm:$0xff]
  %v625 = vld [vmem:[%s1 + $0x1310] sm:$0xff]
  %v626 = vld [vmem:[%s1 + $0x1318] sm:$0xff]
  %v627 = vld [vmem:[%s1 + $0x1320] sm:$0xff]
  %v628 = vld [vmem:[%s1 + $0x1328] sm:$0xff]
  %v629 = vld [vmem:[%s1 + $0x1330] sm:$0xff]
  %v630 = vld [vmem:[%s1 + $0x1338] sm:$0xff]
  %v631 = vld [vmem:[%s1 + $0x1340] sm:$0xff]
  %v632 = vld [vmem:[%s1 + $0x1348] sm:$0xff]
  %v633 = vld [vmem:[%s1 + $0x1350] sm:$0xff]
  %v634 = vld [vmem:[%s1 + $0x1358] sm:$0xff]
  %v635 = vld [vmem:[%s1 + $0x1360] sm:$0xff]
  %v636 = vld [vmem:[%s1 + $0x1368] sm:$0xff]
  %v637 = vld [vmem:[%s1 + $0x1370] sm:$0xff]
  %v638 = vld [vmem:[%s1 + $0x1378] sm:$0xff]
  %v639 = vld [vmem:[%s1 + $0x1380] sm:$0xff]
  %v640 = vld [vmem:[%s1 + $0x1388] sm:$0xff]
  %v641 = vld [vmem:[%s1 + $0x1390] sm:$0xff]
  %v642 = vld [vmem:[%s1 + $0x1398] sm:$0xff]
  %v643 = vld [vmem:[%s1 + $0x13a0] sm:$0xff]
  %v644 = vld [vmem:[%s1 + $0x13a8] sm:$0xff]
  %v645 = vld [vmem:[%s1 + $0x13b0] sm:$0xff]
  %v646 = vld [vmem:[%s1 + $0x13b8] sm:$0xff]
  %v647 = vld [vmem:[%s1 + $0x13c0] sm:$0xff]
  %v648 = vld [vmem:[%s1 + $0x13c8] sm:$0xff]
  %v649 = vld [vmem:[%s1 + $0x13d0] sm:$0xff]
  %v650 = vld [vmem:[%s1 + $0x13d8] sm:$0xff]
  %v651 = vld [vmem:[%s1 + $0x13e0] sm:$0xff]
  %v652 = vld [vmem:[%s1 + $0x13e8] sm:$0xff]
  %v653 = vld [vmem:[%s1 + $0x13f0] sm:$0xff]
  %v654 = vld [vmem:[%s1 + $0x13f8] sm:$0xff]
  %v655 = vld [vmem:[%s1 + $0x1400] sm:$0xff]
  %v656 = vld [vmem:[%s1 + $0x1408] sm:$0xff]
  %v657 = vld [vmem:[%s1 + $0x1410] sm:$0xff]
  %v658 = vld [vmem:[%s1 + $0x1418] sm:$0xff]
  %v659 = vld [vmem:[%s1 + $0x1420] sm:$0xff]
  %v660 = vld [vmem:[%s1 + $0x1428] sm:$0xff]
  %v661 = vld [vmem:[%s1 + $0x1430] sm:$0xff]
  %v662 = vld [vmem:[%s1 + $0x1438] sm:$0xff]
  %v663 = vld [vmem:[%s1 + $0x1440] sm:$0xff]
  %v664 = vld [vmem:[%s1 + $0x1448] sm:$0xff]
  %v665 = vld [vmem:[%s1 + $0x1450] sm:$0xff]
  %v666 = vld [vmem:[%s1 + $0x1458] sm:$0xff]
  %v667 = vld [vmem:[%s1 + $0x1460] sm:$0xff]
  %v668 = vld [vmem:[%s1 + $0x1468] sm:$0xff]
  %v669 = vld [vmem:[%s1 + $0x1470] sm:$0xff]
  %v670 = vld [vmem:[%s1 + $0x1478] sm:$0xff]
  %v671 = vld [vmem:[%s1 + $0x1480] sm:$0xff]
  %v672 = vld [vmem:[%s1 + $0x1488] sm:$0xff]
  %v673 = vld [vmem:[%s1 + $0x1490] sm:$0xff]
  %v674 = vld [vmem:[%s1 + $0x1498] sm:$0xff]
  %v675 = vld [vmem:[%s1 + $0x14a0] sm:$0xff]
  %v676 = vld [vmem:[%s1 + $0x14a8] sm:$0xff]
  %v677 = vld [vmem:[%s1 + $0x14b0] sm:$0xff]
  %v678 = vld [vmem:[%s1 + $0x14b8] sm:$0xff]
  %v679 = vld [vmem:[%s1 + $0x14c0] sm:$0xff]
  %v680 = vld [vmem:[%s1 + $0x14c8] sm:$0xff]
  %v681 = vld [vmem:[%s1 + $0x14d0] sm:$0xff]
  %v682 = vld [vmem:[%s1 + $0x14d8] sm:$0xff]
  %v683 = vld [vmem:[%s1 + $0x14e0] sm:$0xff]
  %v684 = vld [vmem:[%s1 + $0x14e8] sm:$0xff]
  %v685 = vld [vmem:[%s1 + $0x14f0] sm:$0xff]
  %v686 = vld [vmem:[%s1 + $0x14f8] sm:$0xff]
  %v687 = vld [vmem:[%s1 + $0x1500] sm:$0xff]
  %v688 = vld [vmem:[%s1 + $0x1508] sm:$0xff]
  %v689 = vld [vmem:[%s1 + $0x1510] sm:$0xff]
  %v690 = vld [vmem:[%s1 + $0x1518] sm:$0xff]
  %v691 = vld [vmem:[%s1 + $0x1520] sm:$0xff]
  %v692 = vld [vmem:[%s1 + $0x1528] sm:$0xff]
  %v693 = vld [vmem:[%s1 + $0x1530] sm:$0xff]
  %v694 = vld [vmem:[%s1 + $0x1538] sm:$0xff]
  %v695 = vld [vmem:[%s1 + $0x1540] sm:$0xff]
  %v696 = vld [vmem:[%s1 + $0x1548] sm:$0xff]
  %v697 = vld [vmem:[%s1 + $0x1550] sm:$0xff]
  %v698 = vld [vmem:[%s1 + $0x1558] sm:$0xff]
  %v699 = vld [vmem:[%s1 + $0x1560] sm:$0xff]
  %v700 = vld [vmem:[%s1 + $0x1568] sm:$0xff]
  %v701 = vld [vmem:[%s1 + $0x1570] sm:$0xff]
  %v702 = vld [vmem:[%s1 + $0x1578] sm:$0xff]
  %v703 = vld [vmem:[%s1 + $0x1580] sm:$0xff]
  %v704 = vld [vmem:[%s1 + $0x1588] sm:$0xff]
  %v705 = vld [vmem:[%s1 + $0x1590] sm:$0xff]
  %v706 = vld [vmem:[%s1 + $0x1598] sm:$0xff]
  %v707 = vld [vmem:[%s1 + $0x15a0] sm:$0xff]
  %v708 = vld [vmem:[%s1 + $0x15a8] sm:$0xff]
  %v709 = vld [vmem:[%s1 + $0x15b0] sm:$0xff]
  %v710 = vld [vmem:[%s1 + $0x15b8] sm:$0xff]
  %v711 = vld [vmem:[%s1 + $0x15c0] sm:$0xff]
  %v712 = vld [vmem:[%s1 + $0x15c8] sm:$0xff]
  %v713 = vld [vmem:[%s1 + $0x15d0] sm:$0xff]
  %v714 = vld [vmem:[%s1 + $0x15d8] sm:$0xff]
  %v715 = vld [vmem:[%s1 + $0x15e0] sm:$0xff]
  %v716 = vld [vmem:[%s1 + $0x15e8] sm:$0xff]
  %v717 = vld [vmem:[%s1 + $0x15f0] sm:$0xff]
  %v718 = vld [vmem:[%s1 + $0x15f8] sm:$0xff]
  %v719 = vld [vmem:[%s1 + $0x1600] sm:$0xff]
  %v720 = vld [vmem:[%s1 + $0x1608] sm:$0xff]
  %v721 = vld [vmem:[%s1 + $0x1610] sm:$0xff]
  %v722 = vld [vmem:[%s1 + $0x1618] sm:$0xff]
  %v723 = vld [vmem:[%s1 + $0x1620] sm:$0xff]
  %v724 = vld [vmem:[%s1 + $0x1628] sm:$0xff]
  %v725 = vld [vmem:[%s1 + $0x1630] sm:$0xff]
  %v726 = vld [vmem:[%s1 + $0x1638] sm:$0xff]
  %v727 = vld [vmem:[%s1 + $0x1640] sm:$0xff]
  %v728 = vld [vmem:[%s1 + $0x1648] sm:$0xff]
  %v729 = vld [vmem:[%s1 + $0x1650] sm:$0xff]
  %v730 = vld [vmem:[%s1 + $0x1658] sm:$0xff]
  %v731 = vld [vmem:[%s1 + $0x1660] sm:$0xff]
  %v732 = vld [vmem:[%s1 + $0x1668] sm:$0xff]
  %v733 = vld [vmem:[%s1 + $0x1670] sm:$0xff]
  %v734 = vld [vmem:[%s1 + $0x1678] sm:$0xff]
  %v735 = vld [vmem:[%s1 + $0x1680] sm:$0xff]
  %v736 = vld [vmem:[%s1 + $0x1688] sm:$0xff]
  %v737 = vld [vmem:[%s1 + $0x1690] sm:$0xff]
  %v738 = vld [vmem:[%s1 + $0x1698] sm:$0xff]
  %v739 = vld [vmem:[%s1 + $0x16a0] sm:$0xff]
  %v740 = vld [vmem:[%s1 + $0x16a8] sm:$0xff]
  %v741 = vld [vmem:[%s1 + $0x16b0] sm:$0xff]
  %v742 = vld [vmem:[%s1 + $0x16b8] sm:$0xff]
  %v743 = vld [vmem:[%s1 + $0x16c0] sm:$0xff]
  %v744 = vld [vmem:[%s1 + $0x16c8] sm:$0xff]
  %v745 = vld [vmem:[%s1 + $0x16d0] sm:$0xff]
  %v746 = vld [vmem:[%s1 + $0x16d8] sm:$0xff]
  %v747 = vld [vmem:[%s1 + $0x16e0] sm:$0xff]
  %v748 = vld [vmem:[%s1 + $0x16e8] sm:$0xff]
  %v749 = vld [vmem:[%s1 + $0x16f0] sm:$0xff]
  %v750 = vld [vmem:[%s1 + $0x16f8] sm:$0xff]
  %v751 = vld [vmem:[%s1 + $0x1700] sm:$0xff]
  %v752 = vld [vmem:[%s1 + $0x1708] sm:$0xff]
  %v753 = vld [vmem:[%s1 + $0x1710] sm:$0xff]
  %v754 = vld [vmem:[%s1 + $0x1718] sm:$0xff]
  %v755 = vld [vmem:[%s1 + $0x1720] sm:$0xff]
  %v756 = vld [vmem:[%s1 + $0x1728] sm:$0xff]
  %v757 = vld [vmem:[%s1 + $0x1730] sm:$0xff]
  %v758 = vld [vmem:[%s1 + $0x1738] sm:$0xff]
  %v759 = vld [vmem:[%s1 + $0x1740] sm:$0xff]
  %v760 = vld [vmem:[%s1 + $0x1748] sm:$0xff]
  %v761 = vld [vmem:[%s1 + $0x1750] sm:$0xff]
  %v762 = vld [vmem:[%s1 + $0x1758] sm:$0xff]
  %v763 = vld [vmem:[%s1 + $0x1760] sm:$0xff]
  %v764 = vld [vmem:[%s1 + $0x1768] sm:$0xff]
  %v765 = vld [vmem:[%s1 + $0x1770] sm:$0xff]
  %v766 = vld [vmem:[%s1 + $0x1778] sm:$0xff]
  %v767 = vld [vmem:[%s1 + $0x1780] sm:$0xff]
  %v768 = vld [vmem:[%s1 + $0x1788] sm:$0xff]
  %v769 = vld [vmem:[%s1 + $0x1790] sm:$0xff]
  %v770 = vld [vmem:[%s1 + $0x1798] sm:$0xff]
  %v771 = vld [vmem:[%s1 + $0x17a0] sm:$0xff]
  %v772 = vld [vmem:[%s1 + $0x17a8] sm:$0xff]
  %v773 = vld [vmem:[%s1 + $0x17b0] sm:$0xff]
  %v774 = vld [vmem:[%s1 + $0x17b8] sm:$0xff]
  %v775 = vld [vmem:[%s1 + $0x17c0] sm:$0xff]
  %v776 = vld [vmem:[%s1 + $0x17c8] sm:$0xff]
  %v777 = vld [vmem:[%s1 + $0x17d0] sm:$0xff]
  %v778 = vld [vmem:[%s1 + $0x17d8] sm:$0xff]
  %v779 = vld [vmem:[%s1 + $0x17e0] sm:$0xff]
  %v780 = vld [vmem:[%s1 + $0x17e8] sm:$0xff]
  %v781 = vld [vmem:[%s1 + $0x17f0] sm:$0xff]
  %v782 = vld [vmem:[%s1 + $0x17f8] sm:$0xff]
  %v783 = vld [vmem:[%s1 + $0x1800] sm:$0xff]
  %v784 = vld [vmem:[%s1 + $0x1808] sm:$0xff]
  %v785 = vld [vmem:[%s1 + $0x1810] sm:$0xff]
  %v786 = vld [vmem:[%s1 + $0x1818] sm:$0xff]
  %v787 = vld [vmem:[%s1 + $0x1820] sm:$0xff]
  %v788 = vld [vmem:[%s1 + $0x1828] sm:$0xff]
  %v789 = vld [vmem:[%s1 + $0x1830] sm:$0xff]
  %v790 = vld [vmem:[%s1 + $0x1838] sm:$0xff]
  %v791 = vld [vmem:[%s1 + $0x1840] sm:$0xff]
  %v792 = vld [vmem:[%s1 + $0x1848] sm:$0xff]
  %v793 = vld [vmem:[%s1 + $0x1850] sm:$0xff]
  %v794 = vld [vmem:[%s1 + $0x1858] sm:$0xff]
  %v795 = vld [vmem:[%s1 + $0x1860] sm:$0xff]
  %v796 = vld [vmem:[%s1 + $0x1868] sm:$0xff]
  %v797 = vld [vmem:[%s1 + $0x1870] sm:$0xff]
  %v798 = vld [vmem:[%s1 + $0x1878] sm:$0xff]
  %v799 = vld [vmem:[%s1 + $0x1880] sm:$0xff]
  %v800 = vld [vmem:[%s1 + $0x1888] sm:$0xff]
  %v801 = vld [vmem:[%s1 + $0x1890] sm:$0xff]
  %v802 = vld [vmem:[%s1 + $0x1898] sm:$0xff]
  %v803 = vld [vmem:[%s1 + $0x18a0] sm:$0xff]
  %v804 = vld [vmem:[%s1 + $0x18a8] sm:$0xff]
  %v805 = vld [vmem:[%s1 + $0x18b0] sm:$0xff]
  %v806 = vld [vmem:[%s1 + $0x18b8] sm:$0xff]
  %v807 = vld [vmem:[%s1 + $0x18c0] sm:$0xff]
  %v808 = vld [vmem:[%s1 + $0x18c8] sm:$0xff]
  %v809 = vld [vmem:[%s1 + $0x18d0] sm:$0xff]
  %v810 = vld [vmem:[%s1 + $0x18d8] sm:$0xff]
  %v811 = vld [vmem:[%s1 + $0x18e0] sm:$0xff]
  %v812 = vld [vmem:[%s1 + $0x18e8] sm:$0xff]
  %v813 = vld [vmem:[%s1 + $0x18f0] sm:$0xff]
  %v814 = vld [vmem:[%s1 + $0x18f8] sm:$0xff]
  %v815 = vld [vmem:[%s1 + $0x1900] sm:$0xff]
  %v816 = vld [vmem:[%s1 + $0x1908] sm:$0xff]
  %v817 = vld [vmem:[%s1 + $0x1910] sm:$0xff]
  %v818 = vld [vmem:[%s1 + $0x1918] sm:$0xff]
  %v819 = vld [vmem:[%s1 + $0x1920] sm:$0xff]
  %v820 = vld [vmem:[%s1 + $0x1928] sm:$0xff]
  %v821 = vld [vmem:[%s1 + $0x1930] sm:$0xff]
  %v822 = vld [vmem:[%s1 + $0x1938] sm:$0xff]
  %v823 = vld [vmem:[%s1 + $0x1940] sm:$0xff]
  %v824 = vld [vmem:[%s1 + $0x1948] sm:$0xff]
  %v825 = vld [vmem:[%s1 + $0x1950] sm:$0xff]
  %v826 = vld [vmem:[%s1 + $0x1958] sm:$0xff]
  %v827 = vld [vmem:[%s1 + $0x1960] sm:$0xff]
  %v828 = vld [vmem:[%s1 + $0x1968] sm:$0xff]
  %v829 = vld [vmem:[%s1 + $0x1970] sm:$0xff]
  %v830 = vld [vmem:[%s1 + $0x1978] sm:$0xff]
  %v831 = vld [vmem:[%s1 + $0x1980] sm:$0xff]
  %v832 = vld [vmem:[%s1 + $0x1988] sm:$0xff]
  %v833 = vld [vmem:[%s1 + $0x1990] sm:$0xff]
  %v834 = vld [vmem:[%s1 + $0x1998] sm:$0xff]
  %v835 = vld [vmem:[%s1 + $0x19a0] sm:$0xff]
  %v836 = vld [vmem:[%s1 + $0x19a8] sm:$0xff]
  %v837 = vld [vmem:[%s1 + $0x19b0] sm:$0xff]
  %v838 = vld [vmem:[%s1 + $0x19b8] sm:$0xff]
  %v839 = vld [vmem:[%s1 + $0x19c0] sm:$0xff]
  %v840 = vld [vmem:[%s1 + $0x19c8] sm:$0xff]
  %v841 = vld [vmem:[%s1 + $0x19d0] sm:$0xff]
  %v842 = vld [vmem:[%s1 + $0x19d8] sm:$0xff]
  %v843 = vld [vmem:[%s1 + $0x19e0] sm:$0xff]
  %v844 = vld [vmem:[%s1 + $0x19e8] sm:$0xff]
  %v845 = vld [vmem:[%s1 + $0x19f0] sm:$0xff]
  %v846 = vld [vmem:[%s1 + $0x19f8] sm:$0xff]
  %v847 = vld [vmem:[%s1 + $0x1a00] sm:$0xff]
  %v848 = vld [vmem:[%s1 + $0x1a08] sm:$0xff]
  %v849 = vld [vmem:[%s1 + $0x1a10] sm:$0xff]
  %v850 = vld [vmem:[%s1 + $0x1a18] sm:$0xff]
  %v851 = vld [vmem:[%s1 + $0x1a20] sm:$0xff]
  %v852 = vld [vmem:[%s1 + $0x1a28] sm:$0xff]
  %v853 = vld [vmem:[%s1 + $0x1a30] sm:$0xff]
  %v854 = vld [vmem:[%s1 + $0x1a38] sm:$0xff]
  %v855 = vld [vmem:[%s1 + $0x1a40] sm:$0xff]
  %v856 = vld [vmem:[%s1 + $0x1a48] sm:$0xff]
  %v857 = vld [vmem:[%s1 + $0x1a50] sm:$0xff]
  %v858 = vld [vmem:[%s1 + $0x1a58] sm:$0xff]
  %v859 = vld [vmem:[%s1 + $0x1a60] sm:$0xff]
  %v860 = vld [vmem:[%s1 + $0x1a68] sm:$0xff]
  %v861 = vld [vmem:[%s1 + $0x1a70] sm:$0xff]
  %v862 = vld [vmem:[%s1 + $0x1a78] sm:$0xff]
  %v863 = vld [vmem:[%s1 + $0x1a80] sm:$0xff]
  %v864 = vld [vmem:[%s1 + $0x1a88] sm:$0xff]
  %v865 = vld [vmem:[%s1 + $0x1a90] sm:$0xff]
  %v866 = vld [vmem:[%s1 + $0x1a98] sm:$0xff]
  %v867 = vld [vmem:[%s1 + $0x1aa0] sm:$0xff]
  %v868 = vld [vmem:[%s1 + $0x1aa8] sm:$0xff]
  %v869 = vld [vmem:[%s1 + $0x1ab0] sm:$0xff]
  %v870 = vld [vmem:[%s1 + $0x1ab8] sm:$0xff]
  %v871 = vld [vmem:[%s1 + $0x1ac0] sm:$0xff]
  %v872 = vld [vmem:[%s1 + $0x1ac8] sm:$0xff]
  %v873 = vld [vmem:[%s1 + $0x1ad0] sm:$0xff]
  %v874 = vld [vmem:[%s1 + $0x1ad8] sm:$0xff]
  %v875 = vld [vmem:[%s1 + $0x1ae0] sm:$0xff]
  %v876 = vld [vmem:[%s1 + $0x1ae8] sm:$0xff]
  %v877 = vld [vmem:[%s1 + $0x1af0] sm:$0xff]
  %v878 = vld [vmem:[%s1 + $0x1af8] sm:$0xff]
  %v879 = vld [vmem:[%s1 + $0x1b00] sm:$0xff]
  %v880 = vld [vmem:[%s1 + $0x1b08] sm:$0xff]
  %v881 = vld [vmem:[%s1 + $0x1b10] sm:$0xff]
  %v882 = vld [vmem:[%s1 + $0x1b18] sm:$0xff]
  %v883 = vld [vmem:[%s1 + $0x1b20] sm:$0xff]
  %v884 = vld [vmem:[%s1 + $0x1b28] sm:$0xff]
  %v885 = vld [vmem:[%s1 + $0x1b30] sm:$0xff]
  %v886 = vld [vmem:[%s1 + $0x1b38] sm:$0xff]
  %v887 = vld [vmem:[%s1 + $0x1b40] sm:$0xff]
  %v888 = vld [vmem:[%s1 + $0x1b48] sm:$0xff]
  %v889 = vld [vmem:[%s1 + $0x1b50] sm:$0xff]
  %v890 = vld [vmem:[%s1 + $0x1b58] sm:$0xff]
  %v891 = vld [vmem:[%s1 + $0x1b60] sm:$0xff]
  %v892 = vld [vmem:[%s1 + $0x1b68] sm:$0xff]
  %v893 = vld [vmem:[%s1 + $0x1b70] sm:$0xff]
  %v894 = vld [vmem:[%s1 + $0x1b78] sm:$0xff]
  %v895 = vld [vmem:[%s1 + $0x1b80] sm:$0xff]
  %v896 = vld [vmem:[%s1 + $0x1b88] sm:$0xff]
  %v897 = vld [vmem:[%s1 + $0x1b90] sm:$0xff]
  %v898 = vld [vmem:[%s1 + $0x1b98] sm:$0xff]
  %v899 = vld [vmem:[%s1 + $0x1ba0] sm:$0xff]
  %v900 = vld [vmem:[%s1 + $0x1ba8] sm:$0xff]
  %v901 = vld [vmem:[%s1 + $0x1bb0] sm:$0xff]
  %v902 = vld [vmem:[%s1 + $0x1bb8] sm:$0xff]
  %v903 = vld [vmem:[%s1 + $0x1bc0] sm:$0xff]
  %v904 = vld [vmem:[%s1 + $0x1bc8] sm:$0xff]
  %v905 = vld [vmem:[%s1 + $0x1bd0] sm:$0xff]
  %v906 = vld [vmem:[%s1 + $0x1bd8] sm:$0xff]
  %v907 = vld [vmem:[%s1 + $0x1be0] sm:$0xff]
  %v908 = vld [vmem:[%s1 + $0x1be8] sm:$0xff]
  %v909 = vld [vmem:[%s1 + $0x1bf0] sm:$0xff]
  %v910 = vld [vmem:[%s1 + $0x1bf8] sm:$0xff]
  %v911 = vld [vmem:[%s1 + $0x1c00] sm:$0xff]
  %v912 = vld [vmem:[%s1 + $0x1c08] sm:$0xff]
  %v913 = vld [vmem:[%s1 + $0x1c10] sm:$0xff]
  %v914 = vld [vmem:[%s1 + $0x1c18] sm:$0xff]
  %v915 = vld [vmem:[%s1 + $0x1c20] sm:$0xff]
  %v916 = vld [vmem:[%s1 + $0x1c28] sm:$0xff]
  %v917 = vld [vmem:[%s1 + $0x1c30] sm:$0xff]
  %v918 = vld [vmem:[%s1 + $0x1c38] sm:$0xff]
  %v919 = vld [vmem:[%s1 + $0x1c40] sm:$0xff]
  %v920 = vld [vmem:[%s1 + $0x1c48] sm:$0xff]
  %v921 = vld [vmem:[%s1 + $0x1c50] sm:$0xff]
  %v922 = vld [vmem:[%s1 + $0x1c58] sm:$0xff]
  %v923 = vld [vmem:[%s1 + $0x1c60] sm:$0xff]
  %v924 = vld [vmem:[%s1 + $0x1c68] sm:$0xff]
  %v925 = vld [vmem:[%s1 + $0x1c70] sm:$0xff]
  %v926 = vld [vmem:[%s1 + $0x1c78] sm:$0xff]
  %v927 = vld [vmem:[%s1 + $0x1c80] sm:$0xff]
  %v928 = vld [vmem:[%s1 + $0x1c88] sm:$0xff]
  %v929 = vld [vmem:[%s1 + $0x1c90] sm:$0xff]
  %v930 = vld [vmem:[%s1 + $0x1c98] sm:$0xff]
  %v931 = vld [vmem:[%s1 + $0x1ca0] sm:$0xff]
  %v932 = vld [vmem:[%s1 + $0x1ca8] sm:$0xff]
  %v933 = vld [vmem:[%s1 + $0x1cb0] sm:$0xff]
  %v934 = vld [vmem:[%s1 + $0x1cb8] sm:$0xff]
  %v935 = vld [vmem:[%s1 + $0x1cc0] sm:$0xff]
  %v936 = vld [vmem:[%s1 + $0x1cc8] sm:$0xff]
  %v937 = vld [vmem:[%s1 + $0x1cd0] sm:$0xff]
  %v938 = vld [vmem:[%s1 + $0x1cd8] sm:$0xff]
  %v939 = vld [vmem:[%s1 + $0x1ce0] sm:$0xff]
  %v940 = vld [vmem:[%s1 + $0x1ce8] sm:$0xff]
  %v941 = vld [vmem:[%s1 + $0x1cf0] sm:$0xff]
  %v942 = vld [vmem:[%s1 + $0x1cf8] sm:$0xff]
  %v943 = vld [vmem:[%s1 + $0x1d00] sm:$0xff]
  %v944 = vld [vmem:[%s1 + $0x1d08] sm:$0xff]
  %v945 = vld [vmem:[%s1 + $0x1d10] sm:$0xff]
  %v946 = vld [vmem:[%s1 + $0x1d18] sm:$0xff]
  %v947 = vld [vmem:[%s1 + $0x1d20] sm:$0xff]
  %v948 = vld [vmem:[%s1 + $0x1d28] sm:$0xff]
  %v949 = vld [vmem:[%s1 + $0x1d30] sm:$0xff]
  %v950 = vld [vmem:[%s1 + $0x1d38] sm:$0xff]
  %v951 = vld [vmem:[%s1 + $0x1d40] sm:$0xff]
  %v952 = vld [vmem:[%s1 + $0x1d48] sm:$0xff]
  %v953 = vld [vmem:[%s1 + $0x1d50] sm:$0xff]
  %v954 = vld [vmem:[%s1 + $0x1d58] sm:$0xff]
  %v955 = vld [vmem:[%s1 + $0x1d60] sm:$0xff]
  %v956 = vld [vmem:[%s1 + $0x1d68] sm:$0xff]
  %v957 = vld [vmem:[%s1 + $0x1d70] sm:$0xff]
  %v958 = vld [vmem:[%s1 + $0x1d78] sm:$0xff]
  %v959 = vld [vmem:[%s1 + $0x1d80] sm:$0xff]
  %v960 = vld [vmem:[%s1 + $0x1d88] sm:$0xff]
  %v961 = vld [vmem:[%s1 + $0x1d90] sm:$0xff]
  %v962 = vld [vmem:[%s1 + $0x1d98] sm:$0xff]
  %v963 = vld [vmem:[%s1 + $0x1da0] sm:$0xff]
  %v964 = vld [vmem:[%s1 + $0x1da8] sm:$0xff]
  %v965 = vld [vmem:[%s1 + $0x1db0] sm:$0xff]
  %v966 = vld [vmem:[%s1 + $0x1db8] sm:$0xff]
  %v967 = vld [vmem:[%s1 + $0x1dc0] sm:$0xff]
  %v968 = vld [vmem:[%s1 + $0x1dc8] sm:$0xff]
  %v969 = vld [vmem:[%s1 + $0x1dd0] sm:$0xff]
  %v970 = vld [vmem:[%s1 + $0x1dd8] sm:$0xff]
  %v971 = vld [vmem:[%s1 + $0x1de0] sm:$0xff]
  %v972 = vld [vmem:[%s1 + $0x1de8] sm:$0xff]
  %v973 = vld [vmem:[%s1 + $0x1df0] sm:$0xff]
  %v974 = vld [vmem:[%s1 + $0x1df8] sm:$0xff]
  %v975 = vld [vmem:[%s1 + $0x1e00] sm:$0xff]
  %v976 = vld [vmem:[%s1 + $0x1e08] sm:$0xff]
  %v977 = vld [vmem:[%s1 + $0x1e10] sm:$0xff]
  %v978 = vld [vmem:[%s1 + $0x1e18] sm:$0xff]
  %v979 = vld [vmem:[%s1 + $0x1e20] sm:$0xff]
  %v980 = vld [vmem:[%s1 + $0x1e28] sm:$0xff]
  %v981 = vld [vmem:[%s1 + $0x1e30] sm:$0xff]
  %v982 = vld [vmem:[%s1 + $0x1e38] sm:$0xff]
  %v983 = vld [vmem:[%s1 + $0x1e40] sm:$0xff]
  %v984 = vld [vmem:[%s1 + $0x1e48] sm:$0xff]
  %v985 = vld [vmem:[%s1 + $0x1e50] sm:$0xff]
  %v986 = vld [vmem:[%s1 + $0x1e58] sm:$0xff]
  %v987 = vld [vmem:[%s1 + $0x1e60] sm:$0xff]
  %v988 = vld [vmem:[%s1 + $0x1e68] sm:$0xff]
  %v989 = vld [vmem:[%s1 + $0x1e70] sm:$0xff]
  %v990 = vld [vmem:[%s1 + $0x1e78] sm:$0xff]
  %v991 = vld [vmem:[%s1 + $0x1e80] sm:$0xff]
  %v992 = vld [vmem:[%s1 + $0x1e88] sm:$0xff]
  %v993 = vld [vmem:[%s1 + $0x1e90] sm:$0xff]
  %v994 = vld [vmem:[%s1 + $0x1e98] sm:$0xff]
  %v995 = vld [vmem:[%s1 + $0x1ea0] sm:$0xff]
  %v996 = vld [vmem:[%s1 + $0x1ea8] sm:$0xff]
  %v997 = vld [vmem:[%s1 + $0x1eb0] sm:$0xff]
  %v998 = vld [vmem:[%s1 + $0x1eb8] sm:$0xff]
  %v999 = vld [vmem:[%s1 + $0x1ec0] sm:$0xff]
  %v1000 = vld [vmem:[%s1 + $0x1ec8] sm:$0xff]
  %v1001 = vld [vmem:[%s1 + $0x1ed0] sm:$0xff]
  %v1002 = vld [vmem:[%s1 + $0x1ed8] sm:$0xff]
  %v1003 = vld [vmem:[%s1 + $0x1ee0] sm:$0xff]
  %v1004 = vld [vmem:[%s1 + $0x1ee8] sm:$0xff]
  %v1005 = vld [vmem:[%s1 + $0x1ef0] sm:$0xff]
  %v1006 = vld [vmem:[%s1 + $0x1ef8] sm:$0xff]
  %v1007 = vld [vmem:[%s1 + $0x1f00] sm:$0xff]
  %v1008 = vld [vmem:[%s1 + $0x1f08] sm:$0xff]
  %v1009 = vld [vmem:[%s1 + $0x1f10] sm:$0xff]
  %v1010 = vld [vmem:[%s1 + $0x1f18] sm:$0xff]
  %v1011 = vld [vmem:[%s1 + $0x1f20] sm:$0xff]
  %v1012 = vld [vmem:[%s1 + $0x1f28] sm:$0xff]
  %v1013 = vld [vmem:[%s1 + $0x1f30] sm:$0xff]
  %v1014 = vld [vmem:[%s1 + $0x1f38] sm:$0xff]
  %v1015 = vld [vmem:[%s1 + $0x1f40] sm:$0xff]
  %v1016 = vld [vmem:[%s1 + $0x1f48] sm:$0xff]
  %v1017 = vld [vmem:[%s1 + $0x1f50] sm:$0xff]
  %v1018 = vld [vmem:[%s1 + $0x1f58] sm:$0xff]
  %v1019 = vld [vmem:[%s1 + $0x1f60] sm:$0xff]
  %v1020 = vld [vmem:[%s1 + $0x1f68] sm:$0xff]
  %v1021 = vld [vmem:[%s1 + $0x1f70] sm:$0xff]
  %v1022 = vld [vmem:[%s1 + $0x1f78] sm:$0xff]
  %v1023 = vld [vmem:[%s1 + $0x1f80] sm:$0xff]
  %v1024 = vld [vmem:[%s1 + $0x1f88] sm:$0xff]
  %v1025 = vld [vmem:[%s1 + $0x1f90] sm:$0xff]
  %v1026 = vld [vmem:[%s1 + $0x1f98] sm:$0xff]
  %v1027 = vld [vmem:[%s1 + $0x1fa0] sm:$0xff]
  %v1028 = vld [vmem:[%s1 + $0x1fa8] sm:$0xff]
  %v1029 = vld [vmem:[%s1 + $0x1fb0] sm:$0xff]
  %v1030 = vld [vmem:[%s1 + $0x1fb8] sm:$0xff]
  %v1031 = vld [vmem:[%s1 + $0x1fc0] sm:$0xff]
  %v1032 = vld [vmem:[%s1 + $0x1fc8] sm:$0xff]
  %v1033 = vld [vmem:[%s1 + $0x1fd0] sm:$0xff]
  %v1034 = vld [vmem:[%s1 + $0x1fd8] sm:$0xff]
  %v1035 = vld [vmem:[%s1 + $0x1fe0] sm:$0xff]
  %v1036 = vld [vmem:[%s1 + $0x1fe8] sm:$0xff]
  %v1037 = vld [vmem:[%s1 + $0x1ff0] sm:$0xff]
  %v1038 = vld [vmem:[%s1 + $0x1ff8] sm:$0xff]
  %1040 = vst [vmem:[#allocation1] ss:$9 sm:$0xff] %v11
  %v1041 = vld [vmem:[#allocation1] sm:$0xff]
  %v1042 = vld [vmem:[#allocation1 + $0x9] sm:$0xff]
  %v1043 = vld [vmem:[#allocation1 + $0x12] sm:$0xff]
  %v1044 = vld [vmem:[#allocation1 + $0x1b] sm:$0xff]
  %v1045 = vld [vmem:[#allocation1 + $0x24] sm:$0xff]
  %v1046 = vld [vmem:[#allocation1 + $0x2d] sm:$0xff]
  %v1047 = vld [vmem:[#allocation1 + $0x36] sm:$0xff]
  %v1048 = vld [vmem:[#allocation1 + $0x3f] sm:$0xff]
  %1050 = vst [vmem:[#allocation1] ss:$9 sm:$0xff] %v12
  %v1051 = vld [vmem:[#allocation1] sm:$0xff]
  %v1052 = vld [vmem:[#allocation1 + $0x9] sm:$0xff]
  %v1053 = vld [vmem:[#allocation1 + $0x12] sm:$0xff]
  %v1054 = vld [vmem:[#allocation1 + $0x1b] sm:$0xff]
  %v1055 = vld [vmem:[#allocation1 + $0x24] sm:$0xff]
  %v1056 = vld [vmem:[#allocation1 + $0x2d] sm:$0xff]
  %v1057 = vld [vmem:[#allocation1 + $0x36] sm:$0xff]
  %v1058 = vld [vmem:[#allocation1 + $0x3f] sm:$0xff]
  %1060 = vst [vmem:[#allocation1] ss:$9 sm:$0xff] %v13
  %v1061 = vld [vmem:[#allocation1] sm:$0xff]
  %v1062 = vld [vmem:[#allocation1 + $0x9] sm:$0xff]
  %v1063 = vld [vmem:[#allocation1 + $0x12] sm:$0xff]
  %v1064 = vld [vmem:[#allocation1 + $0x1b] sm:$0xff]
  %v1065 = vld [vmem:[#allocation1 + $0x24] sm:$0xff]
  %v1066 = vld [vmem:[#allocation1 + $0x2d] sm:$0xff]
  %v1067 = vld [vmem:[#allocation1 + $0x36] sm:$0xff]
  %v1068 = vld [vmem:[#allocation1 + $0x3f] sm:$0xff]
  %1070 = vst [vmem:[#allocation1] ss:$9 sm:$0xff] %v14
  %v1071 = vld [vmem:[#allocation1] sm:$0xff]
  %v1072 = vld [vmem:[#allocation1 + $0x9] sm:$0xff]
  %v1073 = vld [vmem:[#allocation1 + $0x12] sm:$0xff]
  %v1074 = vld [vmem:[#allocation1 + $0x1b] sm:$0xff]
  %v1075 = vld [vmem:[#allocation1 + $0x24] sm:$0xff]
  %v1076 = vld [vmem:[#allocation1 + $0x2d] sm:$0xff]
  %v1077 = vld [vmem:[#allocation1 + $0x36] sm:$0xff]
  %v1078 = vld [vmem:[#allocation1 + $0x3f] sm:$0xff]
  %v2135 = vunpack.c.l.b16 %v15
  %v2136 = vunpack.c.h.b16 %v15
  %v2137 = vunpack.c.l.b16 %v16
  %v2138 = vunpack.c.h.b16 %v16
  %v2139 = vunpack.c.l.b16 %v17
  %v2140 = vunpack.c.h.b16 %v17
  %v2141 = vunpack.c.l.b16 %v18
  %v2142 = vunpack.c.h.b16 %v18
  %v2143 = vunpack.c.l.b16 %v19
  %v2144 = vunpack.c.h.b16 %v19
  %v2145 = vunpack.c.l.b16 %v20
  %v2146 = vunpack.c.h.b16 %v20
  %v2147 = vunpack.c.l.b16 %v21
  %v2148 = vunpack.c.h.b16 %v21
  %v2149 = vunpack.c.l.b16 %v22
  %v2150 = vunpack.c.h.b16 %v22
  %v2151 = vunpack.c.l.b16 %v23
  %v2152 = vunpack.c.h.b16 %v23
  %v2153 = vunpack.c.l.b16 %v24
  %v2154 = vunpack.c.h.b16 %v24
  %v2155 = vunpack.c.l.b16 %v25
  %v2156 = vunpack.c.h.b16 %v25
  %v2157 = vunpack.c.l.b16 %v26
  %v2158 = vunpack.c.h.b16 %v26
  %v2159 = vunpack.c.l.b16 %v27
  %v2160 = vunpack.c.h.b16 %v27
  %v2161 = vunpack.c.l.b16 %v28
  %v2162 = vunpack.c.h.b16 %v28
  %v2163 = vunpack.c.l.b16 %v29
  %v2164 = vunpack.c.h.b16 %v29
  %v2165 = vunpack.c.l.b16 %v30
  %v2166 = vunpack.c.h.b16 %v30
  %v2167 = vunpack.c.l.b16 %v31
  %v2168 = vunpack.c.h.b16 %v31
  %v2169 = vunpack.c.l.b16 %v32
  %v2170 = vunpack.c.h.b16 %v32
  %v2171 = vunpack.c.l.b16 %v33
  %v2172 = vunpack.c.h.b16 %v33
  %v2173 = vunpack.c.l.b16 %v34
  %v2174 = vunpack.c.h.b16 %v34
  %v2175 = vunpack.c.l.b16 %v35
  %v2176 = vunpack.c.h.b16 %v35
  %v2177 = vunpack.c.l.b16 %v36
  %v2178 = vunpack.c.h.b16 %v36
  %v2179 = vunpack.c.l.b16 %v37
  %v2180 = vunpack.c.h.b16 %v37
  %v2181 = vunpack.c.l.b16 %v38
  %v2182 = vunpack.c.h.b16 %v38
  %v2183 = vunpack.c.l.b16 %v39
  %v2184 = vunpack.c.h.b16 %v39
  %v2185 = vunpack.c.l.b16 %v40
  %v2186 = vunpack.c.h.b16 %v40
  %v2187 = vunpack.c.l.b16 %v41
  %v2188 = vunpack.c.h.b16 %v41
  %v2189 = vunpack.c.l.b16 %v42
  %v2190 = vunpack.c.h.b16 %v42
  %v2191 = vunpack.c.l.b16 %v43
  %v2192 = vunpack.c.h.b16 %v43
  %v2193 = vunpack.c.l.b16 %v44
  %v2194 = vunpack.c.h.b16 %v44
  %v2195 = vunpack.c.l.b16 %v45
  %v2196 = vunpack.c.h.b16 %v45
  %v2197 = vunpack.c.l.b16 %v46
  %v2198 = vunpack.c.h.b16 %v46
  %v2199 = vunpack.c.l.b16 %v47
  %v2200 = vunpack.c.h.b16 %v47
  %v2201 = vunpack.c.l.b16 %v48
  %v2202 = vunpack.c.h.b16 %v48
  %v2203 = vunpack.c.l.b16 %v49
  %v2204 = vunpack.c.h.b16 %v49
  %v2205 = vunpack.c.l.b16 %v50
  %v2206 = vunpack.c.h.b16 %v50
  %v2207 = vunpack.c.l.b16 %v51
  %v2208 = vunpack.c.h.b16 %v51
  %v2209 = vunpack.c.l.b16 %v52
  %v2210 = vunpack.c.h.b16 %v52
  %v2211 = vunpack.c.l.b16 %v53
  %v2212 = vunpack.c.h.b16 %v53
  %v2213 = vunpack.c.l.b16 %v54
  %v2214 = vunpack.c.h.b16 %v54
  %v2215 = vunpack.c.l.b16 %v55
  %v2216 = vunpack.c.h.b16 %v55
  %v2217 = vunpack.c.l.b16 %v56
  %v2218 = vunpack.c.h.b16 %v56
  %v2219 = vunpack.c.l.b16 %v57
  %v2220 = vunpack.c.h.b16 %v57
  %v2221 = vunpack.c.l.b16 %v58
  %v2222 = vunpack.c.h.b16 %v58
  %v2223 = vunpack.c.l.b16 %v59
  %v2224 = vunpack.c.h.b16 %v59
  %v2225 = vunpack.c.l.b16 %v60
  %v2226 = vunpack.c.h.b16 %v60
  %v2227 = vunpack.c.l.b16 %v61
  %v2228 = vunpack.c.h.b16 %v61
  %v2229 = vunpack.c.l.b16 %v62
  %v2230 = vunpack.c.h.b16 %v62
  %v2231 = vunpack.c.l.b16 %v63
  %v2232 = vunpack.c.h.b16 %v63
  %v2233 = vunpack.c.l.b16 %v64
  %v2234 = vunpack.c.h.b16 %v64
  %v2235 = vunpack.c.l.b16 %v65
  %v2236 = vunpack.c.h.b16 %v65
  %v2237 = vunpack.c.l.b16 %v66
  %v2238 = vunpack.c.h.b16 %v66
  %v2239 = vunpack.c.l.b16 %v67
  %v2240 = vunpack.c.h.b16 %v67
  %v2241 = vunpack.c.l.b16 %v68
  %v2242 = vunpack.c.h.b16 %v68
  %v2243 = vunpack.c.l.b16 %v69
  %v2244 = vunpack.c.h.b16 %v69
  %v2245 = vunpack.c.l.b16 %v70
  %v2246 = vunpack.c.h.b16 %v70
  %v2247 = vunpack.c.l.b16 %v71
  %v2248 = vunpack.c.h.b16 %v71
  %v2249 = vunpack.c.l.b16 %v72
  %v2250 = vunpack.c.h.b16 %v72
  %v2251 = vunpack.c.l.b16 %v73
  %v2252 = vunpack.c.h.b16 %v73
  %v2253 = vunpack.c.l.b16 %v74
  %v2254 = vunpack.c.h.b16 %v74
  %v2255 = vunpack.c.l.b16 %v75
  %v2256 = vunpack.c.h.b16 %v75
  %v2257 = vunpack.c.l.b16 %v76
  %v2258 = vunpack.c.h.b16 %v76
  %v2259 = vunpack.c.l.b16 %v77
  %v2260 = vunpack.c.h.b16 %v77
  %v2261 = vunpack.c.l.b16 %v78
  %v2262 = vunpack.c.h.b16 %v78
  %v2263 = vunpack.c.l.b16 %v79
  %v2264 = vunpack.c.h.b16 %v79
  %v2265 = vunpack.c.l.b16 %v80
  %v2266 = vunpack.c.h.b16 %v80
  %v2267 = vunpack.c.l.b16 %v81
  %v2268 = vunpack.c.h.b16 %v81
  %v2269 = vunpack.c.l.b16 %v82
  %v2270 = vunpack.c.h.b16 %v82
  %v2271 = vunpack.c.l.b16 %v83
  %v2272 = vunpack.c.h.b16 %v83
  %v2273 = vunpack.c.l.b16 %v84
  %v2274 = vunpack.c.h.b16 %v84
  %v2275 = vunpack.c.l.b16 %v85
  %v2276 = vunpack.c.h.b16 %v85
  %v2277 = vunpack.c.l.b16 %v86
  %v2278 = vunpack.c.h.b16 %v86
  %v2279 = vunpack.c.l.b16 %v87
  %v2280 = vunpack.c.h.b16 %v87
  %v2281 = vunpack.c.l.b16 %v88
  %v2282 = vunpack.c.h.b16 %v88
  %v2283 = vunpack.c.l.b16 %v89
  %v2284 = vunpack.c.h.b16 %v89
  %v2285 = vunpack.c.l.b16 %v90
  %v2286 = vunpack.c.h.b16 %v90
  %v2287 = vunpack.c.l.b16 %v91
  %v2288 = vunpack.c.h.b16 %v91
  %v2289 = vunpack.c.l.b16 %v92
  %v2290 = vunpack.c.h.b16 %v92
  %v2291 = vunpack.c.l.b16 %v93
  %v2292 = vunpack.c.h.b16 %v93
  %v2293 = vunpack.c.l.b16 %v94
  %v2294 = vunpack.c.h.b16 %v94
  %v2295 = vunpack.c.l.b16 %v95
  %v2296 = vunpack.c.h.b16 %v95
  %v2297 = vunpack.c.l.b16 %v96
  %v2298 = vunpack.c.h.b16 %v96
  %v2299 = vunpack.c.l.b16 %v97
  %v2300 = vunpack.c.h.b16 %v97
  %v2301 = vunpack.c.l.b16 %v98
  %v2302 = vunpack.c.h.b16 %v98
  %v2303 = vunpack.c.l.b16 %v99
  %v2304 = vunpack.c.h.b16 %v99
  %v2305 = vunpack.c.l.b16 %v100
  %v2306 = vunpack.c.h.b16 %v100
  %v2307 = vunpack.c.l.b16 %v101
  %v2308 = vunpack.c.h.b16 %v101
  %v2309 = vunpack.c.l.b16 %v102
  %v2310 = vunpack.c.h.b16 %v102
  %v2311 = vunpack.c.l.b16 %v103
  %v2312 = vunpack.c.h.b16 %v103
  %v2313 = vunpack.c.l.b16 %v104
  %v2314 = vunpack.c.h.b16 %v104
  %v2315 = vunpack.c.l.b16 %v105
  %v2316 = vunpack.c.h.b16 %v105
  %v2317 = vunpack.c.l.b16 %v106
  %v2318 = vunpack.c.h.b16 %v106
  %v2319 = vunpack.c.l.b16 %v107
  %v2320 = vunpack.c.h.b16 %v107
  %v2321 = vunpack.c.l.b16 %v108
  %v2322 = vunpack.c.h.b16 %v108
  %v2323 = vunpack.c.l.b16 %v109
  %v2324 = vunpack.c.h.b16 %v109
  %v2325 = vunpack.c.l.b16 %v110
  %v2326 = vunpack.c.h.b16 %v110
  %v2327 = vunpack.c.l.b16 %v111
  %v2328 = vunpack.c.h.b16 %v111
  %v2329 = vunpack.c.l.b16 %v112
  %v2330 = vunpack.c.h.b16 %v112
  %v2331 = vunpack.c.l.b16 %v113
  %v2332 = vunpack.c.h.b16 %v113
  %v2333 = vunpack.c.l.b16 %v114
  %v2334 = vunpack.c.h.b16 %v114
  %v2335 = vunpack.c.l.b16 %v115
  %v2336 = vunpack.c.h.b16 %v115
  %v2337 = vunpack.c.l.b16 %v116
  %v2338 = vunpack.c.h.b16 %v116
  %v2339 = vunpack.c.l.b16 %v117
  %v2340 = vunpack.c.h.b16 %v117
  %v2341 = vunpack.c.l.b16 %v118
  %v2342 = vunpack.c.h.b16 %v118
  %v2343 = vunpack.c.l.b16 %v119
  %v2344 = vunpack.c.h.b16 %v119
  %v2345 = vunpack.c.l.b16 %v120
  %v2346 = vunpack.c.h.b16 %v120
  %v2347 = vunpack.c.l.b16 %v121
  %v2348 = vunpack.c.h.b16 %v121
  %v2349 = vunpack.c.l.b16 %v122
  %v2350 = vunpack.c.h.b16 %v122
  %v2351 = vunpack.c.l.b16 %v123
  %v2352 = vunpack.c.h.b16 %v123
  %v2353 = vunpack.c.l.b16 %v124
  %v2354 = vunpack.c.h.b16 %v124
  %v2355 = vunpack.c.l.b16 %v125
  %v2356 = vunpack.c.h.b16 %v125
  %v2357 = vunpack.c.l.b16 %v126
  %v2358 = vunpack.c.h.b16 %v126
  %v2359 = vunpack.c.l.b16 %v127
  %v2360 = vunpack.c.h.b16 %v127
  %v2361 = vunpack.c.l.b16 %v128
  %v2362 = vunpack.c.h.b16 %v128
  %v2363 = vunpack.c.l.b16 %v129
  %v2364 = vunpack.c.h.b16 %v129
  %v2365 = vunpack.c.l.b16 %v130
  %v2366 = vunpack.c.h.b16 %v130
  %v2367 = vunpack.c.l.b16 %v131
  %v2368 = vunpack.c.h.b16 %v131
  %v2369 = vunpack.c.l.b16 %v132
  %v2370 = vunpack.c.h.b16 %v132
  %v2371 = vunpack.c.l.b16 %v133
  %v2372 = vunpack.c.h.b16 %v133
  %v2373 = vunpack.c.l.b16 %v134
  %v2374 = vunpack.c.h.b16 %v134
  %v2375 = vunpack.c.l.b16 %v135
  %v2376 = vunpack.c.h.b16 %v135
  %v2377 = vunpack.c.l.b16 %v136
  %v2378 = vunpack.c.h.b16 %v136
  %v2379 = vunpack.c.l.b16 %v137
  %v2380 = vunpack.c.h.b16 %v137
  %v2381 = vunpack.c.l.b16 %v138
  %v2382 = vunpack.c.h.b16 %v138
  %v2383 = vunpack.c.l.b16 %v139
  %v2384 = vunpack.c.h.b16 %v139
  %v2385 = vunpack.c.l.b16 %v140
  %v2386 = vunpack.c.h.b16 %v140
  %v2387 = vunpack.c.l.b16 %v141
  %v2388 = vunpack.c.h.b16 %v141
  %v2389 = vunpack.c.l.b16 %v142
  %v2390 = vunpack.c.h.b16 %v142
  %v2391 = vunpack.c.l.b16 %v143
  %v2392 = vunpack.c.h.b16 %v143
  %v2393 = vunpack.c.l.b16 %v144
  %v2394 = vunpack.c.h.b16 %v144
  %v2395 = vunpack.c.l.b16 %v145
  %v2396 = vunpack.c.h.b16 %v145
  %v2397 = vunpack.c.l.b16 %v146
  %v2398 = vunpack.c.h.b16 %v146
  %v2399 = vunpack.c.l.b16 %v147
  %v2400 = vunpack.c.h.b16 %v147
  %v2401 = vunpack.c.l.b16 %v148
  %v2402 = vunpack.c.h.b16 %v148
  %v2403 = vunpack.c.l.b16 %v149
  %v2404 = vunpack.c.h.b16 %v149
  %v2405 = vunpack.c.l.b16 %v150
  %v2406 = vunpack.c.h.b16 %v150
  %v2407 = vunpack.c.l.b16 %v151
  %v2408 = vunpack.c.h.b16 %v151
  %v2409 = vunpack.c.l.b16 %v152
  %v2410 = vunpack.c.h.b16 %v152
  %v2411 = vunpack.c.l.b16 %v153
  %v2412 = vunpack.c.h.b16 %v153
  %v2413 = vunpack.c.l.b16 %v154
  %v2414 = vunpack.c.h.b16 %v154
  %v2415 = vunpack.c.l.b16 %v155
  %v2416 = vunpack.c.h.b16 %v155
  %v2417 = vunpack.c.l.b16 %v156
  %v2418 = vunpack.c.h.b16 %v156
  %v2419 = vunpack.c.l.b16 %v157
  %v2420 = vunpack.c.h.b16 %v157
  %v2421 = vunpack.c.l.b16 %v158
  %v2422 = vunpack.c.h.b16 %v158
  %v2423 = vunpack.c.l.b16 %v159
  %v2424 = vunpack.c.h.b16 %v159
  %v2425 = vunpack.c.l.b16 %v160
  %v2426 = vunpack.c.h.b16 %v160
  %v2427 = vunpack.c.l.b16 %v161
  %v2428 = vunpack.c.h.b16 %v161
  %v2429 = vunpack.c.l.b16 %v162
  %v2430 = vunpack.c.h.b16 %v162
  %v2431 = vunpack.c.l.b16 %v163
  %v2432 = vunpack.c.h.b16 %v163
  %v2433 = vunpack.c.l.b16 %v164
  %v2434 = vunpack.c.h.b16 %v164
  %v2435 = vunpack.c.l.b16 %v165
  %v2436 = vunpack.c.h.b16 %v165
  %v2437 = vunpack.c.l.b16 %v166
  %v2438 = vunpack.c.h.b16 %v166
  %v2439 = vunpack.c.l.b16 %v167
  %v2440 = vunpack.c.h.b16 %v167
  %v2441 = vunpack.c.l.b16 %v168
  %v2442 = vunpack.c.h.b16 %v168
  %v2443 = vunpack.c.l.b16 %v169
  %v2444 = vunpack.c.h.b16 %v169
  %v2445 = vunpack.c.l.b16 %v170
  %v2446 = vunpack.c.h.b16 %v170
  %v2447 = vunpack.c.l.b16 %v171
  %v2448 = vunpack.c.h.b16 %v171
  %v2449 = vunpack.c.l.b16 %v172
  %v2450 = vunpack.c.h.b16 %v172
  %v2451 = vunpack.c.l.b16 %v173
  %v2452 = vunpack.c.h.b16 %v173
  %v2453 = vunpack.c.l.b16 %v174
  %v2454 = vunpack.c.h.b16 %v174
  %v2455 = vunpack.c.l.b16 %v175
  %v2456 = vunpack.c.h.b16 %v175
  %v2457 = vunpack.c.l.b16 %v176
  %v2458 = vunpack.c.h.b16 %v176
  %v2459 = vunpack.c.l.b16 %v177
  %v2460 = vunpack.c.h.b16 %v177
  %v2461 = vunpack.c.l.b16 %v178
  %v2462 = vunpack.c.h.b16 %v178
  %v2463 = vunpack.c.l.b16 %v179
  %v2464 = vunpack.c.h.b16 %v179
  %v2465 = vunpack.c.l.b16 %v180
  %v2466 = vunpack.c.h.b16 %v180
  %v2467 = vunpack.c.l.b16 %v181
  %v2468 = vunpack.c.h.b16 %v181
  %v2469 = vunpack.c.l.b16 %v182
  %v2470 = vunpack.c.h.b16 %v182
  %v2471 = vunpack.c.l.b16 %v183
  %v2472 = vunpack.c.h.b16 %v183
  %v2473 = vunpack.c.l.b16 %v184
  %v2474 = vunpack.c.h.b16 %v184
  %v2475 = vunpack.c.l.b16 %v185
  %v2476 = vunpack.c.h.b16 %v185
  %v2477 = vunpack.c.l.b16 %v186
  %v2478 = vunpack.c.h.b16 %v186
  %v2479 = vunpack.c.l.b16 %v187
  %v2480 = vunpack.c.h.b16 %v187
  %v2481 = vunpack.c.l.b16 %v188
  %v2482 = vunpack.c.h.b16 %v188
  %v2483 = vunpack.c.l.b16 %v189
  %v2484 = vunpack.c.h.b16 %v189
  %v2485 = vunpack.c.l.b16 %v190
  %v2486 = vunpack.c.h.b16 %v190
  %v2487 = vunpack.c.l.b16 %v191
  %v2488 = vunpack.c.h.b16 %v191
  %v2489 = vunpack.c.l.b16 %v192
  %v2490 = vunpack.c.h.b16 %v192
  %v2491 = vunpack.c.l.b16 %v193
  %v2492 = vunpack.c.h.b16 %v193
  %v2493 = vunpack.c.l.b16 %v194
  %v2494 = vunpack.c.h.b16 %v194
  %v2495 = vunpack.c.l.b16 %v195
  %v2496 = vunpack.c.h.b16 %v195
  %v2497 = vunpack.c.l.b16 %v196
  %v2498 = vunpack.c.h.b16 %v196
  %v2499 = vunpack.c.l.b16 %v197
  %v2500 = vunpack.c.h.b16 %v197
  %v2501 = vunpack.c.l.b16 %v198
  %v2502 = vunpack.c.h.b16 %v198
  %v2503 = vunpack.c.l.b16 %v199
  %v2504 = vunpack.c.h.b16 %v199
  %v2505 = vunpack.c.l.b16 %v200
  %v2506 = vunpack.c.h.b16 %v200
  %v2507 = vunpack.c.l.b16 %v201
  %v2508 = vunpack.c.h.b16 %v201
  %v2509 = vunpack.c.l.b16 %v202
  %v2510 = vunpack.c.h.b16 %v202
  %v2511 = vunpack.c.l.b16 %v203
  %v2512 = vunpack.c.h.b16 %v203
  %v2513 = vunpack.c.l.b16 %v204
  %v2514 = vunpack.c.h.b16 %v204
  %v2515 = vunpack.c.l.b16 %v205
  %v2516 = vunpack.c.h.b16 %v205
  %v2517 = vunpack.c.l.b16 %v206
  %v2518 = vunpack.c.h.b16 %v206
  %v2519 = vunpack.c.l.b16 %v207
  %v2520 = vunpack.c.h.b16 %v207
  %v2521 = vunpack.c.l.b16 %v208
  %v2522 = vunpack.c.h.b16 %v208
  %v2523 = vunpack.c.l.b16 %v209
  %v2524 = vunpack.c.h.b16 %v209
  %v2525 = vunpack.c.l.b16 %v210
  %v2526 = vunpack.c.h.b16 %v210
  %v2527 = vunpack.c.l.b16 %v211
  %v2528 = vunpack.c.h.b16 %v211
  %v2529 = vunpack.c.l.b16 %v212
  %v2530 = vunpack.c.h.b16 %v212
  %v2531 = vunpack.c.l.b16 %v213
  %v2532 = vunpack.c.h.b16 %v213
  %v2533 = vunpack.c.l.b16 %v214
  %v2534 = vunpack.c.h.b16 %v214
  %v2535 = vunpack.c.l.b16 %v215
  %v2536 = vunpack.c.h.b16 %v215
  %v2537 = vunpack.c.l.b16 %v216
  %v2538 = vunpack.c.h.b16 %v216
  %v2539 = vunpack.c.l.b16 %v217
  %v2540 = vunpack.c.h.b16 %v217
  %v2541 = vunpack.c.l.b16 %v218
  %v2542 = vunpack.c.h.b16 %v218
  %v2543 = vunpack.c.l.b16 %v219
  %v2544 = vunpack.c.h.b16 %v219
  %v2545 = vunpack.c.l.b16 %v220
  %v2546 = vunpack.c.h.b16 %v220
  %v2547 = vunpack.c.l.b16 %v221
  %v2548 = vunpack.c.h.b16 %v221
  %v2549 = vunpack.c.l.b16 %v222
  %v2550 = vunpack.c.h.b16 %v222
  %v2551 = vunpack.c.l.b16 %v223
  %v2552 = vunpack.c.h.b16 %v223
  %v2553 = vunpack.c.l.b16 %v224
  %v2554 = vunpack.c.h.b16 %v224
  %v2555 = vunpack.c.l.b16 %v225
  %v2556 = vunpack.c.h.b16 %v225
  %v2557 = vunpack.c.l.b16 %v226
  %v2558 = vunpack.c.h.b16 %v226
  %v2559 = vunpack.c.l.b16 %v227
  %v2560 = vunpack.c.h.b16 %v227
  %v2561 = vunpack.c.l.b16 %v228
  %v2562 = vunpack.c.h.b16 %v228
  %v2563 = vunpack.c.l.b16 %v229
  %v2564 = vunpack.c.h.b16 %v229
  %v2565 = vunpack.c.l.b16 %v230
  %v2566 = vunpack.c.h.b16 %v230
  %v2567 = vunpack.c.l.b16 %v231
  %v2568 = vunpack.c.h.b16 %v231
  %v2569 = vunpack.c.l.b16 %v232
  %v2570 = vunpack.c.h.b16 %v232
  %v2571 = vunpack.c.l.b16 %v233
  %v2572 = vunpack.c.h.b16 %v233
  %v2573 = vunpack.c.l.b16 %v234
  %v2574 = vunpack.c.h.b16 %v234
  %v2575 = vunpack.c.l.b16 %v235
  %v2576 = vunpack.c.h.b16 %v235
  %v2577 = vunpack.c.l.b16 %v236
  %v2578 = vunpack.c.h.b16 %v236
  %v2579 = vunpack.c.l.b16 %v237
  %v2580 = vunpack.c.h.b16 %v237
  %v2581 = vunpack.c.l.b16 %v238
  %v2582 = vunpack.c.h.b16 %v238
  %v2583 = vunpack.c.l.b16 %v239
  %v2584 = vunpack.c.h.b16 %v239
  %v2585 = vunpack.c.l.b16 %v240
  %v2586 = vunpack.c.h.b16 %v240
  %v2587 = vunpack.c.l.b16 %v241
  %v2588 = vunpack.c.h.b16 %v241
  %v2589 = vunpack.c.l.b16 %v242
  %v2590 = vunpack.c.h.b16 %v242
  %v2591 = vunpack.c.l.b16 %v243
  %v2592 = vunpack.c.h.b16 %v243
  %v2593 = vunpack.c.l.b16 %v244
  %v2594 = vunpack.c.h.b16 %v244
  %v2595 = vunpack.c.l.b16 %v245
  %v2596 = vunpack.c.h.b16 %v245
  %v2597 = vunpack.c.l.b16 %v246
  %v2598 = vunpack.c.h.b16 %v246
  %v2599 = vunpack.c.l.b16 %v247
  %v2600 = vunpack.c.h.b16 %v247
  %v2601 = vunpack.c.l.b16 %v248
  %v2602 = vunpack.c.h.b16 %v248
  %v2603 = vunpack.c.l.b16 %v249
  %v2604 = vunpack.c.h.b16 %v249
  %v2605 = vunpack.c.l.b16 %v250
  %v2606 = vunpack.c.h.b16 %v250
  %v2607 = vunpack.c.l.b16 %v251
  %v2608 = vunpack.c.h.b16 %v251
  %v2609 = vunpack.c.l.b16 %v252
  %v2610 = vunpack.c.h.b16 %v252
  %v2611 = vunpack.c.l.b16 %v253
  %v2612 = vunpack.c.h.b16 %v253
  %v2613 = vunpack.c.l.b16 %v254
  %v2614 = vunpack.c.h.b16 %v254
  %v2615 = vunpack.c.l.b16 %v255
  %v2616 = vunpack.c.h.b16 %v255
  %v2617 = vunpack.c.l.b16 %v256
  %v2618 = vunpack.c.h.b16 %v256
  %v2619 = vunpack.c.l.b16 %v257
  %v2620 = vunpack.c.h.b16 %v257
  %v2621 = vunpack.c.l.b16 %v258
  %v2622 = vunpack.c.h.b16 %v258
  %v2623 = vunpack.c.l.b16 %v259
  %v2624 = vunpack.c.h.b16 %v259
  %v2625 = vunpack.c.l.b16 %v260
  %v2626 = vunpack.c.h.b16 %v260
  %v2627 = vunpack.c.l.b16 %v261
  %v2628 = vunpack.c.h.b16 %v261
  %v2629 = vunpack.c.l.b16 %v262
  %v2630 = vunpack.c.h.b16 %v262
  %v2631 = vunpack.c.l.b16 %v263
  %v2632 = vunpack.c.h.b16 %v263
  %v2633 = vunpack.c.l.b16 %v264
  %v2634 = vunpack.c.h.b16 %v264
  %v2635 = vunpack.c.l.b16 %v265
  %v2636 = vunpack.c.h.b16 %v265
  %v2637 = vunpack.c.l.b16 %v266
  %v2638 = vunpack.c.h.b16 %v266
  %v2639 = vunpack.c.l.b16 %v267
  %v2640 = vunpack.c.h.b16 %v267
  %v2641 = vunpack.c.l.b16 %v268
  %v2642 = vunpack.c.h.b16 %v268
  %v2643 = vunpack.c.l.b16 %v269
  %v2644 = vunpack.c.h.b16 %v269
  %v2645 = vunpack.c.l.b16 %v270
  %v2646 = vunpack.c.h.b16 %v270
  %v2647 = vunpack.c.l.b16 %v271
  %v2648 = vunpack.c.h.b16 %v271
  %v2649 = vunpack.c.l.b16 %v272
  %v2650 = vunpack.c.h.b16 %v272
  %v2651 = vunpack.c.l.b16 %v273
  %v2652 = vunpack.c.h.b16 %v273
  %v2653 = vunpack.c.l.b16 %v274
  %v2654 = vunpack.c.h.b16 %v274
  %v2655 = vunpack.c.l.b16 %v275
  %v2656 = vunpack.c.h.b16 %v275
  %v2657 = vunpack.c.l.b16 %v276
  %v2658 = vunpack.c.h.b16 %v276
  %v2659 = vunpack.c.l.b16 %v277
  %v2660 = vunpack.c.h.b16 %v277
  %v2661 = vunpack.c.l.b16 %v278
  %v2662 = vunpack.c.h.b16 %v278
  %v2663 = vunpack.c.l.b16 %v279
  %v2664 = vunpack.c.h.b16 %v279
  %v2665 = vunpack.c.l.b16 %v280
  %v2666 = vunpack.c.h.b16 %v280
  %v2667 = vunpack.c.l.b16 %v281
  %v2668 = vunpack.c.h.b16 %v281
  %v2669 = vunpack.c.l.b16 %v282
  %v2670 = vunpack.c.h.b16 %v282
  %v2671 = vunpack.c.l.b16 %v283
  %v2672 = vunpack.c.h.b16 %v283
  %v2673 = vunpack.c.l.b16 %v284
  %v2674 = vunpack.c.h.b16 %v284
  %v2675 = vunpack.c.l.b16 %v285
  %v2676 = vunpack.c.h.b16 %v285
  %v2677 = vunpack.c.l.b16 %v286
  %v2678 = vunpack.c.h.b16 %v286
  %v2679 = vunpack.c.l.b16 %v287
  %v2680 = vunpack.c.h.b16 %v287
  %v2681 = vunpack.c.l.b16 %v288
  %v2682 = vunpack.c.h.b16 %v288
  %v2683 = vunpack.c.l.b16 %v289
  %v2684 = vunpack.c.h.b16 %v289
  %v2685 = vunpack.c.l.b16 %v290
  %v2686 = vunpack.c.h.b16 %v290
  %v2687 = vunpack.c.l.b16 %v291
  %v2688 = vunpack.c.h.b16 %v291
  %v2689 = vunpack.c.l.b16 %v292
  %v2690 = vunpack.c.h.b16 %v292
  %v2691 = vunpack.c.l.b16 %v293
  %v2692 = vunpack.c.h.b16 %v293
  %v2693 = vunpack.c.l.b16 %v294
  %v2694 = vunpack.c.h.b16 %v294
  %v2695 = vunpack.c.l.b16 %v295
  %v2696 = vunpack.c.h.b16 %v295
  %v2697 = vunpack.c.l.b16 %v296
  %v2698 = vunpack.c.h.b16 %v296
  %v2699 = vunpack.c.l.b16 %v297
  %v2700 = vunpack.c.h.b16 %v297
  %v2701 = vunpack.c.l.b16 %v298
  %v2702 = vunpack.c.h.b16 %v298
  %v2703 = vunpack.c.l.b16 %v299
  %v2704 = vunpack.c.h.b16 %v299
  %v2705 = vunpack.c.l.b16 %v300
  %v2706 = vunpack.c.h.b16 %v300
  %v2707 = vunpack.c.l.b16 %v301
  %v2708 = vunpack.c.h.b16 %v301
  %v2709 = vunpack.c.l.b16 %v302
  %v2710 = vunpack.c.h.b16 %v302
  %v2711 = vunpack.c.l.b16 %v303
  %v2712 = vunpack.c.h.b16 %v303
  %v2713 = vunpack.c.l.b16 %v304
  %v2714 = vunpack.c.h.b16 %v304
  %v2715 = vunpack.c.l.b16 %v305
  %v2716 = vunpack.c.h.b16 %v305
  %v2717 = vunpack.c.l.b16 %v306
  %v2718 = vunpack.c.h.b16 %v306
  %v2719 = vunpack.c.l.b16 %v307
  %v2720 = vunpack.c.h.b16 %v307
  %v2721 = vunpack.c.l.b16 %v308
  %v2722 = vunpack.c.h.b16 %v308
  %v2723 = vunpack.c.l.b16 %v309
  %v2724 = vunpack.c.h.b16 %v309
  %v2725 = vunpack.c.l.b16 %v310
  %v2726 = vunpack.c.h.b16 %v310
  %v2727 = vunpack.c.l.b16 %v311
  %v2728 = vunpack.c.h.b16 %v311
  %v2729 = vunpack.c.l.b16 %v312
  %v2730 = vunpack.c.h.b16 %v312
  %v2731 = vunpack.c.l.b16 %v313
  %v2732 = vunpack.c.h.b16 %v313
  %v2733 = vunpack.c.l.b16 %v314
  %v2734 = vunpack.c.h.b16 %v314
  %v2735 = vunpack.c.l.b16 %v315
  %v2736 = vunpack.c.h.b16 %v315
  %v2737 = vunpack.c.l.b16 %v316
  %v2738 = vunpack.c.h.b16 %v316
  %v2739 = vunpack.c.l.b16 %v317
  %v2740 = vunpack.c.h.b16 %v317
  %v2741 = vunpack.c.l.b16 %v318
  %v2742 = vunpack.c.h.b16 %v318
  %v2743 = vunpack.c.l.b16 %v319
  %v2744 = vunpack.c.h.b16 %v319
  %v2745 = vunpack.c.l.b16 %v320
  %v2746 = vunpack.c.h.b16 %v320
  %v2747 = vunpack.c.l.b16 %v321
  %v2748 = vunpack.c.h.b16 %v321
  %v2749 = vunpack.c.l.b16 %v322
  %v2750 = vunpack.c.h.b16 %v322
  %v2751 = vunpack.c.l.b16 %v323
  %v2752 = vunpack.c.h.b16 %v323
  %v2753 = vunpack.c.l.b16 %v324
  %v2754 = vunpack.c.h.b16 %v324
  %v2755 = vunpack.c.l.b16 %v325
  %v2756 = vunpack.c.h.b16 %v325
  %v2757 = vunpack.c.l.b16 %v326
  %v2758 = vunpack.c.h.b16 %v326
  %v2759 = vunpack.c.l.b16 %v327
  %v2760 = vunpack.c.h.b16 %v327
  %v2761 = vunpack.c.l.b16 %v328
  %v2762 = vunpack.c.h.b16 %v328
  %v2763 = vunpack.c.l.b16 %v329
  %v2764 = vunpack.c.h.b16 %v329
  %v2765 = vunpack.c.l.b16 %v330
  %v2766 = vunpack.c.h.b16 %v330
  %v2767 = vunpack.c.l.b16 %v331
  %v2768 = vunpack.c.h.b16 %v331
  %v2769 = vunpack.c.l.b16 %v332
  %v2770 = vunpack.c.h.b16 %v332
  %v2771 = vunpack.c.l.b16 %v333
  %v2772 = vunpack.c.h.b16 %v333
  %v2773 = vunpack.c.l.b16 %v334
  %v2774 = vunpack.c.h.b16 %v334
  %v2775 = vunpack.c.l.b16 %v335
  %v2776 = vunpack.c.h.b16 %v335
  %v2777 = vunpack.c.l.b16 %v336
  %v2778 = vunpack.c.h.b16 %v336
  %v2779 = vunpack.c.l.b16 %v337
  %v2780 = vunpack.c.h.b16 %v337
  %v2781 = vunpack.c.l.b16 %v338
  %v2782 = vunpack.c.h.b16 %v338
  %v2783 = vunpack.c.l.b16 %v339
  %v2784 = vunpack.c.h.b16 %v339
  %v2785 = vunpack.c.l.b16 %v340
  %v2786 = vunpack.c.h.b16 %v340
  %v2787 = vunpack.c.l.b16 %v341
  %v2788 = vunpack.c.h.b16 %v341
  %v2789 = vunpack.c.l.b16 %v342
  %v2790 = vunpack.c.h.b16 %v342
  %v2791 = vunpack.c.l.b16 %v343
  %v2792 = vunpack.c.h.b16 %v343
  %v2793 = vunpack.c.l.b16 %v344
  %v2794 = vunpack.c.h.b16 %v344
  %v2795 = vunpack.c.l.b16 %v345
  %v2796 = vunpack.c.h.b16 %v345
  %v2797 = vunpack.c.l.b16 %v346
  %v2798 = vunpack.c.h.b16 %v346
  %v2799 = vunpack.c.l.b16 %v347
  %v2800 = vunpack.c.h.b16 %v347
  %v2801 = vunpack.c.l.b16 %v348
  %v2802 = vunpack.c.h.b16 %v348
  %v2803 = vunpack.c.l.b16 %v349
  %v2804 = vunpack.c.h.b16 %v349
  %v2805 = vunpack.c.l.b16 %v350
  %v2806 = vunpack.c.h.b16 %v350
  %v2807 = vunpack.c.l.b16 %v351
  %v2808 = vunpack.c.h.b16 %v351
  %v2809 = vunpack.c.l.b16 %v352
  %v2810 = vunpack.c.h.b16 %v352
  %v2811 = vunpack.c.l.b16 %v353
  %v2812 = vunpack.c.h.b16 %v353
  %v2813 = vunpack.c.l.b16 %v354
  %v2814 = vunpack.c.h.b16 %v354
  %v2815 = vunpack.c.l.b16 %v355
  %v2816 = vunpack.c.h.b16 %v355
  %v2817 = vunpack.c.l.b16 %v356
  %v2818 = vunpack.c.h.b16 %v356
  %v2819 = vunpack.c.l.b16 %v357
  %v2820 = vunpack.c.h.b16 %v357
  %v2821 = vunpack.c.l.b16 %v358
  %v2822 = vunpack.c.h.b16 %v358
  %v2823 = vunpack.c.l.b16 %v359
  %v2824 = vunpack.c.h.b16 %v359
  %v2825 = vunpack.c.l.b16 %v360
  %v2826 = vunpack.c.h.b16 %v360
  %v2827 = vunpack.c.l.b16 %v361
  %v2828 = vunpack.c.h.b16 %v361
  %v2829 = vunpack.c.l.b16 %v362
  %v2830 = vunpack.c.h.b16 %v362
  %v2831 = vunpack.c.l.b16 %v363
  %v2832 = vunpack.c.h.b16 %v363
  %v2833 = vunpack.c.l.b16 %v364
  %v2834 = vunpack.c.h.b16 %v364
  %v2835 = vunpack.c.l.b16 %v365
  %v2836 = vunpack.c.h.b16 %v365
  %v2837 = vunpack.c.l.b16 %v366
  %v2838 = vunpack.c.h.b16 %v366
  %v2839 = vunpack.c.l.b16 %v367
  %v2840 = vunpack.c.h.b16 %v367
  %v2841 = vunpack.c.l.b16 %v368
  %v2842 = vunpack.c.h.b16 %v368
  %v2843 = vunpack.c.l.b16 %v369
  %v2844 = vunpack.c.h.b16 %v369
  %v2845 = vunpack.c.l.b16 %v370
  %v2846 = vunpack.c.h.b16 %v370
  %v2847 = vunpack.c.l.b16 %v371
  %v2848 = vunpack.c.h.b16 %v371
  %v2849 = vunpack.c.l.b16 %v372
  %v2850 = vunpack.c.h.b16 %v372
  %v2851 = vunpack.c.l.b16 %v373
  %v2852 = vunpack.c.h.b16 %v373
  %v2853 = vunpack.c.l.b16 %v374
  %v2854 = vunpack.c.h.b16 %v374
  %v2855 = vunpack.c.l.b16 %v375
  %v2856 = vunpack.c.h.b16 %v375
  %v2857 = vunpack.c.l.b16 %v376
  %v2858 = vunpack.c.h.b16 %v376
  %v2859 = vunpack.c.l.b16 %v377
  %v2860 = vunpack.c.h.b16 %v377
  %v2861 = vunpack.c.l.b16 %v378
  %v2862 = vunpack.c.h.b16 %v378
  %v2863 = vunpack.c.l.b16 %v379
  %v2864 = vunpack.c.h.b16 %v379
  %v2865 = vunpack.c.l.b16 %v380
  %v2866 = vunpack.c.h.b16 %v380
  %v2867 = vunpack.c.l.b16 %v381
  %v2868 = vunpack.c.h.b16 %v381
  %v2869 = vunpack.c.l.b16 %v382
  %v2870 = vunpack.c.h.b16 %v382
  %v2871 = vunpack.c.l.b16 %v383
  %v2872 = vunpack.c.h.b16 %v383
  %v2873 = vunpack.c.l.b16 %v384
  %v2874 = vunpack.c.h.b16 %v384
  %v2875 = vunpack.c.l.b16 %v385
  %v2876 = vunpack.c.h.b16 %v385
  %v2877 = vunpack.c.l.b16 %v386
  %v2878 = vunpack.c.h.b16 %v386
  %v2879 = vunpack.c.l.b16 %v387
  %v2880 = vunpack.c.h.b16 %v387
  %v2881 = vunpack.c.l.b16 %v388
  %v2882 = vunpack.c.h.b16 %v388
  %v2883 = vunpack.c.l.b16 %v389
  %v2884 = vunpack.c.h.b16 %v389
  %v2885 = vunpack.c.l.b16 %v390
  %v2886 = vunpack.c.h.b16 %v390
  %v2887 = vunpack.c.l.b16 %v391
  %v2888 = vunpack.c.h.b16 %v391
  %v2889 = vunpack.c.l.b16 %v392
  %v2890 = vunpack.c.h.b16 %v392
  %v2891 = vunpack.c.l.b16 %v393
  %v2892 = vunpack.c.h.b16 %v393
  %v2893 = vunpack.c.l.b16 %v394
  %v2894 = vunpack.c.h.b16 %v394
  %v2895 = vunpack.c.l.b16 %v395
  %v2896 = vunpack.c.h.b16 %v395
  %v2897 = vunpack.c.l.b16 %v396
  %v2898 = vunpack.c.h.b16 %v396
  %v2899 = vunpack.c.l.b16 %v397
  %v2900 = vunpack.c.h.b16 %v397
  %v2901 = vunpack.c.l.b16 %v398
  %v2902 = vunpack.c.h.b16 %v398
  %v2903 = vunpack.c.l.b16 %v399
  %v2904 = vunpack.c.h.b16 %v399
  %v2905 = vunpack.c.l.b16 %v400
  %v2906 = vunpack.c.h.b16 %v400
  %v2907 = vunpack.c.l.b16 %v401
  %v2908 = vunpack.c.h.b16 %v401
  %v2909 = vunpack.c.l.b16 %v402
  %v2910 = vunpack.c.h.b16 %v402
  %v2911 = vunpack.c.l.b16 %v403
  %v2912 = vunpack.c.h.b16 %v403
  %v2913 = vunpack.c.l.b16 %v404
  %v2914 = vunpack.c.h.b16 %v404
  %v2915 = vunpack.c.l.b16 %v405
  %v2916 = vunpack.c.h.b16 %v405
  %v2917 = vunpack.c.l.b16 %v406
  %v2918 = vunpack.c.h.b16 %v406
  %v2919 = vunpack.c.l.b16 %v407
  %v2920 = vunpack.c.h.b16 %v407
  %v2921 = vunpack.c.l.b16 %v408
  %v2922 = vunpack.c.h.b16 %v408
  %v2923 = vunpack.c.l.b16 %v409
  %v2924 = vunpack.c.h.b16 %v409
  %v2925 = vunpack.c.l.b16 %v410
  %v2926 = vunpack.c.h.b16 %v410
  %v2927 = vunpack.c.l.b16 %v411
  %v2928 = vunpack.c.h.b16 %v411
  %v2929 = vunpack.c.l.b16 %v412
  %v2930 = vunpack.c.h.b16 %v412
  %v2931 = vunpack.c.l.b16 %v413
  %v2932 = vunpack.c.h.b16 %v413
  %v2933 = vunpack.c.l.b16 %v414
  %v2934 = vunpack.c.h.b16 %v414
  %v2935 = vunpack.c.l.b16 %v415
  %v2936 = vunpack.c.h.b16 %v415
  %v2937 = vunpack.c.l.b16 %v416
  %v2938 = vunpack.c.h.b16 %v416
  %v2939 = vunpack.c.l.b16 %v417
  %v2940 = vunpack.c.h.b16 %v417
  %v2941 = vunpack.c.l.b16 %v418
  %v2942 = vunpack.c.h.b16 %v418
  %v2943 = vunpack.c.l.b16 %v419
  %v2944 = vunpack.c.h.b16 %v419
  %v2945 = vunpack.c.l.b16 %v420
  %v2946 = vunpack.c.h.b16 %v420
  %v2947 = vunpack.c.l.b16 %v421
  %v2948 = vunpack.c.h.b16 %v421
  %v2949 = vunpack.c.l.b16 %v422
  %v2950 = vunpack.c.h.b16 %v422
  %v2951 = vunpack.c.l.b16 %v423
  %v2952 = vunpack.c.h.b16 %v423
  %v2953 = vunpack.c.l.b16 %v424
  %v2954 = vunpack.c.h.b16 %v424
  %v2955 = vunpack.c.l.b16 %v425
  %v2956 = vunpack.c.h.b16 %v425
  %v2957 = vunpack.c.l.b16 %v426
  %v2958 = vunpack.c.h.b16 %v426
  %v2959 = vunpack.c.l.b16 %v427
  %v2960 = vunpack.c.h.b16 %v427
  %v2961 = vunpack.c.l.b16 %v428
  %v2962 = vunpack.c.h.b16 %v428
  %v2963 = vunpack.c.l.b16 %v429
  %v2964 = vunpack.c.h.b16 %v429
  %v2965 = vunpack.c.l.b16 %v430
  %v2966 = vunpack.c.h.b16 %v430
  %v2967 = vunpack.c.l.b16 %v431
  %v2968 = vunpack.c.h.b16 %v431
  %v2969 = vunpack.c.l.b16 %v432
  %v2970 = vunpack.c.h.b16 %v432
  %v2971 = vunpack.c.l.b16 %v433
  %v2972 = vunpack.c.h.b16 %v433
  %v2973 = vunpack.c.l.b16 %v434
  %v2974 = vunpack.c.h.b16 %v434
  %v2975 = vunpack.c.l.b16 %v435
  %v2976 = vunpack.c.h.b16 %v435
  %v2977 = vunpack.c.l.b16 %v436
  %v2978 = vunpack.c.h.b16 %v436
  %v2979 = vunpack.c.l.b16 %v437
  %v2980 = vunpack.c.h.b16 %v437
  %v2981 = vunpack.c.l.b16 %v438
  %v2982 = vunpack.c.h.b16 %v438
  %v2983 = vunpack.c.l.b16 %v439
  %v2984 = vunpack.c.h.b16 %v439
  %v2985 = vunpack.c.l.b16 %v440
  %v2986 = vunpack.c.h.b16 %v440
  %v2987 = vunpack.c.l.b16 %v441
  %v2988 = vunpack.c.h.b16 %v441
  %v2989 = vunpack.c.l.b16 %v442
  %v2990 = vunpack.c.h.b16 %v442
  %v2991 = vunpack.c.l.b16 %v443
  %v2992 = vunpack.c.h.b16 %v443
  %v2993 = vunpack.c.l.b16 %v444
  %v2994 = vunpack.c.h.b16 %v444
  %v2995 = vunpack.c.l.b16 %v445
  %v2996 = vunpack.c.h.b16 %v445
  %v2997 = vunpack.c.l.b16 %v446
  %v2998 = vunpack.c.h.b16 %v446
  %v2999 = vunpack.c.l.b16 %v447
  %v3000 = vunpack.c.h.b16 %v447
  %v3001 = vunpack.c.l.b16 %v448
  %v3002 = vunpack.c.h.b16 %v448
  %v3003 = vunpack.c.l.b16 %v449
  %v3004 = vunpack.c.h.b16 %v449
  %v3005 = vunpack.c.l.b16 %v450
  %v3006 = vunpack.c.h.b16 %v450
  %v3007 = vunpack.c.l.b16 %v451
  %v3008 = vunpack.c.h.b16 %v451
  %v3009 = vunpack.c.l.b16 %v452
  %v3010 = vunpack.c.h.b16 %v452
  %v3011 = vunpack.c.l.b16 %v453
  %v3012 = vunpack.c.h.b16 %v453
  %v3013 = vunpack.c.l.b16 %v454
  %v3014 = vunpack.c.h.b16 %v454
  %v3015 = vunpack.c.l.b16 %v455
  %v3016 = vunpack.c.h.b16 %v455
  %v3017 = vunpack.c.l.b16 %v456
  %v3018 = vunpack.c.h.b16 %v456
  %v3019 = vunpack.c.l.b16 %v457
  %v3020 = vunpack.c.h.b16 %v457
  %v3021 = vunpack.c.l.b16 %v458
  %v3022 = vunpack.c.h.b16 %v458
  %v3023 = vunpack.c.l.b16 %v459
  %v3024 = vunpack.c.h.b16 %v459
  %v3025 = vunpack.c.l.b16 %v460
  %v3026 = vunpack.c.h.b16 %v460
  %v3027 = vunpack.c.l.b16 %v461
  %v3028 = vunpack.c.h.b16 %v461
  %v3029 = vunpack.c.l.b16 %v462
  %v3030 = vunpack.c.h.b16 %v462
  %v3031 = vunpack.c.l.b16 %v463
  %v3032 = vunpack.c.h.b16 %v463
  %v3033 = vunpack.c.l.b16 %v464
  %v3034 = vunpack.c.h.b16 %v464
  %v3035 = vunpack.c.l.b16 %v465
  %v3036 = vunpack.c.h.b16 %v465
  %v3037 = vunpack.c.l.b16 %v466
  %v3038 = vunpack.c.h.b16 %v466
  %v3039 = vunpack.c.l.b16 %v467
  %v3040 = vunpack.c.h.b16 %v467
  %v3041 = vunpack.c.l.b16 %v468
  %v3042 = vunpack.c.h.b16 %v468
  %v3043 = vunpack.c.l.b16 %v469
  %v3044 = vunpack.c.h.b16 %v469
  %v3045 = vunpack.c.l.b16 %v470
  %v3046 = vunpack.c.h.b16 %v470
  %v3047 = vunpack.c.l.b16 %v471
  %v3048 = vunpack.c.h.b16 %v471
  %v3049 = vunpack.c.l.b16 %v472
  %v3050 = vunpack.c.h.b16 %v472
  %v3051 = vunpack.c.l.b16 %v473
  %v3052 = vunpack.c.h.b16 %v473
  %v3053 = vunpack.c.l.b16 %v474
  %v3054 = vunpack.c.h.b16 %v474
  %v3055 = vunpack.c.l.b16 %v475
  %v3056 = vunpack.c.h.b16 %v475
  %v3057 = vunpack.c.l.b16 %v476
  %v3058 = vunpack.c.h.b16 %v476
  %v3059 = vunpack.c.l.b16 %v477
  %v3060 = vunpack.c.h.b16 %v477
  %v3061 = vunpack.c.l.b16 %v478
  %v3062 = vunpack.c.h.b16 %v478
  %v3063 = vunpack.c.l.b16 %v479
  %v3064 = vunpack.c.h.b16 %v479
  %v3065 = vunpack.c.l.b16 %v480
  %v3066 = vunpack.c.h.b16 %v480
  %v3067 = vunpack.c.l.b16 %v481
  %v3068 = vunpack.c.h.b16 %v481
  %v3069 = vunpack.c.l.b16 %v482
  %v3070 = vunpack.c.h.b16 %v482
  %v3071 = vunpack.c.l.b16 %v483
  %v3072 = vunpack.c.h.b16 %v483
  %v3073 = vunpack.c.l.b16 %v484
  %v3074 = vunpack.c.h.b16 %v484
  %v3075 = vunpack.c.l.b16 %v485
  %v3076 = vunpack.c.h.b16 %v485
  %v3077 = vunpack.c.l.b16 %v486
  %v3078 = vunpack.c.h.b16 %v486
  %v3079 = vunpack.c.l.b16 %v487
  %v3080 = vunpack.c.h.b16 %v487
  %v3081 = vunpack.c.l.b16 %v488
  %v3082 = vunpack.c.h.b16 %v488
  %v3083 = vunpack.c.l.b16 %v489
  %v3084 = vunpack.c.h.b16 %v489
  %v3085 = vunpack.c.l.b16 %v490
  %v3086 = vunpack.c.h.b16 %v490
  %v3087 = vunpack.c.l.b16 %v491
  %v3088 = vunpack.c.h.b16 %v491
  %v3089 = vunpack.c.l.b16 %v492
  %v3090 = vunpack.c.h.b16 %v492
  %v3091 = vunpack.c.l.b16 %v493
  %v3092 = vunpack.c.h.b16 %v493
  %v3093 = vunpack.c.l.b16 %v494
  %v3094 = vunpack.c.h.b16 %v494
  %v3095 = vunpack.c.l.b16 %v495
  %v3096 = vunpack.c.h.b16 %v495
  %v3097 = vunpack.c.l.b16 %v496
  %v3098 = vunpack.c.h.b16 %v496
  %v3099 = vunpack.c.l.b16 %v497
  %v3100 = vunpack.c.h.b16 %v497
  %v3101 = vunpack.c.l.b16 %v498
  %v3102 = vunpack.c.h.b16 %v498
  %v3103 = vunpack.c.l.b16 %v499
  %v3104 = vunpack.c.h.b16 %v499
  %v3105 = vunpack.c.l.b16 %v500
  %v3106 = vunpack.c.h.b16 %v500
  %v3107 = vunpack.c.l.b16 %v501
  %v3108 = vunpack.c.h.b16 %v501
  %v3109 = vunpack.c.l.b16 %v502
  %v3110 = vunpack.c.h.b16 %v502
  %v3111 = vunpack.c.l.b16 %v503
  %v3112 = vunpack.c.h.b16 %v503
  %v3113 = vunpack.c.l.b16 %v504
  %v3114 = vunpack.c.h.b16 %v504
  %v3115 = vunpack.c.l.b16 %v505
  %v3116 = vunpack.c.h.b16 %v505
  %v3117 = vunpack.c.l.b16 %v506
  %v3118 = vunpack.c.h.b16 %v506
  %v3119 = vunpack.c.l.b16 %v507
  %v3120 = vunpack.c.h.b16 %v507
  %v3121 = vunpack.c.l.b16 %v508
  %v3122 = vunpack.c.h.b16 %v508
  %v3123 = vunpack.c.l.b16 %v509
  %v3124 = vunpack.c.h.b16 %v509
  %v3125 = vunpack.c.l.b16 %v510
  %v3126 = vunpack.c.h.b16 %v510
  %v3127 = vunpack.c.l.b16 %v511
  %v3128 = vunpack.c.h.b16 %v511
  %v3129 = vunpack.c.l.b16 %v512
  %v3130 = vunpack.c.h.b16 %v512
  %v3131 = vunpack.c.l.b16 %v513
  %v3132 = vunpack.c.h.b16 %v513
  %v3133 = vunpack.c.l.b16 %v514
  %v3134 = vunpack.c.h.b16 %v514
  %v3135 = vunpack.c.l.b16 %v515
  %v3136 = vunpack.c.h.b16 %v515
  %v3137 = vunpack.c.l.b16 %v516
  %v3138 = vunpack.c.h.b16 %v516
  %v3139 = vunpack.c.l.b16 %v517
  %v3140 = vunpack.c.h.b16 %v517
  %v3141 = vunpack.c.l.b16 %v518
  %v3142 = vunpack.c.h.b16 %v518
  %v3143 = vunpack.c.l.b16 %v519
  %v3144 = vunpack.c.h.b16 %v519
  %v3145 = vunpack.c.l.b16 %v520
  %v3146 = vunpack.c.h.b16 %v520
  %v3147 = vunpack.c.l.b16 %v521
  %v3148 = vunpack.c.h.b16 %v521
  %v3149 = vunpack.c.l.b16 %v522
  %v3150 = vunpack.c.h.b16 %v522
  %v3151 = vunpack.c.l.b16 %v523
  %v3152 = vunpack.c.h.b16 %v523
  %v3153 = vunpack.c.l.b16 %v524
  %v3154 = vunpack.c.h.b16 %v524
  %v3155 = vunpack.c.l.b16 %v525
  %v3156 = vunpack.c.h.b16 %v525
  %v3157 = vunpack.c.l.b16 %v526
  %v3158 = vunpack.c.h.b16 %v526
  %v3159 = vunpack.c.l.b16 %v527
  %v3160 = vunpack.c.h.b16 %v527
  %v3161 = vunpack.c.l.b16 %v528
  %v3162 = vunpack.c.h.b16 %v528
  %v3163 = vunpack.c.l.b16 %v529
  %v3164 = vunpack.c.h.b16 %v529
  %v3165 = vunpack.c.l.b16 %v530
  %v3166 = vunpack.c.h.b16 %v530
  %v3167 = vunpack.c.l.b16 %v531
  %v3168 = vunpack.c.h.b16 %v531
  %v3169 = vunpack.c.l.b16 %v532
  %v3170 = vunpack.c.h.b16 %v532
  %v3171 = vunpack.c.l.b16 %v533
  %v3172 = vunpack.c.h.b16 %v533
  %v3173 = vunpack.c.l.b16 %v534
  %v3174 = vunpack.c.h.b16 %v534
  %v3175 = vunpack.c.l.b16 %v535
  %v3176 = vunpack.c.h.b16 %v535
  %v3177 = vunpack.c.l.b16 %v536
  %v3178 = vunpack.c.h.b16 %v536
  %v3179 = vunpack.c.l.b16 %v537
  %v3180 = vunpack.c.h.b16 %v537
  %v3181 = vunpack.c.l.b16 %v538
  %v3182 = vunpack.c.h.b16 %v538
  %v3183 = vunpack.c.l.b16 %v539
  %v3184 = vunpack.c.h.b16 %v539
  %v3185 = vunpack.c.l.b16 %v540
  %v3186 = vunpack.c.h.b16 %v540
  %v3187 = vunpack.c.l.b16 %v541
  %v3188 = vunpack.c.h.b16 %v541
  %v3189 = vunpack.c.l.b16 %v542
  %v3190 = vunpack.c.h.b16 %v542
  %v3191 = vunpack.c.l.b16 %v543
  %v3192 = vunpack.c.h.b16 %v543
  %v3193 = vunpack.c.l.b16 %v544
  %v3194 = vunpack.c.h.b16 %v544
  %v3195 = vunpack.c.l.b16 %v545
  %v3196 = vunpack.c.h.b16 %v545
  %v3197 = vunpack.c.l.b16 %v546
  %v3198 = vunpack.c.h.b16 %v546
  %v3199 = vunpack.c.l.b16 %v547
  %v3200 = vunpack.c.h.b16 %v547
  %v3201 = vunpack.c.l.b16 %v548
  %v3202 = vunpack.c.h.b16 %v548
  %v3203 = vunpack.c.l.b16 %v549
  %v3204 = vunpack.c.h.b16 %v549
  %v3205 = vunpack.c.l.b16 %v550
  %v3206 = vunpack.c.h.b16 %v550
  %v3207 = vunpack.c.l.b16 %v551
  %v3208 = vunpack.c.h.b16 %v551
  %v3209 = vunpack.c.l.b16 %v552
  %v3210 = vunpack.c.h.b16 %v552
  %v3211 = vunpack.c.l.b16 %v553
  %v3212 = vunpack.c.h.b16 %v553
  %v3213 = vunpack.c.l.b16 %v554
  %v3214 = vunpack.c.h.b16 %v554
  %v3215 = vunpack.c.l.b16 %v555
  %v3216 = vunpack.c.h.b16 %v555
  %v3217 = vunpack.c.l.b16 %v556
  %v3218 = vunpack.c.h.b16 %v556
  %v3219 = vunpack.c.l.b16 %v557
  %v3220 = vunpack.c.h.b16 %v557
  %v3221 = vunpack.c.l.b16 %v558
  %v3222 = vunpack.c.h.b16 %v558
  %v3223 = vunpack.c.l.b16 %v559
  %v3224 = vunpack.c.h.b16 %v559
  %v3225 = vunpack.c.l.b16 %v560
  %v3226 = vunpack.c.h.b16 %v560
  %v3227 = vunpack.c.l.b16 %v561
  %v3228 = vunpack.c.h.b16 %v561
  %v3229 = vunpack.c.l.b16 %v562
  %v3230 = vunpack.c.h.b16 %v562
  %v3231 = vunpack.c.l.b16 %v563
  %v3232 = vunpack.c.h.b16 %v563
  %v3233 = vunpack.c.l.b16 %v564
  %v3234 = vunpack.c.h.b16 %v564
  %v3235 = vunpack.c.l.b16 %v565
  %v3236 = vunpack.c.h.b16 %v565
  %v3237 = vunpack.c.l.b16 %v566
  %v3238 = vunpack.c.h.b16 %v566
  %v3239 = vunpack.c.l.b16 %v567
  %v3240 = vunpack.c.h.b16 %v567
  %v3241 = vunpack.c.l.b16 %v568
  %v3242 = vunpack.c.h.b16 %v568
  %v3243 = vunpack.c.l.b16 %v569
  %v3244 = vunpack.c.h.b16 %v569
  %v3245 = vunpack.c.l.b16 %v570
  %v3246 = vunpack.c.h.b16 %v570
  %v3247 = vunpack.c.l.b16 %v571
  %v3248 = vunpack.c.h.b16 %v571
  %v3249 = vunpack.c.l.b16 %v572
  %v3250 = vunpack.c.h.b16 %v572
  %v3251 = vunpack.c.l.b16 %v573
  %v3252 = vunpack.c.h.b16 %v573
  %v3253 = vunpack.c.l.b16 %v574
  %v3254 = vunpack.c.h.b16 %v574
  %v3255 = vunpack.c.l.b16 %v575
  %v3256 = vunpack.c.h.b16 %v575
  %v3257 = vunpack.c.l.b16 %v576
  %v3258 = vunpack.c.h.b16 %v576
  %v3259 = vunpack.c.l.b16 %v577
  %v3260 = vunpack.c.h.b16 %v577
  %v3261 = vunpack.c.l.b16 %v578
  %v3262 = vunpack.c.h.b16 %v578
  %v3263 = vunpack.c.l.b16 %v579
  %v3264 = vunpack.c.h.b16 %v579
  %v3265 = vunpack.c.l.b16 %v580
  %v3266 = vunpack.c.h.b16 %v580
  %v3267 = vunpack.c.l.b16 %v581
  %v3268 = vunpack.c.h.b16 %v581
  %v3269 = vunpack.c.l.b16 %v582
  %v3270 = vunpack.c.h.b16 %v582
  %v3271 = vunpack.c.l.b16 %v583
  %v3272 = vunpack.c.h.b16 %v583
  %v3273 = vunpack.c.l.b16 %v584
  %v3274 = vunpack.c.h.b16 %v584
  %v3275 = vunpack.c.l.b16 %v585
  %v3276 = vunpack.c.h.b16 %v585
  %v3277 = vunpack.c.l.b16 %v586
  %v3278 = vunpack.c.h.b16 %v586
  %v3279 = vunpack.c.l.b16 %v587
  %v3280 = vunpack.c.h.b16 %v587
  %v3281 = vunpack.c.l.b16 %v588
  %v3282 = vunpack.c.h.b16 %v588
  %v3283 = vunpack.c.l.b16 %v589
  %v3284 = vunpack.c.h.b16 %v589
  %v3285 = vunpack.c.l.b16 %v590
  %v3286 = vunpack.c.h.b16 %v590
  %v3287 = vunpack.c.l.b16 %v591
  %v3288 = vunpack.c.h.b16 %v591
  %v3289 = vunpack.c.l.b16 %v592
  %v3290 = vunpack.c.h.b16 %v592
  %v3291 = vunpack.c.l.b16 %v593
  %v3292 = vunpack.c.h.b16 %v593
  %v3293 = vunpack.c.l.b16 %v594
  %v3294 = vunpack.c.h.b16 %v594
  %v3295 = vunpack.c.l.b16 %v595
  %v3296 = vunpack.c.h.b16 %v595
  %v3297 = vunpack.c.l.b16 %v596
  %v3298 = vunpack.c.h.b16 %v596
  %v3299 = vunpack.c.l.b16 %v597
  %v3300 = vunpack.c.h.b16 %v597
  %v3301 = vunpack.c.l.b16 %v598
  %v3302 = vunpack.c.h.b16 %v598
  %v3303 = vunpack.c.l.b16 %v599
  %v3304 = vunpack.c.h.b16 %v599
  %v3305 = vunpack.c.l.b16 %v600
  %v3306 = vunpack.c.h.b16 %v600
  %v3307 = vunpack.c.l.b16 %v601
  %v3308 = vunpack.c.h.b16 %v601
  %v3309 = vunpack.c.l.b16 %v602
  %v3310 = vunpack.c.h.b16 %v602
  %v3311 = vunpack.c.l.b16 %v603
  %v3312 = vunpack.c.h.b16 %v603
  %v3313 = vunpack.c.l.b16 %v604
  %v3314 = vunpack.c.h.b16 %v604
  %v3315 = vunpack.c.l.b16 %v605
  %v3316 = vunpack.c.h.b16 %v605
  %v3317 = vunpack.c.l.b16 %v606
  %v3318 = vunpack.c.h.b16 %v606
  %v3319 = vunpack.c.l.b16 %v607
  %v3320 = vunpack.c.h.b16 %v607
  %v3321 = vunpack.c.l.b16 %v608
  %v3322 = vunpack.c.h.b16 %v608
  %v3323 = vunpack.c.l.b16 %v609
  %v3324 = vunpack.c.h.b16 %v609
  %v3325 = vunpack.c.l.b16 %v610
  %v3326 = vunpack.c.h.b16 %v610
  %v3327 = vunpack.c.l.b16 %v611
  %v3328 = vunpack.c.h.b16 %v611
  %v3329 = vunpack.c.l.b16 %v612
  %v3330 = vunpack.c.h.b16 %v612
  %v3331 = vunpack.c.l.b16 %v613
  %v3332 = vunpack.c.h.b16 %v613
  %v3333 = vunpack.c.l.b16 %v614
  %v3334 = vunpack.c.h.b16 %v614
  %v3335 = vunpack.c.l.b16 %v615
  %v3336 = vunpack.c.h.b16 %v615
  %v3337 = vunpack.c.l.b16 %v616
  %v3338 = vunpack.c.h.b16 %v616
  %v3339 = vunpack.c.l.b16 %v617
  %v3340 = vunpack.c.h.b16 %v617
  %v3341 = vunpack.c.l.b16 %v618
  %v3342 = vunpack.c.h.b16 %v618
  %v3343 = vunpack.c.l.b16 %v619
  %v3344 = vunpack.c.h.b16 %v619
  %v3345 = vunpack.c.l.b16 %v620
  %v3346 = vunpack.c.h.b16 %v620
  %v3347 = vunpack.c.l.b16 %v621
  %v3348 = vunpack.c.h.b16 %v621
  %v3349 = vunpack.c.l.b16 %v622
  %v3350 = vunpack.c.h.b16 %v622
  %v3351 = vunpack.c.l.b16 %v623
  %v3352 = vunpack.c.h.b16 %v623
  %v3353 = vunpack.c.l.b16 %v624
  %v3354 = vunpack.c.h.b16 %v624
  %v3355 = vunpack.c.l.b16 %v625
  %v3356 = vunpack.c.h.b16 %v625
  %v3357 = vunpack.c.l.b16 %v626
  %v3358 = vunpack.c.h.b16 %v626
  %v3359 = vunpack.c.l.b16 %v627
  %v3360 = vunpack.c.h.b16 %v627
  %v3361 = vunpack.c.l.b16 %v628
  %v3362 = vunpack.c.h.b16 %v628
  %v3363 = vunpack.c.l.b16 %v629
  %v3364 = vunpack.c.h.b16 %v629
  %v3365 = vunpack.c.l.b16 %v630
  %v3366 = vunpack.c.h.b16 %v630
  %v3367 = vunpack.c.l.b16 %v631
  %v3368 = vunpack.c.h.b16 %v631
  %v3369 = vunpack.c.l.b16 %v632
  %v3370 = vunpack.c.h.b16 %v632
  %v3371 = vunpack.c.l.b16 %v633
  %v3372 = vunpack.c.h.b16 %v633
  %v3373 = vunpack.c.l.b16 %v634
  %v3374 = vunpack.c.h.b16 %v634
  %v3375 = vunpack.c.l.b16 %v635
  %v3376 = vunpack.c.h.b16 %v635
  %v3377 = vunpack.c.l.b16 %v636
  %v3378 = vunpack.c.h.b16 %v636
  %v3379 = vunpack.c.l.b16 %v637
  %v3380 = vunpack.c.h.b16 %v637
  %v3381 = vunpack.c.l.b16 %v638
  %v3382 = vunpack.c.h.b16 %v638
  %v3383 = vunpack.c.l.b16 %v639
  %v3384 = vunpack.c.h.b16 %v639
  %v3385 = vunpack.c.l.b16 %v640
  %v3386 = vunpack.c.h.b16 %v640
  %v3387 = vunpack.c.l.b16 %v641
  %v3388 = vunpack.c.h.b16 %v641
  %v3389 = vunpack.c.l.b16 %v642
  %v3390 = vunpack.c.h.b16 %v642
  %v3391 = vunpack.c.l.b16 %v643
  %v3392 = vunpack.c.h.b16 %v643
  %v3393 = vunpack.c.l.b16 %v644
  %v3394 = vunpack.c.h.b16 %v644
  %v3395 = vunpack.c.l.b16 %v645
  %v3396 = vunpack.c.h.b16 %v645
  %v3397 = vunpack.c.l.b16 %v646
  %v3398 = vunpack.c.h.b16 %v646
  %v3399 = vunpack.c.l.b16 %v647
  %v3400 = vunpack.c.h.b16 %v647
  %v3401 = vunpack.c.l.b16 %v648
  %v3402 = vunpack.c.h.b16 %v648
  %v3403 = vunpack.c.l.b16 %v649
  %v3404 = vunpack.c.h.b16 %v649
  %v3405 = vunpack.c.l.b16 %v650
  %v3406 = vunpack.c.h.b16 %v650
  %v3407 = vunpack.c.l.b16 %v651
  %v3408 = vunpack.c.h.b16 %v651
  %v3409 = vunpack.c.l.b16 %v652
  %v3410 = vunpack.c.h.b16 %v652
  %v3411 = vunpack.c.l.b16 %v653
  %v3412 = vunpack.c.h.b16 %v653
  %v3413 = vunpack.c.l.b16 %v654
  %v3414 = vunpack.c.h.b16 %v654
  %v3415 = vunpack.c.l.b16 %v655
  %v3416 = vunpack.c.h.b16 %v655
  %v3417 = vunpack.c.l.b16 %v656
  %v3418 = vunpack.c.h.b16 %v656
  %v3419 = vunpack.c.l.b16 %v657
  %v3420 = vunpack.c.h.b16 %v657
  %v3421 = vunpack.c.l.b16 %v658
  %v3422 = vunpack.c.h.b16 %v658
  %v3423 = vunpack.c.l.b16 %v659
  %v3424 = vunpack.c.h.b16 %v659
  %v3425 = vunpack.c.l.b16 %v660
  %v3426 = vunpack.c.h.b16 %v660
  %v3427 = vunpack.c.l.b16 %v661
  %v3428 = vunpack.c.h.b16 %v661
  %v3429 = vunpack.c.l.b16 %v662
  %v3430 = vunpack.c.h.b16 %v662
  %v3431 = vunpack.c.l.b16 %v663
  %v3432 = vunpack.c.h.b16 %v663
  %v3433 = vunpack.c.l.b16 %v664
  %v3434 = vunpack.c.h.b16 %v664
  %v3435 = vunpack.c.l.b16 %v665
  %v3436 = vunpack.c.h.b16 %v665
  %v3437 = vunpack.c.l.b16 %v666
  %v3438 = vunpack.c.h.b16 %v666
  %v3439 = vunpack.c.l.b16 %v667
  %v3440 = vunpack.c.h.b16 %v667
  %v3441 = vunpack.c.l.b16 %v668
  %v3442 = vunpack.c.h.b16 %v668
  %v3443 = vunpack.c.l.b16 %v669
  %v3444 = vunpack.c.h.b16 %v669
  %v3445 = vunpack.c.l.b16 %v670
  %v3446 = vunpack.c.h.b16 %v670
  %v3447 = vunpack.c.l.b16 %v671
  %v3448 = vunpack.c.h.b16 %v671
  %v3449 = vunpack.c.l.b16 %v672
  %v3450 = vunpack.c.h.b16 %v672
  %v3451 = vunpack.c.l.b16 %v673
  %v3452 = vunpack.c.h.b16 %v673
  %v3453 = vunpack.c.l.b16 %v674
  %v3454 = vunpack.c.h.b16 %v674
  %v3455 = vunpack.c.l.b16 %v675
  %v3456 = vunpack.c.h.b16 %v675
  %v3457 = vunpack.c.l.b16 %v676
  %v3458 = vunpack.c.h.b16 %v676
  %v3459 = vunpack.c.l.b16 %v677
  %v3460 = vunpack.c.h.b16 %v677
  %v3461 = vunpack.c.l.b16 %v678
  %v3462 = vunpack.c.h.b16 %v678
  %v3463 = vunpack.c.l.b16 %v679
  %v3464 = vunpack.c.h.b16 %v679
  %v3465 = vunpack.c.l.b16 %v680
  %v3466 = vunpack.c.h.b16 %v680
  %v3467 = vunpack.c.l.b16 %v681
  %v3468 = vunpack.c.h.b16 %v681
  %v3469 = vunpack.c.l.b16 %v682
  %v3470 = vunpack.c.h.b16 %v682
  %v3471 = vunpack.c.l.b16 %v683
  %v3472 = vunpack.c.h.b16 %v683
  %v3473 = vunpack.c.l.b16 %v684
  %v3474 = vunpack.c.h.b16 %v684
  %v3475 = vunpack.c.l.b16 %v685
  %v3476 = vunpack.c.h.b16 %v685
  %v3477 = vunpack.c.l.b16 %v686
  %v3478 = vunpack.c.h.b16 %v686
  %v3479 = vunpack.c.l.b16 %v687
  %v3480 = vunpack.c.h.b16 %v687
  %v3481 = vunpack.c.l.b16 %v688
  %v3482 = vunpack.c.h.b16 %v688
  %v3483 = vunpack.c.l.b16 %v689
  %v3484 = vunpack.c.h.b16 %v689
  %v3485 = vunpack.c.l.b16 %v690
  %v3486 = vunpack.c.h.b16 %v690
  %v3487 = vunpack.c.l.b16 %v691
  %v3488 = vunpack.c.h.b16 %v691
  %v3489 = vunpack.c.l.b16 %v692
  %v3490 = vunpack.c.h.b16 %v692
  %v3491 = vunpack.c.l.b16 %v693
  %v3492 = vunpack.c.h.b16 %v693
  %v3493 = vunpack.c.l.b16 %v694
  %v3494 = vunpack.c.h.b16 %v694
  %v3495 = vunpack.c.l.b16 %v695
  %v3496 = vunpack.c.h.b16 %v695
  %v3497 = vunpack.c.l.b16 %v696
  %v3498 = vunpack.c.h.b16 %v696
  %v3499 = vunpack.c.l.b16 %v697
  %v3500 = vunpack.c.h.b16 %v697
  %v3501 = vunpack.c.l.b16 %v698
  %v3502 = vunpack.c.h.b16 %v698
  %v3503 = vunpack.c.l.b16 %v699
  %v3504 = vunpack.c.h.b16 %v699
  %v3505 = vunpack.c.l.b16 %v700
  %v3506 = vunpack.c.h.b16 %v700
  %v3507 = vunpack.c.l.b16 %v701
  %v3508 = vunpack.c.h.b16 %v701
  %v3509 = vunpack.c.l.b16 %v702
  %v3510 = vunpack.c.h.b16 %v702
  %v3511 = vunpack.c.l.b16 %v703
  %v3512 = vunpack.c.h.b16 %v703
  %v3513 = vunpack.c.l.b16 %v704
  %v3514 = vunpack.c.h.b16 %v704
  %v3515 = vunpack.c.l.b16 %v705
  %v3516 = vunpack.c.h.b16 %v705
  %v3517 = vunpack.c.l.b16 %v706
  %v3518 = vunpack.c.h.b16 %v706
  %v3519 = vunpack.c.l.b16 %v707
  %v3520 = vunpack.c.h.b16 %v707
  %v3521 = vunpack.c.l.b16 %v708
  %v3522 = vunpack.c.h.b16 %v708
  %v3523 = vunpack.c.l.b16 %v709
  %v3524 = vunpack.c.h.b16 %v709
  %v3525 = vunpack.c.l.b16 %v710
  %v3526 = vunpack.c.h.b16 %v710
  %v3527 = vunpack.c.l.b16 %v711
  %v3528 = vunpack.c.h.b16 %v711
  %v3529 = vunpack.c.l.b16 %v712
  %v3530 = vunpack.c.h.b16 %v712
  %v3531 = vunpack.c.l.b16 %v713
  %v3532 = vunpack.c.h.b16 %v713
  %v3533 = vunpack.c.l.b16 %v714
  %v3534 = vunpack.c.h.b16 %v714
  %v3535 = vunpack.c.l.b16 %v715
  %v3536 = vunpack.c.h.b16 %v715
  %v3537 = vunpack.c.l.b16 %v716
  %v3538 = vunpack.c.h.b16 %v716
  %v3539 = vunpack.c.l.b16 %v717
  %v3540 = vunpack.c.h.b16 %v717
  %v3541 = vunpack.c.l.b16 %v718
  %v3542 = vunpack.c.h.b16 %v718
  %v3543 = vunpack.c.l.b16 %v719
  %v3544 = vunpack.c.h.b16 %v719
  %v3545 = vunpack.c.l.b16 %v720
  %v3546 = vunpack.c.h.b16 %v720
  %v3547 = vunpack.c.l.b16 %v721
  %v3548 = vunpack.c.h.b16 %v721
  %v3549 = vunpack.c.l.b16 %v722
  %v3550 = vunpack.c.h.b16 %v722
  %v3551 = vunpack.c.l.b16 %v723
  %v3552 = vunpack.c.h.b16 %v723
  %v3553 = vunpack.c.l.b16 %v724
  %v3554 = vunpack.c.h.b16 %v724
  %v3555 = vunpack.c.l.b16 %v725
  %v3556 = vunpack.c.h.b16 %v725
  %v3557 = vunpack.c.l.b16 %v726
  %v3558 = vunpack.c.h.b16 %v726
  %v3559 = vunpack.c.l.b16 %v727
  %v3560 = vunpack.c.h.b16 %v727
  %v3561 = vunpack.c.l.b16 %v728
  %v3562 = vunpack.c.h.b16 %v728
  %v3563 = vunpack.c.l.b16 %v729
  %v3564 = vunpack.c.h.b16 %v729
  %v3565 = vunpack.c.l.b16 %v730
  %v3566 = vunpack.c.h.b16 %v730
  %v3567 = vunpack.c.l.b16 %v731
  %v3568 = vunpack.c.h.b16 %v731
  %v3569 = vunpack.c.l.b16 %v732
  %v3570 = vunpack.c.h.b16 %v732
  %v3571 = vunpack.c.l.b16 %v733
  %v3572 = vunpack.c.h.b16 %v733
  %v3573 = vunpack.c.l.b16 %v734
  %v3574 = vunpack.c.h.b16 %v734
  %v3575 = vunpack.c.l.b16 %v735
  %v3576 = vunpack.c.h.b16 %v735
  %v3577 = vunpack.c.l.b16 %v736
  %v3578 = vunpack.c.h.b16 %v736
  %v3579 = vunpack.c.l.b16 %v737
  %v3580 = vunpack.c.h.b16 %v737
  %v3581 = vunpack.c.l.b16 %v738
  %v3582 = vunpack.c.h.b16 %v738
  %v3583 = vunpack.c.l.b16 %v739
  %v3584 = vunpack.c.h.b16 %v739
  %v3585 = vunpack.c.l.b16 %v740
  %v3586 = vunpack.c.h.b16 %v740
  %v3587 = vunpack.c.l.b16 %v741
  %v3588 = vunpack.c.h.b16 %v741
  %v3589 = vunpack.c.l.b16 %v742
  %v3590 = vunpack.c.h.b16 %v742
  %v3591 = vunpack.c.l.b16 %v743
  %v3592 = vunpack.c.h.b16 %v743
  %v3593 = vunpack.c.l.b16 %v744
  %v3594 = vunpack.c.h.b16 %v744
  %v3595 = vunpack.c.l.b16 %v745
  %v3596 = vunpack.c.h.b16 %v745
  %v3597 = vunpack.c.l.b16 %v746
  %v3598 = vunpack.c.h.b16 %v746
  %v3599 = vunpack.c.l.b16 %v747
  %v3600 = vunpack.c.h.b16 %v747
  %v3601 = vunpack.c.l.b16 %v748
  %v3602 = vunpack.c.h.b16 %v748
  %v3603 = vunpack.c.l.b16 %v749
  %v3604 = vunpack.c.h.b16 %v749
  %v3605 = vunpack.c.l.b16 %v750
  %v3606 = vunpack.c.h.b16 %v750
  %v3607 = vunpack.c.l.b16 %v751
  %v3608 = vunpack.c.h.b16 %v751
  %v3609 = vunpack.c.l.b16 %v752
  %v3610 = vunpack.c.h.b16 %v752
  %v3611 = vunpack.c.l.b16 %v753
  %v3612 = vunpack.c.h.b16 %v753
  %v3613 = vunpack.c.l.b16 %v754
  %v3614 = vunpack.c.h.b16 %v754
  %v3615 = vunpack.c.l.b16 %v755
  %v3616 = vunpack.c.h.b16 %v755
  %v3617 = vunpack.c.l.b16 %v756
  %v3618 = vunpack.c.h.b16 %v756
  %v3619 = vunpack.c.l.b16 %v757
  %v3620 = vunpack.c.h.b16 %v757
  %v3621 = vunpack.c.l.b16 %v758
  %v3622 = vunpack.c.h.b16 %v758
  %v3623 = vunpack.c.l.b16 %v759
  %v3624 = vunpack.c.h.b16 %v759
  %v3625 = vunpack.c.l.b16 %v760
  %v3626 = vunpack.c.h.b16 %v760
  %v3627 = vunpack.c.l.b16 %v761
  %v3628 = vunpack.c.h.b16 %v761
  %v3629 = vunpack.c.l.b16 %v762
  %v3630 = vunpack.c.h.b16 %v762
  %v3631 = vunpack.c.l.b16 %v763
  %v3632 = vunpack.c.h.b16 %v763
  %v3633 = vunpack.c.l.b16 %v764
  %v3634 = vunpack.c.h.b16 %v764
  %v3635 = vunpack.c.l.b16 %v765
  %v3636 = vunpack.c.h.b16 %v765
  %v3637 = vunpack.c.l.b16 %v766
  %v3638 = vunpack.c.h.b16 %v766
  %v3639 = vunpack.c.l.b16 %v767
  %v3640 = vunpack.c.h.b16 %v767
  %v3641 = vunpack.c.l.b16 %v768
  %v3642 = vunpack.c.h.b16 %v768
  %v3643 = vunpack.c.l.b16 %v769
  %v3644 = vunpack.c.h.b16 %v769
  %v3645 = vunpack.c.l.b16 %v770
  %v3646 = vunpack.c.h.b16 %v770
  %v3647 = vunpack.c.l.b16 %v771
  %v3648 = vunpack.c.h.b16 %v771
  %v3649 = vunpack.c.l.b16 %v772
  %v3650 = vunpack.c.h.b16 %v772
  %v3651 = vunpack.c.l.b16 %v773
  %v3652 = vunpack.c.h.b16 %v773
  %v3653 = vunpack.c.l.b16 %v774
  %v3654 = vunpack.c.h.b16 %v774
  %v3655 = vunpack.c.l.b16 %v775
  %v3656 = vunpack.c.h.b16 %v775
  %v3657 = vunpack.c.l.b16 %v776
  %v3658 = vunpack.c.h.b16 %v776
  %v3659 = vunpack.c.l.b16 %v777
  %v3660 = vunpack.c.h.b16 %v777
  %v3661 = vunpack.c.l.b16 %v778
  %v3662 = vunpack.c.h.b16 %v778
  %v3663 = vunpack.c.l.b16 %v779
  %v3664 = vunpack.c.h.b16 %v779
  %v3665 = vunpack.c.l.b16 %v780
  %v3666 = vunpack.c.h.b16 %v780
  %v3667 = vunpack.c.l.b16 %v781
  %v3668 = vunpack.c.h.b16 %v781
  %v3669 = vunpack.c.l.b16 %v782
  %v3670 = vunpack.c.h.b16 %v782
  %v3671 = vunpack.c.l.b16 %v783
  %v3672 = vunpack.c.h.b16 %v783
  %v3673 = vunpack.c.l.b16 %v784
  %v3674 = vunpack.c.h.b16 %v784
  %v3675 = vunpack.c.l.b16 %v785
  %v3676 = vunpack.c.h.b16 %v785
  %v3677 = vunpack.c.l.b16 %v786
  %v3678 = vunpack.c.h.b16 %v786
  %v3679 = vunpack.c.l.b16 %v787
  %v3680 = vunpack.c.h.b16 %v787
  %v3681 = vunpack.c.l.b16 %v788
  %v3682 = vunpack.c.h.b16 %v788
  %v3683 = vunpack.c.l.b16 %v789
  %v3684 = vunpack.c.h.b16 %v789
  %v3685 = vunpack.c.l.b16 %v790
  %v3686 = vunpack.c.h.b16 %v790
  %v3687 = vunpack.c.l.b16 %v791
  %v3688 = vunpack.c.h.b16 %v791
  %v3689 = vunpack.c.l.b16 %v792
  %v3690 = vunpack.c.h.b16 %v792
  %v3691 = vunpack.c.l.b16 %v793
  %v3692 = vunpack.c.h.b16 %v793
  %v3693 = vunpack.c.l.b16 %v794
  %v3694 = vunpack.c.h.b16 %v794
  %v3695 = vunpack.c.l.b16 %v795
  %v3696 = vunpack.c.h.b16 %v795
  %v3697 = vunpack.c.l.b16 %v796
  %v3698 = vunpack.c.h.b16 %v796
  %v3699 = vunpack.c.l.b16 %v797
  %v3700 = vunpack.c.h.b16 %v797
  %v3701 = vunpack.c.l.b16 %v798
  %v3702 = vunpack.c.h.b16 %v798
  %v3703 = vunpack.c.l.b16 %v799
  %v3704 = vunpack.c.h.b16 %v799
  %v3705 = vunpack.c.l.b16 %v800
  %v3706 = vunpack.c.h.b16 %v800
  %v3707 = vunpack.c.l.b16 %v801
  %v3708 = vunpack.c.h.b16 %v801
  %v3709 = vunpack.c.l.b16 %v802
  %v3710 = vunpack.c.h.b16 %v802
  %v3711 = vunpack.c.l.b16 %v803
  %v3712 = vunpack.c.h.b16 %v803
  %v3713 = vunpack.c.l.b16 %v804
  %v3714 = vunpack.c.h.b16 %v804
  %v3715 = vunpack.c.l.b16 %v805
  %v3716 = vunpack.c.h.b16 %v805
  %v3717 = vunpack.c.l.b16 %v806
  %v3718 = vunpack.c.h.b16 %v806
  %v3719 = vunpack.c.l.b16 %v807
  %v3720 = vunpack.c.h.b16 %v807
  %v3721 = vunpack.c.l.b16 %v808
  %v3722 = vunpack.c.h.b16 %v808
  %v3723 = vunpack.c.l.b16 %v809
  %v3724 = vunpack.c.h.b16 %v809
  %v3725 = vunpack.c.l.b16 %v810
  %v3726 = vunpack.c.h.b16 %v810
  %v3727 = vunpack.c.l.b16 %v811
  %v3728 = vunpack.c.h.b16 %v811
  %v3729 = vunpack.c.l.b16 %v812
  %v3730 = vunpack.c.h.b16 %v812
  %v3731 = vunpack.c.l.b16 %v813
  %v3732 = vunpack.c.h.b16 %v813
  %v3733 = vunpack.c.l.b16 %v814
  %v3734 = vunpack.c.h.b16 %v814
  %v3735 = vunpack.c.l.b16 %v815
  %v3736 = vunpack.c.h.b16 %v815
  %v3737 = vunpack.c.l.b16 %v816
  %v3738 = vunpack.c.h.b16 %v816
  %v3739 = vunpack.c.l.b16 %v817
  %v3740 = vunpack.c.h.b16 %v817
  %v3741 = vunpack.c.l.b16 %v818
  %v3742 = vunpack.c.h.b16 %v818
  %v3743 = vunpack.c.l.b16 %v819
  %v3744 = vunpack.c.h.b16 %v819
  %v3745 = vunpack.c.l.b16 %v820
  %v3746 = vunpack.c.h.b16 %v820
  %v3747 = vunpack.c.l.b16 %v821
  %v3748 = vunpack.c.h.b16 %v821
  %v3749 = vunpack.c.l.b16 %v822
  %v3750 = vunpack.c.h.b16 %v822
  %v3751 = vunpack.c.l.b16 %v823
  %v3752 = vunpack.c.h.b16 %v823
  %v3753 = vunpack.c.l.b16 %v824
  %v3754 = vunpack.c.h.b16 %v824
  %v3755 = vunpack.c.l.b16 %v825
  %v3756 = vunpack.c.h.b16 %v825
  %v3757 = vunpack.c.l.b16 %v826
  %v3758 = vunpack.c.h.b16 %v826
  %v3759 = vunpack.c.l.b16 %v827
  %v3760 = vunpack.c.h.b16 %v827
  %v3761 = vunpack.c.l.b16 %v828
  %v3762 = vunpack.c.h.b16 %v828
  %v3763 = vunpack.c.l.b16 %v829
  %v3764 = vunpack.c.h.b16 %v829
  %v3765 = vunpack.c.l.b16 %v830
  %v3766 = vunpack.c.h.b16 %v830
  %v3767 = vunpack.c.l.b16 %v831
  %v3768 = vunpack.c.h.b16 %v831
  %v3769 = vunpack.c.l.b16 %v832
  %v3770 = vunpack.c.h.b16 %v832
  %v3771 = vunpack.c.l.b16 %v833
  %v3772 = vunpack.c.h.b16 %v833
  %v3773 = vunpack.c.l.b16 %v834
  %v3774 = vunpack.c.h.b16 %v834
  %v3775 = vunpack.c.l.b16 %v835
  %v3776 = vunpack.c.h.b16 %v835
  %v3777 = vunpack.c.l.b16 %v836
  %v3778 = vunpack.c.h.b16 %v836
  %v3779 = vunpack.c.l.b16 %v837
  %v3780 = vunpack.c.h.b16 %v837
  %v3781 = vunpack.c.l.b16 %v838
  %v3782 = vunpack.c.h.b16 %v838
  %v3783 = vunpack.c.l.b16 %v839
  %v3784 = vunpack.c.h.b16 %v839
  %v3785 = vunpack.c.l.b16 %v840
  %v3786 = vunpack.c.h.b16 %v840
  %v3787 = vunpack.c.l.b16 %v841
  %v3788 = vunpack.c.h.b16 %v841
  %v3789 = vunpack.c.l.b16 %v842
  %v3790 = vunpack.c.h.b16 %v842
  %v3791 = vunpack.c.l.b16 %v843
  %v3792 = vunpack.c.h.b16 %v843
  %v3793 = vunpack.c.l.b16 %v844
  %v3794 = vunpack.c.h.b16 %v844
  %v3795 = vunpack.c.l.b16 %v845
  %v3796 = vunpack.c.h.b16 %v845
  %v3797 = vunpack.c.l.b16 %v846
  %v3798 = vunpack.c.h.b16 %v846
  %v3799 = vunpack.c.l.b16 %v847
  %v3800 = vunpack.c.h.b16 %v847
  %v3801 = vunpack.c.l.b16 %v848
  %v3802 = vunpack.c.h.b16 %v848
  %v3803 = vunpack.c.l.b16 %v849
  %v3804 = vunpack.c.h.b16 %v849
  %v3805 = vunpack.c.l.b16 %v850
  %v3806 = vunpack.c.h.b16 %v850
  %v3807 = vunpack.c.l.b16 %v851
  %v3808 = vunpack.c.h.b16 %v851
  %v3809 = vunpack.c.l.b16 %v852
  %v3810 = vunpack.c.h.b16 %v852
  %v3811 = vunpack.c.l.b16 %v853
  %v3812 = vunpack.c.h.b16 %v853
  %v3813 = vunpack.c.l.b16 %v854
  %v3814 = vunpack.c.h.b16 %v854
  %v3815 = vunpack.c.l.b16 %v855
  %v3816 = vunpack.c.h.b16 %v855
  %v3817 = vunpack.c.l.b16 %v856
  %v3818 = vunpack.c.h.b16 %v856
  %v3819 = vunpack.c.l.b16 %v857
  %v3820 = vunpack.c.h.b16 %v857
  %v3821 = vunpack.c.l.b16 %v858
  %v3822 = vunpack.c.h.b16 %v858
  %v3823 = vunpack.c.l.b16 %v859
  %v3824 = vunpack.c.h.b16 %v859
  %v3825 = vunpack.c.l.b16 %v860
  %v3826 = vunpack.c.h.b16 %v860
  %v3827 = vunpack.c.l.b16 %v861
  %v3828 = vunpack.c.h.b16 %v861
  %v3829 = vunpack.c.l.b16 %v862
  %v3830 = vunpack.c.h.b16 %v862
  %v3831 = vunpack.c.l.b16 %v863
  %v3832 = vunpack.c.h.b16 %v863
  %v3833 = vunpack.c.l.b16 %v864
  %v3834 = vunpack.c.h.b16 %v864
  %v3835 = vunpack.c.l.b16 %v865
  %v3836 = vunpack.c.h.b16 %v865
  %v3837 = vunpack.c.l.b16 %v866
  %v3838 = vunpack.c.h.b16 %v866
  %v3839 = vunpack.c.l.b16 %v867
  %v3840 = vunpack.c.h.b16 %v867
  %v3841 = vunpack.c.l.b16 %v868
  %v3842 = vunpack.c.h.b16 %v868
  %v3843 = vunpack.c.l.b16 %v869
  %v3844 = vunpack.c.h.b16 %v869
  %v3845 = vunpack.c.l.b16 %v870
  %v3846 = vunpack.c.h.b16 %v870
  %v3847 = vunpack.c.l.b16 %v871
  %v3848 = vunpack.c.h.b16 %v871
  %v3849 = vunpack.c.l.b16 %v872
  %v3850 = vunpack.c.h.b16 %v872
  %v3851 = vunpack.c.l.b16 %v873
  %v3852 = vunpack.c.h.b16 %v873
  %v3853 = vunpack.c.l.b16 %v874
  %v3854 = vunpack.c.h.b16 %v874
  %v3855 = vunpack.c.l.b16 %v875
  %v3856 = vunpack.c.h.b16 %v875
  %v3857 = vunpack.c.l.b16 %v876
  %v3858 = vunpack.c.h.b16 %v876
  %v3859 = vunpack.c.l.b16 %v877
  %v3860 = vunpack.c.h.b16 %v877
  %v3861 = vunpack.c.l.b16 %v878
  %v3862 = vunpack.c.h.b16 %v878
  %v3863 = vunpack.c.l.b16 %v879
  %v3864 = vunpack.c.h.b16 %v879
  %v3865 = vunpack.c.l.b16 %v880
  %v3866 = vunpack.c.h.b16 %v880
  %v3867 = vunpack.c.l.b16 %v881
  %v3868 = vunpack.c.h.b16 %v881
  %v3869 = vunpack.c.l.b16 %v882
  %v3870 = vunpack.c.h.b16 %v882
  %v3871 = vunpack.c.l.b16 %v883
  %v3872 = vunpack.c.h.b16 %v883
  %v3873 = vunpack.c.l.b16 %v884
  %v3874 = vunpack.c.h.b16 %v884
  %v3875 = vunpack.c.l.b16 %v885
  %v3876 = vunpack.c.h.b16 %v885
  %v3877 = vunpack.c.l.b16 %v886
  %v3878 = vunpack.c.h.b16 %v886
  %v3879 = vunpack.c.l.b16 %v887
  %v3880 = vunpack.c.h.b16 %v887
  %v3881 = vunpack.c.l.b16 %v888
  %v3882 = vunpack.c.h.b16 %v888
  %v3883 = vunpack.c.l.b16 %v889
  %v3884 = vunpack.c.h.b16 %v889
  %v3885 = vunpack.c.l.b16 %v890
  %v3886 = vunpack.c.h.b16 %v890
  %v3887 = vunpack.c.l.b16 %v891
  %v3888 = vunpack.c.h.b16 %v891
  %v3889 = vunpack.c.l.b16 %v892
  %v3890 = vunpack.c.h.b16 %v892
  %v3891 = vunpack.c.l.b16 %v893
  %v3892 = vunpack.c.h.b16 %v893
  %v3893 = vunpack.c.l.b16 %v894
  %v3894 = vunpack.c.h.b16 %v894
  %v3895 = vunpack.c.l.b16 %v895
  %v3896 = vunpack.c.h.b16 %v895
  %v3897 = vunpack.c.l.b16 %v896
  %v3898 = vunpack.c.h.b16 %v896
  %v3899 = vunpack.c.l.b16 %v897
  %v3900 = vunpack.c.h.b16 %v897
  %v3901 = vunpack.c.l.b16 %v898
  %v3902 = vunpack.c.h.b16 %v898
  %v3903 = vunpack.c.l.b16 %v899
  %v3904 = vunpack.c.h.b16 %v899
  %v3905 = vunpack.c.l.b16 %v900
  %v3906 = vunpack.c.h.b16 %v900
  %v3907 = vunpack.c.l.b16 %v901
  %v3908 = vunpack.c.h.b16 %v901
  %v3909 = vunpack.c.l.b16 %v902
  %v3910 = vunpack.c.h.b16 %v902
  %v3911 = vunpack.c.l.b16 %v903
  %v3912 = vunpack.c.h.b16 %v903
  %v3913 = vunpack.c.l.b16 %v904
  %v3914 = vunpack.c.h.b16 %v904
  %v3915 = vunpack.c.l.b16 %v905
  %v3916 = vunpack.c.h.b16 %v905
  %v3917 = vunpack.c.l.b16 %v906
  %v3918 = vunpack.c.h.b16 %v906
  %v3919 = vunpack.c.l.b16 %v907
  %v3920 = vunpack.c.h.b16 %v907
  %v3921 = vunpack.c.l.b16 %v908
  %v3922 = vunpack.c.h.b16 %v908
  %v3923 = vunpack.c.l.b16 %v909
  %v3924 = vunpack.c.h.b16 %v909
  %v3925 = vunpack.c.l.b16 %v910
  %v3926 = vunpack.c.h.b16 %v910
  %v3927 = vunpack.c.l.b16 %v911
  %v3928 = vunpack.c.h.b16 %v911
  %v3929 = vunpack.c.l.b16 %v912
  %v3930 = vunpack.c.h.b16 %v912
  %v3931 = vunpack.c.l.b16 %v913
  %v3932 = vunpack.c.h.b16 %v913
  %v3933 = vunpack.c.l.b16 %v914
  %v3934 = vunpack.c.h.b16 %v914
  %v3935 = vunpack.c.l.b16 %v915
  %v3936 = vunpack.c.h.b16 %v915
  %v3937 = vunpack.c.l.b16 %v916
  %v3938 = vunpack.c.h.b16 %v916
  %v3939 = vunpack.c.l.b16 %v917
  %v3940 = vunpack.c.h.b16 %v917
  %v3941 = vunpack.c.l.b16 %v918
  %v3942 = vunpack.c.h.b16 %v918
  %v3943 = vunpack.c.l.b16 %v919
  %v3944 = vunpack.c.h.b16 %v919
  %v3945 = vunpack.c.l.b16 %v920
  %v3946 = vunpack.c.h.b16 %v920
  %v3947 = vunpack.c.l.b16 %v921
  %v3948 = vunpack.c.h.b16 %v921
  %v3949 = vunpack.c.l.b16 %v922
  %v3950 = vunpack.c.h.b16 %v922
  %v3951 = vunpack.c.l.b16 %v923
  %v3952 = vunpack.c.h.b16 %v923
  %v3953 = vunpack.c.l.b16 %v924
  %v3954 = vunpack.c.h.b16 %v924
  %v3955 = vunpack.c.l.b16 %v925
  %v3956 = vunpack.c.h.b16 %v925
  %v3957 = vunpack.c.l.b16 %v926
  %v3958 = vunpack.c.h.b16 %v926
  %v3959 = vunpack.c.l.b16 %v927
  %v3960 = vunpack.c.h.b16 %v927
  %v3961 = vunpack.c.l.b16 %v928
  %v3962 = vunpack.c.h.b16 %v928
  %v3963 = vunpack.c.l.b16 %v929
  %v3964 = vunpack.c.h.b16 %v929
  %v3965 = vunpack.c.l.b16 %v930
  %v3966 = vunpack.c.h.b16 %v930
  %v3967 = vunpack.c.l.b16 %v931
  %v3968 = vunpack.c.h.b16 %v931
  %v3969 = vunpack.c.l.b16 %v932
  %v3970 = vunpack.c.h.b16 %v932
  %v3971 = vunpack.c.l.b16 %v933
  %v3972 = vunpack.c.h.b16 %v933
  %v3973 = vunpack.c.l.b16 %v934
  %v3974 = vunpack.c.h.b16 %v934
  %v3975 = vunpack.c.l.b16 %v935
  %v3976 = vunpack.c.h.b16 %v935
  %v3977 = vunpack.c.l.b16 %v936
  %v3978 = vunpack.c.h.b16 %v936
  %v3979 = vunpack.c.l.b16 %v937
  %v3980 = vunpack.c.h.b16 %v937
  %v3981 = vunpack.c.l.b16 %v938
  %v3982 = vunpack.c.h.b16 %v938
  %v3983 = vunpack.c.l.b16 %v939
  %v3984 = vunpack.c.h.b16 %v939
  %v3985 = vunpack.c.l.b16 %v940
  %v3986 = vunpack.c.h.b16 %v940
  %v3987 = vunpack.c.l.b16 %v941
  %v3988 = vunpack.c.h.b16 %v941
  %v3989 = vunpack.c.l.b16 %v942
  %v3990 = vunpack.c.h.b16 %v942
  %v3991 = vunpack.c.l.b16 %v943
  %v3992 = vunpack.c.h.b16 %v943
  %v3993 = vunpack.c.l.b16 %v944
  %v3994 = vunpack.c.h.b16 %v944
  %v3995 = vunpack.c.l.b16 %v945
  %v3996 = vunpack.c.h.b16 %v945
  %v3997 = vunpack.c.l.b16 %v946
  %v3998 = vunpack.c.h.b16 %v946
  %v3999 = vunpack.c.l.b16 %v947
  %v4000 = vunpack.c.h.b16 %v947
  %v4001 = vunpack.c.l.b16 %v948
  %v4002 = vunpack.c.h.b16 %v948
  %v4003 = vunpack.c.l.b16 %v949
  %v4004 = vunpack.c.h.b16 %v949
  %v4005 = vunpack.c.l.b16 %v950
  %v4006 = vunpack.c.h.b16 %v950
  %v4007 = vunpack.c.l.b16 %v951
  %v4008 = vunpack.c.h.b16 %v951
  %v4009 = vunpack.c.l.b16 %v952
  %v4010 = vunpack.c.h.b16 %v952
  %v4011 = vunpack.c.l.b16 %v953
  %v4012 = vunpack.c.h.b16 %v953
  %v4013 = vunpack.c.l.b16 %v954
  %v4014 = vunpack.c.h.b16 %v954
  %v4015 = vunpack.c.l.b16 %v955
  %v4016 = vunpack.c.h.b16 %v955
  %v4017 = vunpack.c.l.b16 %v956
  %v4018 = vunpack.c.h.b16 %v956
  %v4019 = vunpack.c.l.b16 %v957
  %v4020 = vunpack.c.h.b16 %v957
  %v4021 = vunpack.c.l.b16 %v958
  %v4022 = vunpack.c.h.b16 %v958
  %v4023 = vunpack.c.l.b16 %v959
  %v4024 = vunpack.c.h.b16 %v959
  %v4025 = vunpack.c.l.b16 %v960
  %v4026 = vunpack.c.h.b16 %v960
  %v4027 = vunpack.c.l.b16 %v961
  %v4028 = vunpack.c.h.b16 %v961
  %v4029 = vunpack.c.l.b16 %v962
  %v4030 = vunpack.c.h.b16 %v962
  %v4031 = vunpack.c.l.b16 %v963
  %v4032 = vunpack.c.h.b16 %v963
  %v4033 = vunpack.c.l.b16 %v964
  %v4034 = vunpack.c.h.b16 %v964
  %v4035 = vunpack.c.l.b16 %v965
  %v4036 = vunpack.c.h.b16 %v965
  %v4037 = vunpack.c.l.b16 %v966
  %v4038 = vunpack.c.h.b16 %v966
  %v4039 = vunpack.c.l.b16 %v967
  %v4040 = vunpack.c.h.b16 %v967
  %v4041 = vunpack.c.l.b16 %v968
  %v4042 = vunpack.c.h.b16 %v968
  %v4043 = vunpack.c.l.b16 %v969
  %v4044 = vunpack.c.h.b16 %v969
  %v4045 = vunpack.c.l.b16 %v970
  %v4046 = vunpack.c.h.b16 %v970
  %v4047 = vunpack.c.l.b16 %v971
  %v4048 = vunpack.c.h.b16 %v971
  %v4049 = vunpack.c.l.b16 %v972
  %v4050 = vunpack.c.h.b16 %v972
  %v4051 = vunpack.c.l.b16 %v973
  %v4052 = vunpack.c.h.b16 %v973
  %v4053 = vunpack.c.l.b16 %v974
  %v4054 = vunpack.c.h.b16 %v974
  %v4055 = vunpack.c.l.b16 %v975
  %v4056 = vunpack.c.h.b16 %v975
  %v4057 = vunpack.c.l.b16 %v976
  %v4058 = vunpack.c.h.b16 %v976
  %v4059 = vunpack.c.l.b16 %v977
  %v4060 = vunpack.c.h.b16 %v977
  %v4061 = vunpack.c.l.b16 %v978
  %v4062 = vunpack.c.h.b16 %v978
  %v4063 = vunpack.c.l.b16 %v979
  %v4064 = vunpack.c.h.b16 %v979
  %v4065 = vunpack.c.l.b16 %v980
  %v4066 = vunpack.c.h.b16 %v980
  %v4067 = vunpack.c.l.b16 %v981
  %v4068 = vunpack.c.h.b16 %v981
  %v4069 = vunpack.c.l.b16 %v982
  %v4070 = vunpack.c.h.b16 %v982
  %v4071 = vunpack.c.l.b16 %v983
  %v4072 = vunpack.c.h.b16 %v983
  %v4073 = vunpack.c.l.b16 %v984
  %v4074 = vunpack.c.h.b16 %v984
  %v4075 = vunpack.c.l.b16 %v985
  %v4076 = vunpack.c.h.b16 %v985
  %v4077 = vunpack.c.l.b16 %v986
  %v4078 = vunpack.c.h.b16 %v986
  %v4079 = vunpack.c.l.b16 %v987
  %v4080 = vunpack.c.h.b16 %v987
  %v4081 = vunpack.c.l.b16 %v988
  %v4082 = vunpack.c.h.b16 %v988
  %v4083 = vunpack.c.l.b16 %v989
  %v4084 = vunpack.c.h.b16 %v989
  %v4085 = vunpack.c.l.b16 %v990
  %v4086 = vunpack.c.h.b16 %v990
  %v4087 = vunpack.c.l.b16 %v991
  %v4088 = vunpack.c.h.b16 %v991
  %v4089 = vunpack.c.l.b16 %v992
  %v4090 = vunpack.c.h.b16 %v992
  %v4091 = vunpack.c.l.b16 %v993
  %v4092 = vunpack.c.h.b16 %v993
  %v4093 = vunpack.c.l.b16 %v994
  %v4094 = vunpack.c.h.b16 %v994
  %v4095 = vunpack.c.l.b16 %v995
  %v4096 = vunpack.c.h.b16 %v995
  %v4097 = vunpack.c.l.b16 %v996
  %v4098 = vunpack.c.h.b16 %v996
  %v4099 = vunpack.c.l.b16 %v997
  %v4100 = vunpack.c.h.b16 %v997
  %v4101 = vunpack.c.l.b16 %v998
  %v4102 = vunpack.c.h.b16 %v998
  %v4103 = vunpack.c.l.b16 %v999
  %v4104 = vunpack.c.h.b16 %v999
  %v4105 = vunpack.c.l.b16 %v1000
  %v4106 = vunpack.c.h.b16 %v1000
  %v4107 = vunpack.c.l.b16 %v1001
  %v4108 = vunpack.c.h.b16 %v1001
  %v4109 = vunpack.c.l.b16 %v1002
  %v4110 = vunpack.c.h.b16 %v1002
  %v4111 = vunpack.c.l.b16 %v1003
  %v4112 = vunpack.c.h.b16 %v1003
  %v4113 = vunpack.c.l.b16 %v1004
  %v4114 = vunpack.c.h.b16 %v1004
  %v4115 = vunpack.c.l.b16 %v1005
  %v4116 = vunpack.c.h.b16 %v1005
  %v4117 = vunpack.c.l.b16 %v1006
  %v4118 = vunpack.c.h.b16 %v1006
  %v4119 = vunpack.c.l.b16 %v1007
  %v4120 = vunpack.c.h.b16 %v1007
  %v4121 = vunpack.c.l.b16 %v1008
  %v4122 = vunpack.c.h.b16 %v1008
  %v4123 = vunpack.c.l.b16 %v1009
  %v4124 = vunpack.c.h.b16 %v1009
  %v4125 = vunpack.c.l.b16 %v1010
  %v4126 = vunpack.c.h.b16 %v1010
  %v4127 = vunpack.c.l.b16 %v1011
  %v4128 = vunpack.c.h.b16 %v1011
  %v4129 = vunpack.c.l.b16 %v1012
  %v4130 = vunpack.c.h.b16 %v1012
  %v4131 = vunpack.c.l.b16 %v1013
  %v4132 = vunpack.c.h.b16 %v1013
  %v4133 = vunpack.c.l.b16 %v1014
  %v4134 = vunpack.c.h.b16 %v1014
  %v4135 = vunpack.c.l.b16 %v1015
  %v4136 = vunpack.c.h.b16 %v1015
  %v4137 = vunpack.c.l.b16 %v1016
  %v4138 = vunpack.c.h.b16 %v1016
  %v4139 = vunpack.c.l.b16 %v1017
  %v4140 = vunpack.c.h.b16 %v1017
  %v4141 = vunpack.c.l.b16 %v1018
  %v4142 = vunpack.c.h.b16 %v1018
  %v4143 = vunpack.c.l.b16 %v1019
  %v4144 = vunpack.c.h.b16 %v1019
  %v4145 = vunpack.c.l.b16 %v1020
  %v4146 = vunpack.c.h.b16 %v1020
  %v4147 = vunpack.c.l.b16 %v1021
  %v4148 = vunpack.c.h.b16 %v1021
  %v4149 = vunpack.c.l.b16 %v1022
  %v4150 = vunpack.c.h.b16 %v1022
  %v4151 = vunpack.c.l.b16 %v1023
  %v4152 = vunpack.c.h.b16 %v1023
  %v4153 = vunpack.c.l.b16 %v1024
  %v4154 = vunpack.c.h.b16 %v1024
  %v4155 = vunpack.c.l.b16 %v1025
  %v4156 = vunpack.c.h.b16 %v1025
  %v4157 = vunpack.c.l.b16 %v1026
  %v4158 = vunpack.c.h.b16 %v1026
  %v4159 = vunpack.c.l.b16 %v1027
  %v4160 = vunpack.c.h.b16 %v1027
  %v4161 = vunpack.c.l.b16 %v1028
  %v4162 = vunpack.c.h.b16 %v1028
  %v4163 = vunpack.c.l.b16 %v1029
  %v4164 = vunpack.c.h.b16 %v1029
  %v4165 = vunpack.c.l.b16 %v1030
  %v4166 = vunpack.c.h.b16 %v1030
  %v4167 = vunpack.c.l.b16 %v1031
  %v4168 = vunpack.c.h.b16 %v1031
  %v4169 = vunpack.c.l.b16 %v1032
  %v4170 = vunpack.c.h.b16 %v1032
  %v4171 = vunpack.c.l.b16 %v1033
  %v4172 = vunpack.c.h.b16 %v1033
  %v4173 = vunpack.c.l.b16 %v1034
  %v4174 = vunpack.c.h.b16 %v1034
  %v4175 = vunpack.c.l.b16 %v1035
  %v4176 = vunpack.c.h.b16 %v1035
  %v4177 = vunpack.c.l.b16 %v1036
  %v4178 = vunpack.c.h.b16 %v1036
  %v4179 = vunpack.c.l.b16 %v1037
  %v4180 = vunpack.c.h.b16 %v1037
  %v4181 = vunpack.c.l.b16 %v1038
  %v4182 = vunpack.c.h.b16 %v1038
  %v4183 = vpack.c.b16 %v2139, %v2135
  %v4184 = vpack.c.b16 %v2140, %v2136
  %v4185 = vpack.c.b16 %v2141, %v2137
  %v4186 = vpack.c.b16 %v2142, %v2138
  %v4187 = vpack.c.b16 %v2147, %v2143
  %v4188 = vpack.c.b16 %v2148, %v2144
  %v4189 = vpack.c.b16 %v2149, %v2145
  %v4190 = vpack.c.b16 %v2150, %v2146
  %v4191 = vpack.c.b16 %v2155, %v2151
  %v4192 = vpack.c.b16 %v2156, %v2152
  %v4193 = vpack.c.b16 %v2157, %v2153
  %v4194 = vpack.c.b16 %v2158, %v2154
  %v4195 = vpack.c.b16 %v2163, %v2159
  %v4196 = vpack.c.b16 %v2164, %v2160
  %v4197 = vpack.c.b16 %v2165, %v2161
  %v4198 = vpack.c.b16 %v2166, %v2162
  %v4199 = vpack.c.b16 %v2171, %v2167
  %v4200 = vpack.c.b16 %v2172, %v2168
  %v4201 = vpack.c.b16 %v2173, %v2169
  %v4202 = vpack.c.b16 %v2174, %v2170
  %v4203 = vpack.c.b16 %v2179, %v2175
  %v4204 = vpack.c.b16 %v2180, %v2176
  %v4205 = vpack.c.b16 %v2181, %v2177
  %v4206 = vpack.c.b16 %v2182, %v2178
  %v4207 = vpack.c.b16 %v2187, %v2183
  %v4208 = vpack.c.b16 %v2188, %v2184
  %v4209 = vpack.c.b16 %v2189, %v2185
  %v4210 = vpack.c.b16 %v2190, %v2186
  %v4211 = vpack.c.b16 %v2195, %v2191
  %v4212 = vpack.c.b16 %v2196, %v2192
  %v4213 = vpack.c.b16 %v2197, %v2193
  %v4214 = vpack.c.b16 %v2198, %v2194
  %v4215 = vpack.c.b16 %v2203, %v2199
  %v4216 = vpack.c.b16 %v2204, %v2200
  %v4217 = vpack.c.b16 %v2205, %v2201
  %v4218 = vpack.c.b16 %v2206, %v2202
  %v4219 = vpack.c.b16 %v2211, %v2207
  %v4220 = vpack.c.b16 %v2212, %v2208
  %v4221 = vpack.c.b16 %v2213, %v2209
  %v4222 = vpack.c.b16 %v2214, %v2210
  %v4223 = vpack.c.b16 %v2219, %v2215
  %v4224 = vpack.c.b16 %v2220, %v2216
  %v4225 = vpack.c.b16 %v2221, %v2217
  %v4226 = vpack.c.b16 %v2222, %v2218
  %v4227 = vpack.c.b16 %v2227, %v2223
  %v4228 = vpack.c.b16 %v2228, %v2224
  %v4229 = vpack.c.b16 %v2229, %v2225
  %v4230 = vpack.c.b16 %v2230, %v2226
  %v4231 = vpack.c.b16 %v2235, %v2231
  %v4232 = vpack.c.b16 %v2236, %v2232
  %v4233 = vpack.c.b16 %v2237, %v2233
  %v4234 = vpack.c.b16 %v2238, %v2234
  %v4235 = vpack.c.b16 %v2243, %v2239
  %v4236 = vpack.c.b16 %v2244, %v2240
  %v4237 = vpack.c.b16 %v2245, %v2241
  %v4238 = vpack.c.b16 %v2246, %v2242
  %v4239 = vpack.c.b16 %v2251, %v2247
  %v4240 = vpack.c.b16 %v2252, %v2248
  %v4241 = vpack.c.b16 %v2253, %v2249
  %v4242 = vpack.c.b16 %v2254, %v2250
  %v4243 = vpack.c.b16 %v2259, %v2255
  %v4244 = vpack.c.b16 %v2260, %v2256
  %v4245 = vpack.c.b16 %v2261, %v2257
  %v4246 = vpack.c.b16 %v2262, %v2258
  %v4247 = vpack.c.b16 %v2267, %v2263
  %v4248 = vpack.c.b16 %v2268, %v2264
  %v4249 = vpack.c.b16 %v2269, %v2265
  %v4250 = vpack.c.b16 %v2270, %v2266
  %v4251 = vpack.c.b16 %v2275, %v2271
  %v4252 = vpack.c.b16 %v2276, %v2272
  %v4253 = vpack.c.b16 %v2277, %v2273
  %v4254 = vpack.c.b16 %v2278, %v2274
  %v4255 = vpack.c.b16 %v2283, %v2279
  %v4256 = vpack.c.b16 %v2284, %v2280
  %v4257 = vpack.c.b16 %v2285, %v2281
  %v4258 = vpack.c.b16 %v2286, %v2282
  %v4259 = vpack.c.b16 %v2291, %v2287
  %v4260 = vpack.c.b16 %v2292, %v2288
  %v4261 = vpack.c.b16 %v2293, %v2289
  %v4262 = vpack.c.b16 %v2294, %v2290
  %v4263 = vpack.c.b16 %v2299, %v2295
  %v4264 = vpack.c.b16 %v2300, %v2296
  %v4265 = vpack.c.b16 %v2301, %v2297
  %v4266 = vpack.c.b16 %v2302, %v2298
  %v4267 = vpack.c.b16 %v2307, %v2303
  %v4268 = vpack.c.b16 %v2308, %v2304
  %v4269 = vpack.c.b16 %v2309, %v2305
  %v4270 = vpack.c.b16 %v2310, %v2306
  %v4271 = vpack.c.b16 %v2315, %v2311
  %v4272 = vpack.c.b16 %v2316, %v2312
  %v4273 = vpack.c.b16 %v2317, %v2313
  %v4274 = vpack.c.b16 %v2318, %v2314
  %v4275 = vpack.c.b16 %v2323, %v2319
  %v4276 = vpack.c.b16 %v2324, %v2320
  %v4277 = vpack.c.b16 %v2325, %v2321
  %v4278 = vpack.c.b16 %v2326, %v2322
  %v4279 = vpack.c.b16 %v2331, %v2327
  %v4280 = vpack.c.b16 %v2332, %v2328
  %v4281 = vpack.c.b16 %v2333, %v2329
  %v4282 = vpack.c.b16 %v2334, %v2330
  %v4283 = vpack.c.b16 %v2339, %v2335
  %v4284 = vpack.c.b16 %v2340, %v2336
  %v4285 = vpack.c.b16 %v2341, %v2337
  %v4286 = vpack.c.b16 %v2342, %v2338
  %v4287 = vpack.c.b16 %v2347, %v2343
  %v4288 = vpack.c.b16 %v2348, %v2344
  %v4289 = vpack.c.b16 %v2349, %v2345
  %v4290 = vpack.c.b16 %v2350, %v2346
  %v4291 = vpack.c.b16 %v2355, %v2351
  %v4292 = vpack.c.b16 %v2356, %v2352
  %v4293 = vpack.c.b16 %v2357, %v2353
  %v4294 = vpack.c.b16 %v2358, %v2354
  %v4295 = vpack.c.b16 %v2363, %v2359
  %v4296 = vpack.c.b16 %v2364, %v2360
  %v4297 = vpack.c.b16 %v2365, %v2361
  %v4298 = vpack.c.b16 %v2366, %v2362
  %v4299 = vpack.c.b16 %v2371, %v2367
  %v4300 = vpack.c.b16 %v2372, %v2368
  %v4301 = vpack.c.b16 %v2373, %v2369
  %v4302 = vpack.c.b16 %v2374, %v2370
  %v4303 = vpack.c.b16 %v2379, %v2375
  %v4304 = vpack.c.b16 %v2380, %v2376
  %v4305 = vpack.c.b16 %v2381, %v2377
  %v4306 = vpack.c.b16 %v2382, %v2378
  %v4307 = vpack.c.b16 %v2387, %v2383
  %v4308 = vpack.c.b16 %v2388, %v2384
  %v4309 = vpack.c.b16 %v2389, %v2385
  %v4310 = vpack.c.b16 %v2390, %v2386
  %v4311 = vpack.c.b16 %v2395, %v2391
  %v4312 = vpack.c.b16 %v2396, %v2392
  %v4313 = vpack.c.b16 %v2397, %v2393
  %v4314 = vpack.c.b16 %v2398, %v2394
  %v4315 = vpack.c.b16 %v2403, %v2399
  %v4316 = vpack.c.b16 %v2404, %v2400
  %v4317 = vpack.c.b16 %v2405, %v2401
  %v4318 = vpack.c.b16 %v2406, %v2402
  %v4319 = vpack.c.b16 %v2411, %v2407
  %v4320 = vpack.c.b16 %v2412, %v2408
  %v4321 = vpack.c.b16 %v2413, %v2409
  %v4322 = vpack.c.b16 %v2414, %v2410
  %v4323 = vpack.c.b16 %v2419, %v2415
  %v4324 = vpack.c.b16 %v2420, %v2416
  %v4325 = vpack.c.b16 %v2421, %v2417
  %v4326 = vpack.c.b16 %v2422, %v2418
  %v4327 = vpack.c.b16 %v2427, %v2423
  %v4328 = vpack.c.b16 %v2428, %v2424
  %v4329 = vpack.c.b16 %v2429, %v2425
  %v4330 = vpack.c.b16 %v2430, %v2426
  %v4331 = vpack.c.b16 %v2435, %v2431
  %v4332 = vpack.c.b16 %v2436, %v2432
  %v4333 = vpack.c.b16 %v2437, %v2433
  %v4334 = vpack.c.b16 %v2438, %v2434
  %v4335 = vpack.c.b16 %v2443, %v2439
  %v4336 = vpack.c.b16 %v2444, %v2440
  %v4337 = vpack.c.b16 %v2445, %v2441
  %v4338 = vpack.c.b16 %v2446, %v2442
  %v4339 = vpack.c.b16 %v2451, %v2447
  %v4340 = vpack.c.b16 %v2452, %v2448
  %v4341 = vpack.c.b16 %v2453, %v2449
  %v4342 = vpack.c.b16 %v2454, %v2450
  %v4343 = vpack.c.b16 %v2459, %v2455
  %v4344 = vpack.c.b16 %v2460, %v2456
  %v4345 = vpack.c.b16 %v2461, %v2457
  %v4346 = vpack.c.b16 %v2462, %v2458
  %v4347 = vpack.c.b16 %v2467, %v2463
  %v4348 = vpack.c.b16 %v2468, %v2464
  %v4349 = vpack.c.b16 %v2469, %v2465
  %v4350 = vpack.c.b16 %v2470, %v2466
  %v4351 = vpack.c.b16 %v2475, %v2471
  %v4352 = vpack.c.b16 %v2476, %v2472
  %v4353 = vpack.c.b16 %v2477, %v2473
  %v4354 = vpack.c.b16 %v2478, %v2474
  %v4355 = vpack.c.b16 %v2483, %v2479
  %v4356 = vpack.c.b16 %v2484, %v2480
  %v4357 = vpack.c.b16 %v2485, %v2481
  %v4358 = vpack.c.b16 %v2486, %v2482
  %v4359 = vpack.c.b16 %v2491, %v2487
  %v4360 = vpack.c.b16 %v2492, %v2488
  %v4361 = vpack.c.b16 %v2493, %v2489
  %v4362 = vpack.c.b16 %v2494, %v2490
  %v4363 = vpack.c.b16 %v2499, %v2495
  %v4364 = vpack.c.b16 %v2500, %v2496
  %v4365 = vpack.c.b16 %v2501, %v2497
  %v4366 = vpack.c.b16 %v2502, %v2498
  %v4367 = vpack.c.b16 %v2507, %v2503
  %v4368 = vpack.c.b16 %v2508, %v2504
  %v4369 = vpack.c.b16 %v2509, %v2505
  %v4370 = vpack.c.b16 %v2510, %v2506
  %v4371 = vpack.c.b16 %v2515, %v2511
  %v4372 = vpack.c.b16 %v2516, %v2512
  %v4373 = vpack.c.b16 %v2517, %v2513
  %v4374 = vpack.c.b16 %v2518, %v2514
  %v4375 = vpack.c.b16 %v2523, %v2519
  %v4376 = vpack.c.b16 %v2524, %v2520
  %v4377 = vpack.c.b16 %v2525, %v2521
  %v4378 = vpack.c.b16 %v2526, %v2522
  %v4379 = vpack.c.b16 %v2531, %v2527
  %v4380 = vpack.c.b16 %v2532, %v2528
  %v4381 = vpack.c.b16 %v2533, %v2529
  %v4382 = vpack.c.b16 %v2534, %v2530
  %v4383 = vpack.c.b16 %v2539, %v2535
  %v4384 = vpack.c.b16 %v2540, %v2536
  %v4385 = vpack.c.b16 %v2541, %v2537
  %v4386 = vpack.c.b16 %v2542, %v2538
  %v4387 = vpack.c.b16 %v2547, %v2543
  %v4388 = vpack.c.b16 %v2548, %v2544
  %v4389 = vpack.c.b16 %v2549, %v2545
  %v4390 = vpack.c.b16 %v2550, %v2546
  %v4391 = vpack.c.b16 %v2555, %v2551
  %v4392 = vpack.c.b16 %v2556, %v2552
  %v4393 = vpack.c.b16 %v2557, %v2553
  %v4394 = vpack.c.b16 %v2558, %v2554
  %v4395 = vpack.c.b16 %v2563, %v2559
  %v4396 = vpack.c.b16 %v2564, %v2560
  %v4397 = vpack.c.b16 %v2565, %v2561
  %v4398 = vpack.c.b16 %v2566, %v2562
  %v4399 = vpack.c.b16 %v2571, %v2567
  %v4400 = vpack.c.b16 %v2572, %v2568
  %v4401 = vpack.c.b16 %v2573, %v2569
  %v4402 = vpack.c.b16 %v2574, %v2570
  %v4403 = vpack.c.b16 %v2579, %v2575
  %v4404 = vpack.c.b16 %v2580, %v2576
  %v4405 = vpack.c.b16 %v2581, %v2577
  %v4406 = vpack.c.b16 %v2582, %v2578
  %v4407 = vpack.c.b16 %v2587, %v2583
  %v4408 = vpack.c.b16 %v2588, %v2584
  %v4409 = vpack.c.b16 %v2589, %v2585
  %v4410 = vpack.c.b16 %v2590, %v2586
  %v4411 = vpack.c.b16 %v2595, %v2591
  %v4412 = vpack.c.b16 %v2596, %v2592
  %v4413 = vpack.c.b16 %v2597, %v2593
  %v4414 = vpack.c.b16 %v2598, %v2594
  %v4415 = vpack.c.b16 %v2603, %v2599
  %v4416 = vpack.c.b16 %v2604, %v2600
  %v4417 = vpack.c.b16 %v2605, %v2601
  %v4418 = vpack.c.b16 %v2606, %v2602
  %v4419 = vpack.c.b16 %v2611, %v2607
  %v4420 = vpack.c.b16 %v2612, %v2608
  %v4421 = vpack.c.b16 %v2613, %v2609
  %v4422 = vpack.c.b16 %v2614, %v2610
  %v4423 = vpack.c.b16 %v2619, %v2615
  %v4424 = vpack.c.b16 %v2620, %v2616
  %v4425 = vpack.c.b16 %v2621, %v2617
  %v4426 = vpack.c.b16 %v2622, %v2618
  %v4427 = vpack.c.b16 %v2627, %v2623
  %v4428 = vpack.c.b16 %v2628, %v2624
  %v4429 = vpack.c.b16 %v2629, %v2625
  %v4430 = vpack.c.b16 %v2630, %v2626
  %v4431 = vpack.c.b16 %v2635, %v2631
  %v4432 = vpack.c.b16 %v2636, %v2632
  %v4433 = vpack.c.b16 %v2637, %v2633
  %v4434 = vpack.c.b16 %v2638, %v2634
  %v4435 = vpack.c.b16 %v2643, %v2639
  %v4436 = vpack.c.b16 %v2644, %v2640
  %v4437 = vpack.c.b16 %v2645, %v2641
  %v4438 = vpack.c.b16 %v2646, %v2642
  %v4439 = vpack.c.b16 %v2651, %v2647
  %v4440 = vpack.c.b16 %v2652, %v2648
  %v4441 = vpack.c.b16 %v2653, %v2649
  %v4442 = vpack.c.b16 %v2654, %v2650
  %v4443 = vpack.c.b16 %v2659, %v2655
  %v4444 = vpack.c.b16 %v2660, %v2656
  %v4445 = vpack.c.b16 %v2661, %v2657
  %v4446 = vpack.c.b16 %v2662, %v2658
  %v4447 = vpack.c.b16 %v2667, %v2663
  %v4448 = vpack.c.b16 %v2668, %v2664
  %v4449 = vpack.c.b16 %v2669, %v2665
  %v4450 = vpack.c.b16 %v2670, %v2666
  %v4451 = vpack.c.b16 %v2675, %v2671
  %v4452 = vpack.c.b16 %v2676, %v2672
  %v4453 = vpack.c.b16 %v2677, %v2673
  %v4454 = vpack.c.b16 %v2678, %v2674
  %v4455 = vpack.c.b16 %v2683, %v2679
  %v4456 = vpack.c.b16 %v2684, %v2680
  %v4457 = vpack.c.b16 %v2685, %v2681
  %v4458 = vpack.c.b16 %v2686, %v2682
  %v4459 = vpack.c.b16 %v2691, %v2687
  %v4460 = vpack.c.b16 %v2692, %v2688
  %v4461 = vpack.c.b16 %v2693, %v2689
  %v4462 = vpack.c.b16 %v2694, %v2690
  %v4463 = vpack.c.b16 %v2699, %v2695
  %v4464 = vpack.c.b16 %v2700, %v2696
  %v4465 = vpack.c.b16 %v2701, %v2697
  %v4466 = vpack.c.b16 %v2702, %v2698
  %v4467 = vpack.c.b16 %v2707, %v2703
  %v4468 = vpack.c.b16 %v2708, %v2704
  %v4469 = vpack.c.b16 %v2709, %v2705
  %v4470 = vpack.c.b16 %v2710, %v2706
  %v4471 = vpack.c.b16 %v2715, %v2711
  %v4472 = vpack.c.b16 %v2716, %v2712
  %v4473 = vpack.c.b16 %v2717, %v2713
  %v4474 = vpack.c.b16 %v2718, %v2714
  %v4475 = vpack.c.b16 %v2723, %v2719
  %v4476 = vpack.c.b16 %v2724, %v2720
  %v4477 = vpack.c.b16 %v2725, %v2721
  %v4478 = vpack.c.b16 %v2726, %v2722
  %v4479 = vpack.c.b16 %v2731, %v2727
  %v4480 = vpack.c.b16 %v2732, %v2728
  %v4481 = vpack.c.b16 %v2733, %v2729
  %v4482 = vpack.c.b16 %v2734, %v2730
  %v4483 = vpack.c.b16 %v2739, %v2735
  %v4484 = vpack.c.b16 %v2740, %v2736
  %v4485 = vpack.c.b16 %v2741, %v2737
  %v4486 = vpack.c.b16 %v2742, %v2738
  %v4487 = vpack.c.b16 %v2747, %v2743
  %v4488 = vpack.c.b16 %v2748, %v2744
  %v4489 = vpack.c.b16 %v2749, %v2745
  %v4490 = vpack.c.b16 %v2750, %v2746
  %v4491 = vpack.c.b16 %v2755, %v2751
  %v4492 = vpack.c.b16 %v2756, %v2752
  %v4493 = vpack.c.b16 %v2757, %v2753
  %v4494 = vpack.c.b16 %v2758, %v2754
  %v4495 = vpack.c.b16 %v2763, %v2759
  %v4496 = vpack.c.b16 %v2764, %v2760
  %v4497 = vpack.c.b16 %v2765, %v2761
  %v4498 = vpack.c.b16 %v2766, %v2762
  %v4499 = vpack.c.b16 %v2771, %v2767
  %v4500 = vpack.c.b16 %v2772, %v2768
  %v4501 = vpack.c.b16 %v2773, %v2769
  %v4502 = vpack.c.b16 %v2774, %v2770
  %v4503 = vpack.c.b16 %v2779, %v2775
  %v4504 = vpack.c.b16 %v2780, %v2776
  %v4505 = vpack.c.b16 %v2781, %v2777
  %v4506 = vpack.c.b16 %v2782, %v2778
  %v4507 = vpack.c.b16 %v2787, %v2783
  %v4508 = vpack.c.b16 %v2788, %v2784
  %v4509 = vpack.c.b16 %v2789, %v2785
  %v4510 = vpack.c.b16 %v2790, %v2786
  %v4511 = vpack.c.b16 %v2795, %v2791
  %v4512 = vpack.c.b16 %v2796, %v2792
  %v4513 = vpack.c.b16 %v2797, %v2793
  %v4514 = vpack.c.b16 %v2798, %v2794
  %v4515 = vpack.c.b16 %v2803, %v2799
  %v4516 = vpack.c.b16 %v2804, %v2800
  %v4517 = vpack.c.b16 %v2805, %v2801
  %v4518 = vpack.c.b16 %v2806, %v2802
  %v4519 = vpack.c.b16 %v2811, %v2807
  %v4520 = vpack.c.b16 %v2812, %v2808
  %v4521 = vpack.c.b16 %v2813, %v2809
  %v4522 = vpack.c.b16 %v2814, %v2810
  %v4523 = vpack.c.b16 %v2819, %v2815
  %v4524 = vpack.c.b16 %v2820, %v2816
  %v4525 = vpack.c.b16 %v2821, %v2817
  %v4526 = vpack.c.b16 %v2822, %v2818
  %v4527 = vpack.c.b16 %v2827, %v2823
  %v4528 = vpack.c.b16 %v2828, %v2824
  %v4529 = vpack.c.b16 %v2829, %v2825
  %v4530 = vpack.c.b16 %v2830, %v2826
  %v4531 = vpack.c.b16 %v2835, %v2831
  %v4532 = vpack.c.b16 %v2836, %v2832
  %v4533 = vpack.c.b16 %v2837, %v2833
  %v4534 = vpack.c.b16 %v2838, %v2834
  %v4535 = vpack.c.b16 %v2843, %v2839
  %v4536 = vpack.c.b16 %v2844, %v2840
  %v4537 = vpack.c.b16 %v2845, %v2841
  %v4538 = vpack.c.b16 %v2846, %v2842
  %v4539 = vpack.c.b16 %v2851, %v2847
  %v4540 = vpack.c.b16 %v2852, %v2848
  %v4541 = vpack.c.b16 %v2853, %v2849
  %v4542 = vpack.c.b16 %v2854, %v2850
  %v4543 = vpack.c.b16 %v2859, %v2855
  %v4544 = vpack.c.b16 %v2860, %v2856
  %v4545 = vpack.c.b16 %v2861, %v2857
  %v4546 = vpack.c.b16 %v2862, %v2858
  %v4547 = vpack.c.b16 %v2867, %v2863
  %v4548 = vpack.c.b16 %v2868, %v2864
  %v4549 = vpack.c.b16 %v2869, %v2865
  %v4550 = vpack.c.b16 %v2870, %v2866
  %v4551 = vpack.c.b16 %v2875, %v2871
  %v4552 = vpack.c.b16 %v2876, %v2872
  %v4553 = vpack.c.b16 %v2877, %v2873
  %v4554 = vpack.c.b16 %v2878, %v2874
  %v4555 = vpack.c.b16 %v2883, %v2879
  %v4556 = vpack.c.b16 %v2884, %v2880
  %v4557 = vpack.c.b16 %v2885, %v2881
  %v4558 = vpack.c.b16 %v2886, %v2882
  %v4559 = vpack.c.b16 %v2891, %v2887
  %v4560 = vpack.c.b16 %v2892, %v2888
  %v4561 = vpack.c.b16 %v2893, %v2889
  %v4562 = vpack.c.b16 %v2894, %v2890
  %v4563 = vpack.c.b16 %v2899, %v2895
  %v4564 = vpack.c.b16 %v2900, %v2896
  %v4565 = vpack.c.b16 %v2901, %v2897
  %v4566 = vpack.c.b16 %v2902, %v2898
  %v4567 = vpack.c.b16 %v2907, %v2903
  %v4568 = vpack.c.b16 %v2908, %v2904
  %v4569 = vpack.c.b16 %v2909, %v2905
  %v4570 = vpack.c.b16 %v2910, %v2906
  %v4571 = vpack.c.b16 %v2915, %v2911
  %v4572 = vpack.c.b16 %v2916, %v2912
  %v4573 = vpack.c.b16 %v2917, %v2913
  %v4574 = vpack.c.b16 %v2918, %v2914
  %v4575 = vpack.c.b16 %v2923, %v2919
  %v4576 = vpack.c.b16 %v2924, %v2920
  %v4577 = vpack.c.b16 %v2925, %v2921
  %v4578 = vpack.c.b16 %v2926, %v2922
  %v4579 = vpack.c.b16 %v2931, %v2927
  %v4580 = vpack.c.b16 %v2932, %v2928
  %v4581 = vpack.c.b16 %v2933, %v2929
  %v4582 = vpack.c.b16 %v2934, %v2930
  %v4583 = vpack.c.b16 %v2939, %v2935
  %v4584 = vpack.c.b16 %v2940, %v2936
  %v4585 = vpack.c.b16 %v2941, %v2937
  %v4586 = vpack.c.b16 %v2942, %v2938
  %v4587 = vpack.c.b16 %v2947, %v2943
  %v4588 = vpack.c.b16 %v2948, %v2944
  %v4589 = vpack.c.b16 %v2949, %v2945
  %v4590 = vpack.c.b16 %v2950, %v2946
  %v4591 = vpack.c.b16 %v2955, %v2951
  %v4592 = vpack.c.b16 %v2956, %v2952
  %v4593 = vpack.c.b16 %v2957, %v2953
  %v4594 = vpack.c.b16 %v2958, %v2954
  %v4595 = vpack.c.b16 %v2963, %v2959
  %v4596 = vpack.c.b16 %v2964, %v2960
  %v4597 = vpack.c.b16 %v2965, %v2961
  %v4598 = vpack.c.b16 %v2966, %v2962
  %v4599 = vpack.c.b16 %v2971, %v2967
  %v4600 = vpack.c.b16 %v2972, %v2968
  %v4601 = vpack.c.b16 %v2973, %v2969
  %v4602 = vpack.c.b16 %v2974, %v2970
  %v4603 = vpack.c.b16 %v2979, %v2975
  %v4604 = vpack.c.b16 %v2980, %v2976
  %v4605 = vpack.c.b16 %v2981, %v2977
  %v4606 = vpack.c.b16 %v2982, %v2978
  %v4607 = vpack.c.b16 %v2987, %v2983
  %v4608 = vpack.c.b16 %v2988, %v2984
  %v4609 = vpack.c.b16 %v2989, %v2985
  %v4610 = vpack.c.b16 %v2990, %v2986
  %v4611 = vpack.c.b16 %v2995, %v2991
  %v4612 = vpack.c.b16 %v2996, %v2992
  %v4613 = vpack.c.b16 %v2997, %v2993
  %v4614 = vpack.c.b16 %v2998, %v2994
  %v4615 = vpack.c.b16 %v3003, %v2999
  %v4616 = vpack.c.b16 %v3004, %v3000
  %v4617 = vpack.c.b16 %v3005, %v3001
  %v4618 = vpack.c.b16 %v3006, %v3002
  %v4619 = vpack.c.b16 %v3011, %v3007
  %v4620 = vpack.c.b16 %v3012, %v3008
  %v4621 = vpack.c.b16 %v3013, %v3009
  %v4622 = vpack.c.b16 %v3014, %v3010
  %v4623 = vpack.c.b16 %v3019, %v3015
  %v4624 = vpack.c.b16 %v3020, %v3016
  %v4625 = vpack.c.b16 %v3021, %v3017
  %v4626 = vpack.c.b16 %v3022, %v3018
  %v4627 = vpack.c.b16 %v3027, %v3023
  %v4628 = vpack.c.b16 %v3028, %v3024
  %v4629 = vpack.c.b16 %v3029, %v3025
  %v4630 = vpack.c.b16 %v3030, %v3026
  %v4631 = vpack.c.b16 %v3035, %v3031
  %v4632 = vpack.c.b16 %v3036, %v3032
  %v4633 = vpack.c.b16 %v3037, %v3033
  %v4634 = vpack.c.b16 %v3038, %v3034
  %v4635 = vpack.c.b16 %v3043, %v3039
  %v4636 = vpack.c.b16 %v3044, %v3040
  %v4637 = vpack.c.b16 %v3045, %v3041
  %v4638 = vpack.c.b16 %v3046, %v3042
  %v4639 = vpack.c.b16 %v3051, %v3047
  %v4640 = vpack.c.b16 %v3052, %v3048
  %v4641 = vpack.c.b16 %v3053, %v3049
  %v4642 = vpack.c.b16 %v3054, %v3050
  %v4643 = vpack.c.b16 %v3059, %v3055
  %v4644 = vpack.c.b16 %v3060, %v3056
  %v4645 = vpack.c.b16 %v3061, %v3057
  %v4646 = vpack.c.b16 %v3062, %v3058
  %v4647 = vpack.c.b16 %v3067, %v3063
  %v4648 = vpack.c.b16 %v3068, %v3064
  %v4649 = vpack.c.b16 %v3069, %v3065
  %v4650 = vpack.c.b16 %v3070, %v3066
  %v4651 = vpack.c.b16 %v3075, %v3071
  %v4652 = vpack.c.b16 %v3076, %v3072
  %v4653 = vpack.c.b16 %v3077, %v3073
  %v4654 = vpack.c.b16 %v3078, %v3074
  %v4655 = vpack.c.b16 %v3083, %v3079
  %v4656 = vpack.c.b16 %v3084, %v3080
  %v4657 = vpack.c.b16 %v3085, %v3081
  %v4658 = vpack.c.b16 %v3086, %v3082
  %v4659 = vpack.c.b16 %v3091, %v3087
  %v4660 = vpack.c.b16 %v3092, %v3088
  %v4661 = vpack.c.b16 %v3093, %v3089
  %v4662 = vpack.c.b16 %v3094, %v3090
  %v4663 = vpack.c.b16 %v3099, %v3095
  %v4664 = vpack.c.b16 %v3100, %v3096
  %v4665 = vpack.c.b16 %v3101, %v3097
  %v4666 = vpack.c.b16 %v3102, %v3098
  %v4667 = vpack.c.b16 %v3107, %v3103
  %v4668 = vpack.c.b16 %v3108, %v3104
  %v4669 = vpack.c.b16 %v3109, %v3105
  %v4670 = vpack.c.b16 %v3110, %v3106
  %v4671 = vpack.c.b16 %v3115, %v3111
  %v4672 = vpack.c.b16 %v3116, %v3112
  %v4673 = vpack.c.b16 %v3117, %v3113
  %v4674 = vpack.c.b16 %v3118, %v3114
  %v4675 = vpack.c.b16 %v3123, %v3119
  %v4676 = vpack.c.b16 %v3124, %v3120
  %v4677 = vpack.c.b16 %v3125, %v3121
  %v4678 = vpack.c.b16 %v3126, %v3122
  %v4679 = vpack.c.b16 %v3131, %v3127
  %v4680 = vpack.c.b16 %v3132, %v3128
  %v4681 = vpack.c.b16 %v3133, %v3129
  %v4682 = vpack.c.b16 %v3134, %v3130
  %v4683 = vpack.c.b16 %v3139, %v3135
  %v4684 = vpack.c.b16 %v3140, %v3136
  %v4685 = vpack.c.b16 %v3141, %v3137
  %v4686 = vpack.c.b16 %v3142, %v3138
  %v4687 = vpack.c.b16 %v3147, %v3143
  %v4688 = vpack.c.b16 %v3148, %v3144
  %v4689 = vpack.c.b16 %v3149, %v3145
  %v4690 = vpack.c.b16 %v3150, %v3146
  %v4691 = vpack.c.b16 %v3155, %v3151
  %v4692 = vpack.c.b16 %v3156, %v3152
  %v4693 = vpack.c.b16 %v3157, %v3153
  %v4694 = vpack.c.b16 %v3158, %v3154
  %v4695 = vpack.c.b16 %v3163, %v3159
  %v4696 = vpack.c.b16 %v3164, %v3160
  %v4697 = vpack.c.b16 %v3165, %v3161
  %v4698 = vpack.c.b16 %v3166, %v3162
  %v4699 = vpack.c.b16 %v3171, %v3167
  %v4700 = vpack.c.b16 %v3172, %v3168
  %v4701 = vpack.c.b16 %v3173, %v3169
  %v4702 = vpack.c.b16 %v3174, %v3170
  %v4703 = vpack.c.b16 %v3179, %v3175
  %v4704 = vpack.c.b16 %v3180, %v3176
  %v4705 = vpack.c.b16 %v3181, %v3177
  %v4706 = vpack.c.b16 %v3182, %v3178
  %v4707 = vpack.c.b16 %v3187, %v3183
  %v4708 = vpack.c.b16 %v3188, %v3184
  %v4709 = vpack.c.b16 %v3189, %v3185
  %v4710 = vpack.c.b16 %v3190, %v3186
  %v4711 = vpack.c.b16 %v3195, %v3191
  %v4712 = vpack.c.b16 %v3196, %v3192
  %v4713 = vpack.c.b16 %v3197, %v3193
  %v4714 = vpack.c.b16 %v3198, %v3194
  %v4715 = vpack.c.b16 %v3203, %v3199
  %v4716 = vpack.c.b16 %v3204, %v3200
  %v4717 = vpack.c.b16 %v3205, %v3201
  %v4718 = vpack.c.b16 %v3206, %v3202
  %v4719 = vpack.c.b16 %v3211, %v3207
  %v4720 = vpack.c.b16 %v3212, %v3208
  %v4721 = vpack.c.b16 %v3213, %v3209
  %v4722 = vpack.c.b16 %v3214, %v3210
  %v4723 = vpack.c.b16 %v3219, %v3215
  %v4724 = vpack.c.b16 %v3220, %v3216
  %v4725 = vpack.c.b16 %v3221, %v3217
  %v4726 = vpack.c.b16 %v3222, %v3218
  %v4727 = vpack.c.b16 %v3227, %v3223
  %v4728 = vpack.c.b16 %v3228, %v3224
  %v4729 = vpack.c.b16 %v3229, %v3225
  %v4730 = vpack.c.b16 %v3230, %v3226
  %v4731 = vpack.c.b16 %v3235, %v3231
  %v4732 = vpack.c.b16 %v3236, %v3232
  %v4733 = vpack.c.b16 %v3237, %v3233
  %v4734 = vpack.c.b16 %v3238, %v3234
  %v4735 = vpack.c.b16 %v3243, %v3239
  %v4736 = vpack.c.b16 %v3244, %v3240
  %v4737 = vpack.c.b16 %v3245, %v3241
  %v4738 = vpack.c.b16 %v3246, %v3242
  %v4739 = vpack.c.b16 %v3251, %v3247
  %v4740 = vpack.c.b16 %v3252, %v3248
  %v4741 = vpack.c.b16 %v3253, %v3249
  %v4742 = vpack.c.b16 %v3254, %v3250
  %v4743 = vpack.c.b16 %v3259, %v3255
  %v4744 = vpack.c.b16 %v3260, %v3256
  %v4745 = vpack.c.b16 %v3261, %v3257
  %v4746 = vpack.c.b16 %v3262, %v3258
  %v4747 = vpack.c.b16 %v3267, %v3263
  %v4748 = vpack.c.b16 %v3268, %v3264
  %v4749 = vpack.c.b16 %v3269, %v3265
  %v4750 = vpack.c.b16 %v3270, %v3266
  %v4751 = vpack.c.b16 %v3275, %v3271
  %v4752 = vpack.c.b16 %v3276, %v3272
  %v4753 = vpack.c.b16 %v3277, %v3273
  %v4754 = vpack.c.b16 %v3278, %v3274
  %v4755 = vpack.c.b16 %v3283, %v3279
  %v4756 = vpack.c.b16 %v3284, %v3280
  %v4757 = vpack.c.b16 %v3285, %v3281
  %v4758 = vpack.c.b16 %v3286, %v3282
  %v4759 = vpack.c.b16 %v3291, %v3287
  %v4760 = vpack.c.b16 %v3292, %v3288
  %v4761 = vpack.c.b16 %v3293, %v3289
  %v4762 = vpack.c.b16 %v3294, %v3290
  %v4763 = vpack.c.b16 %v3299, %v3295
  %v4764 = vpack.c.b16 %v3300, %v3296
  %v4765 = vpack.c.b16 %v3301, %v3297
  %v4766 = vpack.c.b16 %v3302, %v3298
  %v4767 = vpack.c.b16 %v3307, %v3303
  %v4768 = vpack.c.b16 %v3308, %v3304
  %v4769 = vpack.c.b16 %v3309, %v3305
  %v4770 = vpack.c.b16 %v3310, %v3306
  %v4771 = vpack.c.b16 %v3315, %v3311
  %v4772 = vpack.c.b16 %v3316, %v3312
  %v4773 = vpack.c.b16 %v3317, %v3313
  %v4774 = vpack.c.b16 %v3318, %v3314
  %v4775 = vpack.c.b16 %v3323, %v3319
  %v4776 = vpack.c.b16 %v3324, %v3320
  %v4777 = vpack.c.b16 %v3325, %v3321
  %v4778 = vpack.c.b16 %v3326, %v3322
  %v4779 = vpack.c.b16 %v3331, %v3327
  %v4780 = vpack.c.b16 %v3332, %v3328
  %v4781 = vpack.c.b16 %v3333, %v3329
  %v4782 = vpack.c.b16 %v3334, %v3330
  %v4783 = vpack.c.b16 %v3339, %v3335
  %v4784 = vpack.c.b16 %v3340, %v3336
  %v4785 = vpack.c.b16 %v3341, %v3337
  %v4786 = vpack.c.b16 %v3342, %v3338
  %v4787 = vpack.c.b16 %v3347, %v3343
  %v4788 = vpack.c.b16 %v3348, %v3344
  %v4789 = vpack.c.b16 %v3349, %v3345
  %v4790 = vpack.c.b16 %v3350, %v3346
  %v4791 = vpack.c.b16 %v3355, %v3351
  %v4792 = vpack.c.b16 %v3356, %v3352
  %v4793 = vpack.c.b16 %v3357, %v3353
  %v4794 = vpack.c.b16 %v3358, %v3354
  %v4795 = vpack.c.b16 %v3363, %v3359
  %v4796 = vpack.c.b16 %v3364, %v3360
  %v4797 = vpack.c.b16 %v3365, %v3361
  %v4798 = vpack.c.b16 %v3366, %v3362
  %v4799 = vpack.c.b16 %v3371, %v3367
  %v4800 = vpack.c.b16 %v3372, %v3368
  %v4801 = vpack.c.b16 %v3373, %v3369
  %v4802 = vpack.c.b16 %v3374, %v3370
  %v4803 = vpack.c.b16 %v3379, %v3375
  %v4804 = vpack.c.b16 %v3380, %v3376
  %v4805 = vpack.c.b16 %v3381, %v3377
  %v4806 = vpack.c.b16 %v3382, %v3378
  %v4807 = vpack.c.b16 %v3387, %v3383
  %v4808 = vpack.c.b16 %v3388, %v3384
  %v4809 = vpack.c.b16 %v3389, %v3385
  %v4810 = vpack.c.b16 %v3390, %v3386
  %v4811 = vpack.c.b16 %v3395, %v3391
  %v4812 = vpack.c.b16 %v3396, %v3392
  %v4813 = vpack.c.b16 %v3397, %v3393
  %v4814 = vpack.c.b16 %v3398, %v3394
  %v4815 = vpack.c.b16 %v3403, %v3399
  %v4816 = vpack.c.b16 %v3404, %v3400
  %v4817 = vpack.c.b16 %v3405, %v3401
  %v4818 = vpack.c.b16 %v3406, %v3402
  %v4819 = vpack.c.b16 %v3411, %v3407
  %v4820 = vpack.c.b16 %v3412, %v3408
  %v4821 = vpack.c.b16 %v3413, %v3409
  %v4822 = vpack.c.b16 %v3414, %v3410
  %v4823 = vpack.c.b16 %v3419, %v3415
  %v4824 = vpack.c.b16 %v3420, %v3416
  %v4825 = vpack.c.b16 %v3421, %v3417
  %v4826 = vpack.c.b16 %v3422, %v3418
  %v4827 = vpack.c.b16 %v3427, %v3423
  %v4828 = vpack.c.b16 %v3428, %v3424
  %v4829 = vpack.c.b16 %v3429, %v3425
  %v4830 = vpack.c.b16 %v3430, %v3426
  %v4831 = vpack.c.b16 %v3435, %v3431
  %v4832 = vpack.c.b16 %v3436, %v3432
  %v4833 = vpack.c.b16 %v3437, %v3433
  %v4834 = vpack.c.b16 %v3438, %v3434
  %v4835 = vpack.c.b16 %v3443, %v3439
  %v4836 = vpack.c.b16 %v3444, %v3440
  %v4837 = vpack.c.b16 %v3445, %v3441
  %v4838 = vpack.c.b16 %v3446, %v3442
  %v4839 = vpack.c.b16 %v3451, %v3447
  %v4840 = vpack.c.b16 %v3452, %v3448
  %v4841 = vpack.c.b16 %v3453, %v3449
  %v4842 = vpack.c.b16 %v3454, %v3450
  %v4843 = vpack.c.b16 %v3459, %v3455
  %v4844 = vpack.c.b16 %v3460, %v3456
  %v4845 = vpack.c.b16 %v3461, %v3457
  %v4846 = vpack.c.b16 %v3462, %v3458
  %v4847 = vpack.c.b16 %v3467, %v3463
  %v4848 = vpack.c.b16 %v3468, %v3464
  %v4849 = vpack.c.b16 %v3469, %v3465
  %v4850 = vpack.c.b16 %v3470, %v3466
  %v4851 = vpack.c.b16 %v3475, %v3471
  %v4852 = vpack.c.b16 %v3476, %v3472
  %v4853 = vpack.c.b16 %v3477, %v3473
  %v4854 = vpack.c.b16 %v3478, %v3474
  %v4855 = vpack.c.b16 %v3483, %v3479
  %v4856 = vpack.c.b16 %v3484, %v3480
  %v4857 = vpack.c.b16 %v3485, %v3481
  %v4858 = vpack.c.b16 %v3486, %v3482
  %v4859 = vpack.c.b16 %v3491, %v3487
  %v4860 = vpack.c.b16 %v3492, %v3488
  %v4861 = vpack.c.b16 %v3493, %v3489
  %v4862 = vpack.c.b16 %v3494, %v3490
  %v4863 = vpack.c.b16 %v3499, %v3495
  %v4864 = vpack.c.b16 %v3500, %v3496
  %v4865 = vpack.c.b16 %v3501, %v3497
  %v4866 = vpack.c.b16 %v3502, %v3498
  %v4867 = vpack.c.b16 %v3507, %v3503
  %v4868 = vpack.c.b16 %v3508, %v3504
  %v4869 = vpack.c.b16 %v3509, %v3505
  %v4870 = vpack.c.b16 %v3510, %v3506
  %v4871 = vpack.c.b16 %v3515, %v3511
  %v4872 = vpack.c.b16 %v3516, %v3512
  %v4873 = vpack.c.b16 %v3517, %v3513
  %v4874 = vpack.c.b16 %v3518, %v3514
  %v4875 = vpack.c.b16 %v3523, %v3519
  %v4876 = vpack.c.b16 %v3524, %v3520
  %v4877 = vpack.c.b16 %v3525, %v3521
  %v4878 = vpack.c.b16 %v3526, %v3522
  %v4879 = vpack.c.b16 %v3531, %v3527
  %v4880 = vpack.c.b16 %v3532, %v3528
  %v4881 = vpack.c.b16 %v3533, %v3529
  %v4882 = vpack.c.b16 %v3534, %v3530
  %v4883 = vpack.c.b16 %v3539, %v3535
  %v4884 = vpack.c.b16 %v3540, %v3536
  %v4885 = vpack.c.b16 %v3541, %v3537
  %v4886 = vpack.c.b16 %v3542, %v3538
  %v4887 = vpack.c.b16 %v3547, %v3543
  %v4888 = vpack.c.b16 %v3548, %v3544
  %v4889 = vpack.c.b16 %v3549, %v3545
  %v4890 = vpack.c.b16 %v3550, %v3546
  %v4891 = vpack.c.b16 %v3555, %v3551
  %v4892 = vpack.c.b16 %v3556, %v3552
  %v4893 = vpack.c.b16 %v3557, %v3553
  %v4894 = vpack.c.b16 %v3558, %v3554
  %v4895 = vpack.c.b16 %v3563, %v3559
  %v4896 = vpack.c.b16 %v3564, %v3560
  %v4897 = vpack.c.b16 %v3565, %v3561
  %v4898 = vpack.c.b16 %v3566, %v3562
  %v4899 = vpack.c.b16 %v3571, %v3567
  %v4900 = vpack.c.b16 %v3572, %v3568
  %v4901 = vpack.c.b16 %v3573, %v3569
  %v4902 = vpack.c.b16 %v3574, %v3570
  %v4903 = vpack.c.b16 %v3579, %v3575
  %v4904 = vpack.c.b16 %v3580, %v3576
  %v4905 = vpack.c.b16 %v3581, %v3577
  %v4906 = vpack.c.b16 %v3582, %v3578
  %v4907 = vpack.c.b16 %v3587, %v3583
  %v4908 = vpack.c.b16 %v3588, %v3584
  %v4909 = vpack.c.b16 %v3589, %v3585
  %v4910 = vpack.c.b16 %v3590, %v3586
  %v4911 = vpack.c.b16 %v3595, %v3591
  %v4912 = vpack.c.b16 %v3596, %v3592
  %v4913 = vpack.c.b16 %v3597, %v3593
  %v4914 = vpack.c.b16 %v3598, %v3594
  %v4915 = vpack.c.b16 %v3603, %v3599
  %v4916 = vpack.c.b16 %v3604, %v3600
  %v4917 = vpack.c.b16 %v3605, %v3601
  %v4918 = vpack.c.b16 %v3606, %v3602
  %v4919 = vpack.c.b16 %v3611, %v3607
  %v4920 = vpack.c.b16 %v3612, %v3608
  %v4921 = vpack.c.b16 %v3613, %v3609
  %v4922 = vpack.c.b16 %v3614, %v3610
  %v4923 = vpack.c.b16 %v3619, %v3615
  %v4924 = vpack.c.b16 %v3620, %v3616
  %v4925 = vpack.c.b16 %v3621, %v3617
  %v4926 = vpack.c.b16 %v3622, %v3618
  %v4927 = vpack.c.b16 %v3627, %v3623
  %v4928 = vpack.c.b16 %v3628, %v3624
  %v4929 = vpack.c.b16 %v3629, %v3625
  %v4930 = vpack.c.b16 %v3630, %v3626
  %v4931 = vpack.c.b16 %v3635, %v3631
  %v4932 = vpack.c.b16 %v3636, %v3632
  %v4933 = vpack.c.b16 %v3637, %v3633
  %v4934 = vpack.c.b16 %v3638, %v3634
  %v4935 = vpack.c.b16 %v3643, %v3639
  %v4936 = vpack.c.b16 %v3644, %v3640
  %v4937 = vpack.c.b16 %v3645, %v3641
  %v4938 = vpack.c.b16 %v3646, %v3642
  %v4939 = vpack.c.b16 %v3651, %v3647
  %v4940 = vpack.c.b16 %v3652, %v3648
  %v4941 = vpack.c.b16 %v3653, %v3649
  %v4942 = vpack.c.b16 %v3654, %v3650
  %v4943 = vpack.c.b16 %v3659, %v3655
  %v4944 = vpack.c.b16 %v3660, %v3656
  %v4945 = vpack.c.b16 %v3661, %v3657
  %v4946 = vpack.c.b16 %v3662, %v3658
  %v4947 = vpack.c.b16 %v3667, %v3663
  %v4948 = vpack.c.b16 %v3668, %v3664
  %v4949 = vpack.c.b16 %v3669, %v3665
  %v4950 = vpack.c.b16 %v3670, %v3666
  %v4951 = vpack.c.b16 %v3675, %v3671
  %v4952 = vpack.c.b16 %v3676, %v3672
  %v4953 = vpack.c.b16 %v3677, %v3673
  %v4954 = vpack.c.b16 %v3678, %v3674
  %v4955 = vpack.c.b16 %v3683, %v3679
  %v4956 = vpack.c.b16 %v3684, %v3680
  %v4957 = vpack.c.b16 %v3685, %v3681
  %v4958 = vpack.c.b16 %v3686, %v3682
  %v4959 = vpack.c.b16 %v3691, %v3687
  %v4960 = vpack.c.b16 %v3692, %v3688
  %v4961 = vpack.c.b16 %v3693, %v3689
  %v4962 = vpack.c.b16 %v3694, %v3690
  %v4963 = vpack.c.b16 %v3699, %v3695
  %v4964 = vpack.c.b16 %v3700, %v3696
  %v4965 = vpack.c.b16 %v3701, %v3697
  %v4966 = vpack.c.b16 %v3702, %v3698
  %v4967 = vpack.c.b16 %v3707, %v3703
  %v4968 = vpack.c.b16 %v3708, %v3704
  %v4969 = vpack.c.b16 %v3709, %v3705
  %v4970 = vpack.c.b16 %v3710, %v3706
  %v4971 = vpack.c.b16 %v3715, %v3711
  %v4972 = vpack.c.b16 %v3716, %v3712
  %v4973 = vpack.c.b16 %v3717, %v3713
  %v4974 = vpack.c.b16 %v3718, %v3714
  %v4975 = vpack.c.b16 %v3723, %v3719
  %v4976 = vpack.c.b16 %v3724, %v3720
  %v4977 = vpack.c.b16 %v3725, %v3721
  %v4978 = vpack.c.b16 %v3726, %v3722
  %v4979 = vpack.c.b16 %v3731, %v3727
  %v4980 = vpack.c.b16 %v3732, %v3728
  %v4981 = vpack.c.b16 %v3733, %v3729
  %v4982 = vpack.c.b16 %v3734, %v3730
  %v4983 = vpack.c.b16 %v3739, %v3735
  %v4984 = vpack.c.b16 %v3740, %v3736
  %v4985 = vpack.c.b16 %v3741, %v3737
  %v4986 = vpack.c.b16 %v3742, %v3738
  %v4987 = vpack.c.b16 %v3747, %v3743
  %v4988 = vpack.c.b16 %v3748, %v3744
  %v4989 = vpack.c.b16 %v3749, %v3745
  %v4990 = vpack.c.b16 %v3750, %v3746
  %v4991 = vpack.c.b16 %v3755, %v3751
  %v4992 = vpack.c.b16 %v3756, %v3752
  %v4993 = vpack.c.b16 %v3757, %v3753
  %v4994 = vpack.c.b16 %v3758, %v3754
  %v4995 = vpack.c.b16 %v3763, %v3759
  %v4996 = vpack.c.b16 %v3764, %v3760
  %v4997 = vpack.c.b16 %v3765, %v3761
  %v4998 = vpack.c.b16 %v3766, %v3762
  %v4999 = vpack.c.b16 %v3771, %v3767
  %v5000 = vpack.c.b16 %v3772, %v3768
  %v5001 = vpack.c.b16 %v3773, %v3769
  %v5002 = vpack.c.b16 %v3774, %v3770
  %v5003 = vpack.c.b16 %v3779, %v3775
  %v5004 = vpack.c.b16 %v3780, %v3776
  %v5005 = vpack.c.b16 %v3781, %v3777
  %v5006 = vpack.c.b16 %v3782, %v3778
  %v5007 = vpack.c.b16 %v3787, %v3783
  %v5008 = vpack.c.b16 %v3788, %v3784
  %v5009 = vpack.c.b16 %v3789, %v3785
  %v5010 = vpack.c.b16 %v3790, %v3786
  %v5011 = vpack.c.b16 %v3795, %v3791
  %v5012 = vpack.c.b16 %v3796, %v3792
  %v5013 = vpack.c.b16 %v3797, %v3793
  %v5014 = vpack.c.b16 %v3798, %v3794
  %v5015 = vpack.c.b16 %v3803, %v3799
  %v5016 = vpack.c.b16 %v3804, %v3800
  %v5017 = vpack.c.b16 %v3805, %v3801
  %v5018 = vpack.c.b16 %v3806, %v3802
  %v5019 = vpack.c.b16 %v3811, %v3807
  %v5020 = vpack.c.b16 %v3812, %v3808
  %v5021 = vpack.c.b16 %v3813, %v3809
  %v5022 = vpack.c.b16 %v3814, %v3810
  %v5023 = vpack.c.b16 %v3819, %v3815
  %v5024 = vpack.c.b16 %v3820, %v3816
  %v5025 = vpack.c.b16 %v3821, %v3817
  %v5026 = vpack.c.b16 %v3822, %v3818
  %v5027 = vpack.c.b16 %v3827, %v3823
  %v5028 = vpack.c.b16 %v3828, %v3824
  %v5029 = vpack.c.b16 %v3829, %v3825
  %v5030 = vpack.c.b16 %v3830, %v3826
  %v5031 = vpack.c.b16 %v3835, %v3831
  %v5032 = vpack.c.b16 %v3836, %v3832
  %v5033 = vpack.c.b16 %v3837, %v3833
  %v5034 = vpack.c.b16 %v3838, %v3834
  %v5035 = vpack.c.b16 %v3843, %v3839
  %v5036 = vpack.c.b16 %v3844, %v3840
  %v5037 = vpack.c.b16 %v3845, %v3841
  %v5038 = vpack.c.b16 %v3846, %v3842
  %v5039 = vpack.c.b16 %v3851, %v3847
  %v5040 = vpack.c.b16 %v3852, %v3848
  %v5041 = vpack.c.b16 %v3853, %v3849
  %v5042 = vpack.c.b16 %v3854, %v3850
  %v5043 = vpack.c.b16 %v3859, %v3855
  %v5044 = vpack.c.b16 %v3860, %v3856
  %v5045 = vpack.c.b16 %v3861, %v3857
  %v5046 = vpack.c.b16 %v3862, %v3858
  %v5047 = vpack.c.b16 %v3867, %v3863
  %v5048 = vpack.c.b16 %v3868, %v3864
  %v5049 = vpack.c.b16 %v3869, %v3865
  %v5050 = vpack.c.b16 %v3870, %v3866
  %v5051 = vpack.c.b16 %v3875, %v3871
  %v5052 = vpack.c.b16 %v3876, %v3872
  %v5053 = vpack.c.b16 %v3877, %v3873
  %v5054 = vpack.c.b16 %v3878, %v3874
  %v5055 = vpack.c.b16 %v3883, %v3879
  %v5056 = vpack.c.b16 %v3884, %v3880
  %v5057 = vpack.c.b16 %v3885, %v3881
  %v5058 = vpack.c.b16 %v3886, %v3882
  %v5059 = vpack.c.b16 %v3891, %v3887
  %v5060 = vpack.c.b16 %v3892, %v3888
  %v5061 = vpack.c.b16 %v3893, %v3889
  %v5062 = vpack.c.b16 %v3894, %v3890
  %v5063 = vpack.c.b16 %v3899, %v3895
  %v5064 = vpack.c.b16 %v3900, %v3896
  %v5065 = vpack.c.b16 %v3901, %v3897
  %v5066 = vpack.c.b16 %v3902, %v3898
  %v5067 = vpack.c.b16 %v3907, %v3903
  %v5068 = vpack.c.b16 %v3908, %v3904
  %v5069 = vpack.c.b16 %v3909, %v3905
  %v5070 = vpack.c.b16 %v3910, %v3906
  %v5071 = vpack.c.b16 %v3915, %v3911
  %v5072 = vpack.c.b16 %v3916, %v3912
  %v5073 = vpack.c.b16 %v3917, %v3913
  %v5074 = vpack.c.b16 %v3918, %v3914
  %v5075 = vpack.c.b16 %v3923, %v3919
  %v5076 = vpack.c.b16 %v3924, %v3920
  %v5077 = vpack.c.b16 %v3925, %v3921
  %v5078 = vpack.c.b16 %v3926, %v3922
  %v5079 = vpack.c.b16 %v3931, %v3927
  %v5080 = vpack.c.b16 %v3932, %v3928
  %v5081 = vpack.c.b16 %v3933, %v3929
  %v5082 = vpack.c.b16 %v3934, %v3930
  %v5083 = vpack.c.b16 %v3939, %v3935
  %v5084 = vpack.c.b16 %v3940, %v3936
  %v5085 = vpack.c.b16 %v3941, %v3937
  %v5086 = vpack.c.b16 %v3942, %v3938
  %v5087 = vpack.c.b16 %v3947, %v3943
  %v5088 = vpack.c.b16 %v3948, %v3944
  %v5089 = vpack.c.b16 %v3949, %v3945
  %v5090 = vpack.c.b16 %v3950, %v3946
  %v5091 = vpack.c.b16 %v3955, %v3951
  %v5092 = vpack.c.b16 %v3956, %v3952
  %v5093 = vpack.c.b16 %v3957, %v3953
  %v5094 = vpack.c.b16 %v3958, %v3954
  %v5095 = vpack.c.b16 %v3963, %v3959
  %v5096 = vpack.c.b16 %v3964, %v3960
  %v5097 = vpack.c.b16 %v3965, %v3961
  %v5098 = vpack.c.b16 %v3966, %v3962
  %v5099 = vpack.c.b16 %v3971, %v3967
  %v5100 = vpack.c.b16 %v3972, %v3968
  %v5101 = vpack.c.b16 %v3973, %v3969
  %v5102 = vpack.c.b16 %v3974, %v3970
  %v5103 = vpack.c.b16 %v3979, %v3975
  %v5104 = vpack.c.b16 %v3980, %v3976
  %v5105 = vpack.c.b16 %v3981, %v3977
  %v5106 = vpack.c.b16 %v3982, %v3978
  %v5107 = vpack.c.b16 %v3987, %v3983
  %v5108 = vpack.c.b16 %v3988, %v3984
  %v5109 = vpack.c.b16 %v3989, %v3985
  %v5110 = vpack.c.b16 %v3990, %v3986
  %v5111 = vpack.c.b16 %v3995, %v3991
  %v5112 = vpack.c.b16 %v3996, %v3992
  %v5113 = vpack.c.b16 %v3997, %v3993
  %v5114 = vpack.c.b16 %v3998, %v3994
  %v5115 = vpack.c.b16 %v4003, %v3999
  %v5116 = vpack.c.b16 %v4004, %v4000
  %v5117 = vpack.c.b16 %v4005, %v4001
  %v5118 = vpack.c.b16 %v4006, %v4002
  %v5119 = vpack.c.b16 %v4011, %v4007
  %v5120 = vpack.c.b16 %v4012, %v4008
  %v5121 = vpack.c.b16 %v4013, %v4009
  %v5122 = vpack.c.b16 %v4014, %v4010
  %v5123 = vpack.c.b16 %v4019, %v4015
  %v5124 = vpack.c.b16 %v4020, %v4016
  %v5125 = vpack.c.b16 %v4021, %v4017
  %v5126 = vpack.c.b16 %v4022, %v4018
  %v5127 = vpack.c.b16 %v4027, %v4023
  %v5128 = vpack.c.b16 %v4028, %v4024
  %v5129 = vpack.c.b16 %v4029, %v4025
  %v5130 = vpack.c.b16 %v4030, %v4026
  %v5131 = vpack.c.b16 %v4035, %v4031
  %v5132 = vpack.c.b16 %v4036, %v4032
  %v5133 = vpack.c.b16 %v4037, %v4033
  %v5134 = vpack.c.b16 %v4038, %v4034
  %v5135 = vpack.c.b16 %v4043, %v4039
  %v5136 = vpack.c.b16 %v4044, %v4040
  %v5137 = vpack.c.b16 %v4045, %v4041
  %v5138 = vpack.c.b16 %v4046, %v4042
  %v5139 = vpack.c.b16 %v4051, %v4047
  %v5140 = vpack.c.b16 %v4052, %v4048
  %v5141 = vpack.c.b16 %v4053, %v4049
  %v5142 = vpack.c.b16 %v4054, %v4050
  %v5143 = vpack.c.b16 %v4059, %v4055
  %v5144 = vpack.c.b16 %v4060, %v4056
  %v5145 = vpack.c.b16 %v4061, %v4057
  %v5146 = vpack.c.b16 %v4062, %v4058
  %v5147 = vpack.c.b16 %v4067, %v4063
  %v5148 = vpack.c.b16 %v4068, %v4064
  %v5149 = vpack.c.b16 %v4069, %v4065
  %v5150 = vpack.c.b16 %v4070, %v4066
  %v5151 = vpack.c.b16 %v4075, %v4071
  %v5152 = vpack.c.b16 %v4076, %v4072
  %v5153 = vpack.c.b16 %v4077, %v4073
  %v5154 = vpack.c.b16 %v4078, %v4074
  %v5155 = vpack.c.b16 %v4083, %v4079
  %v5156 = vpack.c.b16 %v4084, %v4080
  %v5157 = vpack.c.b16 %v4085, %v4081
  %v5158 = vpack.c.b16 %v4086, %v4082
  %v5159 = vpack.c.b16 %v4091, %v4087
  %v5160 = vpack.c.b16 %v4092, %v4088
  %v5161 = vpack.c.b16 %v4093, %v4089
  %v5162 = vpack.c.b16 %v4094, %v4090
  %v5163 = vpack.c.b16 %v4099, %v4095
  %v5164 = vpack.c.b16 %v4100, %v4096
  %v5165 = vpack.c.b16 %v4101, %v4097
  %v5166 = vpack.c.b16 %v4102, %v4098
  %v5167 = vpack.c.b16 %v4107, %v4103
  %v5168 = vpack.c.b16 %v4108, %v4104
  %v5169 = vpack.c.b16 %v4109, %v4105
  %v5170 = vpack.c.b16 %v4110, %v4106
  %v5171 = vpack.c.b16 %v4115, %v4111
  %v5172 = vpack.c.b16 %v4116, %v4112
  %v5173 = vpack.c.b16 %v4117, %v4113
  %v5174 = vpack.c.b16 %v4118, %v4114
  %v5175 = vpack.c.b16 %v4123, %v4119
  %v5176 = vpack.c.b16 %v4124, %v4120
  %v5177 = vpack.c.b16 %v4125, %v4121
  %v5178 = vpack.c.b16 %v4126, %v4122
  %v5179 = vpack.c.b16 %v4131, %v4127
  %v5180 = vpack.c.b16 %v4132, %v4128
  %v5181 = vpack.c.b16 %v4133, %v4129
  %v5182 = vpack.c.b16 %v4134, %v4130
  %v5183 = vpack.c.b16 %v4139, %v4135
  %v5184 = vpack.c.b16 %v4140, %v4136
  %v5185 = vpack.c.b16 %v4141, %v4137
  %v5186 = vpack.c.b16 %v4142, %v4138
  %v5187 = vpack.c.b16 %v4147, %v4143
  %v5188 = vpack.c.b16 %v4148, %v4144
  %v5189 = vpack.c.b16 %v4149, %v4145
  %v5190 = vpack.c.b16 %v4150, %v4146
  %v5191 = vpack.c.b16 %v4155, %v4151
  %v5192 = vpack.c.b16 %v4156, %v4152
  %v5193 = vpack.c.b16 %v4157, %v4153
  %v5194 = vpack.c.b16 %v4158, %v4154
  %v5195 = vpack.c.b16 %v4163, %v4159
  %v5196 = vpack.c.b16 %v4164, %v4160
  %v5197 = vpack.c.b16 %v4165, %v4161
  %v5198 = vpack.c.b16 %v4166, %v4162
  %v5199 = vpack.c.b16 %v4171, %v4167
  %v5200 = vpack.c.b16 %v4172, %v4168
  %v5201 = vpack.c.b16 %v4173, %v4169
  %v5202 = vpack.c.b16 %v4174, %v4170
  %v5203 = vpack.c.b16 %v4179, %v4175
  %v5204 = vpack.c.b16 %v4180, %v4176
  %v5205 = vpack.c.b16 %v4181, %v4177
  %v5206 = vpack.c.b16 %v4182, %v4178
  %6231 = vmatpush.bf16.msra.mxu0 %v4211
  %6232 = vmatpush.bf16.msra.mxu0 %v4207
  %6233 = vmatpush.bf16.msra.mxu0 %v4203
  %6234 = vmatpush.bf16.msra.mxu0 %v4199
  %6235 = vmatpush.bf16.msra.mxu0 %v4195
  %6236 = vmatpush.bf16.msra.mxu0 %v4191
  %6237 = vmatpush.bf16.msra.mxu0 %v4187
  %6238 = vmatpush.bf16.msra.mxu0 %v4183
  %6239 = vmatmul.bf16.gmra.mxu0 %v1041
  %v6240 = vpop.f32.mrf.mxu0
  %v6241 = vadd.f32 0.0, %v6240
  %v6242 = vpop.f32.mrf.mxu0
  %6243 = vdwg.mxu0
  %6244 = vmatpush.bf16.msra.mxu0 %v4243
  %6245 = vmatpush.bf16.msra.mxu0 %v4239
  %6246 = vmatpush.bf16.msra.mxu0 %v4235
  %6247 = vmatpush.bf16.msra.mxu0 %v4231
  %6248 = vmatpush.bf16.msra.mxu0 %v4227
  %6249 = vmatpush.bf16.msra.mxu0 %v4223
  %6250 = vmatpush.bf16.msra.mxu0 %v4219
  %6251 = vmatpush.bf16.msra.mxu0 %v4215
  %6252 = vmatmul.bf16.gmra.mxu0 %v1042
  %v6253 = vpop.f32.mrf.mxu0
  %v6254 = vadd.f32 %v6241, %v6253
  %v6255 = vpop.f32.mrf.mxu0
  %6256 = vdwg.mxu0
  %6257 = vmatpush.bf16.msra.mxu0 %v4275
  %6258 = vmatpush.bf16.msra.mxu0 %v4271
  %6259 = vmatpush.bf16.msra.mxu0 %v4267
  %6260 = vmatpush.bf16.msra.mxu0 %v4263
  %6261 = vmatpush.bf16.msra.mxu0 %v4259
  %6262 = vmatpush.bf16.msra.mxu0 %v4255
  %6263 = vmatpush.bf16.msra.mxu0 %v4251
  %6264 = vmatpush.bf16.msra.mxu0 %v4247
  %6265 = vmatmul.bf16.gmra.mxu0 %v1043
  %v6266 = vpop.f32.mrf.mxu0
  %v6267 = vadd.f32 %v6254, %v6266
  %v6268 = vpop.f32.mrf.mxu0
  %6269 = vdwg.mxu0
  %6270 = vmatpush.bf16.msra.mxu0 %v4307
  %6271 = vmatpush.bf16.msra.mxu0 %v4303
  %6272 = vmatpush.bf16.msra.mxu0 %v4299
  %6273 = vmatpush.bf16.msra.mxu0 %v4295
  %6274 = vmatpush.bf16.msra.mxu0 %v4291
  %6275 = vmatpush.bf16.msra.mxu0 %v4287
  %6276 = vmatpush.bf16.msra.mxu0 %v4283
  %6277 = vmatpush.bf16.msra.mxu0 %v4279
  %6278 = vmatmul.bf16.gmra.mxu0 %v1044
  %v6279 = vpop.f32.mrf.mxu0
  %v6280 = vadd.f32 %v6267, %v6279
  %v6281 = vpop.f32.mrf.mxu0
  %6282 = vdwg.mxu0
  %6283 = vmatpush.bf16.msra.mxu0 %v4339
  %6284 = vmatpush.bf16.msra.mxu0 %v4335
  %6285 = vmatpush.bf16.msra.mxu0 %v4331
  %6286 = vmatpush.bf16.msra.mxu0 %v4327
  %6287 = vmatpush.bf16.msra.mxu0 %v4323
  %6288 = vmatpush.bf16.msra.mxu0 %v4319
  %6289 = vmatpush.bf16.msra.mxu0 %v4315
  %6290 = vmatpush.bf16.msra.mxu0 %v4311
  %6291 = vmatmul.bf16.gmra.mxu0 %v1045
  %v6292 = vpop.f32.mrf.mxu0
  %v6293 = vadd.f32 %v6280, %v6292
  %v6294 = vpop.f32.mrf.mxu0
  %6295 = vdwg.mxu0
  %6296 = vmatpush.bf16.msra.mxu0 %v4371
  %6297 = vmatpush.bf16.msra.mxu0 %v4367
  %6298 = vmatpush.bf16.msra.mxu0 %v4363
  %6299 = vmatpush.bf16.msra.mxu0 %v4359
  %6300 = vmatpush.bf16.msra.mxu0 %v4355
  %6301 = vmatpush.bf16.msra.mxu0 %v4351
  %6302 = vmatpush.bf16.msra.mxu0 %v4347
  %6303 = vmatpush.bf16.msra.mxu0 %v4343
  %6304 = vmatmul.bf16.gmra.mxu0 %v1046
  %v6305 = vpop.f32.mrf.mxu0
  %v6306 = vadd.f32 %v6293, %v6305
  %v6307 = vpop.f32.mrf.mxu0
  %6308 = vdwg.mxu0
  %6309 = vmatpush.bf16.msra.mxu0 %v4403
  %6310 = vmatpush.bf16.msra.mxu0 %v4399
  %6311 = vmatpush.bf16.msra.mxu0 %v4395
  %6312 = vmatpush.bf16.msra.mxu0 %v4391
  %6313 = vmatpush.bf16.msra.mxu0 %v4387
  %6314 = vmatpush.bf16.msra.mxu0 %v4383
  %6315 = vmatpush.bf16.msra.mxu0 %v4379
  %6316 = vmatpush.bf16.msra.mxu0 %v4375
  %6317 = vmatmul.bf16.gmra.mxu0 %v1047
  %v6318 = vpop.f32.mrf.mxu0
  %v6319 = vadd.f32 %v6306, %v6318
  %v6320 = vpop.f32.mrf.mxu0
  %6321 = vdwg.mxu0
  %6322 = vmatpush.bf16.msra.mxu0 %v4435
  %6323 = vmatpush.bf16.msra.mxu0 %v4431
  %6324 = vmatpush.bf16.msra.mxu0 %v4427
  %6325 = vmatpush.bf16.msra.mxu0 %v4423
  %6326 = vmatpush.bf16.msra.mxu0 %v4419
  %6327 = vmatpush.bf16.msra.mxu0 %v4415
  %6328 = vmatpush.bf16.msra.mxu0 %v4411
  %6329 = vmatpush.bf16.msra.mxu0 %v4407
  %6330 = vmatmul.bf16.gmra.mxu0 %v1048
  %v6331 = vpop.f32.mrf.mxu0
  %v6332 = vadd.f32 %v6319, %v6331
  %v6333 = vpop.f32.mrf.mxu0
  %6334 = vdwg.mxu0
  %6335 = vmatpush.bf16.msra.mxu0 %v4467
  %6336 = vmatpush.bf16.msra.mxu0 %v4463
  %6337 = vmatpush.bf16.msra.mxu0 %v4459
  %6338 = vmatpush.bf16.msra.mxu0 %v4455
  %6339 = vmatpush.bf16.msra.mxu0 %v4451
  %6340 = vmatpush.bf16.msra.mxu0 %v4447
  %6341 = vmatpush.bf16.msra.mxu0 %v4443
  %6342 = vmatpush.bf16.msra.mxu0 %v4439
  %6343 = vmatmul.bf16.gmra.mxu0 %v1051
  %v6344 = vpop.f32.mrf.mxu0
  %v6345 = vadd.f32 %v6332, %v6344
  %v6346 = vpop.f32.mrf.mxu0
  %6347 = vdwg.mxu0
  %6348 = vmatpush.bf16.msra.mxu0 %v4499
  %6349 = vmatpush.bf16.msra.mxu0 %v4495
  %6350 = vmatpush.bf16.msra.mxu0 %v4491
  %6351 = vmatpush.bf16.msra.mxu0 %v4487
  %6352 = vmatpush.bf16.msra.mxu0 %v4483
  %6353 = vmatpush.bf16.msra.mxu0 %v4479
  %6354 = vmatpush.bf16.msra.mxu0 %v4475
  %6355 = vmatpush.bf16.msra.mxu0 %v4471
  %6356 = vmatmul.bf16.gmra.mxu0 %v1052
  %v6357 = vpop.f32.mrf.mxu0
  %v6358 = vadd.f32 %v6345, %v6357
  %v6359 = vpop.f32.mrf.mxu0
  %6360 = vdwg.mxu0
  %6361 = vmatpush.bf16.msra.mxu0 %v4531
  %6362 = vmatpush.bf16.msra.mxu0 %v4527
  %6363 = vmatpush.bf16.msra.mxu0 %v4523
  %6364 = vmatpush.bf16.msra.mxu0 %v4519
  %6365 = vmatpush.bf16.msra.mxu0 %v4515
  %6366 = vmatpush.bf16.msra.mxu0 %v4511
  %6367 = vmatpush.bf16.msra.mxu0 %v4507
  %6368 = vmatpush.bf16.msra.mxu0 %v4503
  %6369 = vmatmul.bf16.gmra.mxu0 %v1053
  %v6370 = vpop.f32.mrf.mxu0
  %v6371 = vadd.f32 %v6358, %v6370
  %v6372 = vpop.f32.mrf.mxu0
  %6373 = vdwg.mxu0
  %6374 = vmatpush.bf16.msra.mxu0 %v4563
  %6375 = vmatpush.bf16.msra.mxu0 %v4559
  %6376 = vmatpush.bf16.msra.mxu0 %v4555
  %6377 = vmatpush.bf16.msra.mxu0 %v4551
  %6378 = vmatpush.bf16.msra.mxu0 %v4547
  %6379 = vmatpush.bf16.msra.mxu0 %v4543
  %6380 = vmatpush.bf16.msra.mxu0 %v4539
  %6381 = vmatpush.bf16.msra.mxu0 %v4535
  %6382 = vmatmul.bf16.gmra.mxu0 %v1054
  %v6383 = vpop.f32.mrf.mxu0
  %v6384 = vadd.f32 %v6371, %v6383
  %v6385 = vpop.f32.mrf.mxu0
  %6386 = vdwg.mxu0
  %6387 = vmatpush.bf16.msra.mxu0 %v4595
  %6388 = vmatpush.bf16.msra.mxu0 %v4591
  %6389 = vmatpush.bf16.msra.mxu0 %v4587
  %6390 = vmatpush.bf16.msra.mxu0 %v4583
  %6391 = vmatpush.bf16.msra.mxu0 %v4579
  %6392 = vmatpush.bf16.msra.mxu0 %v4575
  %6393 = vmatpush.bf16.msra.mxu0 %v4571
  %6394 = vmatpush.bf16.msra.mxu0 %v4567
  %6395 = vmatmul.bf16.gmra.mxu0 %v1055
  %v6396 = vpop.f32.mrf.mxu0
  %v6397 = vadd.f32 %v6384, %v6396
  %v6398 = vpop.f32.mrf.mxu0
  %6399 = vdwg.mxu0
  %6400 = vmatpush.bf16.msra.mxu0 %v4627
  %6401 = vmatpush.bf16.msra.mxu0 %v4623
  %6402 = vmatpush.bf16.msra.mxu0 %v4619
  %6403 = vmatpush.bf16.msra.mxu0 %v4615
  %6404 = vmatpush.bf16.msra.mxu0 %v4611
  %6405 = vmatpush.bf16.msra.mxu0 %v4607
  %6406 = vmatpush.bf16.msra.mxu0 %v4603
  %6407 = vmatpush.bf16.msra.mxu0 %v4599
  %6408 = vmatmul.bf16.gmra.mxu0 %v1056
  %v6409 = vpop.f32.mrf.mxu0
  %v6410 = vadd.f32 %v6397, %v6409
  %v6411 = vpop.f32.mrf.mxu0
  %6412 = vdwg.mxu0
  %6413 = vmatpush.bf16.msra.mxu0 %v4659
  %6414 = vmatpush.bf16.msra.mxu0 %v4655
  %6415 = vmatpush.bf16.msra.mxu0 %v4651
  %6416 = vmatpush.bf16.msra.mxu0 %v4647
  %6417 = vmatpush.bf16.msra.mxu0 %v4643
  %6418 = vmatpush.bf16.msra.mxu0 %v4639
  %6419 = vmatpush.bf16.msra.mxu0 %v4635
  %6420 = vmatpush.bf16.msra.mxu0 %v4631
  %6421 = vmatmul.bf16.gmra.mxu0 %v1057
  %v6422 = vpop.f32.mrf.mxu0
  %v6423 = vadd.f32 %v6410, %v6422
  %v6424 = vpop.f32.mrf.mxu0
  %6425 = vdwg.mxu0
  %6426 = vmatpush.bf16.msra.mxu0 %v4691
  %6427 = vmatpush.bf16.msra.mxu0 %v4687
  %6428 = vmatpush.bf16.msra.mxu0 %v4683
  %6429 = vmatpush.bf16.msra.mxu0 %v4679
  %6430 = vmatpush.bf16.msra.mxu0 %v4675
  %6431 = vmatpush.bf16.msra.mxu0 %v4671
  %6432 = vmatpush.bf16.msra.mxu0 %v4667
  %6433 = vmatpush.bf16.msra.mxu0 %v4663
  %6434 = vmatmul.bf16.gmra.mxu0 %v1058
  %v6435 = vpop.f32.mrf.mxu0
  %v6436 = vadd.f32 %v6423, %v6435
  %v6437 = vpop.f32.mrf.mxu0
  %6438 = vdwg.mxu0
  %6439 = vmatpush.bf16.msra.mxu0 %v4723
  %6440 = vmatpush.bf16.msra.mxu0 %v4719
  %6441 = vmatpush.bf16.msra.mxu0 %v4715
  %6442 = vmatpush.bf16.msra.mxu0 %v4711
  %6443 = vmatpush.bf16.msra.mxu0 %v4707
  %6444 = vmatpush.bf16.msra.mxu0 %v4703
  %6445 = vmatpush.bf16.msra.mxu0 %v4699
  %6446 = vmatpush.bf16.msra.mxu0 %v4695
  %6447 = vmatmul.bf16.gmra.mxu0 %v1061
  %v6448 = vpop.f32.mrf.mxu0
  %v6449 = vadd.f32 %v6436, %v6448
  %v6450 = vpop.f32.mrf.mxu0
  %6451 = vdwg.mxu0
  %6452 = vmatpush.bf16.msra.mxu0 %v4755
  %6453 = vmatpush.bf16.msra.mxu0 %v4751
  %6454 = vmatpush.bf16.msra.mxu0 %v4747
  %6455 = vmatpush.bf16.msra.mxu0 %v4743
  %6456 = vmatpush.bf16.msra.mxu0 %v4739
  %6457 = vmatpush.bf16.msra.mxu0 %v4735
  %6458 = vmatpush.bf16.msra.mxu0 %v4731
  %6459 = vmatpush.bf16.msra.mxu0 %v4727
  %6460 = vmatmul.bf16.gmra.mxu0 %v1062
  %v6461 = vpop.f32.mrf.mxu0
  %v6462 = vadd.f32 %v6449, %v6461
  %v6463 = vpop.f32.mrf.mxu0
  %6464 = vdwg.mxu0
  %6465 = vmatpush.bf16.msra.mxu0 %v4787
  %6466 = vmatpush.bf16.msra.mxu0 %v4783
  %6467 = vmatpush.bf16.msra.mxu0 %v4779
  %6468 = vmatpush.bf16.msra.mxu0 %v4775
  %6469 = vmatpush.bf16.msra.mxu0 %v4771
  %6470 = vmatpush.bf16.msra.mxu0 %v4767
  %6471 = vmatpush.bf16.msra.mxu0 %v4763
  %6472 = vmatpush.bf16.msra.mxu0 %v4759
  %6473 = vmatmul.bf16.gmra.mxu0 %v1063
  %v6474 = vpop.f32.mrf.mxu0
  %v6475 = vadd.f32 %v6462, %v6474
  %v6476 = vpop.f32.mrf.mxu0
  %6477 = vdwg.mxu0
  %6478 = vmatpush.bf16.msra.mxu0 %v4819
  %6479 = vmatpush.bf16.msra.mxu0 %v4815
  %6480 = vmatpush.bf16.msra.mxu0 %v4811
  %6481 = vmatpush.bf16.msra.mxu0 %v4807
  %6482 = vmatpush.bf16.msra.mxu0 %v4803
  %6483 = vmatpush.bf16.msra.mxu0 %v4799
  %6484 = vmatpush.bf16.msra.mxu0 %v4795
  %6485 = vmatpush.bf16.msra.mxu0 %v4791
  %6486 = vmatmul.bf16.gmra.mxu0 %v1064
  %v6487 = vpop.f32.mrf.mxu0
  %v6488 = vadd.f32 %v6475, %v6487
  %v6489 = vpop.f32.mrf.mxu0
  %6490 = vdwg.mxu0
  %6491 = vmatpush.bf16.msra.mxu0 %v4851
  %6492 = vmatpush.bf16.msra.mxu0 %v4847
  %6493 = vmatpush.bf16.msra.mxu0 %v4843
  %6494 = vmatpush.bf16.msra.mxu0 %v4839
  %6495 = vmatpush.bf16.msra.mxu0 %v4835
  %6496 = vmatpush.bf16.msra.mxu0 %v4831
  %6497 = vmatpush.bf16.msra.mxu0 %v4827
  %6498 = vmatpush.bf16.msra.mxu0 %v4823
  %6499 = vmatmul.bf16.gmra.mxu0 %v1065
  %v6500 = vpop.f32.mrf.mxu0
  %v6501 = vadd.f32 %v6488, %v6500
  %v6502 = vpop.f32.mrf.mxu0
  %6503 = vdwg.mxu0
  %6504 = vmatpush.bf16.msra.mxu0 %v4883
  %6505 = vmatpush.bf16.msra.mxu0 %v4879
  %6506 = vmatpush.bf16.msra.mxu0 %v4875
  %6507 = vmatpush.bf16.msra.mxu0 %v4871
  %6508 = vmatpush.bf16.msra.mxu0 %v4867
  %6509 = vmatpush.bf16.msra.mxu0 %v4863
  %6510 = vmatpush.bf16.msra.mxu0 %v4859
  %6511 = vmatpush.bf16.msra.mxu0 %v4855
  %6512 = vmatmul.bf16.gmra.mxu0 %v1066
  %v6513 = vpop.f32.mrf.mxu0
  %v6514 = vadd.f32 %v6501, %v6513
  %v6515 = vpop.f32.mrf.mxu0
  %6516 = vdwg.mxu0
  %6517 = vmatpush.bf16.msra.mxu0 %v4915
  %6518 = vmatpush.bf16.msra.mxu0 %v4911
  %6519 = vmatpush.bf16.msra.mxu0 %v4907
  %6520 = vmatpush.bf16.msra.mxu0 %v4903
  %6521 = vmatpush.bf16.msra.mxu0 %v4899
  %6522 = vmatpush.bf16.msra.mxu0 %v4895
  %6523 = vmatpush.bf16.msra.mxu0 %v4891
  %6524 = vmatpush.bf16.msra.mxu0 %v4887
  %6525 = vmatmul.bf16.gmra.mxu0 %v1067
  %v6526 = vpop.f32.mrf.mxu0
  %v6527 = vadd.f32 %v6514, %v6526
  %v6528 = vpop.f32.mrf.mxu0
  %6529 = vdwg.mxu0
  %6530 = vmatpush.bf16.msra.mxu0 %v4947
  %6531 = vmatpush.bf16.msra.mxu0 %v4943
  %6532 = vmatpush.bf16.msra.mxu0 %v4939
  %6533 = vmatpush.bf16.msra.mxu0 %v4935
  %6534 = vmatpush.bf16.msra.mxu0 %v4931
  %6535 = vmatpush.bf16.msra.mxu0 %v4927
  %6536 = vmatpush.bf16.msra.mxu0 %v4923
  %6537 = vmatpush.bf16.msra.mxu0 %v4919
  %6538 = vmatmul.bf16.gmra.mxu0 %v1068
  %v6539 = vpop.f32.mrf.mxu0
  %v6540 = vadd.f32 %v6527, %v6539
  %v6541 = vpop.f32.mrf.mxu0
  %6542 = vdwg.mxu0
  %6543 = vmatpush.bf16.msra.mxu0 %v4979
  %6544 = vmatpush.bf16.msra.mxu0 %v4975
  %6545 = vmatpush.bf16.msra.mxu0 %v4971
  %6546 = vmatpush.bf16.msra.mxu0 %v4967
  %6547 = vmatpush.bf16.msra.mxu0 %v4963
  %6548 = vmatpush.bf16.msra.mxu0 %v4959
  %6549 = vmatpush.bf16.msra.mxu0 %v4955
  %6550 = vmatpush.bf16.msra.mxu0 %v4951
  %6551 = vmatmul.bf16.gmra.mxu0 %v1071
  %v6552 = vpop.f32.mrf.mxu0
  %v6553 = vadd.f32 %v6540, %v6552
  %v6554 = vpop.f32.mrf.mxu0
  %6555 = vdwg.mxu0
  %6556 = vmatpush.bf16.msra.mxu0 %v5011
  %6557 = vmatpush.bf16.msra.mxu0 %v5007
  %6558 = vmatpush.bf16.msra.mxu0 %v5003
  %6559 = vmatpush.bf16.msra.mxu0 %v4999
  %6560 = vmatpush.bf16.msra.mxu0 %v4995
  %6561 = vmatpush.bf16.msra.mxu0 %v4991
  %6562 = vmatpush.bf16.msra.mxu0 %v4987
  %6563 = vmatpush.bf16.msra.mxu0 %v4983
  %6564 = vmatmul.bf16.gmra.mxu0 %v1072
  %v6565 = vpop.f32.mrf.mxu0
  %v6566 = vadd.f32 %v6553, %v6565
  %v6567 = vpop.f32.mrf.mxu0
  %6568 = vdwg.mxu0
  %6569 = vmatpush.bf16.msra.mxu0 %v5043
  %6570 = vmatpush.bf16.msra.mxu0 %v5039
  %6571 = vmatpush.bf16.msra.mxu0 %v5035
  %6572 = vmatpush.bf16.msra.mxu0 %v5031
  %6573 = vmatpush.bf16.msra.mxu0 %v5027
  %6574 = vmatpush.bf16.msra.mxu0 %v5023
  %6575 = vmatpush.bf16.msra.mxu0 %v5019
  %6576 = vmatpush.bf16.msra.mxu0 %v5015
  %6577 = vmatmul.bf16.gmra.mxu0 %v1073
  %v6578 = vpop.f32.mrf.mxu0
  %v6579 = vadd.f32 %v6566, %v6578
  %v6580 = vpop.f32.mrf.mxu0
  %6581 = vdwg.mxu0
  %6582 = vmatpush.bf16.msra.mxu0 %v5075
  %6583 = vmatpush.bf16.msra.mxu0 %v5071
  %6584 = vmatpush.bf16.msra.mxu0 %v5067
  %6585 = vmatpush.bf16.msra.mxu0 %v5063
  %6586 = vmatpush.bf16.msra.mxu0 %v5059
  %6587 = vmatpush.bf16.msra.mxu0 %v5055
  %6588 = vmatpush.bf16.msra.mxu0 %v5051
  %6589 = vmatpush.bf16.msra.mxu0 %v5047
  %6590 = vmatmul.bf16.gmra.mxu0 %v1074
  %v6591 = vpop.f32.mrf.mxu0
  %v6592 = vadd.f32 %v6579, %v6591
  %v6593 = vpop.f32.mrf.mxu0
  %6594 = vdwg.mxu0
  %6595 = vmatpush.bf16.msra.mxu0 %v5107
  %6596 = vmatpush.bf16.msra.mxu0 %v5103
  %6597 = vmatpush.bf16.msra.mxu0 %v5099
  %6598 = vmatpush.bf16.msra.mxu0 %v5095
  %6599 = vmatpush.bf16.msra.mxu0 %v5091
  %6600 = vmatpush.bf16.msra.mxu0 %v5087
  %6601 = vmatpush.bf16.msra.mxu0 %v5083
  %6602 = vmatpush.bf16.msra.mxu0 %v5079
  %6603 = vmatmul.bf16.gmra.mxu0 %v1075
  %v6604 = vpop.f32.mrf.mxu0
  %v6605 = vadd.f32 %v6592, %v6604
  %v6606 = vpop.f32.mrf.mxu0
  %6607 = vdwg.mxu0
  %6608 = vmatpush.bf16.msra.mxu0 %v5139
  %6609 = vmatpush.bf16.msra.mxu0 %v5135
  %6610 = vmatpush.bf16.msra.mxu0 %v5131
  %6611 = vmatpush.bf16.msra.mxu0 %v5127
  %6612 = vmatpush.bf16.msra.mxu0 %v5123
  %6613 = vmatpush.bf16.msra.mxu0 %v5119
  %6614 = vmatpush.bf16.msra.mxu0 %v5115
  %6615 = vmatpush.bf16.msra.mxu0 %v5111
  %6616 = vmatmul.bf16.gmra.mxu0 %v1076
  %v6617 = vpop.f32.mrf.mxu0
  %v6618 = vadd.f32 %v6605, %v6617
  %v6619 = vpop.f32.mrf.mxu0
  %6620 = vdwg.mxu0
  %6621 = vmatpush.bf16.msra.mxu0 %v5171
  %6622 = vmatpush.bf16.msra.mxu0 %v5167
  %6623 = vmatpush.bf16.msra.mxu0 %v5163
  %6624 = vmatpush.bf16.msra.mxu0 %v5159
  %6625 = vmatpush.bf16.msra.mxu0 %v5155
  %6626 = vmatpush.bf16.msra.mxu0 %v5151
  %6627 = vmatpush.bf16.msra.mxu0 %v5147
  %6628 = vmatpush.bf16.msra.mxu0 %v5143
  %6629 = vmatmul.bf16.gmra.mxu0 %v1077
  %v6630 = vpop.f32.mrf.mxu0
  %v6631 = vadd.f32 %v6618, %v6630
  %v6632 = vpop.f32.mrf.mxu0
  %6633 = vdwg.mxu0
  %6634 = vmatpush.bf16.msra.mxu0 %v5203
  %6635 = vmatpush.bf16.msra.mxu0 %v5199
  %6636 = vmatpush.bf16.msra.mxu0 %v5195
  %6637 = vmatpush.bf16.msra.mxu0 %v5191
  %6638 = vmatpush.bf16.msra.mxu0 %v5187
  %6639 = vmatpush.bf16.msra.mxu0 %v5183
  %6640 = vmatpush.bf16.msra.mxu0 %v5179
  %6641 = vmatpush.bf16.msra.mxu0 %v5175
  %6642 = vmatmul.bf16.gmra.mxu0 %v1078
  %v6643 = vpop.f32.mrf.mxu0
  %v6644 = vadd.f32 %v6631, %v6643
  %v6645 = vpop.f32.mrf.mxu0
  %6646 = vdwg.mxu0
  %6647 = vmatpush.bf16.msra.mxu0 %v4212
  %6648 = vmatpush.bf16.msra.mxu0 %v4208
  %6649 = vmatpush.bf16.msra.mxu0 %v4204
  %6650 = vmatpush.bf16.msra.mxu0 %v4200
  %6651 = vmatpush.bf16.msra.mxu0 %v4196
  %6652 = vmatpush.bf16.msra.mxu0 %v4192
  %6653 = vmatpush.bf16.msra.mxu0 %v4188
  %6654 = vmatpush.bf16.msra.mxu0 %v4184
  %6655 = vmatmul.bf16.gmra.mxu0 %v1041
  %v6656 = vpop.f32.mrf.mxu0
  %v6657 = vadd.f32 0.0, %v6656
  %v6658 = vpop.f32.mrf.mxu0
  %6659 = vdwg.mxu0
  %6660 = vmatpush.bf16.msra.mxu0 %v4244
  %6661 = vmatpush.bf16.msra.mxu0 %v4240
  %6662 = vmatpush.bf16.msra.mxu0 %v4236
  %6663 = vmatpush.bf16.msra.mxu0 %v4232
  %6664 = vmatpush.bf16.msra.mxu0 %v4228
  %6665 = vmatpush.bf16.msra.mxu0 %v4224
  %6666 = vmatpush.bf16.msra.mxu0 %v4220
  %6667 = vmatpush.bf16.msra.mxu0 %v4216
  %6668 = vmatmul.bf16.gmra.mxu0 %v1042
  %v6669 = vpop.f32.mrf.mxu0
  %v6670 = vadd.f32 %v6657, %v6669
  %v6671 = vpop.f32.mrf.mxu0
  %6672 = vdwg.mxu0
  %6673 = vmatpush.bf16.msra.mxu0 %v4276
  %6674 = vmatpush.bf16.msra.mxu0 %v4272
  %6675 = vmatpush.bf16.msra.mxu0 %v4268
  %6676 = vmatpush.bf16.msra.mxu0 %v4264
  %6677 = vmatpush.bf16.msra.mxu0 %v4260
  %6678 = vmatpush.bf16.msra.mxu0 %v4256
  %6679 = vmatpush.bf16.msra.mxu0 %v4252
  %6680 = vmatpush.bf16.msra.mxu0 %v4248
  %6681 = vmatmul.bf16.gmra.mxu0 %v1043
  %v6682 = vpop.f32.mrf.mxu0
  %v6683 = vadd.f32 %v6670, %v6682
  %v6684 = vpop.f32.mrf.mxu0
  %6685 = vdwg.mxu0
  %6686 = vmatpush.bf16.msra.mxu0 %v4308
  %6687 = vmatpush.bf16.msra.mxu0 %v4304
  %6688 = vmatpush.bf16.msra.mxu0 %v4300
  %6689 = vmatpush.bf16.msra.mxu0 %v4296
  %6690 = vmatpush.bf16.msra.mxu0 %v4292
  %6691 = vmatpush.bf16.msra.mxu0 %v4288
  %6692 = vmatpush.bf16.msra.mxu0 %v4284
  %6693 = vmatpush.bf16.msra.mxu0 %v4280
  %6694 = vmatmul.bf16.gmra.mxu0 %v1044
  %v6695 = vpop.f32.mrf.mxu0
  %v6696 = vadd.f32 %v6683, %v6695
  %v6697 = vpop.f32.mrf.mxu0
  %6698 = vdwg.mxu0
  %6699 = vmatpush.bf16.msra.mxu0 %v4340
  %6700 = vmatpush.bf16.msra.mxu0 %v4336
  %6701 = vmatpush.bf16.msra.mxu0 %v4332
  %6702 = vmatpush.bf16.msra.mxu0 %v4328
  %6703 = vmatpush.bf16.msra.mxu0 %v4324
  %6704 = vmatpush.bf16.msra.mxu0 %v4320
  %6705 = vmatpush.bf16.msra.mxu0 %v4316
  %6706 = vmatpush.bf16.msra.mxu0 %v4312
  %6707 = vmatmul.bf16.gmra.mxu0 %v1045
  %v6708 = vpop.f32.mrf.mxu0
  %v6709 = vadd.f32 %v6696, %v6708
  %v6710 = vpop.f32.mrf.mxu0
  %6711 = vdwg.mxu0
  %6712 = vmatpush.bf16.msra.mxu0 %v4372
  %6713 = vmatpush.bf16.msra.mxu0 %v4368
  %6714 = vmatpush.bf16.msra.mxu0 %v4364
  %6715 = vmatpush.bf16.msra.mxu0 %v4360
  %6716 = vmatpush.bf16.msra.mxu0 %v4356
  %6717 = vmatpush.bf16.msra.mxu0 %v4352
  %6718 = vmatpush.bf16.msra.mxu0 %v4348
  %6719 = vmatpush.bf16.msra.mxu0 %v4344
  %6720 = vmatmul.bf16.gmra.mxu0 %v1046
  %v6721 = vpop.f32.mrf.mxu0
  %v6722 = vadd.f32 %v6709, %v6721
  %v6723 = vpop.f32.mrf.mxu0
  %6724 = vdwg.mxu0
  %6725 = vmatpush.bf16.msra.mxu0 %v4404
  %6726 = vmatpush.bf16.msra.mxu0 %v4400
  %6727 = vmatpush.bf16.msra.mxu0 %v4396
  %6728 = vmatpush.bf16.msra.mxu0 %v4392
  %6729 = vmatpush.bf16.msra.mxu0 %v4388
  %6730 = vmatpush.bf16.msra.mxu0 %v4384
  %6731 = vmatpush.bf16.msra.mxu0 %v4380
  %6732 = vmatpush.bf16.msra.mxu0 %v4376
  %6733 = vmatmul.bf16.gmra.mxu0 %v1047
  %v6734 = vpop.f32.mrf.mxu0
  %v6735 = vadd.f32 %v6722, %v6734
  %v6736 = vpop.f32.mrf.mxu0
  %6737 = vdwg.mxu0
  %6738 = vmatpush.bf16.msra.mxu0 %v4436
  %6739 = vmatpush.bf16.msra.mxu0 %v4432
  %6740 = vmatpush.bf16.msra.mxu0 %v4428
  %6741 = vmatpush.bf16.msra.mxu0 %v4424
  %6742 = vmatpush.bf16.msra.mxu0 %v4420
  %6743 = vmatpush.bf16.msra.mxu0 %v4416
  %6744 = vmatpush.bf16.msra.mxu0 %v4412
  %6745 = vmatpush.bf16.msra.mxu0 %v4408
  %6746 = vmatmul.bf16.gmra.mxu0 %v1048
  %v6747 = vpop.f32.mrf.mxu0
  %v6748 = vadd.f32 %v6735, %v6747
  %v6749 = vpop.f32.mrf.mxu0
  %6750 = vdwg.mxu0
  %6751 = vmatpush.bf16.msra.mxu0 %v4468
  %6752 = vmatpush.bf16.msra.mxu0 %v4464
  %6753 = vmatpush.bf16.msra.mxu0 %v4460
  %6754 = vmatpush.bf16.msra.mxu0 %v4456
  %6755 = vmatpush.bf16.msra.mxu0 %v4452
  %6756 = vmatpush.bf16.msra.mxu0 %v4448
  %6757 = vmatpush.bf16.msra.mxu0 %v4444
  %6758 = vmatpush.bf16.msra.mxu0 %v4440
  %6759 = vmatmul.bf16.gmra.mxu0 %v1051
  %v6760 = vpop.f32.mrf.mxu0
  %v6761 = vadd.f32 %v6748, %v6760
  %v6762 = vpop.f32.mrf.mxu0
  %6763 = vdwg.mxu0
  %6764 = vmatpush.bf16.msra.mxu0 %v4500
  %6765 = vmatpush.bf16.msra.mxu0 %v4496
  %6766 = vmatpush.bf16.msra.mxu0 %v4492
  %6767 = vmatpush.bf16.msra.mxu0 %v4488
  %6768 = vmatpush.bf16.msra.mxu0 %v4484
  %6769 = vmatpush.bf16.msra.mxu0 %v4480
  %6770 = vmatpush.bf16.msra.mxu0 %v4476
  %6771 = vmatpush.bf16.msra.mxu0 %v4472
  %6772 = vmatmul.bf16.gmra.mxu0 %v1052
  %v6773 = vpop.f32.mrf.mxu0
  %v6774 = vadd.f32 %v6761, %v6773
  %v6775 = vpop.f32.mrf.mxu0
  %6776 = vdwg.mxu0
  %6777 = vmatpush.bf16.msra.mxu0 %v4532
  %6778 = vmatpush.bf16.msra.mxu0 %v4528
  %6779 = vmatpush.bf16.msra.mxu0 %v4524
  %6780 = vmatpush.bf16.msra.mxu0 %v4520
  %6781 = vmatpush.bf16.msra.mxu0 %v4516
  %6782 = vmatpush.bf16.msra.mxu0 %v4512
  %6783 = vmatpush.bf16.msra.mxu0 %v4508
  %6784 = vmatpush.bf16.msra.mxu0 %v4504
  %6785 = vmatmul.bf16.gmra.mxu0 %v1053
  %v6786 = vpop.f32.mrf.mxu0
  %v6787 = vadd.f32 %v6774, %v6786
  %v6788 = vpop.f32.mrf.mxu0
  %6789 = vdwg.mxu0
  %6790 = vmatpush.bf16.msra.mxu0 %v4564
  %6791 = vmatpush.bf16.msra.mxu0 %v4560
  %6792 = vmatpush.bf16.msra.mxu0 %v4556
  %6793 = vmatpush.bf16.msra.mxu0 %v4552
  %6794 = vmatpush.bf16.msra.mxu0 %v4548
  %6795 = vmatpush.bf16.msra.mxu0 %v4544
  %6796 = vmatpush.bf16.msra.mxu0 %v4540
  %6797 = vmatpush.bf16.msra.mxu0 %v4536
  %6798 = vmatmul.bf16.gmra.mxu0 %v1054
  %v6799 = vpop.f32.mrf.mxu0
  %v6800 = vadd.f32 %v6787, %v6799
  %v6801 = vpop.f32.mrf.mxu0
  %6802 = vdwg.mxu0
  %6803 = vmatpush.bf16.msra.mxu0 %v4596
  %6804 = vmatpush.bf16.msra.mxu0 %v4592
  %6805 = vmatpush.bf16.msra.mxu0 %v4588
  %6806 = vmatpush.bf16.msra.mxu0 %v4584
  %6807 = vmatpush.bf16.msra.mxu0 %v4580
  %6808 = vmatpush.bf16.msra.mxu0 %v4576
  %6809 = vmatpush.bf16.msra.mxu0 %v4572
  %6810 = vmatpush.bf16.msra.mxu0 %v4568
  %6811 = vmatmul.bf16.gmra.mxu0 %v1055
  %v6812 = vpop.f32.mrf.mxu0
  %v6813 = vadd.f32 %v6800, %v6812
  %v6814 = vpop.f32.mrf.mxu0
  %6815 = vdwg.mxu0
  %6816 = vmatpush.bf16.msra.mxu0 %v4628
  %6817 = vmatpush.bf16.msra.mxu0 %v4624
  %6818 = vmatpush.bf16.msra.mxu0 %v4620
  %6819 = vmatpush.bf16.msra.mxu0 %v4616
  %6820 = vmatpush.bf16.msra.mxu0 %v4612
  %6821 = vmatpush.bf16.msra.mxu0 %v4608
  %6822 = vmatpush.bf16.msra.mxu0 %v4604
  %6823 = vmatpush.bf16.msra.mxu0 %v4600
  %6824 = vmatmul.bf16.gmra.mxu0 %v1056
  %v6825 = vpop.f32.mrf.mxu0
  %v6826 = vadd.f32 %v6813, %v6825
  %v6827 = vpop.f32.mrf.mxu0
  %6828 = vdwg.mxu0
  %6829 = vmatpush.bf16.msra.mxu0 %v4660
  %6830 = vmatpush.bf16.msra.mxu0 %v4656
  %6831 = vmatpush.bf16.msra.mxu0 %v4652
  %6832 = vmatpush.bf16.msra.mxu0 %v4648
  %6833 = vmatpush.bf16.msra.mxu0 %v4644
  %6834 = vmatpush.bf16.msra.mxu0 %v4640
  %6835 = vmatpush.bf16.msra.mxu0 %v4636
  %6836 = vmatpush.bf16.msra.mxu0 %v4632
  %6837 = vmatmul.bf16.gmra.mxu0 %v1057
  %v6838 = vpop.f32.mrf.mxu0
  %v6839 = vadd.f32 %v6826, %v6838
  %v6840 = vpop.f32.mrf.mxu0
  %6841 = vdwg.mxu0
  %6842 = vmatpush.bf16.msra.mxu0 %v4692
  %6843 = vmatpush.bf16.msra.mxu0 %v4688
  %6844 = vmatpush.bf16.msra.mxu0 %v4684
  %6845 = vmatpush.bf16.msra.mxu0 %v4680
  %6846 = vmatpush.bf16.msra.mxu0 %v4676
  %6847 = vmatpush.bf16.msra.mxu0 %v4672
  %6848 = vmatpush.bf16.msra.mxu0 %v4668
  %6849 = vmatpush.bf16.msra.mxu0 %v4664
  %6850 = vmatmul.bf16.gmra.mxu0 %v1058
  %v6851 = vpop.f32.mrf.mxu0
  %v6852 = vadd.f32 %v6839, %v6851
  %v6853 = vpop.f32.mrf.mxu0
  %6854 = vdwg.mxu0
  %6855 = vmatpush.bf16.msra.mxu0 %v4724
  %6856 = vmatpush.bf16.msra.mxu0 %v4720
  %6857 = vmatpush.bf16.msra.mxu0 %v4716
  %6858 = vmatpush.bf16.msra.mxu0 %v4712
  %6859 = vmatpush.bf16.msra.mxu0 %v4708
  %6860 = vmatpush.bf16.msra.mxu0 %v4704
  %6861 = vmatpush.bf16.msra.mxu0 %v4700
  %6862 = vmatpush.bf16.msra.mxu0 %v4696
  %6863 = vmatmul.bf16.gmra.mxu0 %v1061
  %v6864 = vpop.f32.mrf.mxu0
  %v6865 = vadd.f32 %v6852, %v6864
  %v6866 = vpop.f32.mrf.mxu0
  %6867 = vdwg.mxu0
  %6868 = vmatpush.bf16.msra.mxu0 %v4756
  %6869 = vmatpush.bf16.msra.mxu0 %v4752
  %6870 = vmatpush.bf16.msra.mxu0 %v4748
  %6871 = vmatpush.bf16.msra.mxu0 %v4744
  %6872 = vmatpush.bf16.msra.mxu0 %v4740
  %6873 = vmatpush.bf16.msra.mxu0 %v4736
  %6874 = vmatpush.bf16.msra.mxu0 %v4732
  %6875 = vmatpush.bf16.msra.mxu0 %v4728
  %6876 = vmatmul.bf16.gmra.mxu0 %v1062
  %v6877 = vpop.f32.mrf.mxu0
  %v6878 = vadd.f32 %v6865, %v6877
  %v6879 = vpop.f32.mrf.mxu0
  %6880 = vdwg.mxu0
  %6881 = vmatpush.bf16.msra.mxu0 %v4788
  %6882 = vmatpush.bf16.msra.mxu0 %v4784
  %6883 = vmatpush.bf16.msra.mxu0 %v4780
  %6884 = vmatpush.bf16.msra.mxu0 %v4776
  %6885 = vmatpush.bf16.msra.mxu0 %v4772
  %6886 = vmatpush.bf16.msra.mxu0 %v4768
  %6887 = vmatpush.bf16.msra.mxu0 %v4764
  %6888 = vmatpush.bf16.msra.mxu0 %v4760
  %6889 = vmatmul.bf16.gmra.mxu0 %v1063
  %v6890 = vpop.f32.mrf.mxu0
  %v6891 = vadd.f32 %v6878, %v6890
  %v6892 = vpop.f32.mrf.mxu0
  %6893 = vdwg.mxu0
  %6894 = vmatpush.bf16.msra.mxu0 %v4820
  %6895 = vmatpush.bf16.msra.mxu0 %v4816
  %6896 = vmatpush.bf16.msra.mxu0 %v4812
  %6897 = vmatpush.bf16.msra.mxu0 %v4808
  %6898 = vmatpush.bf16.msra.mxu0 %v4804
  %6899 = vmatpush.bf16.msra.mxu0 %v4800
  %6900 = vmatpush.bf16.msra.mxu0 %v4796
  %6901 = vmatpush.bf16.msra.mxu0 %v4792
  %6902 = vmatmul.bf16.gmra.mxu0 %v1064
  %v6903 = vpop.f32.mrf.mxu0
  %v6904 = vadd.f32 %v6891, %v6903
  %v6905 = vpop.f32.mrf.mxu0
  %6906 = vdwg.mxu0
  %6907 = vmatpush.bf16.msra.mxu0 %v4852
  %6908 = vmatpush.bf16.msra.mxu0 %v4848
  %6909 = vmatpush.bf16.msra.mxu0 %v4844
  %6910 = vmatpush.bf16.msra.mxu0 %v4840
  %6911 = vmatpush.bf16.msra.mxu0 %v4836
  %6912 = vmatpush.bf16.msra.mxu0 %v4832
  %6913 = vmatpush.bf16.msra.mxu0 %v4828
  %6914 = vmatpush.bf16.msra.mxu0 %v4824
  %6915 = vmatmul.bf16.gmra.mxu0 %v1065
  %v6916 = vpop.f32.mrf.mxu0
  %v6917 = vadd.f32 %v6904, %v6916
  %v6918 = vpop.f32.mrf.mxu0
  %6919 = vdwg.mxu0
  %6920 = vmatpush.bf16.msra.mxu0 %v4884
  %6921 = vmatpush.bf16.msra.mxu0 %v4880
  %6922 = vmatpush.bf16.msra.mxu0 %v4876
  %6923 = vmatpush.bf16.msra.mxu0 %v4872
  %6924 = vmatpush.bf16.msra.mxu0 %v4868
  %6925 = vmatpush.bf16.msra.mxu0 %v4864
  %6926 = vmatpush.bf16.msra.mxu0 %v4860
  %6927 = vmatpush.bf16.msra.mxu0 %v4856
  %6928 = vmatmul.bf16.gmra.mxu0 %v1066
  %v6929 = vpop.f32.mrf.mxu0
  %v6930 = vadd.f32 %v6917, %v6929
  %v6931 = vpop.f32.mrf.mxu0
  %6932 = vdwg.mxu0
  %6933 = vmatpush.bf16.msra.mxu0 %v4916
  %6934 = vmatpush.bf16.msra.mxu0 %v4912
  %6935 = vmatpush.bf16.msra.mxu0 %v4908
  %6936 = vmatpush.bf16.msra.mxu0 %v4904
  %6937 = vmatpush.bf16.msra.mxu0 %v4900
  %6938 = vmatpush.bf16.msra.mxu0 %v4896
  %6939 = vmatpush.bf16.msra.mxu0 %v4892
  %6940 = vmatpush.bf16.msra.mxu0 %v4888
  %6941 = vmatmul.bf16.gmra.mxu0 %v1067
  %v6942 = vpop.f32.mrf.mxu0
  %v6943 = vadd.f32 %v6930, %v6942
  %v6944 = vpop.f32.mrf.mxu0
  %6945 = vdwg.mxu0
  %6946 = vmatpush.bf16.msra.mxu0 %v4948
  %6947 = vmatpush.bf16.msra.mxu0 %v4944
  %6948 = vmatpush.bf16.msra.mxu0 %v4940
  %6949 = vmatpush.bf16.msra.mxu0 %v4936
  %6950 = vmatpush.bf16.msra.mxu0 %v4932
  %6951 = vmatpush.bf16.msra.mxu0 %v4928
  %6952 = vmatpush.bf16.msra.mxu0 %v4924
  %6953 = vmatpush.bf16.msra.mxu0 %v4920
  %6954 = vmatmul.bf16.gmra.mxu0 %v1068
  %v6955 = vpop.f32.mrf.mxu0
  %v6956 = vadd.f32 %v6943, %v6955
  %v6957 = vpop.f32.mrf.mxu0
  %6958 = vdwg.mxu0
  %6959 = vmatpush.bf16.msra.mxu0 %v4980
  %6960 = vmatpush.bf16.msra.mxu0 %v4976
  %6961 = vmatpush.bf16.msra.mxu0 %v4972
  %6962 = vmatpush.bf16.msra.mxu0 %v4968
  %6963 = vmatpush.bf16.msra.mxu0 %v4964
  %6964 = vmatpush.bf16.msra.mxu0 %v4960
  %6965 = vmatpush.bf16.msra.mxu0 %v4956
  %6966 = vmatpush.bf16.msra.mxu0 %v4952
  %6967 = vmatmul.bf16.gmra.mxu0 %v1071
  %v6968 = vpop.f32.mrf.mxu0
  %v6969 = vadd.f32 %v6956, %v6968
  %v6970 = vpop.f32.mrf.mxu0
  %6971 = vdwg.mxu0
  %6972 = vmatpush.bf16.msra.mxu0 %v5012
  %6973 = vmatpush.bf16.msra.mxu0 %v5008
  %6974 = vmatpush.bf16.msra.mxu0 %v5004
  %6975 = vmatpush.bf16.msra.mxu0 %v5000
  %6976 = vmatpush.bf16.msra.mxu0 %v4996
  %6977 = vmatpush.bf16.msra.mxu0 %v4992
  %6978 = vmatpush.bf16.msra.mxu0 %v4988
  %6979 = vmatpush.bf16.msra.mxu0 %v4984
  %6980 = vmatmul.bf16.gmra.mxu0 %v1072
  %v6981 = vpop.f32.mrf.mxu0
  %v6982 = vadd.f32 %v6969, %v6981
  %v6983 = vpop.f32.mrf.mxu0
  %6984 = vdwg.mxu0
  %6985 = vmatpush.bf16.msra.mxu0 %v5044
  %6986 = vmatpush.bf16.msra.mxu0 %v5040
  %6987 = vmatpush.bf16.msra.mxu0 %v5036
  %6988 = vmatpush.bf16.msra.mxu0 %v5032
  %6989 = vmatpush.bf16.msra.mxu0 %v5028
  %6990 = vmatpush.bf16.msra.mxu0 %v5024
  %6991 = vmatpush.bf16.msra.mxu0 %v5020
  %6992 = vmatpush.bf16.msra.mxu0 %v5016
  %6993 = vmatmul.bf16.gmra.mxu0 %v1073
  %v6994 = vpop.f32.mrf.mxu0
  %v6995 = vadd.f32 %v6982, %v6994
  %v6996 = vpop.f32.mrf.mxu0
  %6997 = vdwg.mxu0
  %6998 = vmatpush.bf16.msra.mxu0 %v5076
  %6999 = vmatpush.bf16.msra.mxu0 %v5072
  %7000 = vmatpush.bf16.msra.mxu0 %v5068
  %7001 = vmatpush.bf16.msra.mxu0 %v5064
  %7002 = vmatpush.bf16.msra.mxu0 %v5060
  %7003 = vmatpush.bf16.msra.mxu0 %v5056
  %7004 = vmatpush.bf16.msra.mxu0 %v5052
  %7005 = vmatpush.bf16.msra.mxu0 %v5048
  %7006 = vmatmul.bf16.gmra.mxu0 %v1074
  %v7007 = vpop.f32.mrf.mxu0
  %v7008 = vadd.f32 %v6995, %v7007
  %v7009 = vpop.f32.mrf.mxu0
  %7010 = vdwg.mxu0
  %7011 = vmatpush.bf16.msra.mxu0 %v5108
  %7012 = vmatpush.bf16.msra.mxu0 %v5104
  %7013 = vmatpush.bf16.msra.mxu0 %v5100
  %7014 = vmatpush.bf16.msra.mxu0 %v5096
  %7015 = vmatpush.bf16.msra.mxu0 %v5092
  %7016 = vmatpush.bf16.msra.mxu0 %v5088
  %7017 = vmatpush.bf16.msra.mxu0 %v5084
  %7018 = vmatpush.bf16.msra.mxu0 %v5080
  %7019 = vmatmul.bf16.gmra.mxu0 %v1075
  %v7020 = vpop.f32.mrf.mxu0
  %v7021 = vadd.f32 %v7008, %v7020
  %v7022 = vpop.f32.mrf.mxu0
  %7023 = vdwg.mxu0
  %7024 = vmatpush.bf16.msra.mxu0 %v5140
  %7025 = vmatpush.bf16.msra.mxu0 %v5136
  %7026 = vmatpush.bf16.msra.mxu0 %v5132
  %7027 = vmatpush.bf16.msra.mxu0 %v5128
  %7028 = vmatpush.bf16.msra.mxu0 %v5124
  %7029 = vmatpush.bf16.msra.mxu0 %v5120
  %7030 = vmatpush.bf16.msra.mxu0 %v5116
  %7031 = vmatpush.bf16.msra.mxu0 %v5112
  %7032 = vmatmul.bf16.gmra.mxu0 %v1076
  %v7033 = vpop.f32.mrf.mxu0
  %v7034 = vadd.f32 %v7021, %v7033
  %v7035 = vpop.f32.mrf.mxu0
  %7036 = vdwg.mxu0
  %7037 = vmatpush.bf16.msra.mxu0 %v5172
  %7038 = vmatpush.bf16.msra.mxu0 %v5168
  %7039 = vmatpush.bf16.msra.mxu0 %v5164
  %7040 = vmatpush.bf16.msra.mxu0 %v5160
  %7041 = vmatpush.bf16.msra.mxu0 %v5156
  %7042 = vmatpush.bf16.msra.mxu0 %v5152
  %7043 = vmatpush.bf16.msra.mxu0 %v5148
  %7044 = vmatpush.bf16.msra.mxu0 %v5144
  %7045 = vmatmul.bf16.gmra.mxu0 %v1077
  %v7046 = vpop.f32.mrf.mxu0
  %v7047 = vadd.f32 %v7034, %v7046
  %v7048 = vpop.f32.mrf.mxu0
  %7049 = vdwg.mxu0
  %7050 = vmatpush.bf16.msra.mxu0 %v5204
  %7051 = vmatpush.bf16.msra.mxu0 %v5200
  %7052 = vmatpush.bf16.msra.mxu0 %v5196
  %7053 = vmatpush.bf16.msra.mxu0 %v5192
  %7054 = vmatpush.bf16.msra.mxu0 %v5188
  %7055 = vmatpush.bf16.msra.mxu0 %v5184
  %7056 = vmatpush.bf16.msra.mxu0 %v5180
  %7057 = vmatpush.bf16.msra.mxu0 %v5176
  %7058 = vmatmul.bf16.gmra.mxu0 %v1078
  %v7059 = vpop.f32.mrf.mxu0
  %v7060 = vadd.f32 %v7047, %v7059
  %v7061 = vpop.f32.mrf.mxu0
  %7062 = vdwg.mxu0
  %7063 = vmatpush.bf16.msra.mxu0 %v4213
  %7064 = vmatpush.bf16.msra.mxu0 %v4209
  %7065 = vmatpush.bf16.msra.mxu0 %v4205
  %7066 = vmatpush.bf16.msra.mxu0 %v4201
  %7067 = vmatpush.bf16.msra.mxu0 %v4197
  %7068 = vmatpush.bf16.msra.mxu0 %v4193
  %7069 = vmatpush.bf16.msra.mxu0 %v4189
  %7070 = vmatpush.bf16.msra.mxu0 %v4185
  %7071 = vmatmul.bf16.gmra.mxu0 %v1041
  %v7072 = vpop.f32.mrf.mxu0
  %v7073 = vadd.f32 0.0, %v7072
  %v7074 = vpop.f32.mrf.mxu0
  %7075 = vdwg.mxu0
  %7076 = vmatpush.bf16.msra.mxu0 %v4245
  %7077 = vmatpush.bf16.msra.mxu0 %v4241
  %7078 = vmatpush.bf16.msra.mxu0 %v4237
  %7079 = vmatpush.bf16.msra.mxu0 %v4233
  %7080 = vmatpush.bf16.msra.mxu0 %v4229
  %7081 = vmatpush.bf16.msra.mxu0 %v4225
  %7082 = vmatpush.bf16.msra.mxu0 %v4221
  %7083 = vmatpush.bf16.msra.mxu0 %v4217
  %7084 = vmatmul.bf16.gmra.mxu0 %v1042
  %v7085 = vpop.f32.mrf.mxu0
  %v7086 = vadd.f32 %v7073, %v7085
  %v7087 = vpop.f32.mrf.mxu0
  %7088 = vdwg.mxu0
  %7089 = vmatpush.bf16.msra.mxu0 %v4277
  %7090 = vmatpush.bf16.msra.mxu0 %v4273
  %7091 = vmatpush.bf16.msra.mxu0 %v4269
  %7092 = vmatpush.bf16.msra.mxu0 %v4265
  %7093 = vmatpush.bf16.msra.mxu0 %v4261
  %7094 = vmatpush.bf16.msra.mxu0 %v4257
  %7095 = vmatpush.bf16.msra.mxu0 %v4253
  %7096 = vmatpush.bf16.msra.mxu0 %v4249
  %7097 = vmatmul.bf16.gmra.mxu0 %v1043
  %v7098 = vpop.f32.mrf.mxu0
  %v7099 = vadd.f32 %v7086, %v7098
  %v7100 = vpop.f32.mrf.mxu0
  %7101 = vdwg.mxu0
  %7102 = vmatpush.bf16.msra.mxu0 %v4309
  %7103 = vmatpush.bf16.msra.mxu0 %v4305
  %7104 = vmatpush.bf16.msra.mxu0 %v4301
  %7105 = vmatpush.bf16.msra.mxu0 %v4297
  %7106 = vmatpush.bf16.msra.mxu0 %v4293
  %7107 = vmatpush.bf16.msra.mxu0 %v4289
  %7108 = vmatpush.bf16.msra.mxu0 %v4285
  %7109 = vmatpush.bf16.msra.mxu0 %v4281
  %7110 = vmatmul.bf16.gmra.mxu0 %v1044
  %v7111 = vpop.f32.mrf.mxu0
  %v7112 = vadd.f32 %v7099, %v7111
  %v7113 = vpop.f32.mrf.mxu0
  %7114 = vdwg.mxu0
  %7115 = vmatpush.bf16.msra.mxu0 %v4341
  %7116 = vmatpush.bf16.msra.mxu0 %v4337
  %7117 = vmatpush.bf16.msra.mxu0 %v4333
  %7118 = vmatpush.bf16.msra.mxu0 %v4329
  %7119 = vmatpush.bf16.msra.mxu0 %v4325
  %7120 = vmatpush.bf16.msra.mxu0 %v4321
  %7121 = vmatpush.bf16.msra.mxu0 %v4317
  %7122 = vmatpush.bf16.msra.mxu0 %v4313
  %7123 = vmatmul.bf16.gmra.mxu0 %v1045
  %v7124 = vpop.f32.mrf.mxu0
  %v7125 = vadd.f32 %v7112, %v7124
  %v7126 = vpop.f32.mrf.mxu0
  %7127 = vdwg.mxu0
  %7128 = vmatpush.bf16.msra.mxu0 %v4373
  %7129 = vmatpush.bf16.msra.mxu0 %v4369
  %7130 = vmatpush.bf16.msra.mxu0 %v4365
  %7131 = vmatpush.bf16.msra.mxu0 %v4361
  %7132 = vmatpush.bf16.msra.mxu0 %v4357
  %7133 = vmatpush.bf16.msra.mxu0 %v4353
  %7134 = vmatpush.bf16.msra.mxu0 %v4349
  %7135 = vmatpush.bf16.msra.mxu0 %v4345
  %7136 = vmatmul.bf16.gmra.mxu0 %v1046
  %v7137 = vpop.f32.mrf.mxu0
  %v7138 = vadd.f32 %v7125, %v7137
  %v7139 = vpop.f32.mrf.mxu0
  %7140 = vdwg.mxu0
  %7141 = vmatpush.bf16.msra.mxu0 %v4405
  %7142 = vmatpush.bf16.msra.mxu0 %v4401
  %7143 = vmatpush.bf16.msra.mxu0 %v4397
  %7144 = vmatpush.bf16.msra.mxu0 %v4393
  %7145 = vmatpush.bf16.msra.mxu0 %v4389
  %7146 = vmatpush.bf16.msra.mxu0 %v4385
  %7147 = vmatpush.bf16.msra.mxu0 %v4381
  %7148 = vmatpush.bf16.msra.mxu0 %v4377
  %7149 = vmatmul.bf16.gmra.mxu0 %v1047
  %v7150 = vpop.f32.mrf.mxu0
  %v7151 = vadd.f32 %v7138, %v7150
  %v7152 = vpop.f32.mrf.mxu0
  %7153 = vdwg.mxu0
  %7154 = vmatpush.bf16.msra.mxu0 %v4437
  %7155 = vmatpush.bf16.msra.mxu0 %v4433
  %7156 = vmatpush.bf16.msra.mxu0 %v4429
  %7157 = vmatpush.bf16.msra.mxu0 %v4425
  %7158 = vmatpush.bf16.msra.mxu0 %v4421
  %7159 = vmatpush.bf16.msra.mxu0 %v4417
  %7160 = vmatpush.bf16.msra.mxu0 %v4413
  %7161 = vmatpush.bf16.msra.mxu0 %v4409
  %7162 = vmatmul.bf16.gmra.mxu0 %v1048
  %v7163 = vpop.f32.mrf.mxu0
  %v7164 = vadd.f32 %v7151, %v7163
  %v7165 = vpop.f32.mrf.mxu0
  %7166 = vdwg.mxu0
  %7167 = vmatpush.bf16.msra.mxu0 %v4469
  %7168 = vmatpush.bf16.msra.mxu0 %v4465
  %7169 = vmatpush.bf16.msra.mxu0 %v4461
  %7170 = vmatpush.bf16.msra.mxu0 %v4457
  %7171 = vmatpush.bf16.msra.mxu0 %v4453
  %7172 = vmatpush.bf16.msra.mxu0 %v4449
  %7173 = vmatpush.bf16.msra.mxu0 %v4445
  %7174 = vmatpush.bf16.msra.mxu0 %v4441
  %7175 = vmatmul.bf16.gmra.mxu0 %v1051
  %v7176 = vpop.f32.mrf.mxu0
  %v7177 = vadd.f32 %v7164, %v7176
  %v7178 = vpop.f32.mrf.mxu0
  %7179 = vdwg.mxu0
  %7180 = vmatpush.bf16.msra.mxu0 %v4501
  %7181 = vmatpush.bf16.msra.mxu0 %v4497
  %7182 = vmatpush.bf16.msra.mxu0 %v4493
  %7183 = vmatpush.bf16.msra.mxu0 %v4489
  %7184 = vmatpush.bf16.msra.mxu0 %v4485
  %7185 = vmatpush.bf16.msra.mxu0 %v4481
  %7186 = vmatpush.bf16.msra.mxu0 %v4477
  %7187 = vmatpush.bf16.msra.mxu0 %v4473
  %7188 = vmatmul.bf16.gmra.mxu0 %v1052
  %v7189 = vpop.f32.mrf.mxu0
  %v7190 = vadd.f32 %v7177, %v7189
  %v7191 = vpop.f32.mrf.mxu0
  %7192 = vdwg.mxu0
  %7193 = vmatpush.bf16.msra.mxu0 %v4533
  %7194 = vmatpush.bf16.msra.mxu0 %v4529
  %7195 = vmatpush.bf16.msra.mxu0 %v4525
  %7196 = vmatpush.bf16.msra.mxu0 %v4521
  %7197 = vmatpush.bf16.msra.mxu0 %v4517
  %7198 = vmatpush.bf16.msra.mxu0 %v4513
  %7199 = vmatpush.bf16.msra.mxu0 %v4509
  %7200 = vmatpush.bf16.msra.mxu0 %v4505
  %7201 = vmatmul.bf16.gmra.mxu0 %v1053
  %v7202 = vpop.f32.mrf.mxu0
  %v7203 = vadd.f32 %v7190, %v7202
  %v7204 = vpop.f32.mrf.mxu0
  %7205 = vdwg.mxu0
  %7206 = vmatpush.bf16.msra.mxu0 %v4565
  %7207 = vmatpush.bf16.msra.mxu0 %v4561
  %7208 = vmatpush.bf16.msra.mxu0 %v4557
  %7209 = vmatpush.bf16.msra.mxu0 %v4553
  %7210 = vmatpush.bf16.msra.mxu0 %v4549
  %7211 = vmatpush.bf16.msra.mxu0 %v4545
  %7212 = vmatpush.bf16.msra.mxu0 %v4541
  %7213 = vmatpush.bf16.msra.mxu0 %v4537
  %7214 = vmatmul.bf16.gmra.mxu0 %v1054
  %v7215 = vpop.f32.mrf.mxu0
  %v7216 = vadd.f32 %v7203, %v7215
  %v7217 = vpop.f32.mrf.mxu0
  %7218 = vdwg.mxu0
  %7219 = vmatpush.bf16.msra.mxu0 %v4597
  %7220 = vmatpush.bf16.msra.mxu0 %v4593
  %7221 = vmatpush.bf16.msra.mxu0 %v4589
  %7222 = vmatpush.bf16.msra.mxu0 %v4585
  %7223 = vmatpush.bf16.msra.mxu0 %v4581
  %7224 = vmatpush.bf16.msra.mxu0 %v4577
  %7225 = vmatpush.bf16.msra.mxu0 %v4573
  %7226 = vmatpush.bf16.msra.mxu0 %v4569
  %7227 = vmatmul.bf16.gmra.mxu0 %v1055
  %v7228 = vpop.f32.mrf.mxu0
  %v7229 = vadd.f32 %v7216, %v7228
  %v7230 = vpop.f32.mrf.mxu0
  %7231 = vdwg.mxu0
  %7232 = vmatpush.bf16.msra.mxu0 %v4629
  %7233 = vmatpush.bf16.msra.mxu0 %v4625
  %7234 = vmatpush.bf16.msra.mxu0 %v4621
  %7235 = vmatpush.bf16.msra.mxu0 %v4617
  %7236 = vmatpush.bf16.msra.mxu0 %v4613
  %7237 = vmatpush.bf16.msra.mxu0 %v4609
  %7238 = vmatpush.bf16.msra.mxu0 %v4605
  %7239 = vmatpush.bf16.msra.mxu0 %v4601
  %7240 = vmatmul.bf16.gmra.mxu0 %v1056
  %v7241 = vpop.f32.mrf.mxu0
  %v7242 = vadd.f32 %v7229, %v7241
  %v7243 = vpop.f32.mrf.mxu0
  %7244 = vdwg.mxu0
  %7245 = vmatpush.bf16.msra.mxu0 %v4661
  %7246 = vmatpush.bf16.msra.mxu0 %v4657
  %7247 = vmatpush.bf16.msra.mxu0 %v4653
  %7248 = vmatpush.bf16.msra.mxu0 %v4649
  %7249 = vmatpush.bf16.msra.mxu0 %v4645
  %7250 = vmatpush.bf16.msra.mxu0 %v4641
  %7251 = vmatpush.bf16.msra.mxu0 %v4637
  %7252 = vmatpush.bf16.msra.mxu0 %v4633
  %7253 = vmatmul.bf16.gmra.mxu0 %v1057
  %v7254 = vpop.f32.mrf.mxu0
  %v7255 = vadd.f32 %v7242, %v7254
  %v7256 = vpop.f32.mrf.mxu0
  %7257 = vdwg.mxu0
  %7258 = vmatpush.bf16.msra.mxu0 %v4693
  %7259 = vmatpush.bf16.msra.mxu0 %v4689
  %7260 = vmatpush.bf16.msra.mxu0 %v4685
  %7261 = vmatpush.bf16.msra.mxu0 %v4681
  %7262 = vmatpush.bf16.msra.mxu0 %v4677
  %7263 = vmatpush.bf16.msra.mxu0 %v4673
  %7264 = vmatpush.bf16.msra.mxu0 %v4669
  %7265 = vmatpush.bf16.msra.mxu0 %v4665
  %7266 = vmatmul.bf16.gmra.mxu0 %v1058
  %v7267 = vpop.f32.mrf.mxu0
  %v7268 = vadd.f32 %v7255, %v7267
  %v7269 = vpop.f32.mrf.mxu0
  %7270 = vdwg.mxu0
  %7271 = vmatpush.bf16.msra.mxu0 %v4725
  %7272 = vmatpush.bf16.msra.mxu0 %v4721
  %7273 = vmatpush.bf16.msra.mxu0 %v4717
  %7274 = vmatpush.bf16.msra.mxu0 %v4713
  %7275 = vmatpush.bf16.msra.mxu0 %v4709
  %7276 = vmatpush.bf16.msra.mxu0 %v4705
  %7277 = vmatpush.bf16.msra.mxu0 %v4701
  %7278 = vmatpush.bf16.msra.mxu0 %v4697
  %7279 = vmatmul.bf16.gmra.mxu0 %v1061
  %v7280 = vpop.f32.mrf.mxu0
  %v7281 = vadd.f32 %v7268, %v7280
  %v7282 = vpop.f32.mrf.mxu0
  %7283 = vdwg.mxu0
  %7284 = vmatpush.bf16.msra.mxu0 %v4757
  %7285 = vmatpush.bf16.msra.mxu0 %v4753
  %7286 = vmatpush.bf16.msra.mxu0 %v4749
  %7287 = vmatpush.bf16.msra.mxu0 %v4745
  %7288 = vmatpush.bf16.msra.mxu0 %v4741
  %7289 = vmatpush.bf16.msra.mxu0 %v4737
  %7290 = vmatpush.bf16.msra.mxu0 %v4733
  %7291 = vmatpush.bf16.msra.mxu0 %v4729
  %7292 = vmatmul.bf16.gmra.mxu0 %v1062
  %v7293 = vpop.f32.mrf.mxu0
  %v7294 = vadd.f32 %v7281, %v7293
  %v7295 = vpop.f32.mrf.mxu0
  %7296 = vdwg.mxu0
  %7297 = vmatpush.bf16.msra.mxu0 %v4789
  %7298 = vmatpush.bf16.msra.mxu0 %v4785
  %7299 = vmatpush.bf16.msra.mxu0 %v4781
  %7300 = vmatpush.bf16.msra.mxu0 %v4777
  %7301 = vmatpush.bf16.msra.mxu0 %v4773
  %7302 = vmatpush.bf16.msra.mxu0 %v4769
  %7303 = vmatpush.bf16.msra.mxu0 %v4765
  %7304 = vmatpush.bf16.msra.mxu0 %v4761
  %7305 = vmatmul.bf16.gmra.mxu0 %v1063
  %v7306 = vpop.f32.mrf.mxu0
  %v7307 = vadd.f32 %v7294, %v7306
  %v7308 = vpop.f32.mrf.mxu0
  %7309 = vdwg.mxu0
  %7310 = vmatpush.bf16.msra.mxu0 %v4821
  %7311 = vmatpush.bf16.msra.mxu0 %v4817
  %7312 = vmatpush.bf16.msra.mxu0 %v4813
  %7313 = vmatpush.bf16.msra.mxu0 %v4809
  %7314 = vmatpush.bf16.msra.mxu0 %v4805
  %7315 = vmatpush.bf16.msra.mxu0 %v4801
  %7316 = vmatpush.bf16.msra.mxu0 %v4797
  %7317 = vmatpush.bf16.msra.mxu0 %v4793
  %7318 = vmatmul.bf16.gmra.mxu0 %v1064
  %v7319 = vpop.f32.mrf.mxu0
  %v7320 = vadd.f32 %v7307, %v7319
  %v7321 = vpop.f32.mrf.mxu0
  %7322 = vdwg.mxu0
  %7323 = vmatpush.bf16.msra.mxu0 %v4853
  %7324 = vmatpush.bf16.msra.mxu0 %v4849
  %7325 = vmatpush.bf16.msra.mxu0 %v4845
  %7326 = vmatpush.bf16.msra.mxu0 %v4841
  %7327 = vmatpush.bf16.msra.mxu0 %v4837
  %7328 = vmatpush.bf16.msra.mxu0 %v4833
  %7329 = vmatpush.bf16.msra.mxu0 %v4829
  %7330 = vmatpush.bf16.msra.mxu0 %v4825
  %7331 = vmatmul.bf16.gmra.mxu0 %v1065
  %v7332 = vpop.f32.mrf.mxu0
  %v7333 = vadd.f32 %v7320, %v7332
  %v7334 = vpop.f32.mrf.mxu0
  %7335 = vdwg.mxu0
  %7336 = vmatpush.bf16.msra.mxu0 %v4885
  %7337 = vmatpush.bf16.msra.mxu0 %v4881
  %7338 = vmatpush.bf16.msra.mxu0 %v4877
  %7339 = vmatpush.bf16.msra.mxu0 %v4873
  %7340 = vmatpush.bf16.msra.mxu0 %v4869
  %7341 = vmatpush.bf16.msra.mxu0 %v4865
  %7342 = vmatpush.bf16.msra.mxu0 %v4861
  %7343 = vmatpush.bf16.msra.mxu0 %v4857
  %7344 = vmatmul.bf16.gmra.mxu0 %v1066
  %v7345 = vpop.f32.mrf.mxu0
  %v7346 = vadd.f32 %v7333, %v7345
  %v7347 = vpop.f32.mrf.mxu0
  %7348 = vdwg.mxu0
  %7349 = vmatpush.bf16.msra.mxu0 %v4917
  %7350 = vmatpush.bf16.msra.mxu0 %v4913
  %7351 = vmatpush.bf16.msra.mxu0 %v4909
  %7352 = vmatpush.bf16.msra.mxu0 %v4905
  %7353 = vmatpush.bf16.msra.mxu0 %v4901
  %7354 = vmatpush.bf16.msra.mxu0 %v4897
  %7355 = vmatpush.bf16.msra.mxu0 %v4893
  %7356 = vmatpush.bf16.msra.mxu0 %v4889
  %7357 = vmatmul.bf16.gmra.mxu0 %v1067
  %v7358 = vpop.f32.mrf.mxu0
  %v7359 = vadd.f32 %v7346, %v7358
  %v7360 = vpop.f32.mrf.mxu0
  %7361 = vdwg.mxu0
  %7362 = vmatpush.bf16.msra.mxu0 %v4949
  %7363 = vmatpush.bf16.msra.mxu0 %v4945
  %7364 = vmatpush.bf16.msra.mxu0 %v4941
  %7365 = vmatpush.bf16.msra.mxu0 %v4937
  %7366 = vmatpush.bf16.msra.mxu0 %v4933
  %7367 = vmatpush.bf16.msra.mxu0 %v4929
  %7368 = vmatpush.bf16.msra.mxu0 %v4925
  %7369 = vmatpush.bf16.msra.mxu0 %v4921
  %7370 = vmatmul.bf16.gmra.mxu0 %v1068
  %v7371 = vpop.f32.mrf.mxu0
  %v7372 = vadd.f32 %v7359, %v7371
  %v7373 = vpop.f32.mrf.mxu0
  %7374 = vdwg.mxu0
  %7375 = vmatpush.bf16.msra.mxu0 %v4981
  %7376 = vmatpush.bf16.msra.mxu0 %v4977
  %7377 = vmatpush.bf16.msra.mxu0 %v4973
  %7378 = vmatpush.bf16.msra.mxu0 %v4969
  %7379 = vmatpush.bf16.msra.mxu0 %v4965
  %7380 = vmatpush.bf16.msra.mxu0 %v4961
  %7381 = vmatpush.bf16.msra.mxu0 %v4957
  %7382 = vmatpush.bf16.msra.mxu0 %v4953
  %7383 = vmatmul.bf16.gmra.mxu0 %v1071
  %v7384 = vpop.f32.mrf.mxu0
  %v7385 = vadd.f32 %v7372, %v7384
  %v7386 = vpop.f32.mrf.mxu0
  %7387 = vdwg.mxu0
  %7388 = vmatpush.bf16.msra.mxu0 %v5013
  %7389 = vmatpush.bf16.msra.mxu0 %v5009
  %7390 = vmatpush.bf16.msra.mxu0 %v5005
  %7391 = vmatpush.bf16.msra.mxu0 %v5001
  %7392 = vmatpush.bf16.msra.mxu0 %v4997
  %7393 = vmatpush.bf16.msra.mxu0 %v4993
  %7394 = vmatpush.bf16.msra.mxu0 %v4989
  %7395 = vmatpush.bf16.msra.mxu0 %v4985
  %7396 = vmatmul.bf16.gmra.mxu0 %v1072
  %v7397 = vpop.f32.mrf.mxu0
  %v7398 = vadd.f32 %v7385, %v7397
  %v7399 = vpop.f32.mrf.mxu0
  %7400 = vdwg.mxu0
  %7401 = vmatpush.bf16.msra.mxu0 %v5045
  %7402 = vmatpush.bf16.msra.mxu0 %v5041
  %7403 = vmatpush.bf16.msra.mxu0 %v5037
  %7404 = vmatpush.bf16.msra.mxu0 %v5033
  %7405 = vmatpush.bf16.msra.mxu0 %v5029
  %7406 = vmatpush.bf16.msra.mxu0 %v5025
  %7407 = vmatpush.bf16.msra.mxu0 %v5021
  %7408 = vmatpush.bf16.msra.mxu0 %v5017
  %7409 = vmatmul.bf16.gmra.mxu0 %v1073
  %v7410 = vpop.f32.mrf.mxu0
  %v7411 = vadd.f32 %v7398, %v7410
  %v7412 = vpop.f32.mrf.mxu0
  %7413 = vdwg.mxu0
  %7414 = vmatpush.bf16.msra.mxu0 %v5077
  %7415 = vmatpush.bf16.msra.mxu0 %v5073
  %7416 = vmatpush.bf16.msra.mxu0 %v5069
  %7417 = vmatpush.bf16.msra.mxu0 %v5065
  %7418 = vmatpush.bf16.msra.mxu0 %v5061
  %7419 = vmatpush.bf16.msra.mxu0 %v5057
  %7420 = vmatpush.bf16.msra.mxu0 %v5053
  %7421 = vmatpush.bf16.msra.mxu0 %v5049
  %7422 = vmatmul.bf16.gmra.mxu0 %v1074
  %v7423 = vpop.f32.mrf.mxu0
  %v7424 = vadd.f32 %v7411, %v7423
  %v7425 = vpop.f32.mrf.mxu0
  %7426 = vdwg.mxu0
  %7427 = vmatpush.bf16.msra.mxu0 %v5109
  %7428 = vmatpush.bf16.msra.mxu0 %v5105
  %7429 = vmatpush.bf16.msra.mxu0 %v5101
  %7430 = vmatpush.bf16.msra.mxu0 %v5097
  %7431 = vmatpush.bf16.msra.mxu0 %v5093
  %7432 = vmatpush.bf16.msra.mxu0 %v5089
  %7433 = vmatpush.bf16.msra.mxu0 %v5085
  %7434 = vmatpush.bf16.msra.mxu0 %v5081
  %7435 = vmatmul.bf16.gmra.mxu0 %v1075
  %v7436 = vpop.f32.mrf.mxu0
  %v7437 = vadd.f32 %v7424, %v7436
  %v7438 = vpop.f32.mrf.mxu0
  %7439 = vdwg.mxu0
  %7440 = vmatpush.bf16.msra.mxu0 %v5141
  %7441 = vmatpush.bf16.msra.mxu0 %v5137
  %7442 = vmatpush.bf16.msra.mxu0 %v5133
  %7443 = vmatpush.bf16.msra.mxu0 %v5129
  %7444 = vmatpush.bf16.msra.mxu0 %v5125
  %7445 = vmatpush.bf16.msra.mxu0 %v5121
  %7446 = vmatpush.bf16.msra.mxu0 %v5117
  %7447 = vmatpush.bf16.msra.mxu0 %v5113
  %7448 = vmatmul.bf16.gmra.mxu0 %v1076
  %v7449 = vpop.f32.mrf.mxu0
  %v7450 = vadd.f32 %v7437, %v7449
  %v7451 = vpop.f32.mrf.mxu0
  %7452 = vdwg.mxu0
  %7453 = vmatpush.bf16.msra.mxu0 %v5173
  %7454 = vmatpush.bf16.msra.mxu0 %v5169
  %7455 = vmatpush.bf16.msra.mxu0 %v5165
  %7456 = vmatpush.bf16.msra.mxu0 %v5161
  %7457 = vmatpush.bf16.msra.mxu0 %v5157
  %7458 = vmatpush.bf16.msra.mxu0 %v5153
  %7459 = vmatpush.bf16.msra.mxu0 %v5149
  %7460 = vmatpush.bf16.msra.mxu0 %v5145
  %7461 = vmatmul.bf16.gmra.mxu0 %v1077
  %v7462 = vpop.f32.mrf.mxu0
  %v7463 = vadd.f32 %v7450, %v7462
  %v7464 = vpop.f32.mrf.mxu0
  %7465 = vdwg.mxu0
  %7466 = vmatpush.bf16.msra.mxu0 %v5205
  %7467 = vmatpush.bf16.msra.mxu0 %v5201
  %7468 = vmatpush.bf16.msra.mxu0 %v5197
  %7469 = vmatpush.bf16.msra.mxu0 %v5193
  %7470 = vmatpush.bf16.msra.mxu0 %v5189
  %7471 = vmatpush.bf16.msra.mxu0 %v5185
  %7472 = vmatpush.bf16.msra.mxu0 %v5181
  %7473 = vmatpush.bf16.msra.mxu0 %v5177
  %7474 = vmatmul.bf16.gmra.mxu0 %v1078
  %v7475 = vpop.f32.mrf.mxu0
  %v7476 = vadd.f32 %v7463, %v7475
  %v7477 = vpop.f32.mrf.mxu0
  %7478 = vdwg.mxu0
  %7479 = vmatpush.bf16.msra.mxu0 %v4214
  %7480 = vmatpush.bf16.msra.mxu0 %v4210
  %7481 = vmatpush.bf16.msra.mxu0 %v4206
  %7482 = vmatpush.bf16.msra.mxu0 %v4202
  %7483 = vmatpush.bf16.msra.mxu0 %v4198
  %7484 = vmatpush.bf16.msra.mxu0 %v4194
  %7485 = vmatpush.bf16.msra.mxu0 %v4190
  %7486 = vmatpush.bf16.msra.mxu0 %v4186
  %7487 = vmatmul.bf16.gmra.mxu0 %v1041
  %v7488 = vpop.f32.mrf.mxu0
  %v7489 = vadd.f32 0.0, %v7488
  %v7490 = vpop.f32.mrf.mxu0
  %7491 = vdwg.mxu0
  %7492 = vmatpush.bf16.msra.mxu0 %v4246
  %7493 = vmatpush.bf16.msra.mxu0 %v4242
  %7494 = vmatpush.bf16.msra.mxu0 %v4238
  %7495 = vmatpush.bf16.msra.mxu0 %v4234
  %7496 = vmatpush.bf16.msra.mxu0 %v4230
  %7497 = vmatpush.bf16.msra.mxu0 %v4226
  %7498 = vmatpush.bf16.msra.mxu0 %v4222
  %7499 = vmatpush.bf16.msra.mxu0 %v4218
  %7500 = vmatmul.bf16.gmra.mxu0 %v1042
  %v7501 = vpop.f32.mrf.mxu0
  %v7502 = vadd.f32 %v7489, %v7501
  %v7503 = vpop.f32.mrf.mxu0
  %7504 = vdwg.mxu0
  %7505 = vmatpush.bf16.msra.mxu0 %v4278
  %7506 = vmatpush.bf16.msra.mxu0 %v4274
  %7507 = vmatpush.bf16.msra.mxu0 %v4270
  %7508 = vmatpush.bf16.msra.mxu0 %v4266
  %7509 = vmatpush.bf16.msra.mxu0 %v4262
  %7510 = vmatpush.bf16.msra.mxu0 %v4258
  %7511 = vmatpush.bf16.msra.mxu0 %v4254
  %7512 = vmatpush.bf16.msra.mxu0 %v4250
  %7513 = vmatmul.bf16.gmra.mxu0 %v1043
  %v7514 = vpop.f32.mrf.mxu0
  %v7515 = vadd.f32 %v7502, %v7514
  %v7516 = vpop.f32.mrf.mxu0
  %7517 = vdwg.mxu0
  %7518 = vmatpush.bf16.msra.mxu0 %v4310
  %7519 = vmatpush.bf16.msra.mxu0 %v4306
  %7520 = vmatpush.bf16.msra.mxu0 %v4302
  %7521 = vmatpush.bf16.msra.mxu0 %v4298
  %7522 = vmatpush.bf16.msra.mxu0 %v4294
  %7523 = vmatpush.bf16.msra.mxu0 %v4290
  %7524 = vmatpush.bf16.msra.mxu0 %v4286
  %7525 = vmatpush.bf16.msra.mxu0 %v4282
  %7526 = vmatmul.bf16.gmra.mxu0 %v1044
  %v7527 = vpop.f32.mrf.mxu0
  %v7528 = vadd.f32 %v7515, %v7527
  %v7529 = vpop.f32.mrf.mxu0
  %7530 = vdwg.mxu0
  %7531 = vmatpush.bf16.msra.mxu0 %v4342
  %7532 = vmatpush.bf16.msra.mxu0 %v4338
  %7533 = vmatpush.bf16.msra.mxu0 %v4334
  %7534 = vmatpush.bf16.msra.mxu0 %v4330
  %7535 = vmatpush.bf16.msra.mxu0 %v4326
  %7536 = vmatpush.bf16.msra.mxu0 %v4322
  %7537 = vmatpush.bf16.msra.mxu0 %v4318
  %7538 = vmatpush.bf16.msra.mxu0 %v4314
  %7539 = vmatmul.bf16.gmra.mxu0 %v1045
  %v7540 = vpop.f32.mrf.mxu0
  %v7541 = vadd.f32 %v7528, %v7540
  %v7542 = vpop.f32.mrf.mxu0
  %7543 = vdwg.mxu0
  %7544 = vmatpush.bf16.msra.mxu0 %v4374
  %7545 = vmatpush.bf16.msra.mxu0 %v4370
  %7546 = vmatpush.bf16.msra.mxu0 %v4366
  %7547 = vmatpush.bf16.msra.mxu0 %v4362
  %7548 = vmatpush.bf16.msra.mxu0 %v4358
  %7549 = vmatpush.bf16.msra.mxu0 %v4354
  %7550 = vmatpush.bf16.msra.mxu0 %v4350
  %7551 = vmatpush.bf16.msra.mxu0 %v4346
  %7552 = vmatmul.bf16.gmra.mxu0 %v1046
  %v7553 = vpop.f32.mrf.mxu0
  %v7554 = vadd.f32 %v7541, %v7553
  %v7555 = vpop.f32.mrf.mxu0
  %7556 = vdwg.mxu0
  %7557 = vmatpush.bf16.msra.mxu0 %v4406
  %7558 = vmatpush.bf16.msra.mxu0 %v4402
  %7559 = vmatpush.bf16.msra.mxu0 %v4398
  %7560 = vmatpush.bf16.msra.mxu0 %v4394
  %7561 = vmatpush.bf16.msra.mxu0 %v4390
  %7562 = vmatpush.bf16.msra.mxu0 %v4386
  %7563 = vmatpush.bf16.msra.mxu0 %v4382
  %7564 = vmatpush.bf16.msra.mxu0 %v4378
  %7565 = vmatmul.bf16.gmra.mxu0 %v1047
  %v7566 = vpop.f32.mrf.mxu0
  %v7567 = vadd.f32 %v7554, %v7566
  %v7568 = vpop.f32.mrf.mxu0
  %7569 = vdwg.mxu0
  %7570 = vmatpush.bf16.msra.mxu0 %v4438
  %7571 = vmatpush.bf16.msra.mxu0 %v4434
  %7572 = vmatpush.bf16.msra.mxu0 %v4430
  %7573 = vmatpush.bf16.msra.mxu0 %v4426
  %7574 = vmatpush.bf16.msra.mxu0 %v4422
  %7575 = vmatpush.bf16.msra.mxu0 %v4418
  %7576 = vmatpush.bf16.msra.mxu0 %v4414
  %7577 = vmatpush.bf16.msra.mxu0 %v4410
  %7578 = vmatmul.bf16.gmra.mxu0 %v1048
  %v7579 = vpop.f32.mrf.mxu0
  %v7580 = vadd.f32 %v7567, %v7579
  %v7581 = vpop.f32.mrf.mxu0
  %7582 = vdwg.mxu0
  %7583 = vmatpush.bf16.msra.mxu0 %v4470
  %7584 = vmatpush.bf16.msra.mxu0 %v4466
  %7585 = vmatpush.bf16.msra.mxu0 %v4462
  %7586 = vmatpush.bf16.msra.mxu0 %v4458
  %7587 = vmatpush.bf16.msra.mxu0 %v4454
  %7588 = vmatpush.bf16.msra.mxu0 %v4450
  %7589 = vmatpush.bf16.msra.mxu0 %v4446
  %7590 = vmatpush.bf16.msra.mxu0 %v4442
  %7591 = vmatmul.bf16.gmra.mxu0 %v1051
  %v7592 = vpop.f32.mrf.mxu0
  %v7593 = vadd.f32 %v7580, %v7592
  %v7594 = vpop.f32.mrf.mxu0
  %7595 = vdwg.mxu0
  %7596 = vmatpush.bf16.msra.mxu0 %v4502
  %7597 = vmatpush.bf16.msra.mxu0 %v4498
  %7598 = vmatpush.bf16.msra.mxu0 %v4494
  %7599 = vmatpush.bf16.msra.mxu0 %v4490
  %7600 = vmatpush.bf16.msra.mxu0 %v4486
  %7601 = vmatpush.bf16.msra.mxu0 %v4482
  %7602 = vmatpush.bf16.msra.mxu0 %v4478
  %7603 = vmatpush.bf16.msra.mxu0 %v4474
  %7604 = vmatmul.bf16.gmra.mxu0 %v1052
  %v7605 = vpop.f32.mrf.mxu0
  %v7606 = vadd.f32 %v7593, %v7605
  %v7607 = vpop.f32.mrf.mxu0
  %7608 = vdwg.mxu0
  %7609 = vmatpush.bf16.msra.mxu0 %v4534
  %7610 = vmatpush.bf16.msra.mxu0 %v4530
  %7611 = vmatpush.bf16.msra.mxu0 %v4526
  %7612 = vmatpush.bf16.msra.mxu0 %v4522
  %7613 = vmatpush.bf16.msra.mxu0 %v4518
  %7614 = vmatpush.bf16.msra.mxu0 %v4514
  %7615 = vmatpush.bf16.msra.mxu0 %v4510
  %7616 = vmatpush.bf16.msra.mxu0 %v4506
  %7617 = vmatmul.bf16.gmra.mxu0 %v1053
  %v7618 = vpop.f32.mrf.mxu0
  %v7619 = vadd.f32 %v7606, %v7618
  %v7620 = vpop.f32.mrf.mxu0
  %7621 = vdwg.mxu0
  %7622 = vmatpush.bf16.msra.mxu0 %v4566
  %7623 = vmatpush.bf16.msra.mxu0 %v4562
  %7624 = vmatpush.bf16.msra.mxu0 %v4558
  %7625 = vmatpush.bf16.msra.mxu0 %v4554
  %7626 = vmatpush.bf16.msra.mxu0 %v4550
  %7627 = vmatpush.bf16.msra.mxu0 %v4546
  %7628 = vmatpush.bf16.msra.mxu0 %v4542
  %7629 = vmatpush.bf16.msra.mxu0 %v4538
  %7630 = vmatmul.bf16.gmra.mxu0 %v1054
  %v7631 = vpop.f32.mrf.mxu0
  %v7632 = vadd.f32 %v7619, %v7631
  %v7633 = vpop.f32.mrf.mxu0
  %7634 = vdwg.mxu0
  %7635 = vmatpush.bf16.msra.mxu0 %v4598
  %7636 = vmatpush.bf16.msra.mxu0 %v4594
  %7637 = vmatpush.bf16.msra.mxu0 %v4590
  %7638 = vmatpush.bf16.msra.mxu0 %v4586
  %7639 = vmatpush.bf16.msra.mxu0 %v4582
  %7640 = vmatpush.bf16.msra.mxu0 %v4578
  %7641 = vmatpush.bf16.msra.mxu0 %v4574
  %7642 = vmatpush.bf16.msra.mxu0 %v4570
  %7643 = vmatmul.bf16.gmra.mxu0 %v1055
  %v7644 = vpop.f32.mrf.mxu0
  %v7645 = vadd.f32 %v7632, %v7644
  %v7646 = vpop.f32.mrf.mxu0
  %7647 = vdwg.mxu0
  %7648 = vmatpush.bf16.msra.mxu0 %v4630
  %7649 = vmatpush.bf16.msra.mxu0 %v4626
  %7650 = vmatpush.bf16.msra.mxu0 %v4622
  %7651 = vmatpush.bf16.msra.mxu0 %v4618
  %7652 = vmatpush.bf16.msra.mxu0 %v4614
  %7653 = vmatpush.bf16.msra.mxu0 %v4610
  %7654 = vmatpush.bf16.msra.mxu0 %v4606
  %7655 = vmatpush.bf16.msra.mxu0 %v4602
  %7656 = vmatmul.bf16.gmra.mxu0 %v1056
  %v7657 = vpop.f32.mrf.mxu0
  %v7658 = vadd.f32 %v7645, %v7657
  %v7659 = vpop.f32.mrf.mxu0
  %7660 = vdwg.mxu0
  %7661 = vmatpush.bf16.msra.mxu0 %v4662
  %7662 = vmatpush.bf16.msra.mxu0 %v4658
  %7663 = vmatpush.bf16.msra.mxu0 %v4654
  %7664 = vmatpush.bf16.msra.mxu0 %v4650
  %7665 = vmatpush.bf16.msra.mxu0 %v4646
  %7666 = vmatpush.bf16.msra.mxu0 %v4642
  %7667 = vmatpush.bf16.msra.mxu0 %v4638
  %7668 = vmatpush.bf16.msra.mxu0 %v4634
  %7669 = vmatmul.bf16.gmra.mxu0 %v1057
  %v7670 = vpop.f32.mrf.mxu0
  %v7671 = vadd.f32 %v7658, %v7670
  %v7672 = vpop.f32.mrf.mxu0
  %7673 = vdwg.mxu0
  %7674 = vmatpush.bf16.msra.mxu0 %v4694
  %7675 = vmatpush.bf16.msra.mxu0 %v4690
  %7676 = vmatpush.bf16.msra.mxu0 %v4686
  %7677 = vmatpush.bf16.msra.mxu0 %v4682
  %7678 = vmatpush.bf16.msra.mxu0 %v4678
  %7679 = vmatpush.bf16.msra.mxu0 %v4674
  %7680 = vmatpush.bf16.msra.mxu0 %v4670
  %7681 = vmatpush.bf16.msra.mxu0 %v4666
  %7682 = vmatmul.bf16.gmra.mxu0 %v1058
  %v7683 = vpop.f32.mrf.mxu0
  %v7684 = vadd.f32 %v7671, %v7683
  %v7685 = vpop.f32.mrf.mxu0
  %7686 = vdwg.mxu0
  %7687 = vmatpush.bf16.msra.mxu0 %v4726
  %7688 = vmatpush.bf16.msra.mxu0 %v4722
  %7689 = vmatpush.bf16.msra.mxu0 %v4718
  %7690 = vmatpush.bf16.msra.mxu0 %v4714
  %7691 = vmatpush.bf16.msra.mxu0 %v4710
  %7692 = vmatpush.bf16.msra.mxu0 %v4706
  %7693 = vmatpush.bf16.msra.mxu0 %v4702
  %7694 = vmatpush.bf16.msra.mxu0 %v4698
  %7695 = vmatmul.bf16.gmra.mxu0 %v1061
  %v7696 = vpop.f32.mrf.mxu0
  %v7697 = vadd.f32 %v7684, %v7696
  %v7698 = vpop.f32.mrf.mxu0
  %7699 = vdwg.mxu0
  %7700 = vmatpush.bf16.msra.mxu0 %v4758
  %7701 = vmatpush.bf16.msra.mxu0 %v4754
  %7702 = vmatpush.bf16.msra.mxu0 %v4750
  %7703 = vmatpush.bf16.msra.mxu0 %v4746
  %7704 = vmatpush.bf16.msra.mxu0 %v4742
  %7705 = vmatpush.bf16.msra.mxu0 %v4738
  %7706 = vmatpush.bf16.msra.mxu0 %v4734
  %7707 = vmatpush.bf16.msra.mxu0 %v4730
  %7708 = vmatmul.bf16.gmra.mxu0 %v1062
  %v7709 = vpop.f32.mrf.mxu0
  %v7710 = vadd.f32 %v7697, %v7709
  %v7711 = vpop.f32.mrf.mxu0
  %7712 = vdwg.mxu0
  %7713 = vmatpush.bf16.msra.mxu0 %v4790
  %7714 = vmatpush.bf16.msra.mxu0 %v4786
  %7715 = vmatpush.bf16.msra.mxu0 %v4782
  %7716 = vmatpush.bf16.msra.mxu0 %v4778
  %7717 = vmatpush.bf16.msra.mxu0 %v4774
  %7718 = vmatpush.bf16.msra.mxu0 %v4770
  %7719 = vmatpush.bf16.msra.mxu0 %v4766
  %7720 = vmatpush.bf16.msra.mxu0 %v4762
  %7721 = vmatmul.bf16.gmra.mxu0 %v1063
  %v7722 = vpop.f32.mrf.mxu0
  %v7723 = vadd.f32 %v7710, %v7722
  %v7724 = vpop.f32.mrf.mxu0
  %7725 = vdwg.mxu0
  %7726 = vmatpush.bf16.msra.mxu0 %v4822
  %7727 = vmatpush.bf16.msra.mxu0 %v4818
  %7728 = vmatpush.bf16.msra.mxu0 %v4814
  %7729 = vmatpush.bf16.msra.mxu0 %v4810
  %7730 = vmatpush.bf16.msra.mxu0 %v4806
  %7731 = vmatpush.bf16.msra.mxu0 %v4802
  %7732 = vmatpush.bf16.msra.mxu0 %v4798
  %7733 = vmatpush.bf16.msra.mxu0 %v4794
  %7734 = vmatmul.bf16.gmra.mxu0 %v1064
  %v7735 = vpop.f32.mrf.mxu0
  %v7736 = vadd.f32 %v7723, %v7735
  %v7737 = vpop.f32.mrf.mxu0
  %7738 = vdwg.mxu0
  %7739 = vmatpush.bf16.msra.mxu0 %v4854
  %7740 = vmatpush.bf16.msra.mxu0 %v4850
  %7741 = vmatpush.bf16.msra.mxu0 %v4846
  %7742 = vmatpush.bf16.msra.mxu0 %v4842
  %7743 = vmatpush.bf16.msra.mxu0 %v4838
  %7744 = vmatpush.bf16.msra.mxu0 %v4834
  %7745 = vmatpush.bf16.msra.mxu0 %v4830
  %7746 = vmatpush.bf16.msra.mxu0 %v4826
  %7747 = vmatmul.bf16.gmra.mxu0 %v1065
  %v7748 = vpop.f32.mrf.mxu0
  %v7749 = vadd.f32 %v7736, %v7748
  %v7750 = vpop.f32.mrf.mxu0
  %7751 = vdwg.mxu0
  %7752 = vmatpush.bf16.msra.mxu0 %v4886
  %7753 = vmatpush.bf16.msra.mxu0 %v4882
  %7754 = vmatpush.bf16.msra.mxu0 %v4878
  %7755 = vmatpush.bf16.msra.mxu0 %v4874
  %7756 = vmatpush.bf16.msra.mxu0 %v4870
  %7757 = vmatpush.bf16.msra.mxu0 %v4866
  %7758 = vmatpush.bf16.msra.mxu0 %v4862
  %7759 = vmatpush.bf16.msra.mxu0 %v4858
  %7760 = vmatmul.bf16.gmra.mxu0 %v1066
  %v7761 = vpop.f32.mrf.mxu0
  %v7762 = vadd.f32 %v7749, %v7761
  %v7763 = vpop.f32.mrf.mxu0
  %7764 = vdwg.mxu0
  %7765 = vmatpush.bf16.msra.mxu0 %v4918
  %7766 = vmatpush.bf16.msra.mxu0 %v4914
  %7767 = vmatpush.bf16.msra.mxu0 %v4910
  %7768 = vmatpush.bf16.msra.mxu0 %v4906
  %7769 = vmatpush.bf16.msra.mxu0 %v4902
  %7770 = vmatpush.bf16.msra.mxu0 %v4898
  %7771 = vmatpush.bf16.msra.mxu0 %v4894
  %7772 = vmatpush.bf16.msra.mxu0 %v4890
  %7773 = vmatmul.bf16.gmra.mxu0 %v1067
  %v7774 = vpop.f32.mrf.mxu0
  %v7775 = vadd.f32 %v7762, %v7774
  %v7776 = vpop.f32.mrf.mxu0
  %7777 = vdwg.mxu0
  %7778 = vmatpush.bf16.msra.mxu0 %v4950
  %7779 = vmatpush.bf16.msra.mxu0 %v4946
  %7780 = vmatpush.bf16.msra.mxu0 %v4942
  %7781 = vmatpush.bf16.msra.mxu0 %v4938
  %7782 = vmatpush.bf16.msra.mxu0 %v4934
  %7783 = vmatpush.bf16.msra.mxu0 %v4930
  %7784 = vmatpush.bf16.msra.mxu0 %v4926
  %7785 = vmatpush.bf16.msra.mxu0 %v4922
  %7786 = vmatmul.bf16.gmra.mxu0 %v1068
  %v7787 = vpop.f32.mrf.mxu0
  %v7788 = vadd.f32 %v7775, %v7787
  %v7789 = vpop.f32.mrf.mxu0
  %7790 = vdwg.mxu0
  %7791 = vmatpush.bf16.msra.mxu0 %v4982
  %7792 = vmatpush.bf16.msra.mxu0 %v4978
  %7793 = vmatpush.bf16.msra.mxu0 %v4974
  %7794 = vmatpush.bf16.msra.mxu0 %v4970
  %7795 = vmatpush.bf16.msra.mxu0 %v4966
  %7796 = vmatpush.bf16.msra.mxu0 %v4962
  %7797 = vmatpush.bf16.msra.mxu0 %v4958
  %7798 = vmatpush.bf16.msra.mxu0 %v4954
  %7799 = vmatmul.bf16.gmra.mxu0 %v1071
  %v7800 = vpop.f32.mrf.mxu0
  %v7801 = vadd.f32 %v7788, %v7800
  %v7802 = vpop.f32.mrf.mxu0
  %7803 = vdwg.mxu0
  %7804 = vmatpush.bf16.msra.mxu0 %v5014
  %7805 = vmatpush.bf16.msra.mxu0 %v5010
  %7806 = vmatpush.bf16.msra.mxu0 %v5006
  %7807 = vmatpush.bf16.msra.mxu0 %v5002
  %7808 = vmatpush.bf16.msra.mxu0 %v4998
  %7809 = vmatpush.bf16.msra.mxu0 %v4994
  %7810 = vmatpush.bf16.msra.mxu0 %v4990
  %7811 = vmatpush.bf16.msra.mxu0 %v4986
  %7812 = vmatmul.bf16.gmra.mxu0 %v1072
  %v7813 = vpop.f32.mrf.mxu0
  %v7814 = vadd.f32 %v7801, %v7813
  %v7815 = vpop.f32.mrf.mxu0
  %7816 = vdwg.mxu0
  %7817 = vmatpush.bf16.msra.mxu0 %v5046
  %7818 = vmatpush.bf16.msra.mxu0 %v5042
  %7819 = vmatpush.bf16.msra.mxu0 %v5038
  %7820 = vmatpush.bf16.msra.mxu0 %v5034
  %7821 = vmatpush.bf16.msra.mxu0 %v5030
  %7822 = vmatpush.bf16.msra.mxu0 %v5026
  %7823 = vmatpush.bf16.msra.mxu0 %v5022
  %7824 = vmatpush.bf16.msra.mxu0 %v5018
  %7825 = vmatmul.bf16.gmra.mxu0 %v1073
  %v7826 = vpop.f32.mrf.mxu0
  %v7827 = vadd.f32 %v7814, %v7826
  %v7828 = vpop.f32.mrf.mxu0
  %7829 = vdwg.mxu0
  %7830 = vmatpush.bf16.msra.mxu0 %v5078
  %7831 = vmatpush.bf16.msra.mxu0 %v5074
  %7832 = vmatpush.bf16.msra.mxu0 %v5070
  %7833 = vmatpush.bf16.msra.mxu0 %v5066
  %7834 = vmatpush.bf16.msra.mxu0 %v5062
  %7835 = vmatpush.bf16.msra.mxu0 %v5058
  %7836 = vmatpush.bf16.msra.mxu0 %v5054
  %7837 = vmatpush.bf16.msra.mxu0 %v5050
  %7838 = vmatmul.bf16.gmra.mxu0 %v1074
  %v7839 = vpop.f32.mrf.mxu0
  %v7840 = vadd.f32 %v7827, %v7839
  %v7841 = vpop.f32.mrf.mxu0
  %7842 = vdwg.mxu0
  %7843 = vmatpush.bf16.msra.mxu0 %v5110
  %7844 = vmatpush.bf16.msra.mxu0 %v5106
  %7845 = vmatpush.bf16.msra.mxu0 %v5102
  %7846 = vmatpush.bf16.msra.mxu0 %v5098
  %7847 = vmatpush.bf16.msra.mxu0 %v5094
  %7848 = vmatpush.bf16.msra.mxu0 %v5090
  %7849 = vmatpush.bf16.msra.mxu0 %v5086
  %7850 = vmatpush.bf16.msra.mxu0 %v5082
  %7851 = vmatmul.bf16.gmra.mxu0 %v1075
  %v7852 = vpop.f32.mrf.mxu0
  %v7853 = vadd.f32 %v7840, %v7852
  %v7854 = vpop.f32.mrf.mxu0
  %7855 = vdwg.mxu0
  %7856 = vmatpush.bf16.msra.mxu0 %v5142
  %7857 = vmatpush.bf16.msra.mxu0 %v5138
  %7858 = vmatpush.bf16.msra.mxu0 %v5134
  %7859 = vmatpush.bf16.msra.mxu0 %v5130
  %7860 = vmatpush.bf16.msra.mxu0 %v5126
  %7861 = vmatpush.bf16.msra.mxu0 %v5122
  %7862 = vmatpush.bf16.msra.mxu0 %v5118
  %7863 = vmatpush.bf16.msra.mxu0 %v5114
  %7864 = vmatmul.bf16.gmra.mxu0 %v1076
  %v7865 = vpop.f32.mrf.mxu0
  %v7866 = vadd.f32 %v7853, %v7865
  %v7867 = vpop.f32.mrf.mxu0
  %7868 = vdwg.mxu0
  %7869 = vmatpush.bf16.msra.mxu0 %v5174
  %7870 = vmatpush.bf16.msra.mxu0 %v5170
  %7871 = vmatpush.bf16.msra.mxu0 %v5166
  %7872 = vmatpush.bf16.msra.mxu0 %v5162
  %7873 = vmatpush.bf16.msra.mxu0 %v5158
  %7874 = vmatpush.bf16.msra.mxu0 %v5154
  %7875 = vmatpush.bf16.msra.mxu0 %v5150
  %7876 = vmatpush.bf16.msra.mxu0 %v5146
  %7877 = vmatmul.bf16.gmra.mxu0 %v1077
  %v7878 = vpop.f32.mrf.mxu0
  %v7879 = vadd.f32 %v7866, %v7878
  %v7880 = vpop.f32.mrf.mxu0
  %7881 = vdwg.mxu0
  %7882 = vmatpush.bf16.msra.mxu0 %v5206
  %7883 = vmatpush.bf16.msra.mxu0 %v5202
  %7884 = vmatpush.bf16.msra.mxu0 %v5198
  %7885 = vmatpush.bf16.msra.mxu0 %v5194
  %7886 = vmatpush.bf16.msra.mxu0 %v5190
  %7887 = vmatpush.bf16.msra.mxu0 %v5186
  %7888 = vmatpush.bf16.msra.mxu0 %v5182
  %7889 = vmatpush.bf16.msra.mxu0 %v5178
  %7890 = vmatmul.bf16.gmra.mxu0 %v1078
  %v7891 = vpop.f32.mrf.mxu0
  %v7892 = vadd.f32 %v7879, %v7891
  %v7893 = vpop.f32.mrf.mxu0
  %7894 = vdwg.mxu0
  %vm7895 = vcmask 1041408
  %v7896 = vsel %vm7895, %v6644, 0.0
  %v7897 = vrot.slane %v7896, 4
  %v7898 = vadd.f32 %v7896, %v7897
  %v7899 = vrot.slane %v7898, 2
  %v7900 = vadd.f32 %v7898, %v7899
  %v7901 = vrot.slane %v7900, 1
  %v7902 = vadd.f32 %v7900, %v7901
  %v7903 = vsel %vm7895, %v7060, 0.0
  %v7904 = vrot.slane %v7903, 4
  %v7905 = vadd.f32 %v7903, %v7904
  %v7906 = vrot.slane %v7905, 2
  %v7907 = vadd.f32 %v7905, %v7906
  %v7908 = vrot.slane %v7907, 1
  %v7909 = vadd.f32 %v7907, %v7908
  %v7910 = vsel %vm7895, %v7476, 0.0
  %v7911 = vrot.slane %v7910, 4
  %v7912 = vadd.f32 %v7910, %v7911
  %v7913 = vrot.slane %v7912, 2
  %v7914 = vadd.f32 %v7912, %v7913
  %v7915 = vrot.slane %v7914, 1
  %v7916 = vadd.f32 %v7914, %v7915
  %v7917 = vsel %vm7895, %v7892, 0.0
  %v7918 = vrot.slane %v7917, 4
  %v7919 = vadd.f32 %v7917, %v7918
  %v7920 = vrot.slane %v7919, 2
  %v7921 = vadd.f32 %v7919, %v7920
  %v7922 = vrot.slane %v7921, 1
  %v7923 = vadd.f32 %v7921, %v7922
  %v7924 = vrcp.pop 2.0
  %v7925 = vmul.f32 2.0, %v7924
  %v7926 = vsub.f32 1.0, %v7925
  %v7927 = vmul.f32 %v7924, %v7926
  %v7928 = vadd.f32 %v7924, %v7927
  %vm7929 = vweird.f32 %v7924
  %v7930 = vsel %vm7929, %v7924, %v7928
  %v7931 = vmul.f32 %v7902, %v7930
  %v7932 = vmul.f32 %v7909, %v7930
  %v7933 = vmul.f32 %v7916, %v7930
  %v7934 = vmul.f32 %v7923, %v7930
  %v7935 = vsub.f32 %v6644, %v7931
  %v7936 = vsub.f32 %v7060, %v7932
  %v7937 = vsub.f32 %v7476, %v7933
  %v7938 = vsub.f32 %v7892, %v7934
  %v7939 = vmul.f32 %v7935, %v7935
  %v7940 = vmul.f32 %v7936, %v7936
  %v7941 = vmul.f32 %v7937, %v7937
  %v7942 = vmul.f32 %v7938, %v7938
  %v7943 = vsel %vm7895, %v7939, 0.0
  %v7944 = vrot.slane %v7943, 4
  %v7945 = vadd.f32 %v7943, %v7944
  %v7946 = vrot.slane %v7945, 2
  %v7947 = vadd.f32 %v7945, %v7946
  %v7948 = vrot.slane %v7947, 1
  %v7949 = vadd.f32 %v7947, %v7948
  %v7950 = vsel %vm7895, %v7940, 0.0
  %v7951 = vrot.slane %v7950, 4
  %v7952 = vadd.f32 %v7950, %v7951
  %v7953 = vrot.slane %v7952, 2
  %v7954 = vadd.f32 %v7952, %v7953
  %v7955 = vrot.slane %v7954, 1
  %v7956 = vadd.f32 %v7954, %v7955
  %v7957 = vsel %vm7895, %v7941, 0.0
  %v7958 = vrot.slane %v7957, 4
  %v7959 = vadd.f32 %v7957, %v7958
  %v7960 = vrot.slane %v7959, 2
  %v7961 = vadd.f32 %v7959, %v7960
  %v7962 = vrot.slane %v7961, 1
  %v7963 = vadd.f32 %v7961, %v7962
  %v7964 = vsel %vm7895, %v7942, 0.0
  %v7965 = vrot.slane %v7964, 4
  %v7966 = vadd.f32 %v7964, %v7965
  %v7967 = vrot.slane %v7966, 2
  %v7968 = vadd.f32 %v7966, %v7967
  %v7969 = vrot.slane %v7968, 1
  %v7970 = vadd.f32 %v7968, %v7969
  %v7971 = vmul.f32 %v7949, %v7930
  %v7972 = vmul.f32 %v7956, %v7930
  %v7973 = vmul.f32 %v7963, %v7930
  %v7974 = vmul.f32 %v7970, %v7930
  %v7975 = vadd.f32 %v7971, 1e-05
  %v7976 = vadd.f32 %v7972, 1e-05
  %v7977 = vadd.f32 %v7973, 1e-05
  %v7978 = vadd.f32 %v7974, 1e-05
  %v7979 = vrsqrt.pop %v7975
  %v7980 = vmul.f32 %v7979, %v7975
  %v7981 = vmul.f32 %v7980, %v7979
  %v7982 = vmul.f32 0.5, %v7981
  %v7983 = vsub.f32 1.5, %v7982
  %v7984 = vmul.f32 %v7979, %v7983
  %vm7985 = vweird.f32 %v7975
  %vm7986 = vweird.f32 %v7979
  %vm7987 = vmor %vm7985, %vm7986
  %v7988 = vsel %vm7987, %v7979, %v7984
  %v7989 = vrsqrt.pop %v7976
  %v7990 = vmul.f32 %v7989, %v7976
  %v7991 = vmul.f32 %v7990, %v7989
  %v7992 = vmul.f32 0.5, %v7991
  %v7993 = vsub.f32 1.5, %v7992
  %v7994 = vmul.f32 %v7989, %v7993
  %vm7995 = vweird.f32 %v7976
  %vm7996 = vweird.f32 %v7989
  %vm7997 = vmor %vm7995, %vm7996
  %v7998 = vsel %vm7997, %v7989, %v7994
  %v7999 = vrsqrt.pop %v7977
  %v8000 = vmul.f32 %v7999, %v7977
  %v8001 = vmul.f32 %v8000, %v7999
  %v8002 = vmul.f32 0.5, %v8001
  %v8003 = vsub.f32 1.5, %v8002
  %v8004 = vmul.f32 %v7999, %v8003
  %vm8005 = vweird.f32 %v7977
  %vm8006 = vweird.f32 %v7999
  %vm8007 = vmor %vm8005, %vm8006
  %v8008 = vsel %vm8007, %v7999, %v8004
  %v8009 = vrsqrt.pop %v7978
  %v8010 = vmul.f32 %v8009, %v7978
  %v8011 = vmul.f32 %v8010, %v8009
  %v8012 = vmul.f32 0.5, %v8011
  %v8013 = vsub.f32 1.5, %v8012
  %v8014 = vmul.f32 %v8009, %v8013
  %vm8015 = vweird.f32 %v7978
  %vm8016 = vweird.f32 %v8009
  %vm8017 = vmor %vm8015, %vm8016
  %v8018 = vsel %vm8017, %v8009, %v8014
  %v8019 = vmul.f32 %v7935, %v7988
  %v8020 = vmul.f32 %v7936, %v7998
  %v8021 = vmul.f32 %v7937, %v8008
  %v8022 = vmul.f32 %v7938, %v8018
  %vm8023 = vcmp.ge.f32.partialorder %v8019, 0.0
  %vm8024 = vcmp.ge.f32.partialorder %v8020, 0.0
  %vm8025 = vcmp.ge.f32.partialorder %v8021, 0.0
  %vm8026 = vcmp.ge.f32.partialorder %v8022, 0.0
  %v8027 = vmul.f32 %v8019, 0.2
  %v8028 = vmul.f32 %v8020, 0.2
  %v8029 = vmul.f32 %v8021, 0.2
  %v8030 = vmul.f32 %v8022, 0.2
  %v8031 = vsel %vm8023, %v8019, %v8027
  %v8032 = vsel %vm8024, %v8020, %v8028
  %v8033 = vsel %vm8025, %v8021, %v8029
  %v8034 = vsel %vm8026, %v8022, %v8030
  %v8035 = vpack.c.bf16 %v8032, %v8031
  %v8036 = vpack.c.bf16 %v8034, %v8033
  %v8039 = vrot.slane %v8035, 3
  %v8040 = vrot.slane %v8036, 6
  %v8041 = vrot.slane %v8036, 1
  %vm8042 = vcmask 1040384
  %v8045 = vsel %vm8042, %v8035, %v8039
  %vm8046 = vcmask 1042434
  %v8049 = vsel %vm8046, %v8040, %v8041
  %v8050 = vsel %vm7895, %v8045, %v8049
  %8052 = vst [vmem:[%s2] sm:$0xf] %v8050
  // Predicated region
  $region10: #{patchgan_forward.7} parent=0 // pred_check
    _
  $region11: #{patchgan_forward.7} parent=0 // pred_check_branch
    %8054 = sbr.rel (0) target = $region13
  $region12: #{patchgan_forward.7} parent=0 // pred_region
    _
  $region13: #{patchgan_forward.7} parent=0 // pred_fallthru
    _
  // Predicated region
  $region14: #{patchgan_forward.7} parent=0 // pred_check
    _
  $region15: #{patchgan_forward.7} parent=0 // pred_check_branch
    %8056 = sbr.rel (0) target = $region17
  $region16: #{patchgan_forward.7} parent=0 // pred_region
    _
  $region17: #{patchgan_forward.7} parent=0 // pred_fallthru
    _

</llo_original>
